<compile_context>
chip_gen: v6e
topology: v6e:2x2x1
jax: 0.10.0
libtpu: 0.0.40
codegen_flags: <defaults>
</compile_context>

<pallas_src>
import functools
import math

import jax
import jax.numpy as jnp
from jax.experimental import pallas as pl
from jax.experimental.pallas import tpu as pltpu

_INV_SQRT2 = 1.0 / math.sqrt(2.0)
_VMEM_LIMIT = 32 * 1024 * 1024


def _device_kind():
    try:
        return jax.devices()[0].device_kind.lower()
    except Exception:
        return ""


def _is_v7(kind):
    return ("v7" in kind) or ("7x" in kind)


def _is_v5e(kind):
    return ("v5e" in kind) or ("v5 lite" in kind) or ("v5litepod" in kind)


def prepare_weight(weight):
    """One-time parameter-load conversion: stream the weight from HBM in bf16."""
    return weight.astype(jnp.bfloat16)


def _gelu_linear_kernel(x_ref, w_ref, b_ref, o_ref, acc_ref, *, mxu_dtype):
    k = pl.program_id(1)

    @pl.when(k == 0)
    def _():
        acc_ref[...] = jnp.zeros_like(acc_ref)

    # exact (erf-based) GELU, matching torch._C._nn.gelu default
    x = x_ref[...]
    g = 0.5 * x * (1.0 + jax.lax.erf(x * _INV_SQRT2))
    g = g.astype(mxu_dtype)
    w = w_ref[...].astype(mxu_dtype)      # [tn, tk], PyTorch layout, untransposed

    # (M, tk) x (tn, tk) contracting on K of both operands -> (M, tn), f32 acc
    acc_ref[...] += jax.lax.dot_general(
        g, w,
        dimension_numbers=(((1,), (1,)), ((), ())),
        preferred_element_type=jnp.float32)

    @pl.when(k == pl.num_programs(1) - 1)
    def _():
        o_ref[...] = (acc_ref[...] + b_ref[...].astype(jnp.float32)).astype(o_ref.dtype)


def gelu_linear(x, weight, bias, *, tk=None, tn=None, bf16_matmul=None):
    """x: [B, S, K], weight: [N, K] (PyTorch layout, f32 or bf16), bias: [N]."""
    B, S, K = x.shape
    N = weight.shape[0]
    M = B * S

    kind = _device_kind()

    if bf16_matmul is None:
        # bf16 weight stream implies bf16 MXU; otherwise enable where the
        # emulated f32 matmul would be the bottleneck (v5e, v7x).
        bf16_matmul = (weight.dtype == jnp.bfloat16) or _is_v5e(kind) or _is_v7(kind)
    mxu_dtype = jnp.bfloat16 if bf16_matmul else jnp.float32

    if tk is None or K % tk != 0:
        tk = next((c for c in (512, 384, 256, 128) if K % c == 0), K)
    if tn is None:
        cores = 2 if _is_v7(kind) else 1
        if cores > 1 and N % cores == 0 and (N // cores) % 128 == 0:
            tn = N // cores
        else:
            tn = N
    assert K % tk == 0 and N % tn == 0, (K, tk, N, tn)

    out_dtype = x.dtype
    x2d = x.reshape(M, K)
    b2d = bias.reshape(1, N)

    x_isz = jnp.dtype(x.dtype).itemsize
    w_isz = jnp.dtype(weight.dtype).itemsize
    o_isz = jnp.dtype(out_dtype).itemsize
    n_j = N // tn

    # VMEM footprint guard (double-buffered inputs/outputs + f32 accumulator).
    vmem_est = (2 * M * tk * x_isz + 2 * tn * tk * w_isz
                + 2 * M * tn * o_isz + M * tn * 4 + 2 * tn * 4)
    assert vmem_est <= _VMEM_LIMIT, f"tile footprint {vmem_est} exceeds VMEM budget"

    cost = pl.CostEstimate(
        flops=2 * M * K * N,
        transcendentals=M * K * n_j,
        bytes_accessed=(M * K * x_isz * n_j + N * K * w_isz
                        + M * N * o_isz + N * 4),
    )

    kernel = functools.partial(_gelu_linear_kernel, mxu_dtype=mxu_dtype)

    out2d = pl.pallas_call(
        kernel,
        out_shape=jax.ShapeDtypeStruct((M, N), out_dtype),
        grid_spec=pltpu.PrefetchScalarGridSpec(
            num_scalar_prefetch=0,
            grid=(n_j, K // tk),
            in_specs=[
                pl.BlockSpec((M, tk), lambda j, k: (0, k)),    # x tile
                pl.BlockSpec((tn, tk), lambda j, k: (j, k)),   # weight tile [tn, tk]
                pl.BlockSpec((1, tn), lambda j, k: (0, j)),    # bias (k-invariant)
            ],
            out_specs=pl.BlockSpec((M, tn), lambda j, k: (0, j)),
            scratch_shapes=[pltpu.VMEM((M, tn), jnp.float32)],  # f32 accumulator
        ),
        compiler_params=pltpu.CompilerParams(
            dimension_semantics=("parallel", "arbitrary"),
            vmem_limit_bytes=_VMEM_LIMIT,
        ),
        cost_estimate=cost,
    )(x2d, weight, b2d)

    return out2d.reshape(B, S, N)


def _reference(x, weight, bias):
    g = 0.5 * x * (1.0 + jax.lax.erf(x * _INV_SQRT2))
    return jnp.einsum("bsk,nk->bsn", g, weight) + bias


if __name__ == "__main__":
    key = jax.random.PRNGKey(0)
    k_x, k_w, k_b = jax.random.split(key, 3)

    # matches the torch module spec: x191 = [1, 384, 3072], Linear(3072 -> 768)
    B, S, K, N = 1, 384, 3072, 768
    x = jax.random.normal(k_x, (B, S, K), dtype=jnp.float32)
    bound = 1.0 / math.sqrt(K)
    weight = jax.random.uniform(k_w, (N, K), minval=-bound, maxval=bound,
                                dtype=jnp.float32)
    bias = jax.random.uniform(k_b, (N,), minval=-bound, maxval=bound,
                              dtype=jnp.float32)

    ref = _reference(x, weight, bias)

    # 1) Full-precision path (strict tolerance).
    out = jax.block_until_ready(gelu_linear(x, weight, bias, bf16_matmul=False))
    assert out.shape == (B, S, N)
    assert jnp.allclose(out, ref, atol=2e-3, rtol=2e-3)

    # 2) bf16 weight stream + bf16 MXU (f32 accumulation) path, looser tolerance.
    w_bf16 = prepare_weight(weight)
    out_bf = jax.block_until_ready(gelu_linear(x, w_bf16, bias, bf16_matmul=True))
    assert out_bf.shape == (B, S, N)
    assert jnp.allclose(out_bf, ref, atol=5e-2, rtol=5e-2)

    print("KERNEL_OK")
</pallas_src>

<mosaic_0001>
module attributes {stable_mosaic.version = 11 : i64} {
  func.func @_gelu_linear_kernel(%arg0: i32, %arg1: i32, %arg2: memref<384x512xf32, #tpu.memory_space<vmem>>, %arg3: memref<768x512xf32, #tpu.memory_space<vmem>>, %arg4: memref<1x768xf32, #tpu.memory_space<vmem>>, %arg5: memref<384x768xf32, #tpu.memory_space<vmem>>, %arg6: memref<384x768xf32, #tpu.memory_space<vmem>>) attributes {dimension_semantics = [#tpu.dimension_semantics<parallel>, #tpu.dimension_semantics<arbitrary>], iteration_bounds = array<i64: 1, 6>, scalar_prefetch = 0 : i64, scratch_operands = 1 : i64, tpu.core_type = #tpu.core_type<tc>, window_params = [{transform_indices = @transform_0, window_bounds = array<i64: 384, 512>}, {transform_indices = @transform_1, window_bounds = array<i64: 768, 512>}, {transform_indices = @transform_2, window_bounds = array<i64: 1, 768>}, {transform_indices = @transform_3, window_bounds = array<i64: 384, 768>}]} {
    %c0_i32 = arith.constant 0 : i32
    %0 = arith.cmpi eq, %arg1, %c0_i32 : i32
    %1 = arith.extui %0 : i1 to i32
    %c0_i32_0 = arith.constant 0 : i32
    %2 = arith.cmpi ne, %1, %c0_i32_0 : i32
    scf.if %2 {
      %cst_12 = arith.constant 0.000000e+00 : f32
      %20 = vector.broadcast %cst_12 : f32 to vector<384x768xf32>
      %c0_13 = arith.constant 0 : index
      %c0_14 = arith.constant 0 : index
      %21 = vector.load %arg6[%c0_13, %c0_14] : memref<384x768xf32, #tpu.memory_space<vmem>>, vector<384x768xf32>
      tpu.vector_store %arg6[%c0_13, %c0_14], %20 {strides = array<i32>} : memref<384x768xf32, #tpu.memory_space<vmem>>, vector<384x768xf32>,
    } else {
    }
    %c0 = arith.constant 0 : index
    %c0_1 = arith.constant 0 : index
    %3 = vector.load %arg2[%c0, %c0_1] : memref<384x512xf32, #tpu.memory_space<vmem>>, vector<384x512xf32>
    %cst = arith.constant 5.000000e-01 : f32
    %4 = vector.broadcast %cst : f32 to vector<384x512xf32>
    %5 = arith.mulf %4, %3 : vector<384x512xf32>
    %cst_2 = arith.constant 0.707106769 : f32
    %6 = vector.broadcast %cst_2 : f32 to vector<384x512xf32>
    %7 = arith.mulf %3, %6 : vector<384x512xf32>
    %8 = math.erf %7 : vector<384x512xf32>
    %cst_3 = arith.constant 1.000000e+00 : f32
    %9 = vector.broadcast %cst_3 : f32 to vector<384x512xf32>
    %10 = arith.addf %9, %8 : vector<384x512xf32>
    %11 = arith.mulf %5, %10 : vector<384x512xf32>
    %c0_4 = arith.constant 0 : index
    %c0_5 = arith.constant 0 : index
    %12 = vector.load %arg3[%c0_4, %c0_5] : memref<768x512xf32, #tpu.memory_space<vmem>>, vector<768x512xf32>
    %c0_6 = arith.constant 0 : index
    %c0_7 = arith.constant 0 : index
    %13 = vector.load %arg6[%c0_6, %c0_7] : memref<384x768xf32, #tpu.memory_space<vmem>>, vector<384x768xf32>
    %cst_8 = arith.constant dense<0.000000e+00> : vector<384x768xf32>
    %14 = tpu.matmul %11, %12, %cst_8 {dimension_numbers = #tpu.dot_dimension_numbers<[1], [1], [0], [0], [0, 0, 1, 0], [], []>} : vector<384x512xf32>, vector<768x512xf32>, vector<384x768xf32> -> vector<384x768xf32>
    %15 = arith.addf %13, %14 : vector<384x768xf32>
    %c0_9 = arith.constant 0 : index
    %c0_10 = arith.constant 0 : index
    %16 = vector.load %arg6[%c0_9, %c0_10] : memref<384x768xf32, #tpu.memory_space<vmem>>, vector<384x768xf32>
    tpu.vector_store %arg6[%c0_9, %c0_10], %15 {strides = array<i32>} : memref<384x768xf32, #tpu.memory_space<vmem>>, vector<384x768xf32>,
    %c5_i32 = arith.constant 5 : i32
    %17 = arith.cmpi eq, %arg1, %c5_i32 : i32
    %18 = arith.extui %17 : i1 to i32
    %c0_i32_11 = arith.constant 0 : i32
    %19 = arith.cmpi ne, %18, %c0_i32_11 : i32
    scf.if %19 {
      %c0_12 = arith.constant 0 : index
      %c0_13 = arith.constant 0 : index
      %20 = vector.load %arg6[%c0_12, %c0_13] : memref<384x768xf32, #tpu.memory_space<vmem>>, vector<384x768xf32>
      %c0_14 = arith.constant 0 : index
      %c0_15 = arith.constant 0 : index
      %21 = vector.load %arg4[%c0_14, %c0_15] : memref<1x768xf32, #tpu.memory_space<vmem>>, vector<1x768xf32>
      %22 = vector.broadcast %21 : vector<1x768xf32> to vector<384x768xf32>
      %23 = arith.addf %20, %22 : vector<384x768xf32>
      %c0_16 = arith.constant 0 : index
      %c0_17 = arith.constant 0 : index
      %24 = vector.load %arg5[%c0_16, %c0_17] : memref<384x768xf32, #tpu.memory_space<vmem>>, vector<384x768xf32>
      tpu.vector_store %arg5[%c0_16, %c0_17], %23 {strides = array<i32>} : memref<384x768xf32, #tpu.memory_space<vmem>>, vector<384x768xf32>,
    } else {
    }
    return
  }
  func.func @transform_0(%arg0: i32, %arg1: i32) -> (i32, i32) {
    %c0_i32 = arith.constant 0 : i32
    %c0_i32_0 = arith.constant 0 : i32
    return %c0_i32, %arg1 : i32, i32
  }
  func.func @transform_1(%arg0: i32, %arg1: i32) -> (i32, i32) {
    %c0_i32 = arith.constant 0 : i32
    return %arg0, %arg1 : i32, i32
  }
  func.func @transform_2(%arg0: i32, %arg1: i32) -> (i32, i32) {
    %c0_i32 = arith.constant 0 : i32
    %c0_i32_0 = arith.constant 0 : i32
    return %c0_i32, %arg0 : i32, i32
  }
  func.func @transform_3(%arg0: i32, %arg1: i32) -> (i32, i32) {
    %c0_i32 = arith.constant 0 : i32
    %c0_i32_0 = arith.constant 0 : i32
    return %c0_i32, %arg0 : i32, i32
  }
}

</mosaic_0001>

<llo_original>
// kernel: tpu_custom_call.1
$region0: #{tpu_custom_call.1}
  #allocation0 [shape = 'u32[]', space=smem, size = 0x4, offset = 0x4, fixed_abs, tag = 'smem constant byte address 0x4 - core index']
  #allocation1 [shape = 'u32[144,128]{1,0:T(1,128)}', space=vmem, size = 0x12000, scoped, tag = 'internal scratch']
  #allocation2 [shape = 'f32[384,768]{1,0:T(8,128)}', space=vmem, size = 0x120000, scoped, tag = 'scratch operand']
  %s0 = inlined_call_operand.hbm [shape: f32[384,3072], index: 0, kind: input, shape index: {}]
  %s1 = inlined_call_operand.hbm [shape: f32[768,3072], index: 1, kind: input, shape index: {}]
  %s2 = inlined_call_operand.hbm [shape: f32[1,768], index: 2, kind: input, shape index: {}]
  %s3 = inlined_call_operand.hbm [shape: f32[384,768], index: 3, kind: output, shape index: {}]
  %s4 = sld [smem:[#allocation0]]
  $region65: #{tpu_custom_call.1} parent=0
    _
  %s6 = ssub.s32 1, %s4
  %s7 = scalar_select 0, %s6, %s4
  $region1: #{tpu_custom_call.1} parent=0
    #allocation3 [shape = 'u8[1572864]{0}', space=vmem, size = 0x180000, scoped, tag = 'input window, operand 0']
    #allocation4 [shape = 's32[2]{0}', space=sflag, size = 0x8, scoped, tag = 'scoped memory for tpu_custom_call.1']
    #allocation5 [shape = 's32[2]{0}', space=sflag, size = 0x8, scoped, tag = 'scoped memory for tpu_custom_call.1']
    #allocation6 [shape = 'u8[3145728]{0}', space=vmem, size = 0x300000, scoped, tag = 'input window, operand 1']
    #allocation7 [shape = 's32[2]{0}', space=sflag, size = 0x8, scoped, tag = 'scoped memory for tpu_custom_call.1']
    #allocation8 [shape = 'u8[3072]{0}', space=vmem, size = 0xc00, scoped, tag = 'input window, operand 2, single buffered']
    #allocation9 [shape = 'u8[1179648]{0}', space=vmem, size = 0x120000, scoped, tag = 'output window, operand 0, single buffered']
    %8 = vsyncpa [#allocation4], 0
    %s9 = scalar_lea.sflag [#allocation4], 1
    %10 = vsyncpa %s9, 0
    %11 = vsyncpa [#allocation7], 0
    %s12 = scalar_lea.sflag [#allocation7], 1
    %13 = vsyncpa %s12, 0
    %14 = vsyncpa [#allocation5], 0
    loop: start=0, step=1, limit=8
    $region2: #{tpu_custom_call.1} parent=1 // loop_pre_header
      _
    $region3: #{tpu_custom_call.1} parent=1 // loop_header
      %s16 = sphi 0, %s20
      %p17 = scmp.ge.s32.totalorder %s16, 8
      %s23 = sphi 0, %s35
      %s24 = sphi 0, %s31
      %s25 = sphi 0, %s23
      %s26 = sphi 0, %s24
      %s27 = sphi 0, %s25
      %s28 = sphi 0, %s26
      %s38 = sphi 0, %s40
      %s41 = sphi 0, %s38
      %s42 = sphi 0, %s41
      %s58 = sphi 0, %s42
      %s66 = sphi 0, %s68
      %s69 = sphi 0, %s66
      %s70 = sphi 0, %s69
      %s86 = sphi 0, %s70
      %s92 = sphi 0, %s94
      %s95 = sphi 0, %s92
      %s96 = sphi 0, %s95
      %s112 = sphi 0, %s96
      %s118 = sphi 0, %s120
      %s121 = sphi 0, %s118
      %s122 = sphi 0, %s121
      %s138 = sphi 0, %s122
    $region4: #{tpu_custom_call.1} parent=1 // loop_header_branch
      %19 = sbr.rel (%p17) target = $region8
    $region5: #{tpu_custom_call.1} parent=1 // loop_body
      %s21 = ssub.s32 %s16, 1
      %s22 = ssub.s32 %s16, 2
      %s29 = sadd.s32 1, %s24
      %p30 = scmp.ge.s32.totalorder %s29, 6
      %s31 = scalar_select %p30, 0, %s29
      %s32 = sadd.s32 1, %s23
      %s33 = scalar_select %p30, %s32, %s23
      %p34 = scmp.ge.s32.totalorder %s33, 1
      %s35 = scalar_select %p34, 0, %s33
      %s36 = ssub.s32 %s24, %s31
      %p37 = scmp.eq.s32.totalorder %s36, 0
      %s39 = sadd.s32 %s38, 1
      %s40 = scalar_select %p37, %s38, %s39
      %p43 = pneg %p37
      %p44 = scmp.eq.s32.totalorder %s16, 5
      %p45 = por %p43, %p44
      %p46 = scmp.ne.s32.totalorder %s38, %s41
      %p47 = scmp.eq.s32.totalorder %s16, 0
      %p48 = por %p46, %p47
      %p49 = scmp.ne.s32.totalorder %s38, %s41
      %p50 = scmp.eq.s32.totalorder %s21, 5
      %p51 = por %p49, %p50
      %p52 = scmp.ne.s32.totalorder %s41, %s42
      %p53 = scmp.eq.s32.totalorder %s21, 0
      %p54 = por %p52, %p53
      %p55 = scmp.ne.s32.totalorder %s41, %s42
      %p56 = scmp.eq.s32.totalorder %s22, 5
      %p57 = por %p55, %p56
      %p59 = scmp.ne.s32.totalorder %s42, %s58
      %p60 = scmp.eq.s32.totalorder %s22, 0
      %p61 = por %p59, %p60
      %s62 = ssub.s32 %s23, %s35
      %s63 = ssub.s32 %s24, %s31
      %s64 = sor.u32 %s62, %s63
      %p65 = scmp.eq.s32.totalorder %s64, 0
      %s67 = sadd.s32 %s66, 1
      %s68 = scalar_select %p65, %s66, %s67
      %p71 = pneg %p65
      %p72 = scmp.eq.s32.totalorder %s16, 5
      %p73 = por %p71, %p72
      %p74 = scmp.ne.s32.totalorder %s66, %s69
      %p75 = scmp.eq.s32.totalorder %s16, 0
      %p76 = por %p74, %p75
      %p77 = scmp.ne.s32.totalorder %s66, %s69
      %p78 = scmp.eq.s32.totalorder %s21, 5
      %p79 = por %p77, %p78
      %p80 = scmp.ne.s32.totalorder %s69, %s70
      %p81 = scmp.eq.s32.totalorder %s21, 0
      %p82 = por %p80, %p81
      %p83 = scmp.ne.s32.totalorder %s69, %s70
      %p84 = scmp.eq.s32.totalorder %s22, 5
      %p85 = por %p83, %p84
      %p87 = scmp.ne.s32.totalorder %s70, %s86
      %p88 = scmp.eq.s32.totalorder %s22, 0
      %p89 = por %p87, %p88
      %s90 = ssub.s32 %s23, %s35
      %p91 = scmp.eq.s32.totalorder %s90, 0
      %s93 = sadd.s32 %s92, 1
      %s94 = scalar_select %p91, %s92, %s93
      %p97 = pneg %p91
      %p98 = scmp.eq.s32.totalorder %s16, 5
      %p99 = por %p97, %p98
      %p100 = scmp.ne.s32.totalorder %s92, %s95
      %p101 = scmp.eq.s32.totalorder %s16, 0
      %p102 = por %p100, %p101
      %p103 = scmp.ne.s32.totalorder %s92, %s95
      %p104 = scmp.eq.s32.totalorder %s21, 5
      %p105 = por %p103, %p104
      %p106 = scmp.ne.s32.totalorder %s95, %s96
      %p107 = scmp.eq.s32.totalorder %s21, 0
      %p108 = por %p106, %p107
      %p109 = scmp.ne.s32.totalorder %s95, %s96
      %p110 = scmp.eq.s32.totalorder %s22, 5
      %p111 = por %p109, %p110
      %p113 = scmp.ne.s32.totalorder %s96, %s112
      %p114 = scmp.eq.s32.totalorder %s22, 0
      %p115 = por %p113, %p114
      %s116 = ssub.s32 %s23, %s35
      %p117 = scmp.eq.s32.totalorder %s116, 0
      %s119 = sadd.s32 %s118, 1
      %s120 = scalar_select %p117, %s118, %s119
      %p123 = pneg %p117
      %p124 = scmp.eq.s32.totalorder %s16, 5
      %p125 = por %p123, %p124
      %p126 = scmp.ne.s32.totalorder %s118, %s121
      %p127 = scmp.eq.s32.totalorder %s16, 0
      %p128 = por %p126, %p127
      %p129 = scmp.ne.s32.totalorder %s118, %s121
      %p130 = scmp.eq.s32.totalorder %s21, 5
      %p131 = por %p129, %p130
      %p132 = scmp.ne.s32.totalorder %s121, %s122
      %p133 = scmp.eq.s32.totalorder %s21, 0
      %p134 = por %p132, %p133
      %p135 = scmp.ne.s32.totalorder %s121, %s122
      %p136 = scmp.eq.s32.totalorder %s22, 5
      %p137 = por %p135, %p136
      %p139 = scmp.ne.s32.totalorder %s122, %s138
      %p140 = scmp.eq.s32.totalorder %s22, 0
      %p141 = por %p139, %p140
      %p142 = scmp.le.s32.totalorder 1, %s16
      %p143 = scmp.lt.s32.totalorder %s16, 7
      %p144 = pnand %p142, %p143
      %p145 = pneg %p144
      // Predicated region
      $region9: #{tpu_custom_call.1} parent=5 // pred_check
        _
      $region10: #{tpu_custom_call.1} parent=5 // pred_check_branch
        %147 = sbr.rel (%p144) target = $region12
      $region11: #{tpu_custom_call.1} parent=5 // pred_region
        %s148 = ssub.s32 %s16, 1
        // Predicated region
        $region13: #{tpu_custom_call.1} parent=11 // pred_check
          %p149 = pneg %p108
        $region14: #{tpu_custom_call.1} parent=11 // pred_check_branch
          %151 = sbr.rel (%p149) target = $region16
        $region15: #{tpu_custom_call.1} parent=11 // pred_region
          %s152 = smul.u32 6, %s25
          %s154 = ssub.s32 96, 96
          %155 = vsyncadd [#allocation7], %s154
          %s156 = smul.addr %s152, 16
          %s157 = scalar_lea.hbm %s2, %s156
          %s159 = sshll.u32 [#allocation8], 4
          %s160 = int_to_ptr.vmem [resolvable:$true] %s159
          %162 = dma.hbm_to_vmem [thread:$0]  %s157, 96, %s160, [#allocation7]
        $region16: #{tpu_custom_call.1} parent=11 // pred_fallthru
          _
      $region12: #{tpu_custom_call.1} parent=5 // pred_fallthru
        _
      %p163 = scmp.lt.s32.totalorder %s16, 6
      // Predicated region
      $region17: #{tpu_custom_call.1} parent=5 // pred_check
        %p164 = pneg %p163
      $region18: #{tpu_custom_call.1} parent=5 // pred_check_branch
        %166 = sbr.rel (%p164) target = $region20
      $region19: #{tpu_custom_call.1} parent=5 // pred_region
        // Predicated region
        $region21: #{tpu_custom_call.1} parent=19 // pred_check
          %p167 = pneg %p48
        $region22: #{tpu_custom_call.1} parent=19 // pred_check_branch
          %169 = sbr.rel (%p167) target = $region24
        $region23: #{tpu_custom_call.1} parent=19 // pred_region
          %s170 = sand.u32 %s38, 1
          %s171 = scalar_lea.sflag [#allocation4], %s170
          %s172 = sand.u32 %s38, 1
          %s173 = smul.addr %s172, 1536
          %s174 = scalar_lea.vmem [#allocation3], %s173
          %s175 = smul.u32 4, %s24
          %s177 = ssub.s32 24576, 24576
          %178 = vsyncadd %s171, %s177
          %s179 = smul.addr %s175, 128
          %s180 = scalar_lea.hbm %s0, %s179
          %s181 = sshll.u32 %s174, 4
          %s182 = int_to_ptr.vmem [resolvable:$true] %s181
          %187 = dma.hbm_to_vmem [thread:$0]  %s180, 24576, %s182, %s171, 3072, 512, 32
        $region24: #{tpu_custom_call.1} parent=19 // pred_fallthru
          _
        // Predicated region
        $region25: #{tpu_custom_call.1} parent=19 // pred_check
          %p188 = pneg %p76
        $region26: #{tpu_custom_call.1} parent=19 // pred_check_branch
          %190 = sbr.rel (%p188) target = $region28
        $region27: #{tpu_custom_call.1} parent=19 // pred_region
          %s191 = sand.u32 %s16, 1
          %s192 = scalar_lea.sflag [#allocation7], %s191
          %s193 = sand.u32 %s66, 1
          %s194 = smul.addr %s193, 3072
          %s195 = scalar_lea.vmem [#allocation6], %s194
          %s196 = smul.u32 96, %s23
          %s197 = smul.u32 4, %s24
          %s199 = ssub.s32 49152, 49152
          %200 = vsyncadd %s192, %s199
          %s201 = smul.addr %s196, 24
          %s202 = sadd.s32 %s197, %s201
          %s203 = smul.addr %s202, 128
          %s204 = scalar_lea.hbm %s1, %s203
          %s205 = sshll.u32 %s195, 4
          %s206 = int_to_ptr.vmem [resolvable:$true] %s205
          %211 = dma.hbm_to_vmem [thread:$0]  %s204, 49152, %s206, %s192, 3072, 512, 32
        $region28: #{tpu_custom_call.1} parent=19 // pred_fallthru
          _
      $region20: #{tpu_custom_call.1} parent=5 // pred_fallthru
        _
      %p212 = scmp.le.s32.totalorder 1, %s16
      %p213 = scmp.lt.s32.totalorder %s16, 7
      %p214 = pnand %p212, %p213
      %p215 = pneg %p214
      // Predicated region
      $region29: #{tpu_custom_call.1} parent=5 // pred_check
        _
      $region30: #{tpu_custom_call.1} parent=5 // pred_check_branch
        %217 = sbr.rel (%p214) target = $region32
      $region31: #{tpu_custom_call.1} parent=5 // pred_region
        %s218 = ssub.s32 %s16, 1
        %s219 = sand.u32 %s41, 1
        %s220 = scalar_lea.sflag [#allocation4], %s219
        %s221 = sand.u32 %s41, 1
        %s222 = smul.addr %s221, 1536
        %s223 = scalar_lea.vmem [#allocation3], %s222
        // Predicated region
        $region33: #{tpu_custom_call.1} parent=31 // pred_check
          %p224 = pneg %p54
        $region34: #{tpu_custom_call.1} parent=31 // pred_check_branch
          %226 = sbr.rel (%p224) target = $region36
        $region35: #{tpu_custom_call.1} parent=31 // pred_region
          %227 = dma.done %s220, 24576
        $region36: #{tpu_custom_call.1} parent=31 // pred_fallthru
          _
        %s228 = sand.u32 %s21, 1
        %s229 = scalar_lea.sflag [#allocation7], %s228
        %s230 = sand.u32 %s69, 1
        %s231 = smul.addr %s230, 3072
        %s232 = scalar_lea.vmem [#allocation6], %s231
        // Predicated region
        $region37: #{tpu_custom_call.1} parent=31 // pred_check
          %p233 = pneg %p82
        $region38: #{tpu_custom_call.1} parent=31 // pred_check_branch
          %235 = sbr.rel (%p233) target = $region40
        $region39: #{tpu_custom_call.1} parent=31 // pred_region
          %236 = dma.done %s229, 49152
        $region40: #{tpu_custom_call.1} parent=31 // pred_fallthru
          _
        // Predicated region
        $region41: #{tpu_custom_call.1} parent=31 // pred_check
          %p237 = pneg %p108
        $region42: #{tpu_custom_call.1} parent=31 // pred_check_branch
          %239 = sbr.rel (%p237) target = $region44
        $region43: #{tpu_custom_call.1} parent=31 // pred_region
          %240 = dma.done [#allocation7], 96
        $region44: #{tpu_custom_call.1} parent=31 // pred_fallthru
          _
        %s241 = sand.u32 %s41, 1
        %s242 = scalar_lea.sflag [#allocation4], %s241
        %s243 = sand.u32 %s41, 1
        %s244 = smul.addr %s243, 1536
        %s245 = scalar_lea.vmem [#allocation3], %s244
        %p246 = pneg %p54
        %p247 = pneg %p51
        %s248 = sand.u32 %s21, 1
        %s249 = scalar_lea.sflag [#allocation7], %s248
        %s250 = sand.u32 %s69, 1
        %s251 = smul.addr %s250, 3072
        %s252 = scalar_lea.vmem [#allocation6], %s251
        %p253 = pneg %p82
        %p254 = pneg %p79
        %p255 = pneg %p108
        %p256 = pneg %p105
        %p257 = pneg %p134
        %p258 = pneg %p131
        %s259 = smul.u32 4, %s26
        %s260 = smul.u32 96, %s25
        %s261 = smul.u32 4, %s26
        %s262 = smul.u32 6, %s25
        %s263 = smul.u32 6, %s25
        %p264 = scmp.eq.s32.totalorder %s26, 0
        // Predicated region
        $region45: #{tpu_custom_call.1} parent=31 // pred_check
          %p265 = pneg %p264
        $region46: #{tpu_custom_call.1} parent=31 // pred_check_branch
          %267 = sbr.rel (%p265) target = $region48
        $region47: #{tpu_custom_call.1} parent=31 // pred_region
          %268 = vst [vmem:[#allocation2] sm:$0xff] 0.0
          %269 = vst [vmem:[#allocation2 + $0x8] sm:$0xff] 0.0
          %270 = vst [vmem:[#allocation2 + $0x10] sm:$0xff] 0.0
          %271 = vst [vmem:[#allocation2 + $0x18] sm:$0xff] 0.0
          %272 = vst [vmem:[#allocation2 + $0x20] sm:$0xff] 0.0
          %273 = vst [vmem:[#allocation2 + $0x28] sm:$0xff] 0.0
          %274 = vst [vmem:[#allocation2 + $0x30] sm:$0xff] 0.0
          %275 = vst [vmem:[#allocation2 + $0x38] sm:$0xff] 0.0
          %276 = vst [vmem:[#allocation2 + $0x40] sm:$0xff] 0.0
          %277 = vst [vmem:[#allocation2 + $0x48] sm:$0xff] 0.0
          %278 = vst [vmem:[#allocation2 + $0x50] sm:$0xff] 0.0
          %279 = vst [vmem:[#allocation2 + $0x58] sm:$0xff] 0.0
          %280 = vst [vmem:[#allocation2 + $0x60] sm:$0xff] 0.0
          %281 = vst [vmem:[#allocation2 + $0x68] sm:$0xff] 0.0
          %282 = vst [vmem:[#allocation2 + $0x70] sm:$0xff] 0.0
          %283 = vst [vmem:[#allocation2 + $0x78] sm:$0xff] 0.0
          %284 = vst [vmem:[#allocation2 + $0x80] sm:$0xff] 0.0
          %285 = vst [vmem:[#allocation2 + $0x88] sm:$0xff] 0.0
          %286 = vst [vmem:[#allocation2 + $0x90] sm:$0xff] 0.0
          %287 = vst [vmem:[#allocation2 + $0x98] sm:$0xff] 0.0
          %288 = vst [vmem:[#allocation2 + $0xa0] sm:$0xff] 0.0
          %289 = vst [vmem:[#allocation2 + $0xa8] sm:$0xff] 0.0
          %290 = vst [vmem:[#allocation2 + $0xb0] sm:$0xff] 0.0
          %291 = vst [vmem:[#allocation2 + $0xb8] sm:$0xff] 0.0
          %292 = vst [vmem:[#allocation2 + $0xc0] sm:$0xff] 0.0
          %293 = vst [vmem:[#allocation2 + $0xc8] sm:$0xff] 0.0
          %294 = vst [vmem:[#allocation2 + $0xd0] sm:$0xff] 0.0
          %295 = vst [vmem:[#allocation2 + $0xd8] sm:$0xff] 0.0
          %296 = vst [vmem:[#allocation2 + $0xe0] sm:$0xff] 0.0
          %297 = vst [vmem:[#allocation2 + $0xe8] sm:$0xff] 0.0
          %298 = vst [vmem:[#allocation2 + $0xf0] sm:$0xff] 0.0
          %299 = vst [vmem:[#allocation2 + $0xf8] sm:$0xff] 0.0
          %300 = vst [vmem:[#allocation2 + $0x100] sm:$0xff] 0.0
          %301 = vst [vmem:[#allocation2 + $0x108] sm:$0xff] 0.0
          %302 = vst [vmem:[#allocation2 + $0x110] sm:$0xff] 0.0
          %303 = vst [vmem:[#allocation2 + $0x118] sm:$0xff] 0.0
          %304 = vst [vmem:[#allocation2 + $0x120] sm:$0xff] 0.0
          %305 = vst [vmem:[#allocation2 + $0x128] sm:$0xff] 0.0
          %306 = vst [vmem:[#allocation2 + $0x130] sm:$0xff] 0.0
          %307 = vst [vmem:[#allocation2 + $0x138] sm:$0xff] 0.0
          %308 = vst [vmem:[#allocation2 + $0x140] sm:$0xff] 0.0
          %309 = vst [vmem:[#allocation2 + $0x148] sm:$0xff] 0.0
          %310 = vst [vmem:[#allocation2 + $0x150] sm:$0xff] 0.0
          %311 = vst [vmem:[#allocation2 + $0x158] sm:$0xff] 0.0
          %312 = vst [vmem:[#allocation2 + $0x160] sm:$0xff] 0.0
          %313 = vst [vmem:[#allocation2 + $0x168] sm:$0xff] 0.0
          %314 = vst [vmem:[#allocation2 + $0x170] sm:$0xff] 0.0
          %315 = vst [vmem:[#allocation2 + $0x178] sm:$0xff] 0.0
          %316 = vst [vmem:[#allocation2 + $0x180] sm:$0xff] 0.0
          %317 = vst [vmem:[#allocation2 + $0x188] sm:$0xff] 0.0
          %318 = vst [vmem:[#allocation2 + $0x190] sm:$0xff] 0.0
          %319 = vst [vmem:[#allocation2 + $0x198] sm:$0xff] 0.0
          %320 = vst [vmem:[#allocation2 + $0x1a0] sm:$0xff] 0.0
          %321 = vst [vmem:[#allocation2 + $0x1a8] sm:$0xff] 0.0
          %322 = vst [vmem:[#allocation2 + $0x1b0] sm:$0xff] 0.0
          %323 = vst [vmem:[#allocation2 + $0x1b8] sm:$0xff] 0.0
          %324 = vst [vmem:[#allocation2 + $0x1c0] sm:$0xff] 0.0
          %325 = vst [vmem:[#allocation2 + $0x1c8] sm:$0xff] 0.0
          %326 = vst [vmem:[#allocation2 + $0x1d0] sm:$0xff] 0.0
          %327 = vst [vmem:[#allocation2 + $0x1d8] sm:$0xff] 0.0
          %328 = vst [vmem:[#allocation2 + $0x1e0] sm:$0xff] 0.0
          %329 = vst [vmem:[#allocation2 + $0x1e8] sm:$0xff] 0.0
          %330 = vst [vmem:[#allocation2 + $0x1f0] sm:$0xff] 0.0
          %331 = vst [vmem:[#allocation2 + $0x1f8] sm:$0xff] 0.0
          %332 = vst [vmem:[#allocation2 + $0x200] sm:$0xff] 0.0
          %333 = vst [vmem:[#allocation2 + $0x208] sm:$0xff] 0.0
          %334 = vst [vmem:[#allocation2 + $0x210] sm:$0xff] 0.0
          %335 = vst [vmem:[#allocation2 + $0x218] sm:$0xff] 0.0
          %336 = vst [vmem:[#allocation2 + $0x220] sm:$0xff] 0.0
          %337 = vst [vmem:[#allocation2 + $0x228] sm:$0xff] 0.0
          %338 = vst [vmem:[#allocation2 + $0x230] sm:$0xff] 0.0
          %339 = vst [vmem:[#allocation2 + $0x238] sm:$0xff] 0.0
          %340 = vst [vmem:[#allocation2 + $0x240] sm:$0xff] 0.0
          %341 = vst [vmem:[#allocation2 + $0x248] sm:$0xff] 0.0
          %342 = vst [vmem:[#allocation2 + $0x250] sm:$0xff] 0.0
          %343 = vst [vmem:[#allocation2 + $0x258] sm:$0xff] 0.0
          %344 = vst [vmem:[#allocation2 + $0x260] sm:$0xff] 0.0
          %345 = vst [vmem:[#allocation2 + $0x268] sm:$0xff] 0.0
          %346 = vst [vmem:[#allocation2 + $0x270] sm:$0xff] 0.0
          %347 = vst [vmem:[#allocation2 + $0x278] sm:$0xff] 0.0
          %348 = vst [vmem:[#allocation2 + $0x280] sm:$0xff] 0.0
          %349 = vst [vmem:[#allocation2 + $0x288] sm:$0xff] 0.0
          %350 = vst [vmem:[#allocation2 + $0x290] sm:$0xff] 0.0
          %351 = vst [vmem:[#allocation2 + $0x298] sm:$0xff] 0.0
          %352 = vst [vmem:[#allocation2 + $0x2a0] sm:$0xff] 0.0
          %353 = vst [vmem:[#allocation2 + $0x2a8] sm:$0xff] 0.0
          %354 = vst [vmem:[#allocation2 + $0x2b0] sm:$0xff] 0.0
          %355 = vst [vmem:[#allocation2 + $0x2b8] sm:$0xff] 0.0
          %356 = vst [vmem:[#allocation2 + $0x2c0] sm:$0xff] 0.0
          %357 = vst [vmem:[#allocation2 + $0x2c8] sm:$0xff] 0.0
          %358 = vst [vmem:[#allocation2 + $0x2d0] sm:$0xff] 0.0
          %359 = vst [vmem:[#allocation2 + $0x2d8] sm:$0xff] 0.0
          %360 = vst [vmem:[#allocation2 + $0x2e0] sm:$0xff] 0.0
          %361 = vst [vmem:[#allocation2 + $0x2e8] sm:$0xff] 0.0
          %362 = vst [vmem:[#allocation2 + $0x2f0] sm:$0xff] 0.0
          %363 = vst [vmem:[#allocation2 + $0x2f8] sm:$0xff] 0.0
          %364 = vst [vmem:[#allocation2 + $0x300] sm:$0xff] 0.0
          %365 = vst [vmem:[#allocation2 + $0x308] sm:$0xff] 0.0
          %366 = vst [vmem:[#allocation2 + $0x310] sm:$0xff] 0.0
          %367 = vst [vmem:[#allocation2 + $0x318] sm:$0xff] 0.0
          %368 = vst [vmem:[#allocation2 + $0x320] sm:$0xff] 0.0
          %369 = vst [vmem:[#allocation2 + $0x328] sm:$0xff] 0.0
          %370 = vst [vmem:[#allocation2 + $0x330] sm:$0xff] 0.0
          %371 = vst [vmem:[#allocation2 + $0x338] sm:$0xff] 0.0
          %372 = vst [vmem:[#allocation2 + $0x340] sm:$0xff] 0.0
          %373 = vst [vmem:[#allocation2 + $0x348] sm:$0xff] 0.0
          %374 = vst [vmem:[#allocation2 + $0x350] sm:$0xff] 0.0
          %375 = vst [vmem:[#allocation2 + $0x358] sm:$0xff] 0.0
          %376 = vst [vmem:[#allocation2 + $0x360] sm:$0xff] 0.0
          %377 = vst [vmem:[#allocation2 + $0x368] sm:$0xff] 0.0
          %378 = vst [vmem:[#allocation2 + $0x370] sm:$0xff] 0.0
          %379 = vst [vmem:[#allocation2 + $0x378] sm:$0xff] 0.0
          %380 = vst [vmem:[#allocation2 + $0x380] sm:$0xff] 0.0
          %381 = vst [vmem:[#allocation2 + $0x388] sm:$0xff] 0.0
          %382 = vst [vmem:[#allocation2 + $0x390] sm:$0xff] 0.0
          %383 = vst [vmem:[#allocation2 + $0x398] sm:$0xff] 0.0
          %384 = vst [vmem:[#allocation2 + $0x3a0] sm:$0xff] 0.0
          %385 = vst [vmem:[#allocation2 + $0x3a8] sm:$0xff] 0.0
          %386 = vst [vmem:[#allocation2 + $0x3b0] sm:$0xff] 0.0
          %387 = vst [vmem:[#allocation2 + $0x3b8] sm:$0xff] 0.0
          %388 = vst [vmem:[#allocation2 + $0x3c0] sm:$0xff] 0.0
          %389 = vst [vmem:[#allocation2 + $0x3c8] sm:$0xff] 0.0
          %390 = vst [vmem:[#allocation2 + $0x3d0] sm:$0xff] 0.0
          %391 = vst [vmem:[#allocation2 + $0x3d8] sm:$0xff] 0.0
          %392 = vst [vmem:[#allocation2 + $0x3e0] sm:$0xff] 0.0
          %393 = vst [vmem:[#allocation2 + $0x3e8] sm:$0xff] 0.0
          %394 = vst [vmem:[#allocation2 + $0x3f0] sm:$0xff] 0.0
          %395 = vst [vmem:[#allocation2 + $0x3f8] sm:$0xff] 0.0
          %396 = vst [vmem:[#allocation2 + $0x400] sm:$0xff] 0.0
          %397 = vst [vmem:[#allocation2 + $0x408] sm:$0xff] 0.0
          %398 = vst [vmem:[#allocation2 + $0x410] sm:$0xff] 0.0
          %399 = vst [vmem:[#allocation2 + $0x418] sm:$0xff] 0.0
          %400 = vst [vmem:[#allocation2 + $0x420] sm:$0xff] 0.0
          %401 = vst [vmem:[#allocation2 + $0x428] sm:$0xff] 0.0
          %402 = vst [vmem:[#allocation2 + $0x430] sm:$0xff] 0.0
          %403 = vst [vmem:[#allocation2 + $0x438] sm:$0xff] 0.0
          %404 = vst [vmem:[#allocation2 + $0x440] sm:$0xff] 0.0
          %405 = vst [vmem:[#allocation2 + $0x448] sm:$0xff] 0.0
          %406 = vst [vmem:[#allocation2 + $0x450] sm:$0xff] 0.0
          %407 = vst [vmem:[#allocation2 + $0x458] sm:$0xff] 0.0
          %408 = vst [vmem:[#allocation2 + $0x460] sm:$0xff] 0.0
          %409 = vst [vmem:[#allocation2 + $0x468] sm:$0xff] 0.0
          %410 = vst [vmem:[#allocation2 + $0x470] sm:$0xff] 0.0
          %411 = vst [vmem:[#allocation2 + $0x478] sm:$0xff] 0.0
          %412 = vst [vmem:[#allocation2 + $0x480] sm:$0xff] 0.0
          %413 = vst [vmem:[#allocation2 + $0x488] sm:$0xff] 0.0
          %414 = vst [vmem:[#allocation2 + $0x490] sm:$0xff] 0.0
          %415 = vst [vmem:[#allocation2 + $0x498] sm:$0xff] 0.0
          %416 = vst [vmem:[#allocation2 + $0x4a0] sm:$0xff] 0.0
          %417 = vst [vmem:[#allocation2 + $0x4a8] sm:$0xff] 0.0
          %418 = vst [vmem:[#allocation2 + $0x4b0] sm:$0xff] 0.0
          %419 = vst [vmem:[#allocation2 + $0x4b8] sm:$0xff] 0.0
          %420 = vst [vmem:[#allocation2 + $0x4c0] sm:$0xff] 0.0
          %421 = vst [vmem:[#allocation2 + $0x4c8] sm:$0xff] 0.0
          %422 = vst [vmem:[#allocation2 + $0x4d0] sm:$0xff] 0.0
          %423 = vst [vmem:[#allocation2 + $0x4d8] sm:$0xff] 0.0
          %424 = vst [vmem:[#allocation2 + $0x4e0] sm:$0xff] 0.0
          %425 = vst [vmem:[#allocation2 + $0x4e8] sm:$0xff] 0.0
          %426 = vst [vmem:[#allocation2 + $0x4f0] sm:$0xff] 0.0
          %427 = vst [vmem:[#allocation2 + $0x4f8] sm:$0xff] 0.0
          %428 = vst [vmem:[#allocation2 + $0x500] sm:$0xff] 0.0
          %429 = vst [vmem:[#allocation2 + $0x508] sm:$0xff] 0.0
          %430 = vst [vmem:[#allocation2 + $0x510] sm:$0xff] 0.0
          %431 = vst [vmem:[#allocation2 + $0x518] sm:$0xff] 0.0
          %432 = vst [vmem:[#allocation2 + $0x520] sm:$0xff] 0.0
          %433 = vst [vmem:[#allocation2 + $0x528] sm:$0xff] 0.0
          %434 = vst [vmem:[#allocation2 + $0x530] sm:$0xff] 0.0
          %435 = vst [vmem:[#allocation2 + $0x538] sm:$0xff] 0.0
          %436 = vst [vmem:[#allocation2 + $0x540] sm:$0xff] 0.0
          %437 = vst [vmem:[#allocation2 + $0x548] sm:$0xff] 0.0
          %438 = vst [vmem:[#allocation2 + $0x550] sm:$0xff] 0.0
          %439 = vst [vmem:[#allocation2 + $0x558] sm:$0xff] 0.0
          %440 = vst [vmem:[#allocation2 + $0x560] sm:$0xff] 0.0
          %441 = vst [vmem:[#allocation2 + $0x568] sm:$0xff] 0.0
          %442 = vst [vmem:[#allocation2 + $0x570] sm:$0xff] 0.0
          %443 = vst [vmem:[#allocation2 + $0x578] sm:$0xff] 0.0
          %444 = vst [vmem:[#allocation2 + $0x580] sm:$0xff] 0.0
          %445 = vst [vmem:[#allocation2 + $0x588] sm:$0xff] 0.0
          %446 = vst [vmem:[#allocation2 + $0x590] sm:$0xff] 0.0
          %447 = vst [vmem:[#allocation2 + $0x598] sm:$0xff] 0.0
          %448 = vst [vmem:[#allocation2 + $0x5a0] sm:$0xff] 0.0
          %449 = vst [vmem:[#allocation2 + $0x5a8] sm:$0xff] 0.0
          %450 = vst [vmem:[#allocation2 + $0x5b0] sm:$0xff] 0.0
          %451 = vst [vmem:[#allocation2 + $0x5b8] sm:$0xff] 0.0
          %452 = vst [vmem:[#allocation2 + $0x5c0] sm:$0xff] 0.0
          %453 = vst [vmem:[#allocation2 + $0x5c8] sm:$0xff] 0.0
          %454 = vst [vmem:[#allocation2 + $0x5d0] sm:$0xff] 0.0
          %455 = vst [vmem:[#allocation2 + $0x5d8] sm:$0xff] 0.0
          %456 = vst [vmem:[#allocation2 + $0x5e0] sm:$0xff] 0.0
          %457 = vst [vmem:[#allocation2 + $0x5e8] sm:$0xff] 0.0
          %458 = vst [vmem:[#allocation2 + $0x5f0] sm:$0xff] 0.0
          %459 = vst [vmem:[#allocation2 + $0x5f8] sm:$0xff] 0.0
          %460 = vst [vmem:[#allocation2 + $0x600] sm:$0xff] 0.0
          %461 = vst [vmem:[#allocation2 + $0x608] sm:$0xff] 0.0
          %462 = vst [vmem:[#allocation2 + $0x610] sm:$0xff] 0.0
          %463 = vst [vmem:[#allocation2 + $0x618] sm:$0xff] 0.0
          %464 = vst [vmem:[#allocation2 + $0x620] sm:$0xff] 0.0
          %465 = vst [vmem:[#allocation2 + $0x628] sm:$0xff] 0.0
          %466 = vst [vmem:[#allocation2 + $0x630] sm:$0xff] 0.0
          %467 = vst [vmem:[#allocation2 + $0x638] sm:$0xff] 0.0
          %468 = vst [vmem:[#allocation2 + $0x640] sm:$0xff] 0.0
          %469 = vst [vmem:[#allocation2 + $0x648] sm:$0xff] 0.0
          %470 = vst [vmem:[#allocation2 + $0x650] sm:$0xff] 0.0
          %471 = vst [vmem:[#allocation2 + $0x658] sm:$0xff] 0.0
          %472 = vst [vmem:[#allocation2 + $0x660] sm:$0xff] 0.0
          %473 = vst [vmem:[#allocation2 + $0x668] sm:$0xff] 0.0
          %474 = vst [vmem:[#allocation2 + $0x670] sm:$0xff] 0.0
          %475 = vst [vmem:[#allocation2 + $0x678] sm:$0xff] 0.0
          %476 = vst [vmem:[#allocation2 + $0x680] sm:$0xff] 0.0
          %477 = vst [vmem:[#allocation2 + $0x688] sm:$0xff] 0.0
          %478 = vst [vmem:[#allocation2 + $0x690] sm:$0xff] 0.0
          %479 = vst [vmem:[#allocation2 + $0x698] sm:$0xff] 0.0
          %480 = vst [vmem:[#allocation2 + $0x6a0] sm:$0xff] 0.0
          %481 = vst [vmem:[#allocation2 + $0x6a8] sm:$0xff] 0.0
          %482 = vst [vmem:[#allocation2 + $0x6b0] sm:$0xff] 0.0
          %483 = vst [vmem:[#allocation2 + $0x6b8] sm:$0xff] 0.0
          %484 = vst [vmem:[#allocation2 + $0x6c0] sm:$0xff] 0.0
          %485 = vst [vmem:[#allocation2 + $0x6c8] sm:$0xff] 0.0
          %486 = vst [vmem:[#allocation2 + $0x6d0] sm:$0xff] 0.0
          %487 = vst [vmem:[#allocation2 + $0x6d8] sm:$0xff] 0.0
          %488 = vst [vmem:[#allocation2 + $0x6e0] sm:$0xff] 0.0
          %489 = vst [vmem:[#allocation2 + $0x6e8] sm:$0xff] 0.0
          %490 = vst [vmem:[#allocation2 + $0x6f0] sm:$0xff] 0.0
          %491 = vst [vmem:[#allocation2 + $0x6f8] sm:$0xff] 0.0
          %492 = vst [vmem:[#allocation2 + $0x700] sm:$0xff] 0.0
          %493 = vst [vmem:[#allocation2 + $0x708] sm:$0xff] 0.0
          %494 = vst [vmem:[#allocation2 + $0x710] sm:$0xff] 0.0
          %495 = vst [vmem:[#allocation2 + $0x718] sm:$0xff] 0.0
          %496 = vst [vmem:[#allocation2 + $0x720] sm:$0xff] 0.0
          %497 = vst [vmem:[#allocation2 + $0x728] sm:$0xff] 0.0
          %498 = vst [vmem:[#allocation2 + $0x730] sm:$0xff] 0.0
          %499 = vst [vmem:[#allocation2 + $0x738] sm:$0xff] 0.0
          %500 = vst [vmem:[#allocation2 + $0x740] sm:$0xff] 0.0
          %501 = vst [vmem:[#allocation2 + $0x748] sm:$0xff] 0.0
          %502 = vst [vmem:[#allocation2 + $0x750] sm:$0xff] 0.0
          %503 = vst [vmem:[#allocation2 + $0x758] sm:$0xff] 0.0
          %504 = vst [vmem:[#allocation2 + $0x760] sm:$0xff] 0.0
          %505 = vst [vmem:[#allocation2 + $0x768] sm:$0xff] 0.0
          %506 = vst [vmem:[#allocation2 + $0x770] sm:$0xff] 0.0
          %507 = vst [vmem:[#allocation2 + $0x778] sm:$0xff] 0.0
          %508 = vst [vmem:[#allocation2 + $0x780] sm:$0xff] 0.0
          %509 = vst [vmem:[#allocation2 + $0x788] sm:$0xff] 0.0
          %510 = vst [vmem:[#allocation2 + $0x790] sm:$0xff] 0.0
          %511 = vst [vmem:[#allocation2 + $0x798] sm:$0xff] 0.0
          %512 = vst [vmem:[#allocation2 + $0x7a0] sm:$0xff] 0.0
          %513 = vst [vmem:[#allocation2 + $0x7a8] sm:$0xff] 0.0
          %514 = vst [vmem:[#allocation2 + $0x7b0] sm:$0xff] 0.0
          %515 = vst [vmem:[#allocation2 + $0x7b8] sm:$0xff] 0.0
          %516 = vst [vmem:[#allocation2 + $0x7c0] sm:$0xff] 0.0
          %517 = vst [vmem:[#allocation2 + $0x7c8] sm:$0xff] 0.0
          %518 = vst [vmem:[#allocation2 + $0x7d0] sm:$0xff] 0.0
          %519 = vst [vmem:[#allocation2 + $0x7d8] sm:$0xff] 0.0
          %520 = vst [vmem:[#allocation2 + $0x7e0] sm:$0xff] 0.0
          %521 = vst [vmem:[#allocation2 + $0x7e8] sm:$0xff] 0.0
          %522 = vst [vmem:[#allocation2 + $0x7f0] sm:$0xff] 0.0
          %523 = vst [vmem:[#allocation2 + $0x7f8] sm:$0xff] 0.0
          %524 = vst [vmem:[#allocation2 + $0x800] sm:$0xff] 0.0
          %525 = vst [vmem:[#allocation2 + $0x808] sm:$0xff] 0.0
          %526 = vst [vmem:[#allocation2 + $0x810] sm:$0xff] 0.0
          %527 = vst [vmem:[#allocation2 + $0x818] sm:$0xff] 0.0
          %528 = vst [vmem:[#allocation2 + $0x820] sm:$0xff] 0.0
          %529 = vst [vmem:[#allocation2 + $0x828] sm:$0xff] 0.0
          %530 = vst [vmem:[#allocation2 + $0x830] sm:$0xff] 0.0
          %531 = vst [vmem:[#allocation2 + $0x838] sm:$0xff] 0.0
          %532 = vst [vmem:[#allocation2 + $0x840] sm:$0xff] 0.0
          %533 = vst [vmem:[#allocation2 + $0x848] sm:$0xff] 0.0
          %534 = vst [vmem:[#allocation2 + $0x850] sm:$0xff] 0.0
          %535 = vst [vmem:[#allocation2 + $0x858] sm:$0xff] 0.0
          %536 = vst [vmem:[#allocation2 + $0x860] sm:$0xff] 0.0
          %537 = vst [vmem:[#allocation2 + $0x868] sm:$0xff] 0.0
          %538 = vst [vmem:[#allocation2 + $0x870] sm:$0xff] 0.0
          %539 = vst [vmem:[#allocation2 + $0x878] sm:$0xff] 0.0
          %540 = vst [vmem:[#allocation2 + $0x880] sm:$0xff] 0.0
          %541 = vst [vmem:[#allocation2 + $0x888] sm:$0xff] 0.0
          %542 = vst [vmem:[#allocation2 + $0x890] sm:$0xff] 0.0
          %543 = vst [vmem:[#allocation2 + $0x898] sm:$0xff] 0.0
          %544 = vst [vmem:[#allocation2 + $0x8a0] sm:$0xff] 0.0
          %545 = vst [vmem:[#allocation2 + $0x8a8] sm:$0xff] 0.0
          %546 = vst [vmem:[#allocation2 + $0x8b0] sm:$0xff] 0.0
          %547 = vst [vmem:[#allocation2 + $0x8b8] sm:$0xff] 0.0
          %548 = vst [vmem:[#allocation2 + $0x8c0] sm:$0xff] 0.0
          %549 = vst [vmem:[#allocation2 + $0x8c8] sm:$0xff] 0.0
          %550 = vst [vmem:[#allocation2 + $0x8d0] sm:$0xff] 0.0
          %551 = vst [vmem:[#allocation2 + $0x8d8] sm:$0xff] 0.0
          %552 = vst [vmem:[#allocation2 + $0x8e0] sm:$0xff] 0.0
          %553 = vst [vmem:[#allocation2 + $0x8e8] sm:$0xff] 0.0
          %554 = vst [vmem:[#allocation2 + $0x8f0] sm:$0xff] 0.0
          %555 = vst [vmem:[#allocation2 + $0x8f8] sm:$0xff] 0.0
        $region48: #{tpu_custom_call.1} parent=31 // pred_fallthru
          _
        %v556 = vld [vmem:[%s223] sm:$0xff]
        %v557 = vld [vmem:[%s223 + $0x8] sm:$0xff]
        %v558 = vld [vmem:[%s223 + $0x10] sm:$0xff]
        %v559 = vld [vmem:[%s223 + $0x18] sm:$0xff]
        %v560 = vld [vmem:[%s223 + $0x20] sm:$0xff]
        %v561 = vld [vmem:[%s223 + $0x28] sm:$0xff]
        %v562 = vld [vmem:[%s223 + $0x30] sm:$0xff]
        %v563 = vld [vmem:[%s223 + $0x38] sm:$0xff]
        %v564 = vld [vmem:[%s223 + $0x40] sm:$0xff]
        %v565 = vld [vmem:[%s223 + $0x48] sm:$0xff]
        %v566 = vld [vmem:[%s223 + $0x50] sm:$0xff]
        %v567 = vld [vmem:[%s223 + $0x58] sm:$0xff]
        %v568 = vld [vmem:[%s223 + $0x60] sm:$0xff]
        %v569 = vld [vmem:[%s223 + $0x68] sm:$0xff]
        %v570 = vld [vmem:[%s223 + $0x70] sm:$0xff]
        %v571 = vld [vmem:[%s223 + $0x78] sm:$0xff]
        %v572 = vld [vmem:[%s223 + $0x80] sm:$0xff]
        %v573 = vld [vmem:[%s223 + $0x88] sm:$0xff]
        %v574 = vld [vmem:[%s223 + $0x90] sm:$0xff]
        %v575 = vld [vmem:[%s223 + $0x98] sm:$0xff]
        %v576 = vld [vmem:[%s223 + $0xa0] sm:$0xff]
        %v577 = vld [vmem:[%s223 + $0xa8] sm:$0xff]
        %v578 = vld [vmem:[%s223 + $0xb0] sm:$0xff]
        %v579 = vld [vmem:[%s223 + $0xb8] sm:$0xff]
        %v580 = vld [vmem:[%s223 + $0xc0] sm:$0xff]
        %v581 = vld [vmem:[%s223 + $0xc8] sm:$0xff]
        %v582 = vld [vmem:[%s223 + $0xd0] sm:$0xff]
        %v583 = vld [vmem:[%s223 + $0xd8] sm:$0xff]
        %v584 = vld [vmem:[%s223 + $0xe0] sm:$0xff]
        %v585 = vld [vmem:[%s223 + $0xe8] sm:$0xff]
        %v586 = vld [vmem:[%s223 + $0xf0] sm:$0xff]
        %v587 = vld [vmem:[%s223 + $0xf8] sm:$0xff]
        %v588 = vld [vmem:[%s223 + $0x100] sm:$0xff]
        %v589 = vld [vmem:[%s223 + $0x108] sm:$0xff]
        %v590 = vld [vmem:[%s223 + $0x110] sm:$0xff]
        %v591 = vld [vmem:[%s223 + $0x118] sm:$0xff]
        %v592 = vld [vmem:[%s223 + $0x120] sm:$0xff]
        %v593 = vld [vmem:[%s223 + $0x128] sm:$0xff]
        %v594 = vld [vmem:[%s223 + $0x130] sm:$0xff]
        %v595 = vld [vmem:[%s223 + $0x138] sm:$0xff]
        %v596 = vld [vmem:[%s223 + $0x140] sm:$0xff]
        %v597 = vld [vmem:[%s223 + $0x148] sm:$0xff]
        %v598 = vld [vmem:[%s223 + $0x150] sm:$0xff]
        %v599 = vld [vmem:[%s223 + $0x158] sm:$0xff]
        %v600 = vld [vmem:[%s223 + $0x160] sm:$0xff]
        %v601 = vld [vmem:[%s223 + $0x168] sm:$0xff]
        %v602 = vld [vmem:[%s223 + $0x170] sm:$0xff]
        %v603 = vld [vmem:[%s223 + $0x178] sm:$0xff]
        %v604 = vld [vmem:[%s223 + $0x180] sm:$0xff]
        %v605 = vld [vmem:[%s223 + $0x188] sm:$0xff]
        %v606 = vld [vmem:[%s223 + $0x190] sm:$0xff]
        %v607 = vld [vmem:[%s223 + $0x198] sm:$0xff]
        %v608 = vld [vmem:[%s223 + $0x1a0] sm:$0xff]
        %v609 = vld [vmem:[%s223 + $0x1a8] sm:$0xff]
        %v610 = vld [vmem:[%s223 + $0x1b0] sm:$0xff]
        %v611 = vld [vmem:[%s223 + $0x1b8] sm:$0xff]
        %v612 = vld [vmem:[%s223 + $0x1c0] sm:$0xff]
        %v613 = vld [vmem:[%s223 + $0x1c8] sm:$0xff]
        %v614 = vld [vmem:[%s223 + $0x1d0] sm:$0xff]
        %v615 = vld [vmem:[%s223 + $0x1d8] sm:$0xff]
        %v616 = vld [vmem:[%s223 + $0x1e0] sm:$0xff]
        %v617 = vld [vmem:[%s223 + $0x1e8] sm:$0xff]
        %v618 = vld [vmem:[%s223 + $0x1f0] sm:$0xff]
        %v619 = vld [vmem:[%s223 + $0x1f8] sm:$0xff]
        %v620 = vld [vmem:[%s223 + $0x200] sm:$0xff]
        %v621 = vld [vmem:[%s223 + $0x208] sm:$0xff]
        %v622 = vld [vmem:[%s223 + $0x210] sm:$0xff]
        %v623 = vld [vmem:[%s223 + $0x218] sm:$0xff]
        %v624 = vld [vmem:[%s223 + $0x220] sm:$0xff]
        %v625 = vld [vmem:[%s223 + $0x228] sm:$0xff]
        %v626 = vld [vmem:[%s223 + $0x230] sm:$0xff]
        %v627 = vld [vmem:[%s223 + $0x238] sm:$0xff]
        %v628 = vld [vmem:[%s223 + $0x240] sm:$0xff]
        %v629 = vld [vmem:[%s223 + $0x248] sm:$0xff]
        %v630 = vld [vmem:[%s223 + $0x250] sm:$0xff]
        %v631 = vld [vmem:[%s223 + $0x258] sm:$0xff]
        %v632 = vld [vmem:[%s223 + $0x260] sm:$0xff]
        %v633 = vld [vmem:[%s223 + $0x268] sm:$0xff]
        %v634 = vld [vmem:[%s223 + $0x270] sm:$0xff]
        %v635 = vld [vmem:[%s223 + $0x278] sm:$0xff]
        %v636 = vld [vmem:[%s223 + $0x280] sm:$0xff]
        %v637 = vld [vmem:[%s223 + $0x288] sm:$0xff]
        %v638 = vld [vmem:[%s223 + $0x290] sm:$0xff]
        %v639 = vld [vmem:[%s223 + $0x298] sm:$0xff]
        %v640 = vld [vmem:[%s223 + $0x2a0] sm:$0xff]
        %v641 = vld [vmem:[%s223 + $0x2a8] sm:$0xff]
        %v642 = vld [vmem:[%s223 + $0x2b0] sm:$0xff]
        %v643 = vld [vmem:[%s223 + $0x2b8] sm:$0xff]
        %v644 = vld [vmem:[%s223 + $0x2c0] sm:$0xff]
        %v645 = vld [vmem:[%s223 + $0x2c8] sm:$0xff]
        %v646 = vld [vmem:[%s223 + $0x2d0] sm:$0xff]
        %v647 = vld [vmem:[%s223 + $0x2d8] sm:$0xff]
        %v648 = vld [vmem:[%s223 + $0x2e0] sm:$0xff]
        %v649 = vld [vmem:[%s223 + $0x2e8] sm:$0xff]
        %v650 = vld [vmem:[%s223 + $0x2f0] sm:$0xff]
        %v651 = vld [vmem:[%s223 + $0x2f8] sm:$0xff]
        %v652 = vld [vmem:[%s223 + $0x300] sm:$0xff]
        %v653 = vld [vmem:[%s223 + $0x308] sm:$0xff]
        %v654 = vld [vmem:[%s223 + $0x310] sm:$0xff]
        %v655 = vld [vmem:[%s223 + $0x318] sm:$0xff]
        %v656 = vld [vmem:[%s223 + $0x320] sm:$0xff]
        %v657 = vld [vmem:[%s223 + $0x328] sm:$0xff]
        %v658 = vld [vmem:[%s223 + $0x330] sm:$0xff]
        %v659 = vld [vmem:[%s223 + $0x338] sm:$0xff]
        %v660 = vld [vmem:[%s223 + $0x340] sm:$0xff]
        %v661 = vld [vmem:[%s223 + $0x348] sm:$0xff]
        %v662 = vld [vmem:[%s223 + $0x350] sm:$0xff]
        %v663 = vld [vmem:[%s223 + $0x358] sm:$0xff]
        %v664 = vld [vmem:[%s223 + $0x360] sm:$0xff]
        %v665 = vld [vmem:[%s223 + $0x368] sm:$0xff]
        %v666 = vld [vmem:[%s223 + $0x370] sm:$0xff]
        %v667 = vld [vmem:[%s223 + $0x378] sm:$0xff]
        %v668 = vld [vmem:[%s223 + $0x380] sm:$0xff]
        %v669 = vld [vmem:[%s223 + $0x388] sm:$0xff]
        %v670 = vld [vmem:[%s223 + $0x390] sm:$0xff]
        %v671 = vld [vmem:[%s223 + $0x398] sm:$0xff]
        %v672 = vld [vmem:[%s223 + $0x3a0] sm:$0xff]
        %v673 = vld [vmem:[%s223 + $0x3a8] sm:$0xff]
        %v674 = vld [vmem:[%s223 + $0x3b0] sm:$0xff]
        %v675 = vld [vmem:[%s223 + $0x3b8] sm:$0xff]
        %v676 = vld [vmem:[%s223 + $0x3c0] sm:$0xff]
        %v677 = vld [vmem:[%s223 + $0x3c8] sm:$0xff]
        %v678 = vld [vmem:[%s223 + $0x3d0] sm:$0xff]
        %v679 = vld [vmem:[%s223 + $0x3d8] sm:$0xff]
        %v680 = vld [vmem:[%s223 + $0x3e0] sm:$0xff]
        %v681 = vld [vmem:[%s223 + $0x3e8] sm:$0xff]
        %v682 = vld [vmem:[%s223 + $0x3f0] sm:$0xff]
        %v683 = vld [vmem:[%s223 + $0x3f8] sm:$0xff]
        %v684 = vld [vmem:[%s223 + $0x400] sm:$0xff]
        %v685 = vld [vmem:[%s223 + $0x408] sm:$0xff]
        %v686 = vld [vmem:[%s223 + $0x410] sm:$0xff]
        %v687 = vld [vmem:[%s223 + $0x418] sm:$0xff]
        %v688 = vld [vmem:[%s223 + $0x420] sm:$0xff]
        %v689 = vld [vmem:[%s223 + $0x428] sm:$0xff]
        %v690 = vld [vmem:[%s223 + $0x430] sm:$0xff]
        %v691 = vld [vmem:[%s223 + $0x438] sm:$0xff]
        %v692 = vld [vmem:[%s223 + $0x440] sm:$0xff]
        %v693 = vld [vmem:[%s223 + $0x448] sm:$0xff]
        %v694 = vld [vmem:[%s223 + $0x450] sm:$0xff]
        %v695 = vld [vmem:[%s223 + $0x458] sm:$0xff]
        %v696 = vld [vmem:[%s223 + $0x460] sm:$0xff]
        %v697 = vld [vmem:[%s223 + $0x468] sm:$0xff]
        %v698 = vld [vmem:[%s223 + $0x470] sm:$0xff]
        %v699 = vld [vmem:[%s223 + $0x478] sm:$0xff]
        %v700 = vld [vmem:[%s223 + $0x480] sm:$0xff]
        %v701 = vld [vmem:[%s223 + $0x488] sm:$0xff]
        %v702 = vld [vmem:[%s223 + $0x490] sm:$0xff]
        %v703 = vld [vmem:[%s223 + $0x498] sm:$0xff]
        %v704 = vld [vmem:[%s223 + $0x4a0] sm:$0xff]
        %v705 = vld [vmem:[%s223 + $0x4a8] sm:$0xff]
        %v706 = vld [vmem:[%s223 + $0x4b0] sm:$0xff]
        %v707 = vld [vmem:[%s223 + $0x4b8] sm:$0xff]
        %v708 = vld [vmem:[%s223 + $0x4c0] sm:$0xff]
        %v709 = vld [vmem:[%s223 + $0x4c8] sm:$0xff]
        %v710 = vld [vmem:[%s223 + $0x4d0] sm:$0xff]
        %v711 = vld [vmem:[%s223 + $0x4d8] sm:$0xff]
        %v712 = vld [vmem:[%s223 + $0x4e0] sm:$0xff]
        %v713 = vld [vmem:[%s223 + $0x4e8] sm:$0xff]
        %v714 = vld [vmem:[%s223 + $0x4f0] sm:$0xff]
        %v715 = vld [vmem:[%s223 + $0x4f8] sm:$0xff]
        %v716 = vld [vmem:[%s223 + $0x500] sm:$0xff]
        %v717 = vld [vmem:[%s223 + $0x508] sm:$0xff]
        %v718 = vld [vmem:[%s223 + $0x510] sm:$0xff]
        %v719 = vld [vmem:[%s223 + $0x518] sm:$0xff]
        %v720 = vld [vmem:[%s223 + $0x520] sm:$0xff]
        %v721 = vld [vmem:[%s223 + $0x528] sm:$0xff]
        %v722 = vld [vmem:[%s223 + $0x530] sm:$0xff]
        %v723 = vld [vmem:[%s223 + $0x538] sm:$0xff]
        %v724 = vld [vmem:[%s223 + $0x540] sm:$0xff]
        %v725 = vld [vmem:[%s223 + $0x548] sm:$0xff]
        %v726 = vld [vmem:[%s223 + $0x550] sm:$0xff]
        %v727 = vld [vmem:[%s223 + $0x558] sm:$0xff]
        %v728 = vld [vmem:[%s223 + $0x560] sm:$0xff]
        %v729 = vld [vmem:[%s223 + $0x568] sm:$0xff]
        %v730 = vld [vmem:[%s223 + $0x570] sm:$0xff]
        %v731 = vld [vmem:[%s223 + $0x578] sm:$0xff]
        %v732 = vld [vmem:[%s223 + $0x580] sm:$0xff]
        %v733 = vld [vmem:[%s223 + $0x588] sm:$0xff]
        %v734 = vld [vmem:[%s223 + $0x590] sm:$0xff]
        %v735 = vld [vmem:[%s223 + $0x598] sm:$0xff]
        %v736 = vld [vmem:[%s223 + $0x5a0] sm:$0xff]
        %v737 = vld [vmem:[%s223 + $0x5a8] sm:$0xff]
        %v738 = vld [vmem:[%s223 + $0x5b0] sm:$0xff]
        %v739 = vld [vmem:[%s223 + $0x5b8] sm:$0xff]
        %v740 = vld [vmem:[%s223 + $0x5c0] sm:$0xff]
        %v741 = vld [vmem:[%s223 + $0x5c8] sm:$0xff]
        %v742 = vld [vmem:[%s223 + $0x5d0] sm:$0xff]
        %v743 = vld [vmem:[%s223 + $0x5d8] sm:$0xff]
        %v744 = vld [vmem:[%s223 + $0x5e0] sm:$0xff]
        %v745 = vld [vmem:[%s223 + $0x5e8] sm:$0xff]
        %v746 = vld [vmem:[%s223 + $0x5f0] sm:$0xff]
        %v747 = vld [vmem:[%s223 + $0x5f8] sm:$0xff]
        %v748 = vmul.f32 %v556, 0.5
        %v749 = vmul.f32 %v557, 0.5
        %v750 = vmul.f32 %v558, 0.5
        %v751 = vmul.f32 %v559, 0.5
        %v752 = vmul.f32 %v560, 0.5
        %v753 = vmul.f32 %v561, 0.5
        %v754 = vmul.f32 %v562, 0.5
        %v755 = vmul.f32 %v563, 0.5
        %v756 = vmul.f32 %v564, 0.5
        %v757 = vmul.f32 %v565, 0.5
        %v758 = vmul.f32 %v566, 0.5
        %v759 = vmul.f32 %v567, 0.5
        %v760 = vmul.f32 %v568, 0.5
        %v761 = vmul.f32 %v569, 0.5
        %v762 = vmul.f32 %v570, 0.5
        %v763 = vmul.f32 %v571, 0.5
        %v764 = vmul.f32 %v572, 0.5
        %v765 = vmul.f32 %v573, 0.5
        %v766 = vmul.f32 %v574, 0.5
        %v767 = vmul.f32 %v575, 0.5
        %v768 = vmul.f32 %v576, 0.5
        %v769 = vmul.f32 %v577, 0.5
        %v770 = vmul.f32 %v578, 0.5
        %v771 = vmul.f32 %v579, 0.5
        %v772 = vmul.f32 %v580, 0.5
        %v773 = vmul.f32 %v581, 0.5
        %v774 = vmul.f32 %v582, 0.5
        %v775 = vmul.f32 %v583, 0.5
        %v776 = vmul.f32 %v584, 0.5
        %v777 = vmul.f32 %v585, 0.5
        %v778 = vmul.f32 %v586, 0.5
        %v779 = vmul.f32 %v587, 0.5
        %v780 = vmul.f32 %v588, 0.5
        %v781 = vmul.f32 %v589, 0.5
        %v782 = vmul.f32 %v590, 0.5
        %v783 = vmul.f32 %v591, 0.5
        %v784 = vmul.f32 %v592, 0.5
        %v785 = vmul.f32 %v593, 0.5
        %v786 = vmul.f32 %v594, 0.5
        %v787 = vmul.f32 %v595, 0.5
        %v788 = vmul.f32 %v596, 0.5
        %v789 = vmul.f32 %v597, 0.5
        %v790 = vmul.f32 %v598, 0.5
        %v791 = vmul.f32 %v599, 0.5
        %v792 = vmul.f32 %v600, 0.5
        %v793 = vmul.f32 %v601, 0.5
        %v794 = vmul.f32 %v602, 0.5
        %v795 = vmul.f32 %v603, 0.5
        %v796 = vmul.f32 %v604, 0.5
        %v797 = vmul.f32 %v605, 0.5
        %v798 = vmul.f32 %v606, 0.5
        %v799 = vmul.f32 %v607, 0.5
        %v800 = vmul.f32 %v608, 0.5
        %v801 = vmul.f32 %v609, 0.5
        %v802 = vmul.f32 %v610, 0.5
        %v803 = vmul.f32 %v611, 0.5
        %v804 = vmul.f32 %v612, 0.5
        %v805 = vmul.f32 %v613, 0.5
        %v806 = vmul.f32 %v614, 0.5
        %v807 = vmul.f32 %v615, 0.5
        %v808 = vmul.f32 %v616, 0.5
        %v809 = vmul.f32 %v617, 0.5
        %v810 = vmul.f32 %v618, 0.5
        %v811 = vmul.f32 %v619, 0.5
        %v812 = vmul.f32 %v620, 0.5
        %v813 = vmul.f32 %v621, 0.5
        %v814 = vmul.f32 %v622, 0.5
        %v815 = vmul.f32 %v623, 0.5
        %v816 = vmul.f32 %v624, 0.5
        %v817 = vmul.f32 %v625, 0.5
        %v818 = vmul.f32 %v626, 0.5
        %v819 = vmul.f32 %v627, 0.5
        %v820 = vmul.f32 %v628, 0.5
        %v821 = vmul.f32 %v629, 0.5
        %v822 = vmul.f32 %v630, 0.5
        %v823 = vmul.f32 %v631, 0.5
        %v824 = vmul.f32 %v632, 0.5
        %v825 = vmul.f32 %v633, 0.5
        %v826 = vmul.f32 %v634, 0.5
        %v827 = vmul.f32 %v635, 0.5
        %v828 = vmul.f32 %v636, 0.5
        %v829 = vmul.f32 %v637, 0.5
        %v830 = vmul.f32 %v638, 0.5
        %v831 = vmul.f32 %v639, 0.5
        %v832 = vmul.f32 %v640, 0.5
        %v833 = vmul.f32 %v641, 0.5
        %v834 = vmul.f32 %v642, 0.5
        %v835 = vmul.f32 %v643, 0.5
        %v836 = vmul.f32 %v644, 0.5
        %v837 = vmul.f32 %v645, 0.5
        %v838 = vmul.f32 %v646, 0.5
        %v839 = vmul.f32 %v647, 0.5
        %v840 = vmul.f32 %v648, 0.5
        %v841 = vmul.f32 %v649, 0.5
        %v842 = vmul.f32 %v650, 0.5
        %v843 = vmul.f32 %v651, 0.5
        %v844 = vmul.f32 %v652, 0.5
        %v845 = vmul.f32 %v653, 0.5
        %v846 = vmul.f32 %v654, 0.5
        %v847 = vmul.f32 %v655, 0.5
        %v848 = vmul.f32 %v656, 0.5
        %v849 = vmul.f32 %v657, 0.5
        %v850 = vmul.f32 %v658, 0.5
        %v851 = vmul.f32 %v659, 0.5
        %v852 = vmul.f32 %v660, 0.5
        %v853 = vmul.f32 %v661, 0.5
        %v854 = vmul.f32 %v662, 0.5
        %v855 = vmul.f32 %v663, 0.5
        %v856 = vmul.f32 %v664, 0.5
        %v857 = vmul.f32 %v665, 0.5
        %v858 = vmul.f32 %v666, 0.5
        %v859 = vmul.f32 %v667, 0.5
        %v860 = vmul.f32 %v668, 0.5
        %v861 = vmul.f32 %v669, 0.5
        %v862 = vmul.f32 %v670, 0.5
        %v863 = vmul.f32 %v671, 0.5
        %v864 = vmul.f32 %v672, 0.5
        %v865 = vmul.f32 %v673, 0.5
        %v866 = vmul.f32 %v674, 0.5
        %v867 = vmul.f32 %v675, 0.5
        %v868 = vmul.f32 %v676, 0.5
        %v869 = vmul.f32 %v677, 0.5
        %v870 = vmul.f32 %v678, 0.5
        %v871 = vmul.f32 %v679, 0.5
        %v872 = vmul.f32 %v680, 0.5
        %v873 = vmul.f32 %v681, 0.5
        %v874 = vmul.f32 %v682, 0.5
        %v875 = vmul.f32 %v683, 0.5
        %v876 = vmul.f32 %v684, 0.5
        %v877 = vmul.f32 %v685, 0.5
        %v878 = vmul.f32 %v686, 0.5
        %v879 = vmul.f32 %v687, 0.5
        %v880 = vmul.f32 %v688, 0.5
        %v881 = vmul.f32 %v689, 0.5
        %v882 = vmul.f32 %v690, 0.5
        %v883 = vmul.f32 %v691, 0.5
        %v884 = vmul.f32 %v692, 0.5
        %v885 = vmul.f32 %v693, 0.5
        %v886 = vmul.f32 %v694, 0.5
        %v887 = vmul.f32 %v695, 0.5
        %v888 = vmul.f32 %v696, 0.5
        %v889 = vmul.f32 %v697, 0.5
        %v890 = vmul.f32 %v698, 0.5
        %v891 = vmul.f32 %v699, 0.5
        %v892 = vmul.f32 %v700, 0.5
        %v893 = vmul.f32 %v701, 0.5
        %v894 = vmul.f32 %v702, 0.5
        %v895 = vmul.f32 %v703, 0.5
        %v896 = vmul.f32 %v704, 0.5
        %v897 = vmul.f32 %v705, 0.5
        %v898 = vmul.f32 %v706, 0.5
        %v899 = vmul.f32 %v707, 0.5
        %v900 = vmul.f32 %v708, 0.5
        %v901 = vmul.f32 %v709, 0.5
        %v902 = vmul.f32 %v710, 0.5
        %v903 = vmul.f32 %v711, 0.5
        %v904 = vmul.f32 %v712, 0.5
        %v905 = vmul.f32 %v713, 0.5
        %v906 = vmul.f32 %v714, 0.5
        %v907 = vmul.f32 %v715, 0.5
        %v908 = vmul.f32 %v716, 0.5
        %v909 = vmul.f32 %v717, 0.5
        %v910 = vmul.f32 %v718, 0.5
        %v911 = vmul.f32 %v719, 0.5
        %v912 = vmul.f32 %v720, 0.5
        %v913 = vmul.f32 %v721, 0.5
        %v914 = vmul.f32 %v722, 0.5
        %v915 = vmul.f32 %v723, 0.5
        %v916 = vmul.f32 %v724, 0.5
        %v917 = vmul.f32 %v725, 0.5
        %v918 = vmul.f32 %v726, 0.5
        %v919 = vmul.f32 %v727, 0.5
        %v920 = vmul.f32 %v728, 0.5
        %v921 = vmul.f32 %v729, 0.5
        %v922 = vmul.f32 %v730, 0.5
        %v923 = vmul.f32 %v731, 0.5
        %v924 = vmul.f32 %v732, 0.5
        %v925 = vmul.f32 %v733, 0.5
        %v926 = vmul.f32 %v734, 0.5
        %v927 = vmul.f32 %v735, 0.5
        %v928 = vmul.f32 %v736, 0.5
        %v929 = vmul.f32 %v737, 0.5
        %v930 = vmul.f32 %v738, 0.5
        %v931 = vmul.f32 %v739, 0.5
        %v932 = vmul.f32 %v740, 0.5
        %v933 = vmul.f32 %v741, 0.5
        %v934 = vmul.f32 %v742, 0.5
        %v935 = vmul.f32 %v743, 0.5
        %v936 = vmul.f32 %v744, 0.5
        %v937 = vmul.f32 %v745, 0.5
        %v938 = vmul.f32 %v746, 0.5
        %v939 = vmul.f32 %v747, 0.5
        %v940 = vmul.f32 %v556, 0.70710677
        %v941 = vmul.f32 %v557, 0.70710677
        %v942 = vmul.f32 %v558, 0.70710677
        %v943 = vmul.f32 %v559, 0.70710677
        %v944 = vmul.f32 %v560, 0.70710677
        %v945 = vmul.f32 %v561, 0.70710677
        %v946 = vmul.f32 %v562, 0.70710677
        %v947 = vmul.f32 %v563, 0.70710677
        %v948 = vmul.f32 %v564, 0.70710677
        %v949 = vmul.f32 %v565, 0.70710677
        %v950 = vmul.f32 %v566, 0.70710677
        %v951 = vmul.f32 %v567, 0.70710677
        %v952 = vmul.f32 %v568, 0.70710677
        %v953 = vmul.f32 %v569, 0.70710677
        %v954 = vmul.f32 %v570, 0.70710677
        %v955 = vmul.f32 %v571, 0.70710677
        %v956 = vmul.f32 %v572, 0.70710677
        %v957 = vmul.f32 %v573, 0.70710677
        %v958 = vmul.f32 %v574, 0.70710677
        %v959 = vmul.f32 %v575, 0.70710677
        %v960 = vmul.f32 %v576, 0.70710677
        %v961 = vmul.f32 %v577, 0.70710677
        %v962 = vmul.f32 %v578, 0.70710677
        %v963 = vmul.f32 %v579, 0.70710677
        %v964 = vmul.f32 %v580, 0.70710677
        %v965 = vmul.f32 %v581, 0.70710677
        %v966 = vmul.f32 %v582, 0.70710677
        %v967 = vmul.f32 %v583, 0.70710677
        %v968 = vmul.f32 %v584, 0.70710677
        %v969 = vmul.f32 %v585, 0.70710677
        %v970 = vmul.f32 %v586, 0.70710677
        %v971 = vmul.f32 %v587, 0.70710677
        %v972 = vmul.f32 %v588, 0.70710677
        %v973 = vmul.f32 %v589, 0.70710677
        %v974 = vmul.f32 %v590, 0.70710677
        %v975 = vmul.f32 %v591, 0.70710677
        %v976 = vmul.f32 %v592, 0.70710677
        %v977 = vmul.f32 %v593, 0.70710677
        %v978 = vmul.f32 %v594, 0.70710677
        %v979 = vmul.f32 %v595, 0.70710677
        %v980 = vmul.f32 %v596, 0.70710677
        %v981 = vmul.f32 %v597, 0.70710677
        %v982 = vmul.f32 %v598, 0.70710677
        %v983 = vmul.f32 %v599, 0.70710677
        %v984 = vmul.f32 %v600, 0.70710677
        %v985 = vmul.f32 %v601, 0.70710677
        %v986 = vmul.f32 %v602, 0.70710677
        %v987 = vmul.f32 %v603, 0.70710677
        %v988 = vmul.f32 %v604, 0.70710677
        %v989 = vmul.f32 %v605, 0.70710677
        %v990 = vmul.f32 %v606, 0.70710677
        %v991 = vmul.f32 %v607, 0.70710677
        %v992 = vmul.f32 %v608, 0.70710677
        %v993 = vmul.f32 %v609, 0.70710677
        %v994 = vmul.f32 %v610, 0.70710677
        %v995 = vmul.f32 %v611, 0.70710677
        %v996 = vmul.f32 %v612, 0.70710677
        %v997 = vmul.f32 %v613, 0.70710677
        %v998 = vmul.f32 %v614, 0.70710677
        %v999 = vmul.f32 %v615, 0.70710677
        %v1000 = vmul.f32 %v616, 0.70710677
        %v1001 = vmul.f32 %v617, 0.70710677
        %v1002 = vmul.f32 %v618, 0.70710677
        %v1003 = vmul.f32 %v619, 0.70710677
        %v1004 = vmul.f32 %v620, 0.70710677
        %v1005 = vmul.f32 %v621, 0.70710677
        %v1006 = vmul.f32 %v622, 0.70710677
        %v1007 = vmul.f32 %v623, 0.70710677
        %v1008 = vmul.f32 %v624, 0.70710677
        %v1009 = vmul.f32 %v625, 0.70710677
        %v1010 = vmul.f32 %v626, 0.70710677
        %v1011 = vmul.f32 %v627, 0.70710677
        %v1012 = vmul.f32 %v628, 0.70710677
        %v1013 = vmul.f32 %v629, 0.70710677
        %v1014 = vmul.f32 %v630, 0.70710677
        %v1015 = vmul.f32 %v631, 0.70710677
        %v1016 = vmul.f32 %v632, 0.70710677
        %v1017 = vmul.f32 %v633, 0.70710677
        %v1018 = vmul.f32 %v634, 0.70710677
        %v1019 = vmul.f32 %v635, 0.70710677
        %v1020 = vmul.f32 %v636, 0.70710677
        %v1021 = vmul.f32 %v637, 0.70710677
        %v1022 = vmul.f32 %v638, 0.70710677
        %v1023 = vmul.f32 %v639, 0.70710677
        %v1024 = vmul.f32 %v640, 0.70710677
        %v1025 = vmul.f32 %v641, 0.70710677
        %v1026 = vmul.f32 %v642, 0.70710677
        %v1027 = vmul.f32 %v643, 0.70710677
        %v1028 = vmul.f32 %v644, 0.70710677
        %v1029 = vmul.f32 %v645, 0.70710677
        %v1030 = vmul.f32 %v646, 0.70710677
        %v1031 = vmul.f32 %v647, 0.70710677
        %v1032 = vmul.f32 %v648, 0.70710677
        %v1033 = vmul.f32 %v649, 0.70710677
        %v1034 = vmul.f32 %v650, 0.70710677
        %v1035 = vmul.f32 %v651, 0.70710677
        %v1036 = vmul.f32 %v652, 0.70710677
        %v1037 = vmul.f32 %v653, 0.70710677
        %v1038 = vmul.f32 %v654, 0.70710677
        %v1039 = vmul.f32 %v655, 0.70710677
        %v1040 = vmul.f32 %v656, 0.70710677
        %v1041 = vmul.f32 %v657, 0.70710677
        %v1042 = vmul.f32 %v658, 0.70710677
        %v1043 = vmul.f32 %v659, 0.70710677
        %v1044 = vmul.f32 %v660, 0.70710677
        %v1045 = vmul.f32 %v661, 0.70710677
        %v1046 = vmul.f32 %v662, 0.70710677
        %v1047 = vmul.f32 %v663, 0.70710677
        %v1048 = vmul.f32 %v664, 0.70710677
        %v1049 = vmul.f32 %v665, 0.70710677
        %v1050 = vmul.f32 %v666, 0.70710677
        %v1051 = vmul.f32 %v667, 0.70710677
        %v1052 = vmul.f32 %v668, 0.70710677
        %v1053 = vmul.f32 %v669, 0.70710677
        %v1054 = vmul.f32 %v670, 0.70710677
        %v1055 = vmul.f32 %v671, 0.70710677
        %v1056 = vmul.f32 %v672, 0.70710677
        %v1057 = vmul.f32 %v673, 0.70710677
        %v1058 = vmul.f32 %v674, 0.70710677
        %v1059 = vmul.f32 %v675, 0.70710677
        %v1060 = vmul.f32 %v676, 0.70710677
        %v1061 = vmul.f32 %v677, 0.70710677
        %v1062 = vmul.f32 %v678, 0.70710677
        %v1063 = vmul.f32 %v679, 0.70710677
        %v1064 = vmul.f32 %v680, 0.70710677
        %v1065 = vmul.f32 %v681, 0.70710677
        %v1066 = vmul.f32 %v682, 0.70710677
        %v1067 = vmul.f32 %v683, 0.70710677
        %v1068 = vmul.f32 %v684, 0.70710677
        %v1069 = vmul.f32 %v685, 0.70710677
        %v1070 = vmul.f32 %v686, 0.70710677
        %v1071 = vmul.f32 %v687, 0.70710677
        %v1072 = vmul.f32 %v688, 0.70710677
        %v1073 = vmul.f32 %v689, 0.70710677
        %v1074 = vmul.f32 %v690, 0.70710677
        %v1075 = vmul.f32 %v691, 0.70710677
        %v1076 = vmul.f32 %v692, 0.70710677
        %v1077 = vmul.f32 %v693, 0.70710677
        %v1078 = vmul.f32 %v694, 0.70710677
        %v1079 = vmul.f32 %v695, 0.70710677
        %v1080 = vmul.f32 %v696, 0.70710677
        %v1081 = vmul.f32 %v697, 0.70710677
        %v1082 = vmul.f32 %v698, 0.70710677
        %v1083 = vmul.f32 %v699, 0.70710677
        %v1084 = vmul.f32 %v700, 0.70710677
        %v1085 = vmul.f32 %v701, 0.70710677
        %v1086 = vmul.f32 %v702, 0.70710677
        %v1087 = vmul.f32 %v703, 0.70710677
        %v1088 = vmul.f32 %v704, 0.70710677
        %v1089 = vmul.f32 %v705, 0.70710677
        %v1090 = vmul.f32 %v706, 0.70710677
        %v1091 = vmul.f32 %v707, 0.70710677
        %v1092 = vmul.f32 %v708, 0.70710677
        %v1093 = vmul.f32 %v709, 0.70710677
        %v1094 = vmul.f32 %v710, 0.70710677
        %v1095 = vmul.f32 %v711, 0.70710677
        %v1096 = vmul.f32 %v712, 0.70710677
        %v1097 = vmul.f32 %v713, 0.70710677
        %v1098 = vmul.f32 %v714, 0.70710677
        %v1099 = vmul.f32 %v715, 0.70710677
        %v1100 = vmul.f32 %v716, 0.70710677
        %v1101 = vmul.f32 %v717, 0.70710677
        %v1102 = vmul.f32 %v718, 0.70710677
        %v1103 = vmul.f32 %v719, 0.70710677
        %v1104 = vmul.f32 %v720, 0.70710677
        %v1105 = vmul.f32 %v721, 0.70710677
        %v1106 = vmul.f32 %v722, 0.70710677
        %v1107 = vmul.f32 %v723, 0.70710677
        %v1108 = vmul.f32 %v724, 0.70710677
        %v1109 = vmul.f32 %v725, 0.70710677
        %v1110 = vmul.f32 %v726, 0.70710677
        %v1111 = vmul.f32 %v727, 0.70710677
        %v1112 = vmul.f32 %v728, 0.70710677
        %v1113 = vmul.f32 %v729, 0.70710677
        %v1114 = vmul.f32 %v730, 0.70710677
        %v1115 = vmul.f32 %v731, 0.70710677
        %v1116 = vmul.f32 %v732, 0.70710677
        %v1117 = vmul.f32 %v733, 0.70710677
        %v1118 = vmul.f32 %v734, 0.70710677
        %v1119 = vmul.f32 %v735, 0.70710677
        %v1120 = vmul.f32 %v736, 0.70710677
        %v1121 = vmul.f32 %v737, 0.70710677
        %v1122 = vmul.f32 %v738, 0.70710677
        %v1123 = vmul.f32 %v739, 0.70710677
        %v1124 = vmul.f32 %v740, 0.70710677
        %v1125 = vmul.f32 %v741, 0.70710677
        %v1126 = vmul.f32 %v742, 0.70710677
        %v1127 = vmul.f32 %v743, 0.70710677
        %v1128 = vmul.f32 %v744, 0.70710677
        %v1129 = vmul.f32 %v745, 0.70710677
        %v1130 = vmul.f32 %v746, 0.70710677
        %v1131 = vmul.f32 %v747, 0.70710677
        %v1132 = verf.f32.pop %v940
        %v1133 = verf.f32.pop %v941
        %v1134 = verf.f32.pop %v942
        %v1135 = verf.f32.pop %v943
        %v1136 = verf.f32.pop %v944
        %v1137 = verf.f32.pop %v945
        %v1138 = verf.f32.pop %v946
        %v1139 = verf.f32.pop %v947
        %v1140 = verf.f32.pop %v948
        %v1141 = verf.f32.pop %v949
        %v1142 = verf.f32.pop %v950
        %v1143 = verf.f32.pop %v951
        %v1144 = verf.f32.pop %v952
        %v1145 = verf.f32.pop %v953
        %v1146 = verf.f32.pop %v954
        %v1147 = verf.f32.pop %v955
        %v1148 = verf.f32.pop %v956
        %v1149 = verf.f32.pop %v957
        %v1150 = verf.f32.pop %v958
        %v1151 = verf.f32.pop %v959
        %v1152 = verf.f32.pop %v960
        %v1153 = verf.f32.pop %v961
        %v1154 = verf.f32.pop %v962
        %v1155 = verf.f32.pop %v963
        %v1156 = verf.f32.pop %v964
        %v1157 = verf.f32.pop %v965
        %v1158 = verf.f32.pop %v966
        %v1159 = verf.f32.pop %v967
        %v1160 = verf.f32.pop %v968
        %v1161 = verf.f32.pop %v969
        %v1162 = verf.f32.pop %v970
        %v1163 = verf.f32.pop %v971
        %v1164 = verf.f32.pop %v972
        %v1165 = verf.f32.pop %v973
        %v1166 = verf.f32.pop %v974
        %v1167 = verf.f32.pop %v975
        %v1168 = verf.f32.pop %v976
        %v1169 = verf.f32.pop %v977
        %v1170 = verf.f32.pop %v978
        %v1171 = verf.f32.pop %v979
        %v1172 = verf.f32.pop %v980
        %v1173 = verf.f32.pop %v981
        %v1174 = verf.f32.pop %v982
        %v1175 = verf.f32.pop %v983
        %v1176 = verf.f32.pop %v984
        %v1177 = verf.f32.pop %v985
        %v1178 = verf.f32.pop %v986
        %v1179 = verf.f32.pop %v987
        %v1180 = verf.f32.pop %v988
        %v1181 = verf.f32.pop %v989
        %v1182 = verf.f32.pop %v990
        %v1183 = verf.f32.pop %v991
        %v1184 = verf.f32.pop %v992
        %v1185 = verf.f32.pop %v993
        %v1186 = verf.f32.pop %v994
        %v1187 = verf.f32.pop %v995
        %v1188 = verf.f32.pop %v996
        %v1189 = verf.f32.pop %v997
        %v1190 = verf.f32.pop %v998
        %v1191 = verf.f32.pop %v999
        %v1192 = verf.f32.pop %v1000
        %v1193 = verf.f32.pop %v1001
        %v1194 = verf.f32.pop %v1002
        %v1195 = verf.f32.pop %v1003
        %v1196 = verf.f32.pop %v1004
        %v1197 = verf.f32.pop %v1005
        %v1198 = verf.f32.pop %v1006
        %v1199 = verf.f32.pop %v1007
        %v1200 = verf.f32.pop %v1008
        %v1201 = verf.f32.pop %v1009
        %v1202 = verf.f32.pop %v1010
        %v1203 = verf.f32.pop %v1011
        %v1204 = verf.f32.pop %v1012
        %v1205 = verf.f32.pop %v1013
        %v1206 = verf.f32.pop %v1014
        %v1207 = verf.f32.pop %v1015
        %v1208 = verf.f32.pop %v1016
        %v1209 = verf.f32.pop %v1017
        %v1210 = verf.f32.pop %v1018
        %v1211 = verf.f32.pop %v1019
        %v1212 = verf.f32.pop %v1020
        %v1213 = verf.f32.pop %v1021
        %v1214 = verf.f32.pop %v1022
        %v1215 = verf.f32.pop %v1023
        %v1216 = verf.f32.pop %v1024
        %v1217 = verf.f32.pop %v1025
        %v1218 = verf.f32.pop %v1026
        %v1219 = verf.f32.pop %v1027
        %v1220 = verf.f32.pop %v1028
        %v1221 = verf.f32.pop %v1029
        %v1222 = verf.f32.pop %v1030
        %v1223 = verf.f32.pop %v1031
        %v1224 = verf.f32.pop %v1032
        %v1225 = verf.f32.pop %v1033
        %v1226 = verf.f32.pop %v1034
        %v1227 = verf.f32.pop %v1035
        %v1228 = verf.f32.pop %v1036
        %v1229 = verf.f32.pop %v1037
        %v1230 = verf.f32.pop %v1038
        %v1231 = verf.f32.pop %v1039
        %v1232 = verf.f32.pop %v1040
        %v1233 = verf.f32.pop %v1041
        %v1234 = verf.f32.pop %v1042
        %v1235 = verf.f32.pop %v1043
        %v1236 = verf.f32.pop %v1044
        %v1237 = verf.f32.pop %v1045
        %v1238 = verf.f32.pop %v1046
        %v1239 = verf.f32.pop %v1047
        %v1240 = verf.f32.pop %v1048
        %v1241 = verf.f32.pop %v1049
        %v1242 = verf.f32.pop %v1050
        %v1243 = verf.f32.pop %v1051
        %v1244 = verf.f32.pop %v1052
        %v1245 = verf.f32.pop %v1053
        %v1246 = verf.f32.pop %v1054
        %v1247 = verf.f32.pop %v1055
        %v1248 = verf.f32.pop %v1056
        %v1249 = verf.f32.pop %v1057
        %v1250 = verf.f32.pop %v1058
        %v1251 = verf.f32.pop %v1059
        %v1252 = verf.f32.pop %v1060
        %v1253 = verf.f32.pop %v1061
        %v1254 = verf.f32.pop %v1062
        %v1255 = verf.f32.pop %v1063
        %v1256 = verf.f32.pop %v1064
        %v1257 = verf.f32.pop %v1065
        %v1258 = verf.f32.pop %v1066
        %v1259 = verf.f32.pop %v1067
        %v1260 = verf.f32.pop %v1068
        %v1261 = verf.f32.pop %v1069
        %v1262 = verf.f32.pop %v1070
        %v1263 = verf.f32.pop %v1071
        %v1264 = verf.f32.pop %v1072
        %v1265 = verf.f32.pop %v1073
        %v1266 = verf.f32.pop %v1074
        %v1267 = verf.f32.pop %v1075
        %v1268 = verf.f32.pop %v1076
        %v1269 = verf.f32.pop %v1077
        %v1270 = verf.f32.pop %v1078
        %v1271 = verf.f32.pop %v1079
        %v1272 = verf.f32.pop %v1080
        %v1273 = verf.f32.pop %v1081
        %v1274 = verf.f32.pop %v1082
        %v1275 = verf.f32.pop %v1083
        %v1276 = verf.f32.pop %v1084
        %v1277 = verf.f32.pop %v1085
        %v1278 = verf.f32.pop %v1086
        %v1279 = verf.f32.pop %v1087
        %v1280 = verf.f32.pop %v1088
        %v1281 = verf.f32.pop %v1089
        %v1282 = verf.f32.pop %v1090
        %v1283 = verf.f32.pop %v1091
        %v1284 = verf.f32.pop %v1092
        %v1285 = verf.f32.pop %v1093
        %v1286 = verf.f32.pop %v1094
        %v1287 = verf.f32.pop %v1095
        %v1288 = verf.f32.pop %v1096
        %v1289 = verf.f32.pop %v1097
        %v1290 = verf.f32.pop %v1098
        %v1291 = verf.f32.pop %v1099
        %v1292 = verf.f32.pop %v1100
        %v1293 = verf.f32.pop %v1101
        %v1294 = verf.f32.pop %v1102
        %v1295 = verf.f32.pop %v1103
        %v1296 = verf.f32.pop %v1104
        %v1297 = verf.f32.pop %v1105
        %v1298 = verf.f32.pop %v1106
        %v1299 = verf.f32.pop %v1107
        %v1300 = verf.f32.pop %v1108
        %v1301 = verf.f32.pop %v1109
        %v1302 = verf.f32.pop %v1110
        %v1303 = verf.f32.pop %v1111
        %v1304 = verf.f32.pop %v1112
        %v1305 = verf.f32.pop %v1113
        %v1306 = verf.f32.pop %v1114
        %v1307 = verf.f32.pop %v1115
        %v1308 = verf.f32.pop %v1116
        %v1309 = verf.f32.pop %v1117
        %v1310 = verf.f32.pop %v1118
        %v1311 = verf.f32.pop %v1119
        %v1312 = verf.f32.pop %v1120
        %v1313 = verf.f32.pop %v1121
        %v1314 = verf.f32.pop %v1122
        %v1315 = verf.f32.pop %v1123
        %v1316 = verf.f32.pop %v1124
        %v1317 = verf.f32.pop %v1125
        %v1318 = verf.f32.pop %v1126
        %v1319 = verf.f32.pop %v1127
        %v1320 = verf.f32.pop %v1128
        %v1321 = verf.f32.pop %v1129
        %v1322 = verf.f32.pop %v1130
        %v1323 = verf.f32.pop %v1131
        %v1324 = vadd.f32 %v1132, 1.0
        %v1325 = vadd.f32 %v1133, 1.0
        %v1326 = vadd.f32 %v1134, 1.0
        %v1327 = vadd.f32 %v1135, 1.0
        %v1328 = vadd.f32 %v1136, 1.0
        %v1329 = vadd.f32 %v1137, 1.0
        %v1330 = vadd.f32 %v1138, 1.0
        %v1331 = vadd.f32 %v1139, 1.0
        %v1332 = vadd.f32 %v1140, 1.0
        %v1333 = vadd.f32 %v1141, 1.0
        %v1334 = vadd.f32 %v1142, 1.0
        %v1335 = vadd.f32 %v1143, 1.0
        %v1336 = vadd.f32 %v1144, 1.0
        %v1337 = vadd.f32 %v1145, 1.0
        %v1338 = vadd.f32 %v1146, 1.0
        %v1339 = vadd.f32 %v1147, 1.0
        %v1340 = vadd.f32 %v1148, 1.0
        %v1341 = vadd.f32 %v1149, 1.0
        %v1342 = vadd.f32 %v1150, 1.0
        %v1343 = vadd.f32 %v1151, 1.0
        %v1344 = vadd.f32 %v1152, 1.0
        %v1345 = vadd.f32 %v1153, 1.0
        %v1346 = vadd.f32 %v1154, 1.0
        %v1347 = vadd.f32 %v1155, 1.0
        %v1348 = vadd.f32 %v1156, 1.0
        %v1349 = vadd.f32 %v1157, 1.0
        %v1350 = vadd.f32 %v1158, 1.0
        %v1351 = vadd.f32 %v1159, 1.0
        %v1352 = vadd.f32 %v1160, 1.0
        %v1353 = vadd.f32 %v1161, 1.0
        %v1354 = vadd.f32 %v1162, 1.0
        %v1355 = vadd.f32 %v1163, 1.0
        %v1356 = vadd.f32 %v1164, 1.0
        %v1357 = vadd.f32 %v1165, 1.0
        %v1358 = vadd.f32 %v1166, 1.0
        %v1359 = vadd.f32 %v1167, 1.0
        %v1360 = vadd.f32 %v1168, 1.0
        %v1361 = vadd.f32 %v1169, 1.0
        %v1362 = vadd.f32 %v1170, 1.0
        %v1363 = vadd.f32 %v1171, 1.0
        %v1364 = vadd.f32 %v1172, 1.0
        %v1365 = vadd.f32 %v1173, 1.0
        %v1366 = vadd.f32 %v1174, 1.0
        %v1367 = vadd.f32 %v1175, 1.0
        %v1368 = vadd.f32 %v1176, 1.0
        %v1369 = vadd.f32 %v1177, 1.0
        %v1370 = vadd.f32 %v1178, 1.0
        %v1371 = vadd.f32 %v1179, 1.0
        %v1372 = vadd.f32 %v1180, 1.0
        %v1373 = vadd.f32 %v1181, 1.0
        %v1374 = vadd.f32 %v1182, 1.0
        %v1375 = vadd.f32 %v1183, 1.0
        %v1376 = vadd.f32 %v1184, 1.0
        %v1377 = vadd.f32 %v1185, 1.0
        %v1378 = vadd.f32 %v1186, 1.0
        %v1379 = vadd.f32 %v1187, 1.0
        %v1380 = vadd.f32 %v1188, 1.0
        %v1381 = vadd.f32 %v1189, 1.0
        %v1382 = vadd.f32 %v1190, 1.0
        %v1383 = vadd.f32 %v1191, 1.0
        %v1384 = vadd.f32 %v1192, 1.0
        %v1385 = vadd.f32 %v1193, 1.0
        %v1386 = vadd.f32 %v1194, 1.0
        %v1387 = vadd.f32 %v1195, 1.0
        %v1388 = vadd.f32 %v1196, 1.0
        %v1389 = vadd.f32 %v1197, 1.0
        %v1390 = vadd.f32 %v1198, 1.0
        %v1391 = vadd.f32 %v1199, 1.0
        %v1392 = vadd.f32 %v1200, 1.0
        %v1393 = vadd.f32 %v1201, 1.0
        %v1394 = vadd.f32 %v1202, 1.0
        %v1395 = vadd.f32 %v1203, 1.0
        %v1396 = vadd.f32 %v1204, 1.0
        %v1397 = vadd.f32 %v1205, 1.0
        %v1398 = vadd.f32 %v1206, 1.0
        %v1399 = vadd.f32 %v1207, 1.0
        %v1400 = vadd.f32 %v1208, 1.0
        %v1401 = vadd.f32 %v1209, 1.0
        %v1402 = vadd.f32 %v1210, 1.0
        %v1403 = vadd.f32 %v1211, 1.0
        %v1404 = vadd.f32 %v1212, 1.0
        %v1405 = vadd.f32 %v1213, 1.0
        %v1406 = vadd.f32 %v1214, 1.0
        %v1407 = vadd.f32 %v1215, 1.0
        %v1408 = vadd.f32 %v1216, 1.0
        %v1409 = vadd.f32 %v1217, 1.0
        %v1410 = vadd.f32 %v1218, 1.0
        %v1411 = vadd.f32 %v1219, 1.0
        %v1412 = vadd.f32 %v1220, 1.0
        %v1413 = vadd.f32 %v1221, 1.0
        %v1414 = vadd.f32 %v1222, 1.0
        %v1415 = vadd.f32 %v1223, 1.0
        %v1416 = vadd.f32 %v1224, 1.0
        %v1417 = vadd.f32 %v1225, 1.0
        %v1418 = vadd.f32 %v1226, 1.0
        %v1419 = vadd.f32 %v1227, 1.0
        %v1420 = vadd.f32 %v1228, 1.0
        %v1421 = vadd.f32 %v1229, 1.0
        %v1422 = vadd.f32 %v1230, 1.0
        %v1423 = vadd.f32 %v1231, 1.0
        %v1424 = vadd.f32 %v1232, 1.0
        %v1425 = vadd.f32 %v1233, 1.0
        %v1426 = vadd.f32 %v1234, 1.0
        %v1427 = vadd.f32 %v1235, 1.0
        %v1428 = vadd.f32 %v1236, 1.0
        %v1429 = vadd.f32 %v1237, 1.0
        %v1430 = vadd.f32 %v1238, 1.0
        %v1431 = vadd.f32 %v1239, 1.0
        %v1432 = vadd.f32 %v1240, 1.0
        %v1433 = vadd.f32 %v1241, 1.0
        %v1434 = vadd.f32 %v1242, 1.0
        %v1435 = vadd.f32 %v1243, 1.0
        %v1436 = vadd.f32 %v1244, 1.0
        %v1437 = vadd.f32 %v1245, 1.0
        %v1438 = vadd.f32 %v1246, 1.0
        %v1439 = vadd.f32 %v1247, 1.0
        %v1440 = vadd.f32 %v1248, 1.0
        %v1441 = vadd.f32 %v1249, 1.0
        %v1442 = vadd.f32 %v1250, 1.0
        %v1443 = vadd.f32 %v1251, 1.0
        %v1444 = vadd.f32 %v1252, 1.0
        %v1445 = vadd.f32 %v1253, 1.0
        %v1446 = vadd.f32 %v1254, 1.0
        %v1447 = vadd.f32 %v1255, 1.0
        %v1448 = vadd.f32 %v1256, 1.0
        %v1449 = vadd.f32 %v1257, 1.0
        %v1450 = vadd.f32 %v1258, 1.0
        %v1451 = vadd.f32 %v1259, 1.0
        %v1452 = vadd.f32 %v1260, 1.0
        %v1453 = vadd.f32 %v1261, 1.0
        %v1454 = vadd.f32 %v1262, 1.0
        %v1455 = vadd.f32 %v1263, 1.0
        %v1456 = vadd.f32 %v1264, 1.0
        %v1457 = vadd.f32 %v1265, 1.0
        %v1458 = vadd.f32 %v1266, 1.0
        %v1459 = vadd.f32 %v1267, 1.0
        %v1460 = vadd.f32 %v1268, 1.0
        %v1461 = vadd.f32 %v1269, 1.0
        %v1462 = vadd.f32 %v1270, 1.0
        %v1463 = vadd.f32 %v1271, 1.0
        %v1464 = vadd.f32 %v1272, 1.0
        %v1465 = vadd.f32 %v1273, 1.0
        %v1466 = vadd.f32 %v1274, 1.0
        %v1467 = vadd.f32 %v1275, 1.0
        %v1468 = vadd.f32 %v1276, 1.0
        %v1469 = vadd.f32 %v1277, 1.0
        %v1470 = vadd.f32 %v1278, 1.0
        %v1471 = vadd.f32 %v1279, 1.0
        %v1472 = vadd.f32 %v1280, 1.0
        %v1473 = vadd.f32 %v1281, 1.0
        %v1474 = vadd.f32 %v1282, 1.0
        %v1475 = vadd.f32 %v1283, 1.0
        %v1476 = vadd.f32 %v1284, 1.0
        %v1477 = vadd.f32 %v1285, 1.0
        %v1478 = vadd.f32 %v1286, 1.0
        %v1479 = vadd.f32 %v1287, 1.0
        %v1480 = vadd.f32 %v1288, 1.0
        %v1481 = vadd.f32 %v1289, 1.0
        %v1482 = vadd.f32 %v1290, 1.0
        %v1483 = vadd.f32 %v1291, 1.0
        %v1484 = vadd.f32 %v1292, 1.0
        %v1485 = vadd.f32 %v1293, 1.0
        %v1486 = vadd.f32 %v1294, 1.0
        %v1487 = vadd.f32 %v1295, 1.0
        %v1488 = vadd.f32 %v1296, 1.0
        %v1489 = vadd.f32 %v1297, 1.0
        %v1490 = vadd.f32 %v1298, 1.0
        %v1491 = vadd.f32 %v1299, 1.0
        %v1492 = vadd.f32 %v1300, 1.0
        %v1493 = vadd.f32 %v1301, 1.0
        %v1494 = vadd.f32 %v1302, 1.0
        %v1495 = vadd.f32 %v1303, 1.0
        %v1496 = vadd.f32 %v1304, 1.0
        %v1497 = vadd.f32 %v1305, 1.0
        %v1498 = vadd.f32 %v1306, 1.0
        %v1499 = vadd.f32 %v1307, 1.0
        %v1500 = vadd.f32 %v1308, 1.0
        %v1501 = vadd.f32 %v1309, 1.0
        %v1502 = vadd.f32 %v1310, 1.0
        %v1503 = vadd.f32 %v1311, 1.0
        %v1504 = vadd.f32 %v1312, 1.0
        %v1505 = vadd.f32 %v1313, 1.0
        %v1506 = vadd.f32 %v1314, 1.0
        %v1507 = vadd.f32 %v1315, 1.0
        %v1508 = vadd.f32 %v1316, 1.0
        %v1509 = vadd.f32 %v1317, 1.0
        %v1510 = vadd.f32 %v1318, 1.0
        %v1511 = vadd.f32 %v1319, 1.0
        %v1512 = vadd.f32 %v1320, 1.0
        %v1513 = vadd.f32 %v1321, 1.0
        %v1514 = vadd.f32 %v1322, 1.0
        %v1515 = vadd.f32 %v1323, 1.0
        %v1516 = vmul.f32 %v748, %v1324
        %v1517 = vmul.f32 %v749, %v1325
        %v1518 = vmul.f32 %v750, %v1326
        %v1519 = vmul.f32 %v751, %v1327
        %v1520 = vmul.f32 %v752, %v1328
        %v1521 = vmul.f32 %v753, %v1329
        %v1522 = vmul.f32 %v754, %v1330
        %v1523 = vmul.f32 %v755, %v1331
        %v1524 = vmul.f32 %v756, %v1332
        %v1525 = vmul.f32 %v757, %v1333
        %v1526 = vmul.f32 %v758, %v1334
        %v1527 = vmul.f32 %v759, %v1335
        %v1528 = vmul.f32 %v760, %v1336
        %v1529 = vmul.f32 %v761, %v1337
        %v1530 = vmul.f32 %v762, %v1338
        %v1531 = vmul.f32 %v763, %v1339
        %v1532 = vmul.f32 %v764, %v1340
        %v1533 = vmul.f32 %v765, %v1341
        %v1534 = vmul.f32 %v766, %v1342
        %v1535 = vmul.f32 %v767, %v1343
        %v1536 = vmul.f32 %v768, %v1344
        %v1537 = vmul.f32 %v769, %v1345
        %v1538 = vmul.f32 %v770, %v1346
        %v1539 = vmul.f32 %v771, %v1347
        %v1540 = vmul.f32 %v772, %v1348
        %v1541 = vmul.f32 %v773, %v1349
        %v1542 = vmul.f32 %v774, %v1350
        %v1543 = vmul.f32 %v775, %v1351
        %v1544 = vmul.f32 %v776, %v1352
        %v1545 = vmul.f32 %v777, %v1353
        %v1546 = vmul.f32 %v778, %v1354
        %v1547 = vmul.f32 %v779, %v1355
        %v1548 = vmul.f32 %v780, %v1356
        %v1549 = vmul.f32 %v781, %v1357
        %v1550 = vmul.f32 %v782, %v1358
        %v1551 = vmul.f32 %v783, %v1359
        %v1552 = vmul.f32 %v784, %v1360
        %v1553 = vmul.f32 %v785, %v1361
        %v1554 = vmul.f32 %v786, %v1362
        %v1555 = vmul.f32 %v787, %v1363
        %v1556 = vmul.f32 %v788, %v1364
        %v1557 = vmul.f32 %v789, %v1365
        %v1558 = vmul.f32 %v790, %v1366
        %v1559 = vmul.f32 %v791, %v1367
        %v1560 = vmul.f32 %v792, %v1368
        %v1561 = vmul.f32 %v793, %v1369
        %v1562 = vmul.f32 %v794, %v1370
        %v1563 = vmul.f32 %v795, %v1371
        %v1564 = vmul.f32 %v796, %v1372
        %v1565 = vmul.f32 %v797, %v1373
        %v1566 = vmul.f32 %v798, %v1374
        %v1567 = vmul.f32 %v799, %v1375
        %v1568 = vmul.f32 %v800, %v1376
        %v1569 = vmul.f32 %v801, %v1377
        %v1570 = vmul.f32 %v802, %v1378
        %v1571 = vmul.f32 %v803, %v1379
        %v1572 = vmul.f32 %v804, %v1380
        %v1573 = vmul.f32 %v805, %v1381
        %v1574 = vmul.f32 %v806, %v1382
        %v1575 = vmul.f32 %v807, %v1383
        %v1576 = vmul.f32 %v808, %v1384
        %v1577 = vmul.f32 %v809, %v1385
        %v1578 = vmul.f32 %v810, %v1386
        %v1579 = vmul.f32 %v811, %v1387
        %v1580 = vmul.f32 %v812, %v1388
        %v1581 = vmul.f32 %v813, %v1389
        %v1582 = vmul.f32 %v814, %v1390
        %v1583 = vmul.f32 %v815, %v1391
        %v1584 = vmul.f32 %v816, %v1392
        %v1585 = vmul.f32 %v817, %v1393
        %v1586 = vmul.f32 %v818, %v1394
        %v1587 = vmul.f32 %v819, %v1395
        %v1588 = vmul.f32 %v820, %v1396
        %v1589 = vmul.f32 %v821, %v1397
        %v1590 = vmul.f32 %v822, %v1398
        %v1591 = vmul.f32 %v823, %v1399
        %v1592 = vmul.f32 %v824, %v1400
        %v1593 = vmul.f32 %v825, %v1401
        %v1594 = vmul.f32 %v826, %v1402
        %v1595 = vmul.f32 %v827, %v1403
        %v1596 = vmul.f32 %v828, %v1404
        %v1597 = vmul.f32 %v829, %v1405
        %v1598 = vmul.f32 %v830, %v1406
        %v1599 = vmul.f32 %v831, %v1407
        %v1600 = vmul.f32 %v832, %v1408
        %v1601 = vmul.f32 %v833, %v1409
        %v1602 = vmul.f32 %v834, %v1410
        %v1603 = vmul.f32 %v835, %v1411
        %v1604 = vmul.f32 %v836, %v1412
        %v1605 = vmul.f32 %v837, %v1413
        %v1606 = vmul.f32 %v838, %v1414
        %v1607 = vmul.f32 %v839, %v1415
        %v1608 = vmul.f32 %v840, %v1416
        %v1609 = vmul.f32 %v841, %v1417
        %v1610 = vmul.f32 %v842, %v1418
        %v1611 = vmul.f32 %v843, %v1419
        %v1612 = vmul.f32 %v844, %v1420
        %v1613 = vmul.f32 %v845, %v1421
        %v1614 = vmul.f32 %v846, %v1422
        %v1615 = vmul.f32 %v847, %v1423
        %v1616 = vmul.f32 %v848, %v1424
        %v1617 = vmul.f32 %v849, %v1425
        %v1618 = vmul.f32 %v850, %v1426
        %v1619 = vmul.f32 %v851, %v1427
        %v1620 = vmul.f32 %v852, %v1428
        %v1621 = vmul.f32 %v853, %v1429
        %v1622 = vmul.f32 %v854, %v1430
        %v1623 = vmul.f32 %v855, %v1431
        %v1624 = vmul.f32 %v856, %v1432
        %v1625 = vmul.f32 %v857, %v1433
        %v1626 = vmul.f32 %v858, %v1434
        %v1627 = vmul.f32 %v859, %v1435
        %v1628 = vmul.f32 %v860, %v1436
        %v1629 = vmul.f32 %v861, %v1437
        %v1630 = vmul.f32 %v862, %v1438
        %v1631 = vmul.f32 %v863, %v1439
        %v1632 = vmul.f32 %v864, %v1440
        %v1633 = vmul.f32 %v865, %v1441
        %v1634 = vmul.f32 %v866, %v1442
        %v1635 = vmul.f32 %v867, %v1443
        %v1636 = vmul.f32 %v868, %v1444
        %v1637 = vmul.f32 %v869, %v1445
        %v1638 = vmul.f32 %v870, %v1446
        %v1639 = vmul.f32 %v871, %v1447
        %v1640 = vmul.f32 %v872, %v1448
        %v1641 = vmul.f32 %v873, %v1449
        %v1642 = vmul.f32 %v874, %v1450
        %v1643 = vmul.f32 %v875, %v1451
        %v1644 = vmul.f32 %v876, %v1452
        %v1645 = vmul.f32 %v877, %v1453
        %v1646 = vmul.f32 %v878, %v1454
        %v1647 = vmul.f32 %v879, %v1455
        %v1648 = vmul.f32 %v880, %v1456
        %v1649 = vmul.f32 %v881, %v1457
        %v1650 = vmul.f32 %v882, %v1458
        %v1651 = vmul.f32 %v883, %v1459
        %v1652 = vmul.f32 %v884, %v1460
        %v1653 = vmul.f32 %v885, %v1461
        %v1654 = vmul.f32 %v886, %v1462
        %v1655 = vmul.f32 %v887, %v1463
        %v1656 = vmul.f32 %v888, %v1464
        %v1657 = vmul.f32 %v889, %v1465
        %v1658 = vmul.f32 %v890, %v1466
        %v1659 = vmul.f32 %v891, %v1467
        %v1660 = vmul.f32 %v892, %v1468
        %v1661 = vmul.f32 %v893, %v1469
        %v1662 = vmul.f32 %v894, %v1470
        %v1663 = vmul.f32 %v895, %v1471
        %v1664 = vmul.f32 %v896, %v1472
        %v1665 = vmul.f32 %v897, %v1473
        %v1666 = vmul.f32 %v898, %v1474
        %v1667 = vmul.f32 %v899, %v1475
        %v1668 = vmul.f32 %v900, %v1476
        %v1669 = vmul.f32 %v901, %v1477
        %v1670 = vmul.f32 %v902, %v1478
        %v1671 = vmul.f32 %v903, %v1479
        %v1672 = vmul.f32 %v904, %v1480
        %v1673 = vmul.f32 %v905, %v1481
        %v1674 = vmul.f32 %v906, %v1482
        %v1675 = vmul.f32 %v907, %v1483
        %v1676 = vmul.f32 %v908, %v1484
        %v1677 = vmul.f32 %v909, %v1485
        %v1678 = vmul.f32 %v910, %v1486
        %v1679 = vmul.f32 %v911, %v1487
        %v1680 = vmul.f32 %v912, %v1488
        %v1681 = vmul.f32 %v913, %v1489
        %v1682 = vmul.f32 %v914, %v1490
        %v1683 = vmul.f32 %v915, %v1491
        %v1684 = vmul.f32 %v916, %v1492
        %v1685 = vmul.f32 %v917, %v1493
        %v1686 = vmul.f32 %v918, %v1494
        %v1687 = vmul.f32 %v919, %v1495
        %v1688 = vmul.f32 %v920, %v1496
        %v1689 = vmul.f32 %v921, %v1497
        %v1690 = vmul.f32 %v922, %v1498
        %v1691 = vmul.f32 %v923, %v1499
        %v1692 = vmul.f32 %v924, %v1500
        %v1693 = vmul.f32 %v925, %v1501
        %v1694 = vmul.f32 %v926, %v1502
        %v1695 = vmul.f32 %v927, %v1503
        %v1696 = vmul.f32 %v928, %v1504
        %v1697 = vmul.f32 %v929, %v1505
        %v1698 = vmul.f32 %v930, %v1506
        %v1699 = vmul.f32 %v931, %v1507
        %v1700 = vmul.f32 %v932, %v1508
        %v1701 = vmul.f32 %v933, %v1509
        %v1702 = vmul.f32 %v934, %v1510
        %v1703 = vmul.f32 %v935, %v1511
        %v1704 = vmul.f32 %v936, %v1512
        %v1705 = vmul.f32 %v937, %v1513
        %v1706 = vmul.f32 %v938, %v1514
        %v1707 = vmul.f32 %v939, %v1515
        %v1708 = vld [vmem:[%s232] sm:$0xff]
        %v1709 = vld [vmem:[%s232 + $0x8] sm:$0xff]
        %v1710 = vld [vmem:[%s232 + $0x10] sm:$0xff]
        %v1711 = vld [vmem:[%s232 + $0x18] sm:$0xff]
        %v1712 = vld [vmem:[%s232 + $0x20] sm:$0xff]
        %v1713 = vld [vmem:[%s232 + $0x28] sm:$0xff]
        %v1714 = vld [vmem:[%s232 + $0x30] sm:$0xff]
        %v1715 = vld [vmem:[%s232 + $0x38] sm:$0xff]
        %v1716 = vld [vmem:[%s232 + $0x40] sm:$0xff]
        %v1717 = vld [vmem:[%s232 + $0x48] sm:$0xff]
        %v1718 = vld [vmem:[%s232 + $0x50] sm:$0xff]
        %v1719 = vld [vmem:[%s232 + $0x58] sm:$0xff]
        %v1720 = vld [vmem:[%s232 + $0x60] sm:$0xff]
        %v1721 = vld [vmem:[%s232 + $0x68] sm:$0xff]
        %v1722 = vld [vmem:[%s232 + $0x70] sm:$0xff]
        %v1723 = vld [vmem:[%s232 + $0x78] sm:$0xff]
        %v1724 = vld [vmem:[%s232 + $0x80] sm:$0xff]
        %v1725 = vld [vmem:[%s232 + $0x88] sm:$0xff]
        %v1726 = vld [vmem:[%s232 + $0x90] sm:$0xff]
        %v1727 = vld [vmem:[%s232 + $0x98] sm:$0xff]
        %v1728 = vld [vmem:[%s232 + $0xa0] sm:$0xff]
        %v1729 = vld [vmem:[%s232 + $0xa8] sm:$0xff]
        %v1730 = vld [vmem:[%s232 + $0xb0] sm:$0xff]
        %v1731 = vld [vmem:[%s232 + $0xb8] sm:$0xff]
        %v1732 = vld [vmem:[%s232 + $0xc0] sm:$0xff]
        %v1733 = vld [vmem:[%s232 + $0xc8] sm:$0xff]
        %v1734 = vld [vmem:[%s232 + $0xd0] sm:$0xff]
        %v1735 = vld [vmem:[%s232 + $0xd8] sm:$0xff]
        %v1736 = vld [vmem:[%s232 + $0xe0] sm:$0xff]
        %v1737 = vld [vmem:[%s232 + $0xe8] sm:$0xff]
        %v1738 = vld [vmem:[%s232 + $0xf0] sm:$0xff]
        %v1739 = vld [vmem:[%s232 + $0xf8] sm:$0xff]
        %v1740 = vld [vmem:[%s232 + $0x100] sm:$0xff]
        %v1741 = vld [vmem:[%s232 + $0x108] sm:$0xff]
        %v1742 = vld [vmem:[%s232 + $0x110] sm:$0xff]
        %v1743 = vld [vmem:[%s232 + $0x118] sm:$0xff]
        %v1744 = vld [vmem:[%s232 + $0x120] sm:$0xff]
        %v1745 = vld [vmem:[%s232 + $0x128] sm:$0xff]
        %v1746 = vld [vmem:[%s232 + $0x130] sm:$0xff]
        %v1747 = vld [vmem:[%s232 + $0x138] sm:$0xff]
        %v1748 = vld [vmem:[%s232 + $0x140] sm:$0xff]
        %v1749 = vld [vmem:[%s232 + $0x148] sm:$0xff]
        %v1750 = vld [vmem:[%s232 + $0x150] sm:$0xff]
        %v1751 = vld [vmem:[%s232 + $0x158] sm:$0xff]
        %v1752 = vld [vmem:[%s232 + $0x160] sm:$0xff]
        %v1753 = vld [vmem:[%s232 + $0x168] sm:$0xff]
        %v1754 = vld [vmem:[%s232 + $0x170] sm:$0xff]
        %v1755 = vld [vmem:[%s232 + $0x178] sm:$0xff]
        %v1756 = vld [vmem:[%s232 + $0x180] sm:$0xff]
        %v1757 = vld [vmem:[%s232 + $0x188] sm:$0xff]
        %v1758 = vld [vmem:[%s232 + $0x190] sm:$0xff]
        %v1759 = vld [vmem:[%s232 + $0x198] sm:$0xff]
        %v1760 = vld [vmem:[%s232 + $0x1a0] sm:$0xff]
        %v1761 = vld [vmem:[%s232 + $0x1a8] sm:$0xff]
        %v1762 = vld [vmem:[%s232 + $0x1b0] sm:$0xff]
        %v1763 = vld [vmem:[%s232 + $0x1b8] sm:$0xff]
        %v1764 = vld [vmem:[%s232 + $0x1c0] sm:$0xff]
        %v1765 = vld [vmem:[%s232 + $0x1c8] sm:$0xff]
        %v1766 = vld [vmem:[%s232 + $0x1d0] sm:$0xff]
        %v1767 = vld [vmem:[%s232 + $0x1d8] sm:$0xff]
        %v1768 = vld [vmem:[%s232 + $0x1e0] sm:$0xff]
        %v1769 = vld [vmem:[%s232 + $0x1e8] sm:$0xff]
        %v1770 = vld [vmem:[%s232 + $0x1f0] sm:$0xff]
        %v1771 = vld [vmem:[%s232 + $0x1f8] sm:$0xff]
        %v1772 = vld [vmem:[%s232 + $0x200] sm:$0xff]
        %v1773 = vld [vmem:[%s232 + $0x208] sm:$0xff]
        %v1774 = vld [vmem:[%s232 + $0x210] sm:$0xff]
        %v1775 = vld [vmem:[%s232 + $0x218] sm:$0xff]
        %v1776 = vld [vmem:[%s232 + $0x220] sm:$0xff]
        %v1777 = vld [vmem:[%s232 + $0x228] sm:$0xff]
        %v1778 = vld [vmem:[%s232 + $0x230] sm:$0xff]
        %v1779 = vld [vmem:[%s232 + $0x238] sm:$0xff]
        %v1780 = vld [vmem:[%s232 + $0x240] sm:$0xff]
        %v1781 = vld [vmem:[%s232 + $0x248] sm:$0xff]
        %v1782 = vld [vmem:[%s232 + $0x250] sm:$0xff]
        %v1783 = vld [vmem:[%s232 + $0x258] sm:$0xff]
        %v1784 = vld [vmem:[%s232 + $0x260] sm:$0xff]
        %v1785 = vld [vmem:[%s232 + $0x268] sm:$0xff]
        %v1786 = vld [vmem:[%s232 + $0x270] sm:$0xff]
        %v1787 = vld [vmem:[%s232 + $0x278] sm:$0xff]
        %v1788 = vld [vmem:[%s232 + $0x280] sm:$0xff]
        %v1789 = vld [vmem:[%s232 + $0x288] sm:$0xff]
        %v1790 = vld [vmem:[%s232 + $0x290] sm:$0xff]
        %v1791 = vld [vmem:[%s232 + $0x298] sm:$0xff]
        %v1792 = vld [vmem:[%s232 + $0x2a0] sm:$0xff]
        %v1793 = vld [vmem:[%s232 + $0x2a8] sm:$0xff]
        %v1794 = vld [vmem:[%s232 + $0x2b0] sm:$0xff]
        %v1795 = vld [vmem:[%s232 + $0x2b8] sm:$0xff]
        %v1796 = vld [vmem:[%s232 + $0x2c0] sm:$0xff]
        %v1797 = vld [vmem:[%s232 + $0x2c8] sm:$0xff]
        %v1798 = vld [vmem:[%s232 + $0x2d0] sm:$0xff]
        %v1799 = vld [vmem:[%s232 + $0x2d8] sm:$0xff]
        %v1800 = vld [vmem:[%s232 + $0x2e0] sm:$0xff]
        %v1801 = vld [vmem:[%s232 + $0x2e8] sm:$0xff]
        %v1802 = vld [vmem:[%s232 + $0x2f0] sm:$0xff]
        %v1803 = vld [vmem:[%s232 + $0x2f8] sm:$0xff]
        %v1804 = vld [vmem:[%s232 + $0x300] sm:$0xff]
        %v1805 = vld [vmem:[%s232 + $0x308] sm:$0xff]
        %v1806 = vld [vmem:[%s232 + $0x310] sm:$0xff]
        %v1807 = vld [vmem:[%s232 + $0x318] sm:$0xff]
        %v1808 = vld [vmem:[%s232 + $0x320] sm:$0xff]
        %v1809 = vld [vmem:[%s232 + $0x328] sm:$0xff]
        %v1810 = vld [vmem:[%s232 + $0x330] sm:$0xff]
        %v1811 = vld [vmem:[%s232 + $0x338] sm:$0xff]
        %v1812 = vld [vmem:[%s232 + $0x340] sm:$0xff]
        %v1813 = vld [vmem:[%s232 + $0x348] sm:$0xff]
        %v1814 = vld [vmem:[%s232 + $0x350] sm:$0xff]
        %v1815 = vld [vmem:[%s232 + $0x358] sm:$0xff]
        %v1816 = vld [vmem:[%s232 + $0x360] sm:$0xff]
        %v1817 = vld [vmem:[%s232 + $0x368] sm:$0xff]
        %v1818 = vld [vmem:[%s232 + $0x370] sm:$0xff]
        %v1819 = vld [vmem:[%s232 + $0x378] sm:$0xff]
        %v1820 = vld [vmem:[%s232 + $0x380] sm:$0xff]
        %v1821 = vld [vmem:[%s232 + $0x388] sm:$0xff]
        %v1822 = vld [vmem:[%s232 + $0x390] sm:$0xff]
        %v1823 = vld [vmem:[%s232 + $0x398] sm:$0xff]
        %v1824 = vld [vmem:[%s232 + $0x3a0] sm:$0xff]
        %v1825 = vld [vmem:[%s232 + $0x3a8] sm:$0xff]
        %v1826 = vld [vmem:[%s232 + $0x3b0] sm:$0xff]
        %v1827 = vld [vmem:[%s232 + $0x3b8] sm:$0xff]
        %v1828 = vld [vmem:[%s232 + $0x3c0] sm:$0xff]
        %v1829 = vld [vmem:[%s232 + $0x3c8] sm:$0xff]
        %v1830 = vld [vmem:[%s232 + $0x3d0] sm:$0xff]
        %v1831 = vld [vmem:[%s232 + $0x3d8] sm:$0xff]
        %v1832 = vld [vmem:[%s232 + $0x3e0] sm:$0xff]
        %v1833 = vld [vmem:[%s232 + $0x3e8] sm:$0xff]
        %v1834 = vld [vmem:[%s232 + $0x3f0] sm:$0xff]
        %v1835 = vld [vmem:[%s232 + $0x3f8] sm:$0xff]
        %v1836 = vld [vmem:[%s232 + $0x400] sm:$0xff]
        %v1837 = vld [vmem:[%s232 + $0x408] sm:$0xff]
        %v1838 = vld [vmem:[%s232 + $0x410] sm:$0xff]
        %v1839 = vld [vmem:[%s232 + $0x418] sm:$0xff]
        %v1840 = vld [vmem:[%s232 + $0x420] sm:$0xff]
        %v1841 = vld [vmem:[%s232 + $0x428] sm:$0xff]
        %v1842 = vld [vmem:[%s232 + $0x430] sm:$0xff]
        %v1843 = vld [vmem:[%s232 + $0x438] sm:$0xff]
        %v1844 = vld [vmem:[%s232 + $0x440] sm:$0xff]
        %v1845 = vld [vmem:[%s232 + $0x448] sm:$0xff]
        %v1846 = vld [vmem:[%s232 + $0x450] sm:$0xff]
        %v1847 = vld [vmem:[%s232 + $0x458] sm:$0xff]
        %v1848 = vld [vmem:[%s232 + $0x460] sm:$0xff]
        %v1849 = vld [vmem:[%s232 + $0x468] sm:$0xff]
        %v1850 = vld [vmem:[%s232 + $0x470] sm:$0xff]
        %v1851 = vld [vmem:[%s232 + $0x478] sm:$0xff]
        %v1852 = vld [vmem:[%s232 + $0x480] sm:$0xff]
        %v1853 = vld [vmem:[%s232 + $0x488] sm:$0xff]
        %v1854 = vld [vmem:[%s232 + $0x490] sm:$0xff]
        %v1855 = vld [vmem:[%s232 + $0x498] sm:$0xff]
        %v1856 = vld [vmem:[%s232 + $0x4a0] sm:$0xff]
        %v1857 = vld [vmem:[%s232 + $0x4a8] sm:$0xff]
        %v1858 = vld [vmem:[%s232 + $0x4b0] sm:$0xff]
        %v1859 = vld [vmem:[%s232 + $0x4b8] sm:$0xff]
        %v1860 = vld [vmem:[%s232 + $0x4c0] sm:$0xff]
        %v1861 = vld [vmem:[%s232 + $0x4c8] sm:$0xff]
        %v1862 = vld [vmem:[%s232 + $0x4d0] sm:$0xff]
        %v1863 = vld [vmem:[%s232 + $0x4d8] sm:$0xff]
        %v1864 = vld [vmem:[%s232 + $0x4e0] sm:$0xff]
        %v1865 = vld [vmem:[%s232 + $0x4e8] sm:$0xff]
        %v1866 = vld [vmem:[%s232 + $0x4f0] sm:$0xff]
        %v1867 = vld [vmem:[%s232 + $0x4f8] sm:$0xff]
        %v1868 = vld [vmem:[%s232 + $0x500] sm:$0xff]
        %v1869 = vld [vmem:[%s232 + $0x508] sm:$0xff]
        %v1870 = vld [vmem:[%s232 + $0x510] sm:$0xff]
        %v1871 = vld [vmem:[%s232 + $0x518] sm:$0xff]
        %v1872 = vld [vmem:[%s232 + $0x520] sm:$0xff]
        %v1873 = vld [vmem:[%s232 + $0x528] sm:$0xff]
        %v1874 = vld [vmem:[%s232 + $0x530] sm:$0xff]
        %v1875 = vld [vmem:[%s232 + $0x538] sm:$0xff]
        %v1876 = vld [vmem:[%s232 + $0x540] sm:$0xff]
        %v1877 = vld [vmem:[%s232 + $0x548] sm:$0xff]
        %v1878 = vld [vmem:[%s232 + $0x550] sm:$0xff]
        %v1879 = vld [vmem:[%s232 + $0x558] sm:$0xff]
        %v1880 = vld [vmem:[%s232 + $0x560] sm:$0xff]
        %v1881 = vld [vmem:[%s232 + $0x568] sm:$0xff]
        %v1882 = vld [vmem:[%s232 + $0x570] sm:$0xff]
        %v1883 = vld [vmem:[%s232 + $0x578] sm:$0xff]
        %v1884 = vld [vmem:[%s232 + $0x580] sm:$0xff]
        %v1885 = vld [vmem:[%s232 + $0x588] sm:$0xff]
        %v1886 = vld [vmem:[%s232 + $0x590] sm:$0xff]
        %v1887 = vld [vmem:[%s232 + $0x598] sm:$0xff]
        %v1888 = vld [vmem:[%s232 + $0x5a0] sm:$0xff]
        %v1889 = vld [vmem:[%s232 + $0x5a8] sm:$0xff]
        %v1890 = vld [vmem:[%s232 + $0x5b0] sm:$0xff]
        %v1891 = vld [vmem:[%s232 + $0x5b8] sm:$0xff]
        %v1892 = vld [vmem:[%s232 + $0x5c0] sm:$0xff]
        %v1893 = vld [vmem:[%s232 + $0x5c8] sm:$0xff]
        %v1894 = vld [vmem:[%s232 + $0x5d0] sm:$0xff]
        %v1895 = vld [vmem:[%s232 + $0x5d8] sm:$0xff]
        %v1896 = vld [vmem:[%s232 + $0x5e0] sm:$0xff]
        %v1897 = vld [vmem:[%s232 + $0x5e8] sm:$0xff]
        %v1898 = vld [vmem:[%s232 + $0x5f0] sm:$0xff]
        %v1899 = vld [vmem:[%s232 + $0x5f8] sm:$0xff]
        %v1900 = vld [vmem:[%s232 + $0x600] sm:$0xff]
        %v1901 = vld [vmem:[%s232 + $0x608] sm:$0xff]
        %v1902 = vld [vmem:[%s232 + $0x610] sm:$0xff]
        %v1903 = vld [vmem:[%s232 + $0x618] sm:$0xff]
        %v1904 = vld [vmem:[%s232 + $0x620] sm:$0xff]
        %v1905 = vld [vmem:[%s232 + $0x628] sm:$0xff]
        %v1906 = vld [vmem:[%s232 + $0x630] sm:$0xff]
        %v1907 = vld [vmem:[%s232 + $0x638] sm:$0xff]
        %v1908 = vld [vmem:[%s232 + $0x640] sm:$0xff]
        %v1909 = vld [vmem:[%s232 + $0x648] sm:$0xff]
        %v1910 = vld [vmem:[%s232 + $0x650] sm:$0xff]
        %v1911 = vld [vmem:[%s232 + $0x658] sm:$0xff]
        %v1912 = vld [vmem:[%s232 + $0x660] sm:$0xff]
        %v1913 = vld [vmem:[%s232 + $0x668] sm:$0xff]
        %v1914 = vld [vmem:[%s232 + $0x670] sm:$0xff]
        %v1915 = vld [vmem:[%s232 + $0x678] sm:$0xff]
        %v1916 = vld [vmem:[%s232 + $0x680] sm:$0xff]
        %v1917 = vld [vmem:[%s232 + $0x688] sm:$0xff]
        %v1918 = vld [vmem:[%s232 + $0x690] sm:$0xff]
        %v1919 = vld [vmem:[%s232 + $0x698] sm:$0xff]
        %v1920 = vld [vmem:[%s232 + $0x6a0] sm:$0xff]
        %v1921 = vld [vmem:[%s232 + $0x6a8] sm:$0xff]
        %v1922 = vld [vmem:[%s232 + $0x6b0] sm:$0xff]
        %v1923 = vld [vmem:[%s232 + $0x6b8] sm:$0xff]
        %v1924 = vld [vmem:[%s232 + $0x6c0] sm:$0xff]
        %v1925 = vld [vmem:[%s232 + $0x6c8] sm:$0xff]
        %v1926 = vld [vmem:[%s232 + $0x6d0] sm:$0xff]
        %v1927 = vld [vmem:[%s232 + $0x6d8] sm:$0xff]
        %v1928 = vld [vmem:[%s232 + $0x6e0] sm:$0xff]
        %v1929 = vld [vmem:[%s232 + $0x6e8] sm:$0xff]
        %v1930 = vld [vmem:[%s232 + $0x6f0] sm:$0xff]
        %v1931 = vld [vmem:[%s232 + $0x6f8] sm:$0xff]
        %v1932 = vld [vmem:[%s232 + $0x700] sm:$0xff]
        %v1933 = vld [vmem:[%s232 + $0x708] sm:$0xff]
        %v1934 = vld [vmem:[%s232 + $0x710] sm:$0xff]
        %v1935 = vld [vmem:[%s232 + $0x718] sm:$0xff]
        %v1936 = vld [vmem:[%s232 + $0x720] sm:$0xff]
        %v1937 = vld [vmem:[%s232 + $0x728] sm:$0xff]
        %v1938 = vld [vmem:[%s232 + $0x730] sm:$0xff]
        %v1939 = vld [vmem:[%s232 + $0x738] sm:$0xff]
        %v1940 = vld [vmem:[%s232 + $0x740] sm:$0xff]
        %v1941 = vld [vmem:[%s232 + $0x748] sm:$0xff]
        %v1942 = vld [vmem:[%s232 + $0x750] sm:$0xff]
        %v1943 = vld [vmem:[%s232 + $0x758] sm:$0xff]
        %v1944 = vld [vmem:[%s232 + $0x760] sm:$0xff]
        %v1945 = vld [vmem:[%s232 + $0x768] sm:$0xff]
        %v1946 = vld [vmem:[%s232 + $0x770] sm:$0xff]
        %v1947 = vld [vmem:[%s232 + $0x778] sm:$0xff]
        %v1948 = vld [vmem:[%s232 + $0x780] sm:$0xff]
        %v1949 = vld [vmem:[%s232 + $0x788] sm:$0xff]
        %v1950 = vld [vmem:[%s232 + $0x790] sm:$0xff]
        %v1951 = vld [vmem:[%s232 + $0x798] sm:$0xff]
        %v1952 = vld [vmem:[%s232 + $0x7a0] sm:$0xff]
        %v1953 = vld [vmem:[%s232 + $0x7a8] sm:$0xff]
        %v1954 = vld [vmem:[%s232 + $0x7b0] sm:$0xff]
        %v1955 = vld [vmem:[%s232 + $0x7b8] sm:$0xff]
        %v1956 = vld [vmem:[%s232 + $0x7c0] sm:$0xff]
        %v1957 = vld [vmem:[%s232 + $0x7c8] sm:$0xff]
        %v1958 = vld [vmem:[%s232 + $0x7d0] sm:$0xff]
        %v1959 = vld [vmem:[%s232 + $0x7d8] sm:$0xff]
        %v1960 = vld [vmem:[%s232 + $0x7e0] sm:$0xff]
        %v1961 = vld [vmem:[%s232 + $0x7e8] sm:$0xff]
        %v1962 = vld [vmem:[%s232 + $0x7f0] sm:$0xff]
        %v1963 = vld [vmem:[%s232 + $0x7f8] sm:$0xff]
        %v1964 = vld [vmem:[%s232 + $0x800] sm:$0xff]
        %v1965 = vld [vmem:[%s232 + $0x808] sm:$0xff]
        %v1966 = vld [vmem:[%s232 + $0x810] sm:$0xff]
        %v1967 = vld [vmem:[%s232 + $0x818] sm:$0xff]
        %v1968 = vld [vmem:[%s232 + $0x820] sm:$0xff]
        %v1969 = vld [vmem:[%s232 + $0x828] sm:$0xff]
        %v1970 = vld [vmem:[%s232 + $0x830] sm:$0xff]
        %v1971 = vld [vmem:[%s232 + $0x838] sm:$0xff]
        %v1972 = vld [vmem:[%s232 + $0x840] sm:$0xff]
        %v1973 = vld [vmem:[%s232 + $0x848] sm:$0xff]
        %v1974 = vld [vmem:[%s232 + $0x850] sm:$0xff]
        %v1975 = vld [vmem:[%s232 + $0x858] sm:$0xff]
        %v1976 = vld [vmem:[%s232 + $0x860] sm:$0xff]
        %v1977 = vld [vmem:[%s232 + $0x868] sm:$0xff]
        %v1978 = vld [vmem:[%s232 + $0x870] sm:$0xff]
        %v1979 = vld [vmem:[%s232 + $0x878] sm:$0xff]
        %v1980 = vld [vmem:[%s232 + $0x880] sm:$0xff]
        %v1981 = vld [vmem:[%s232 + $0x888] sm:$0xff]
        %v1982 = vld [vmem:[%s232 + $0x890] sm:$0xff]
        %v1983 = vld [vmem:[%s232 + $0x898] sm:$0xff]
        %v1984 = vld [vmem:[%s232 + $0x8a0] sm:$0xff]
        %v1985 = vld [vmem:[%s232 + $0x8a8] sm:$0xff]
        %v1986 = vld [vmem:[%s232 + $0x8b0] sm:$0xff]
        %v1987 = vld [vmem:[%s232 + $0x8b8] sm:$0xff]
        %v1988 = vld [vmem:[%s232 + $0x8c0] sm:$0xff]
        %v1989 = vld [vmem:[%s232 + $0x8c8] sm:$0xff]
        %v1990 = vld [vmem:[%s232 + $0x8d0] sm:$0xff]
        %v1991 = vld [vmem:[%s232 + $0x8d8] sm:$0xff]
        %v1992 = vld [vmem:[%s232 + $0x8e0] sm:$0xff]
        %v1993 = vld [vmem:[%s232 + $0x8e8] sm:$0xff]
        %v1994 = vld [vmem:[%s232 + $0x8f0] sm:$0xff]
        %v1995 = vld [vmem:[%s232 + $0x8f8] sm:$0xff]
        %v1996 = vld [vmem:[%s232 + $0x900] sm:$0xff]
        %v1997 = vld [vmem:[%s232 + $0x908] sm:$0xff]
        %v1998 = vld [vmem:[%s232 + $0x910] sm:$0xff]
        %v1999 = vld [vmem:[%s232 + $0x918] sm:$0xff]
        %v2000 = vld [vmem:[%s232 + $0x920] sm:$0xff]
        %v2001 = vld [vmem:[%s232 + $0x928] sm:$0xff]
        %v2002 = vld [vmem:[%s232 + $0x930] sm:$0xff]
        %v2003 = vld [vmem:[%s232 + $0x938] sm:$0xff]
        %v2004 = vld [vmem:[%s232 + $0x940] sm:$0xff]
        %v2005 = vld [vmem:[%s232 + $0x948] sm:$0xff]
        %v2006 = vld [vmem:[%s232 + $0x950] sm:$0xff]
        %v2007 = vld [vmem:[%s232 + $0x958] sm:$0xff]
        %v2008 = vld [vmem:[%s232 + $0x960] sm:$0xff]
        %v2009 = vld [vmem:[%s232 + $0x968] sm:$0xff]
        %v2010 = vld [vmem:[%s232 + $0x970] sm:$0xff]
        %v2011 = vld [vmem:[%s232 + $0x978] sm:$0xff]
        %v2012 = vld [vmem:[%s232 + $0x980] sm:$0xff]
        %v2013 = vld [vmem:[%s232 + $0x988] sm:$0xff]
        %v2014 = vld [vmem:[%s232 + $0x990] sm:$0xff]
        %v2015 = vld [vmem:[%s232 + $0x998] sm:$0xff]
        %v2016 = vld [vmem:[%s232 + $0x9a0] sm:$0xff]
        %v2017 = vld [vmem:[%s232 + $0x9a8] sm:$0xff]
        %v2018 = vld [vmem:[%s232 + $0x9b0] sm:$0xff]
        %v2019 = vld [vmem:[%s232 + $0x9b8] sm:$0xff]
        %v2020 = vld [vmem:[%s232 + $0x9c0] sm:$0xff]
        %v2021 = vld [vmem:[%s232 + $0x9c8] sm:$0xff]
        %v2022 = vld [vmem:[%s232 + $0x9d0] sm:$0xff]
        %v2023 = vld [vmem:[%s232 + $0x9d8] sm:$0xff]
        %v2024 = vld [vmem:[%s232 + $0x9e0] sm:$0xff]
        %v2025 = vld [vmem:[%s232 + $0x9e8] sm:$0xff]
        %v2026 = vld [vmem:[%s232 + $0x9f0] sm:$0xff]
        %v2027 = vld [vmem:[%s232 + $0x9f8] sm:$0xff]
        %v2028 = vld [vmem:[%s232 + $0xa00] sm:$0xff]
        %v2029 = vld [vmem:[%s232 + $0xa08] sm:$0xff]
        %v2030 = vld [vmem:[%s232 + $0xa10] sm:$0xff]
        %v2031 = vld [vmem:[%s232 + $0xa18] sm:$0xff]
        %v2032 = vld [vmem:[%s232 + $0xa20] sm:$0xff]
        %v2033 = vld [vmem:[%s232 + $0xa28] sm:$0xff]
        %v2034 = vld [vmem:[%s232 + $0xa30] sm:$0xff]
        %v2035 = vld [vmem:[%s232 + $0xa38] sm:$0xff]
        %v2036 = vld [vmem:[%s232 + $0xa40] sm:$0xff]
        %v2037 = vld [vmem:[%s232 + $0xa48] sm:$0xff]
        %v2038 = vld [vmem:[%s232 + $0xa50] sm:$0xff]
        %v2039 = vld [vmem:[%s232 + $0xa58] sm:$0xff]
        %v2040 = vld [vmem:[%s232 + $0xa60] sm:$0xff]
        %v2041 = vld [vmem:[%s232 + $0xa68] sm:$0xff]
        %v2042 = vld [vmem:[%s232 + $0xa70] sm:$0xff]
        %v2043 = vld [vmem:[%s232 + $0xa78] sm:$0xff]
        %v2044 = vld [vmem:[%s232 + $0xa80] sm:$0xff]
        %v2045 = vld [vmem:[%s232 + $0xa88] sm:$0xff]
        %v2046 = vld [vmem:[%s232 + $0xa90] sm:$0xff]
        %v2047 = vld [vmem:[%s232 + $0xa98] sm:$0xff]
        %v2048 = vld [vmem:[%s232 + $0xaa0] sm:$0xff]
        %v2049 = vld [vmem:[%s232 + $0xaa8] sm:$0xff]
        %v2050 = vld [vmem:[%s232 + $0xab0] sm:$0xff]
        %v2051 = vld [vmem:[%s232 + $0xab8] sm:$0xff]
        %v2052 = vld [vmem:[%s232 + $0xac0] sm:$0xff]
        %v2053 = vld [vmem:[%s232 + $0xac8] sm:$0xff]
        %v2054 = vld [vmem:[%s232 + $0xad0] sm:$0xff]
        %v2055 = vld [vmem:[%s232 + $0xad8] sm:$0xff]
        %v2056 = vld [vmem:[%s232 + $0xae0] sm:$0xff]
        %v2057 = vld [vmem:[%s232 + $0xae8] sm:$0xff]
        %v2058 = vld [vmem:[%s232 + $0xaf0] sm:$0xff]
        %v2059 = vld [vmem:[%s232 + $0xaf8] sm:$0xff]
        %v2060 = vld [vmem:[%s232 + $0xb00] sm:$0xff]
        %v2061 = vld [vmem:[%s232 + $0xb08] sm:$0xff]
        %v2062 = vld [vmem:[%s232 + $0xb10] sm:$0xff]
        %v2063 = vld [vmem:[%s232 + $0xb18] sm:$0xff]
        %v2064 = vld [vmem:[%s232 + $0xb20] sm:$0xff]
        %v2065 = vld [vmem:[%s232 + $0xb28] sm:$0xff]
        %v2066 = vld [vmem:[%s232 + $0xb30] sm:$0xff]
        %v2067 = vld [vmem:[%s232 + $0xb38] sm:$0xff]
        %v2068 = vld [vmem:[%s232 + $0xb40] sm:$0xff]
        %v2069 = vld [vmem:[%s232 + $0xb48] sm:$0xff]
        %v2070 = vld [vmem:[%s232 + $0xb50] sm:$0xff]
        %v2071 = vld [vmem:[%s232 + $0xb58] sm:$0xff]
        %v2072 = vld [vmem:[%s232 + $0xb60] sm:$0xff]
        %v2073 = vld [vmem:[%s232 + $0xb68] sm:$0xff]
        %v2074 = vld [vmem:[%s232 + $0xb70] sm:$0xff]
        %v2075 = vld [vmem:[%s232 + $0xb78] sm:$0xff]
        %v2076 = vld [vmem:[%s232 + $0xb80] sm:$0xff]
        %v2077 = vld [vmem:[%s232 + $0xb88] sm:$0xff]
        %v2078 = vld [vmem:[%s232 + $0xb90] sm:$0xff]
        %v2079 = vld [vmem:[%s232 + $0xb98] sm:$0xff]
        %v2080 = vld [vmem:[%s232 + $0xba0] sm:$0xff]
        %v2081 = vld [vmem:[%s232 + $0xba8] sm:$0xff]
        %v2082 = vld [vmem:[%s232 + $0xbb0] sm:$0xff]
        %v2083 = vld [vmem:[%s232 + $0xbb8] sm:$0xff]
        %v2084 = vld [vmem:[%s232 + $0xbc0] sm:$0xff]
        %v2085 = vld [vmem:[%s232 + $0xbc8] sm:$0xff]
        %v2086 = vld [vmem:[%s232 + $0xbd0] sm:$0xff]
        %v2087 = vld [vmem:[%s232 + $0xbd8] sm:$0xff]
        %v2088 = vld [vmem:[%s232 + $0xbe0] sm:$0xff]
        %v2089 = vld [vmem:[%s232 + $0xbe8] sm:$0xff]
        %v2090 = vld [vmem:[%s232 + $0xbf0] sm:$0xff]
        %v2091 = vld [vmem:[%s232 + $0xbf8] sm:$0xff]
        %v2092 = vld [vmem:[#allocation2] sm:$0xff]
        %v2093 = vld [vmem:[#allocation2 + $0x8] sm:$0xff]
        %v2094 = vld [vmem:[#allocation2 + $0x10] sm:$0xff]
        %v2095 = vld [vmem:[#allocation2 + $0x18] sm:$0xff]
        %v2096 = vld [vmem:[#allocation2 + $0x20] sm:$0xff]
        %v2097 = vld [vmem:[#allocation2 + $0x28] sm:$0xff]
        %v2098 = vld [vmem:[#allocation2 + $0x30] sm:$0xff]
        %v2099 = vld [vmem:[#allocation2 + $0x38] sm:$0xff]
        %v2100 = vld [vmem:[#allocation2 + $0x40] sm:$0xff]
        %v2101 = vld [vmem:[#allocation2 + $0x48] sm:$0xff]
        %v2102 = vld [vmem:[#allocation2 + $0x50] sm:$0xff]
        %v2103 = vld [vmem:[#allocation2 + $0x58] sm:$0xff]
        %v2104 = vld [vmem:[#allocation2 + $0x60] sm:$0xff]
        %v2105 = vld [vmem:[#allocation2 + $0x68] sm:$0xff]
        %v2106 = vld [vmem:[#allocation2 + $0x70] sm:$0xff]
        %v2107 = vld [vmem:[#allocation2 + $0x78] sm:$0xff]
        %v2108 = vld [vmem:[#allocation2 + $0x80] sm:$0xff]
        %v2109 = vld [vmem:[#allocation2 + $0x88] sm:$0xff]
        %v2110 = vld [vmem:[#allocation2 + $0x90] sm:$0xff]
        %v2111 = vld [vmem:[#allocation2 + $0x98] sm:$0xff]
        %v2112 = vld [vmem:[#allocation2 + $0xa0] sm:$0xff]
        %v2113 = vld [vmem:[#allocation2 + $0xa8] sm:$0xff]
        %v2114 = vld [vmem:[#allocation2 + $0xb0] sm:$0xff]
        %v2115 = vld [vmem:[#allocation2 + $0xb8] sm:$0xff]
        %v2116 = vld [vmem:[#allocation2 + $0xc0] sm:$0xff]
        %v2117 = vld [vmem:[#allocation2 + $0xc8] sm:$0xff]
        %v2118 = vld [vmem:[#allocation2 + $0xd0] sm:$0xff]
        %v2119 = vld [vmem:[#allocation2 + $0xd8] sm:$0xff]
        %v2120 = vld [vmem:[#allocation2 + $0xe0] sm:$0xff]
        %v2121 = vld [vmem:[#allocation2 + $0xe8] sm:$0xff]
        %v2122 = vld [vmem:[#allocation2 + $0xf0] sm:$0xff]
        %v2123 = vld [vmem:[#allocation2 + $0xf8] sm:$0xff]
        %v2124 = vld [vmem:[#allocation2 + $0x100] sm:$0xff]
        %v2125 = vld [vmem:[#allocation2 + $0x108] sm:$0xff]
        %v2126 = vld [vmem:[#allocation2 + $0x110] sm:$0xff]
        %v2127 = vld [vmem:[#allocation2 + $0x118] sm:$0xff]
        %v2128 = vld [vmem:[#allocation2 + $0x120] sm:$0xff]
        %v2129 = vld [vmem:[#allocation2 + $0x128] sm:$0xff]
        %v2130 = vld [vmem:[#allocation2 + $0x130] sm:$0xff]
        %v2131 = vld [vmem:[#allocation2 + $0x138] sm:$0xff]
        %v2132 = vld [vmem:[#allocation2 + $0x140] sm:$0xff]
        %v2133 = vld [vmem:[#allocation2 + $0x148] sm:$0xff]
        %v2134 = vld [vmem:[#allocation2 + $0x150] sm:$0xff]
        %v2135 = vld [vmem:[#allocation2 + $0x158] sm:$0xff]
        %v2136 = vld [vmem:[#allocation2 + $0x160] sm:$0xff]
        %v2137 = vld [vmem:[#allocation2 + $0x168] sm:$0xff]
        %v2138 = vld [vmem:[#allocation2 + $0x170] sm:$0xff]
        %v2139 = vld [vmem:[#allocation2 + $0x178] sm:$0xff]
        %v2140 = vld [vmem:[#allocation2 + $0x180] sm:$0xff]
        %v2141 = vld [vmem:[#allocation2 + $0x188] sm:$0xff]
        %v2142 = vld [vmem:[#allocation2 + $0x190] sm:$0xff]
        %v2143 = vld [vmem:[#allocation2 + $0x198] sm:$0xff]
        %v2144 = vld [vmem:[#allocation2 + $0x1a0] sm:$0xff]
        %v2145 = vld [vmem:[#allocation2 + $0x1a8] sm:$0xff]
        %v2146 = vld [vmem:[#allocation2 + $0x1b0] sm:$0xff]
        %v2147 = vld [vmem:[#allocation2 + $0x1b8] sm:$0xff]
        %v2148 = vld [vmem:[#allocation2 + $0x1c0] sm:$0xff]
        %v2149 = vld [vmem:[#allocation2 + $0x1c8] sm:$0xff]
        %v2150 = vld [vmem:[#allocation2 + $0x1d0] sm:$0xff]
        %v2151 = vld [vmem:[#allocation2 + $0x1d8] sm:$0xff]
        %v2152 = vld [vmem:[#allocation2 + $0x1e0] sm:$0xff]
        %v2153 = vld [vmem:[#allocation2 + $0x1e8] sm:$0xff]
        %v2154 = vld [vmem:[#allocation2 + $0x1f0] sm:$0xff]
        %v2155 = vld [vmem:[#allocation2 + $0x1f8] sm:$0xff]
        %v2156 = vld [vmem:[#allocation2 + $0x200] sm:$0xff]
        %v2157 = vld [vmem:[#allocation2 + $0x208] sm:$0xff]
        %v2158 = vld [vmem:[#allocation2 + $0x210] sm:$0xff]
        %v2159 = vld [vmem:[#allocation2 + $0x218] sm:$0xff]
        %v2160 = vld [vmem:[#allocation2 + $0x220] sm:$0xff]
        %v2161 = vld [vmem:[#allocation2 + $0x228] sm:$0xff]
        %v2162 = vld [vmem:[#allocation2 + $0x230] sm:$0xff]
        %v2163 = vld [vmem:[#allocation2 + $0x238] sm:$0xff]
        %v2164 = vld [vmem:[#allocation2 + $0x240] sm:$0xff]
        %v2165 = vld [vmem:[#allocation2 + $0x248] sm:$0xff]
        %v2166 = vld [vmem:[#allocation2 + $0x250] sm:$0xff]
        %v2167 = vld [vmem:[#allocation2 + $0x258] sm:$0xff]
        %v2168 = vld [vmem:[#allocation2 + $0x260] sm:$0xff]
        %v2169 = vld [vmem:[#allocation2 + $0x268] sm:$0xff]
        %v2170 = vld [vmem:[#allocation2 + $0x270] sm:$0xff]
        %v2171 = vld [vmem:[#allocation2 + $0x278] sm:$0xff]
        %v2172 = vld [vmem:[#allocation2 + $0x280] sm:$0xff]
        %v2173 = vld [vmem:[#allocation2 + $0x288] sm:$0xff]
        %v2174 = vld [vmem:[#allocation2 + $0x290] sm:$0xff]
        %v2175 = vld [vmem:[#allocation2 + $0x298] sm:$0xff]
        %v2176 = vld [vmem:[#allocation2 + $0x2a0] sm:$0xff]
        %v2177 = vld [vmem:[#allocation2 + $0x2a8] sm:$0xff]
        %v2178 = vld [vmem:[#allocation2 + $0x2b0] sm:$0xff]
        %v2179 = vld [vmem:[#allocation2 + $0x2b8] sm:$0xff]
        %v2180 = vld [vmem:[#allocation2 + $0x2c0] sm:$0xff]
        %v2181 = vld [vmem:[#allocation2 + $0x2c8] sm:$0xff]
        %v2182 = vld [vmem:[#allocation2 + $0x2d0] sm:$0xff]
        %v2183 = vld [vmem:[#allocation2 + $0x2d8] sm:$0xff]
        %v2184 = vld [vmem:[#allocation2 + $0x2e0] sm:$0xff]
        %v2185 = vld [vmem:[#allocation2 + $0x2e8] sm:$0xff]
        %v2186 = vld [vmem:[#allocation2 + $0x2f0] sm:$0xff]
        %v2187 = vld [vmem:[#allocation2 + $0x2f8] sm:$0xff]
        %v2188 = vld [vmem:[#allocation2 + $0x300] sm:$0xff]
        %v2189 = vld [vmem:[#allocation2 + $0x308] sm:$0xff]
        %v2190 = vld [vmem:[#allocation2 + $0x310] sm:$0xff]
        %v2191 = vld [vmem:[#allocation2 + $0x318] sm:$0xff]
        %v2192 = vld [vmem:[#allocation2 + $0x320] sm:$0xff]
        %v2193 = vld [vmem:[#allocation2 + $0x328] sm:$0xff]
        %v2194 = vld [vmem:[#allocation2 + $0x330] sm:$0xff]
        %v2195 = vld [vmem:[#allocation2 + $0x338] sm:$0xff]
        %v2196 = vld [vmem:[#allocation2 + $0x340] sm:$0xff]
        %v2197 = vld [vmem:[#allocation2 + $0x348] sm:$0xff]
        %v2198 = vld [vmem:[#allocation2 + $0x350] sm:$0xff]
        %v2199 = vld [vmem:[#allocation2 + $0x358] sm:$0xff]
        %v2200 = vld [vmem:[#allocation2 + $0x360] sm:$0xff]
        %v2201 = vld [vmem:[#allocation2 + $0x368] sm:$0xff]
        %v2202 = vld [vmem:[#allocation2 + $0x370] sm:$0xff]
        %v2203 = vld [vmem:[#allocation2 + $0x378] sm:$0xff]
        %v2204 = vld [vmem:[#allocation2 + $0x380] sm:$0xff]
        %v2205 = vld [vmem:[#allocation2 + $0x388] sm:$0xff]
        %v2206 = vld [vmem:[#allocation2 + $0x390] sm:$0xff]
        %v2207 = vld [vmem:[#allocation2 + $0x398] sm:$0xff]
        %v2208 = vld [vmem:[#allocation2 + $0x3a0] sm:$0xff]
        %v2209 = vld [vmem:[#allocation2 + $0x3a8] sm:$0xff]
        %v2210 = vld [vmem:[#allocation2 + $0x3b0] sm:$0xff]
        %v2211 = vld [vmem:[#allocation2 + $0x3b8] sm:$0xff]
        %v2212 = vld [vmem:[#allocation2 + $0x3c0] sm:$0xff]
        %v2213 = vld [vmem:[#allocation2 + $0x3c8] sm:$0xff]
        %v2214 = vld [vmem:[#allocation2 + $0x3d0] sm:$0xff]
        %v2215 = vld [vmem:[#allocation2 + $0x3d8] sm:$0xff]
        %v2216 = vld [vmem:[#allocation2 + $0x3e0] sm:$0xff]
        %v2217 = vld [vmem:[#allocation2 + $0x3e8] sm:$0xff]
        %v2218 = vld [vmem:[#allocation2 + $0x3f0] sm:$0xff]
        %v2219 = vld [vmem:[#allocation2 + $0x3f8] sm:$0xff]
        %v2220 = vld [vmem:[#allocation2 + $0x400] sm:$0xff]
        %v2221 = vld [vmem:[#allocation2 + $0x408] sm:$0xff]
        %v2222 = vld [vmem:[#allocation2 + $0x410] sm:$0xff]
        %v2223 = vld [vmem:[#allocation2 + $0x418] sm:$0xff]
        %v2224 = vld [vmem:[#allocation2 + $0x420] sm:$0xff]
        %v2225 = vld [vmem:[#allocation2 + $0x428] sm:$0xff]
        %v2226 = vld [vmem:[#allocation2 + $0x430] sm:$0xff]
        %v2227 = vld [vmem:[#allocation2 + $0x438] sm:$0xff]
        %v2228 = vld [vmem:[#allocation2 + $0x440] sm:$0xff]
        %v2229 = vld [vmem:[#allocation2 + $0x448] sm:$0xff]
        %v2230 = vld [vmem:[#allocation2 + $0x450] sm:$0xff]
        %v2231 = vld [vmem:[#allocation2 + $0x458] sm:$0xff]
        %v2232 = vld [vmem:[#allocation2 + $0x460] sm:$0xff]
        %v2233 = vld [vmem:[#allocation2 + $0x468] sm:$0xff]
        %v2234 = vld [vmem:[#allocation2 + $0x470] sm:$0xff]
        %v2235 = vld [vmem:[#allocation2 + $0x478] sm:$0xff]
        %v2236 = vld [vmem:[#allocation2 + $0x480] sm:$0xff]
        %v2237 = vld [vmem:[#allocation2 + $0x488] sm:$0xff]
        %v2238 = vld [vmem:[#allocation2 + $0x490] sm:$0xff]
        %v2239 = vld [vmem:[#allocation2 + $0x498] sm:$0xff]
        %v2240 = vld [vmem:[#allocation2 + $0x4a0] sm:$0xff]
        %v2241 = vld [vmem:[#allocation2 + $0x4a8] sm:$0xff]
        %v2242 = vld [vmem:[#allocation2 + $0x4b0] sm:$0xff]
        %v2243 = vld [vmem:[#allocation2 + $0x4b8] sm:$0xff]
        %v2244 = vld [vmem:[#allocation2 + $0x4c0] sm:$0xff]
        %v2245 = vld [vmem:[#allocation2 + $0x4c8] sm:$0xff]
        %v2246 = vld [vmem:[#allocation2 + $0x4d0] sm:$0xff]
        %v2247 = vld [vmem:[#allocation2 + $0x4d8] sm:$0xff]
        %v2248 = vld [vmem:[#allocation2 + $0x4e0] sm:$0xff]
        %v2249 = vld [vmem:[#allocation2 + $0x4e8] sm:$0xff]
        %v2250 = vld [vmem:[#allocation2 + $0x4f0] sm:$0xff]
        %v2251 = vld [vmem:[#allocation2 + $0x4f8] sm:$0xff]
        %v2252 = vld [vmem:[#allocation2 + $0x500] sm:$0xff]
        %v2253 = vld [vmem:[#allocation2 + $0x508] sm:$0xff]
        %v2254 = vld [vmem:[#allocation2 + $0x510] sm:$0xff]
        %v2255 = vld [vmem:[#allocation2 + $0x518] sm:$0xff]
        %v2256 = vld [vmem:[#allocation2 + $0x520] sm:$0xff]
        %v2257 = vld [vmem:[#allocation2 + $0x528] sm:$0xff]
        %v2258 = vld [vmem:[#allocation2 + $0x530] sm:$0xff]
        %v2259 = vld [vmem:[#allocation2 + $0x538] sm:$0xff]
        %v2260 = vld [vmem:[#allocation2 + $0x540] sm:$0xff]
        %v2261 = vld [vmem:[#allocation2 + $0x548] sm:$0xff]
        %v2262 = vld [vmem:[#allocation2 + $0x550] sm:$0xff]
        %v2263 = vld [vmem:[#allocation2 + $0x558] sm:$0xff]
        %v2264 = vld [vmem:[#allocation2 + $0x560] sm:$0xff]
        %v2265 = vld [vmem:[#allocation2 + $0x568] sm:$0xff]
        %v2266 = vld [vmem:[#allocation2 + $0x570] sm:$0xff]
        %v2267 = vld [vmem:[#allocation2 + $0x578] sm:$0xff]
        %v2268 = vld [vmem:[#allocation2 + $0x580] sm:$0xff]
        %v2269 = vld [vmem:[#allocation2 + $0x588] sm:$0xff]
        %v2270 = vld [vmem:[#allocation2 + $0x590] sm:$0xff]
        %v2271 = vld [vmem:[#allocation2 + $0x598] sm:$0xff]
        %v2272 = vld [vmem:[#allocation2 + $0x5a0] sm:$0xff]
        %v2273 = vld [vmem:[#allocation2 + $0x5a8] sm:$0xff]
        %v2274 = vld [vmem:[#allocation2 + $0x5b0] sm:$0xff]
        %v2275 = vld [vmem:[#allocation2 + $0x5b8] sm:$0xff]
        %v2276 = vld [vmem:[#allocation2 + $0x5c0] sm:$0xff]
        %v2277 = vld [vmem:[#allocation2 + $0x5c8] sm:$0xff]
        %v2278 = vld [vmem:[#allocation2 + $0x5d0] sm:$0xff]
        %v2279 = vld [vmem:[#allocation2 + $0x5d8] sm:$0xff]
        %v2280 = vld [vmem:[#allocation2 + $0x5e0] sm:$0xff]
        %v2281 = vld [vmem:[#allocation2 + $0x5e8] sm:$0xff]
        %v2282 = vld [vmem:[#allocation2 + $0x5f0] sm:$0xff]
        %v2283 = vld [vmem:[#allocation2 + $0x5f8] sm:$0xff]
        %v2284 = vld [vmem:[#allocation2 + $0x600] sm:$0xff]
        %v2285 = vld [vmem:[#allocation2 + $0x608] sm:$0xff]
        %v2286 = vld [vmem:[#allocation2 + $0x610] sm:$0xff]
        %v2287 = vld [vmem:[#allocation2 + $0x618] sm:$0xff]
        %v2288 = vld [vmem:[#allocation2 + $0x620] sm:$0xff]
        %v2289 = vld [vmem:[#allocation2 + $0x628] sm:$0xff]
        %v2290 = vld [vmem:[#allocation2 + $0x630] sm:$0xff]
        %v2291 = vld [vmem:[#allocation2 + $0x638] sm:$0xff]
        %v2292 = vld [vmem:[#allocation2 + $0x640] sm:$0xff]
        %v2293 = vld [vmem:[#allocation2 + $0x648] sm:$0xff]
        %v2294 = vld [vmem:[#allocation2 + $0x650] sm:$0xff]
        %v2295 = vld [vmem:[#allocation2 + $0x658] sm:$0xff]
        %v2296 = vld [vmem:[#allocation2 + $0x660] sm:$0xff]
        %v2297 = vld [vmem:[#allocation2 + $0x668] sm:$0xff]
        %v2298 = vld [vmem:[#allocation2 + $0x670] sm:$0xff]
        %v2299 = vld [vmem:[#allocation2 + $0x678] sm:$0xff]
        %v2300 = vld [vmem:[#allocation2 + $0x680] sm:$0xff]
        %v2301 = vld [vmem:[#allocation2 + $0x688] sm:$0xff]
        %v2302 = vld [vmem:[#allocation2 + $0x690] sm:$0xff]
        %v2303 = vld [vmem:[#allocation2 + $0x698] sm:$0xff]
        %v2304 = vld [vmem:[#allocation2 + $0x6a0] sm:$0xff]
        %v2305 = vld [vmem:[#allocation2 + $0x6a8] sm:$0xff]
        %v2306 = vld [vmem:[#allocation2 + $0x6b0] sm:$0xff]
        %v2307 = vld [vmem:[#allocation2 + $0x6b8] sm:$0xff]
        %v2308 = vld [vmem:[#allocation2 + $0x6c0] sm:$0xff]
        %v2309 = vld [vmem:[#allocation2 + $0x6c8] sm:$0xff]
        %v2310 = vld [vmem:[#allocation2 + $0x6d0] sm:$0xff]
        %v2311 = vld [vmem:[#allocation2 + $0x6d8] sm:$0xff]
        %v2312 = vld [vmem:[#allocation2 + $0x6e0] sm:$0xff]
        %v2313 = vld [vmem:[#allocation2 + $0x6e8] sm:$0xff]
        %v2314 = vld [vmem:[#allocation2 + $0x6f0] sm:$0xff]
        %v2315 = vld [vmem:[#allocation2 + $0x6f8] sm:$0xff]
        %v2316 = vld [vmem:[#allocation2 + $0x700] sm:$0xff]
        %v2317 = vld [vmem:[#allocation2 + $0x708] sm:$0xff]
        %v2318 = vld [vmem:[#allocation2 + $0x710] sm:$0xff]
        %v2319 = vld [vmem:[#allocation2 + $0x718] sm:$0xff]
        %v2320 = vld [vmem:[#allocation2 + $0x720] sm:$0xff]
        %v2321 = vld [vmem:[#allocation2 + $0x728] sm:$0xff]
        %v2322 = vld [vmem:[#allocation2 + $0x730] sm:$0xff]
        %v2323 = vld [vmem:[#allocation2 + $0x738] sm:$0xff]
        %v2324 = vld [vmem:[#allocation2 + $0x740] sm:$0xff]
        %v2325 = vld [vmem:[#allocation2 + $0x748] sm:$0xff]
        %v2326 = vld [vmem:[#allocation2 + $0x750] sm:$0xff]
        %v2327 = vld [vmem:[#allocation2 + $0x758] sm:$0xff]
        %v2328 = vld [vmem:[#allocation2 + $0x760] sm:$0xff]
        %v2329 = vld [vmem:[#allocation2 + $0x768] sm:$0xff]
        %v2330 = vld [vmem:[#allocation2 + $0x770] sm:$0xff]
        %v2331 = vld [vmem:[#allocation2 + $0x778] sm:$0xff]
        %v2332 = vld [vmem:[#allocation2 + $0x780] sm:$0xff]
        %v2333 = vld [vmem:[#allocation2 + $0x788] sm:$0xff]
        %v2334 = vld [vmem:[#allocation2 + $0x790] sm:$0xff]
        %v2335 = vld [vmem:[#allocation2 + $0x798] sm:$0xff]
        %v2336 = vld [vmem:[#allocation2 + $0x7a0] sm:$0xff]
        %v2337 = vld [vmem:[#allocation2 + $0x7a8] sm:$0xff]
        %v2338 = vld [vmem:[#allocation2 + $0x7b0] sm:$0xff]
        %v2339 = vld [vmem:[#allocation2 + $0x7b8] sm:$0xff]
        %v2340 = vld [vmem:[#allocation2 + $0x7c0] sm:$0xff]
        %v2341 = vld [vmem:[#allocation2 + $0x7c8] sm:$0xff]
        %v2342 = vld [vmem:[#allocation2 + $0x7d0] sm:$0xff]
        %v2343 = vld [vmem:[#allocation2 + $0x7d8] sm:$0xff]
        %v2344 = vld [vmem:[#allocation2 + $0x7e0] sm:$0xff]
        %v2345 = vld [vmem:[#allocation2 + $0x7e8] sm:$0xff]
        %v2346 = vld [vmem:[#allocation2 + $0x7f0] sm:$0xff]
        %v2347 = vld [vmem:[#allocation2 + $0x7f8] sm:$0xff]
        %v2348 = vld [vmem:[#allocation2 + $0x800] sm:$0xff]
        %v2349 = vld [vmem:[#allocation2 + $0x808] sm:$0xff]
        %v2350 = vld [vmem:[#allocation2 + $0x810] sm:$0xff]
        %v2351 = vld [vmem:[#allocation2 + $0x818] sm:$0xff]
        %v2352 = vld [vmem:[#allocation2 + $0x820] sm:$0xff]
        %v2353 = vld [vmem:[#allocation2 + $0x828] sm:$0xff]
        %v2354 = vld [vmem:[#allocation2 + $0x830] sm:$0xff]
        %v2355 = vld [vmem:[#allocation2 + $0x838] sm:$0xff]
        %v2356 = vld [vmem:[#allocation2 + $0x840] sm:$0xff]
        %v2357 = vld [vmem:[#allocation2 + $0x848] sm:$0xff]
        %v2358 = vld [vmem:[#allocation2 + $0x850] sm:$0xff]
        %v2359 = vld [vmem:[#allocation2 + $0x858] sm:$0xff]
        %v2360 = vld [vmem:[#allocation2 + $0x860] sm:$0xff]
        %v2361 = vld [vmem:[#allocation2 + $0x868] sm:$0xff]
        %v2362 = vld [vmem:[#allocation2 + $0x870] sm:$0xff]
        %v2363 = vld [vmem:[#allocation2 + $0x878] sm:$0xff]
        %v2364 = vld [vmem:[#allocation2 + $0x880] sm:$0xff]
        %v2365 = vld [vmem:[#allocation2 + $0x888] sm:$0xff]
        %v2366 = vld [vmem:[#allocation2 + $0x890] sm:$0xff]
        %v2367 = vld [vmem:[#allocation2 + $0x898] sm:$0xff]
        %v2368 = vld [vmem:[#allocation2 + $0x8a0] sm:$0xff]
        %v2369 = vld [vmem:[#allocation2 + $0x8a8] sm:$0xff]
        %v2370 = vld [vmem:[#allocation2 + $0x8b0] sm:$0xff]
        %v2371 = vld [vmem:[#allocation2 + $0x8b8] sm:$0xff]
        %v2372 = vld [vmem:[#allocation2 + $0x8c0] sm:$0xff]
        %v2373 = vld [vmem:[#allocation2 + $0x8c8] sm:$0xff]
        %v2374 = vld [vmem:[#allocation2 + $0x8d0] sm:$0xff]
        %v2375 = vld [vmem:[#allocation2 + $0x8d8] sm:$0xff]
        %v2376 = vld [vmem:[#allocation2 + $0x8e0] sm:$0xff]
        %v2377 = vld [vmem:[#allocation2 + $0x8e8] sm:$0xff]
        %v2378 = vld [vmem:[#allocation2 + $0x8f0] sm:$0xff]
        %v2379 = vld [vmem:[#allocation2 + $0x8f8] sm:$0xff]
        %2380 = vmatprep.subr.mxu0 %v1769
        %2381 = vmatpush1.xpose.msra.mxu0 %v1768
        %2382 = vmatprep.subr.mxu0 %v1765
        %2383 = vmatpush1.xpose.msra.mxu0 %v1764
        %2384 = vmatprep.subr.mxu0 %v1761
        %2385 = vmatpush1.xpose.msra.mxu0 %v1760
        %2386 = vmatprep.subr.mxu0 %v1757
        %2387 = vmatpush1.xpose.msra.mxu0 %v1756
        %2388 = vmatprep.subr.mxu0 %v1753
        %2389 = vmatpush1.xpose.msra.mxu0 %v1752
        %2390 = vmatprep.subr.mxu0 %v1749
        %2391 = vmatpush1.xpose.msra.mxu0 %v1748
        %2392 = vmatprep.subr.mxu0 %v1745
        %2393 = vmatpush1.xpose.msra.mxu0 %v1744
        %2394 = vmatprep.subr.mxu0 %v1741
        %2395 = vmatpush1.xpose.msra.mxu0 %v1740
        %2396 = vmatprep.subr.mxu0 %v1737
        %2397 = vmatpush1.xpose.msra.mxu0 %v1736
        %2398 = vmatprep.subr.mxu0 %v1733
        %2399 = vmatpush1.xpose.msra.mxu0 %v1732
        %2400 = vmatprep.subr.mxu0 %v1729
        %2401 = vmatpush1.xpose.msra.mxu0 %v1728
        %2402 = vmatprep.subr.mxu0 %v1725
        %2403 = vmatpush1.xpose.msra.mxu0 %v1724
        %2404 = vmatprep.subr.mxu0 %v1721
        %2405 = vmatpush1.xpose.msra.mxu0 %v1720
        %2406 = vmatprep.subr.mxu0 %v1717
        %2407 = vmatpush1.xpose.msra.mxu0 %v1716
        %2408 = vmatprep.subr.mxu0 %v1713
        %2409 = vmatpush1.xpose.msra.mxu0 %v1712
        %2410 = vmatprep.subr.mxu0 %v1709
        %2411 = vmatpush1.xpose.msra.mxu0 %v1708
        %2412 = vmatprep.subr.mxu0 %v1833
        %2413 = vmatpush2.xpose.msra.mxu0 %v1832
        %2414 = vmatprep.subr.mxu0 %v1829
        %2415 = vmatpush2.xpose.msra.mxu0 %v1828
        %2416 = vmatprep.subr.mxu0 %v1825
        %2417 = vmatpush2.xpose.msra.mxu0 %v1824
        %2418 = vmatprep.subr.mxu0 %v1821
        %2419 = vmatpush2.xpose.msra.mxu0 %v1820
        %2420 = vmatprep.subr.mxu0 %v1817
        %2421 = vmatpush2.xpose.msra.mxu0 %v1816
        %2422 = vmatprep.subr.mxu0 %v1813
        %2423 = vmatpush2.xpose.msra.mxu0 %v1812
        %2424 = vmatprep.subr.mxu0 %v1809
        %2425 = vmatpush2.xpose.msra.mxu0 %v1808
        %2426 = vmatprep.subr.mxu0 %v1805
        %2427 = vmatpush2.xpose.msra.mxu0 %v1804
        %2428 = vmatprep.subr.mxu0 %v1801
        %2429 = vmatpush2.xpose.msra.mxu0 %v1800
        %2430 = vmatprep.subr.mxu0 %v1797
        %2431 = vmatpush2.xpose.msra.mxu0 %v1796
        %2432 = vmatprep.subr.mxu0 %v1793
        %2433 = vmatpush2.xpose.msra.mxu0 %v1792
        %2434 = vmatprep.subr.mxu0 %v1789
        %2435 = vmatpush2.xpose.msra.mxu0 %v1788
        %2436 = vmatprep.subr.mxu0 %v1785
        %2437 = vmatpush2.xpose.msra.mxu0 %v1784
        %2438 = vmatprep.subr.mxu0 %v1781
        %2439 = vmatpush2.xpose.msra.mxu0 %v1780
        %2440 = vmatprep.subr.mxu0 %v1777
        %2441 = vmatpush2.xpose.msra.mxu0 %v1776
        %2442 = vmatprep.subr.mxu0 %v1773
        %2443 = vmatpush2.xpose.msra.mxu0 %v1772
        %2444 = vmatprep.mubr.f32.mxu0 %v1517
        %2445 = vmatmul.mubr.f32.gmra.mxu0 %v1516
        %v2446 = vpop.f32.mrf.mxu0
        %v2447 = vadd.f32 0.0, %v2446
        %v2448 = vpop.f32.mrf.mxu0
        %v2449 = vadd.f32 0.0, %v2448
        %2450 = vmatprep.mubr.f32.mxu0 %v1521
        %2451 = vmatmul.mubr.f32.gmra.mxu0 %v1520
        %v2452 = vpop.f32.mrf.mxu0
        %v2453 = vadd.f32 0.0, %v2452
        %v2454 = vpop.f32.mrf.mxu0
        %v2455 = vadd.f32 0.0, %v2454
        %2456 = vmatprep.mubr.f32.mxu0 %v1525
        %2457 = vmatmul.mubr.f32.gmra.mxu0 %v1524
        %v2458 = vpop.f32.mrf.mxu0
        %v2459 = vadd.f32 0.0, %v2458
        %v2460 = vpop.f32.mrf.mxu0
        %v2461 = vadd.f32 0.0, %v2460
        %2462 = vmatprep.mubr.f32.mxu0 %v1529
        %2463 = vmatmul.mubr.f32.gmra.mxu0 %v1528
        %v2464 = vpop.f32.mrf.mxu0
        %v2465 = vadd.f32 0.0, %v2464
        %v2466 = vpop.f32.mrf.mxu0
        %v2467 = vadd.f32 0.0, %v2466
        %2468 = vmatprep.mubr.f32.mxu0 %v1533
        %2469 = vmatmul.mubr.f32.gmra.mxu0 %v1532
        %v2470 = vpop.f32.mrf.mxu0
        %v2471 = vadd.f32 0.0, %v2470
        %v2472 = vpop.f32.mrf.mxu0
        %v2473 = vadd.f32 0.0, %v2472
        %2474 = vmatprep.mubr.f32.mxu0 %v1537
        %2475 = vmatmul.mubr.f32.gmra.mxu0 %v1536
        %v2476 = vpop.f32.mrf.mxu0
        %v2477 = vadd.f32 0.0, %v2476
        %v2478 = vpop.f32.mrf.mxu0
        %v2479 = vadd.f32 0.0, %v2478
        %2480 = vmatprep.mubr.f32.mxu0 %v1541
        %2481 = vmatmul.mubr.f32.gmra.mxu0 %v1540
        %v2482 = vpop.f32.mrf.mxu0
        %v2483 = vadd.f32 0.0, %v2482
        %v2484 = vpop.f32.mrf.mxu0
        %v2485 = vadd.f32 0.0, %v2484
        %2486 = vmatprep.mubr.f32.mxu0 %v1545
        %2487 = vmatmul.mubr.f32.gmra.mxu0 %v1544
        %v2488 = vpop.f32.mrf.mxu0
        %v2489 = vadd.f32 0.0, %v2488
        %v2490 = vpop.f32.mrf.mxu0
        %v2491 = vadd.f32 0.0, %v2490
        %2492 = vmatprep.mubr.f32.mxu0 %v1549
        %2493 = vmatmul.mubr.f32.gmra.mxu0 %v1548
        %v2494 = vpop.f32.mrf.mxu0
        %v2495 = vadd.f32 0.0, %v2494
        %v2496 = vpop.f32.mrf.mxu0
        %v2497 = vadd.f32 0.0, %v2496
        %2498 = vmatprep.mubr.f32.mxu0 %v1553
        %2499 = vmatmul.mubr.f32.gmra.mxu0 %v1552
        %v2500 = vpop.f32.mrf.mxu0
        %v2501 = vadd.f32 0.0, %v2500
        %v2502 = vpop.f32.mrf.mxu0
        %v2503 = vadd.f32 0.0, %v2502
        %2504 = vmatprep.mubr.f32.mxu0 %v1557
        %2505 = vmatmul.mubr.f32.gmra.mxu0 %v1556
        %v2506 = vpop.f32.mrf.mxu0
        %v2507 = vadd.f32 0.0, %v2506
        %v2508 = vpop.f32.mrf.mxu0
        %v2509 = vadd.f32 0.0, %v2508
        %2510 = vmatprep.mubr.f32.mxu0 %v1561
        %2511 = vmatmul.mubr.f32.gmra.mxu0 %v1560
        %v2512 = vpop.f32.mrf.mxu0
        %v2513 = vadd.f32 0.0, %v2512
        %v2514 = vpop.f32.mrf.mxu0
        %v2515 = vadd.f32 0.0, %v2514
        %2516 = vmatprep.mubr.f32.mxu0 %v1565
        %2517 = vmatmul.mubr.f32.gmra.mxu0 %v1564
        %v2518 = vpop.f32.mrf.mxu0
        %v2519 = vadd.f32 0.0, %v2518
        %v2520 = vpop.f32.mrf.mxu0
        %v2521 = vadd.f32 0.0, %v2520
        %2522 = vmatprep.mubr.f32.mxu0 %v1569
        %2523 = vmatmul.mubr.f32.gmra.mxu0 %v1568
        %v2524 = vpop.f32.mrf.mxu0
        %v2525 = vadd.f32 0.0, %v2524
        %v2526 = vpop.f32.mrf.mxu0
        %v2527 = vadd.f32 0.0, %v2526
        %2528 = vmatprep.mubr.f32.mxu0 %v1573
        %2529 = vmatmul.mubr.f32.gmra.mxu0 %v1572
        %v2530 = vpop.f32.mrf.mxu0
        %v2531 = vadd.f32 0.0, %v2530
        %v2532 = vpop.f32.mrf.mxu0
        %v2533 = vadd.f32 0.0, %v2532
        %2534 = vmatprep.mubr.f32.mxu0 %v1577
        %2535 = vmatmul.mubr.f32.gmra.mxu0 %v1576
        %v2536 = vpop.f32.mrf.mxu0
        %v2537 = vadd.f32 0.0, %v2536
        %v2538 = vpop.f32.mrf.mxu0
        %v2539 = vadd.f32 0.0, %v2538
        %2540 = vmatprep.mubr.f32.mxu0 %v1581
        %2541 = vmatmul.mubr.f32.gmra.mxu0 %v1580
        %v2542 = vpop.f32.mrf.mxu0
        %v2543 = vadd.f32 0.0, %v2542
        %v2544 = vpop.f32.mrf.mxu0
        %v2545 = vadd.f32 0.0, %v2544
        %2546 = vmatprep.mubr.f32.mxu0 %v1585
        %2547 = vmatmul.mubr.f32.gmra.mxu0 %v1584
        %v2548 = vpop.f32.mrf.mxu0
        %v2549 = vadd.f32 0.0, %v2548
        %v2550 = vpop.f32.mrf.mxu0
        %v2551 = vadd.f32 0.0, %v2550
        %2552 = vmatprep.mubr.f32.mxu0 %v1589
        %2553 = vmatmul.mubr.f32.gmra.mxu0 %v1588
        %v2554 = vpop.f32.mrf.mxu0
        %v2555 = vadd.f32 0.0, %v2554
        %v2556 = vpop.f32.mrf.mxu0
        %v2557 = vadd.f32 0.0, %v2556
        %2558 = vmatprep.mubr.f32.mxu0 %v1593
        %2559 = vmatmul.mubr.f32.gmra.mxu0 %v1592
        %v2560 = vpop.f32.mrf.mxu0
        %v2561 = vadd.f32 0.0, %v2560
        %v2562 = vpop.f32.mrf.mxu0
        %v2563 = vadd.f32 0.0, %v2562
        %2564 = vmatprep.mubr.f32.mxu0 %v1597
        %2565 = vmatmul.mubr.f32.gmra.mxu0 %v1596
        %v2566 = vpop.f32.mrf.mxu0
        %v2567 = vadd.f32 0.0, %v2566
        %v2568 = vpop.f32.mrf.mxu0
        %v2569 = vadd.f32 0.0, %v2568
        %2570 = vmatprep.mubr.f32.mxu0 %v1601
        %2571 = vmatmul.mubr.f32.gmra.mxu0 %v1600
        %v2572 = vpop.f32.mrf.mxu0
        %v2573 = vadd.f32 0.0, %v2572
        %v2574 = vpop.f32.mrf.mxu0
        %v2575 = vadd.f32 0.0, %v2574
        %2576 = vmatprep.mubr.f32.mxu0 %v1605
        %2577 = vmatmul.mubr.f32.gmra.mxu0 %v1604
        %v2578 = vpop.f32.mrf.mxu0
        %v2579 = vadd.f32 0.0, %v2578
        %v2580 = vpop.f32.mrf.mxu0
        %v2581 = vadd.f32 0.0, %v2580
        %2582 = vmatprep.mubr.f32.mxu0 %v1609
        %2583 = vmatmul.mubr.f32.gmra.mxu0 %v1608
        %v2584 = vpop.f32.mrf.mxu0
        %v2585 = vadd.f32 0.0, %v2584
        %v2586 = vpop.f32.mrf.mxu0
        %v2587 = vadd.f32 0.0, %v2586
        %2588 = vmatprep.mubr.f32.mxu0 %v1613
        %2589 = vmatmul.mubr.f32.gmra.mxu0 %v1612
        %v2590 = vpop.f32.mrf.mxu0
        %v2591 = vadd.f32 0.0, %v2590
        %v2592 = vpop.f32.mrf.mxu0
        %v2593 = vadd.f32 0.0, %v2592
        %2594 = vmatprep.mubr.f32.mxu0 %v1617
        %2595 = vmatmul.mubr.f32.gmra.mxu0 %v1616
        %v2596 = vpop.f32.mrf.mxu0
        %v2597 = vadd.f32 0.0, %v2596
        %v2598 = vpop.f32.mrf.mxu0
        %v2599 = vadd.f32 0.0, %v2598
        %2600 = vmatprep.mubr.f32.mxu0 %v1621
        %2601 = vmatmul.mubr.f32.gmra.mxu0 %v1620
        %v2602 = vpop.f32.mrf.mxu0
        %v2603 = vadd.f32 0.0, %v2602
        %v2604 = vpop.f32.mrf.mxu0
        %v2605 = vadd.f32 0.0, %v2604
        %2606 = vmatprep.mubr.f32.mxu0 %v1625
        %2607 = vmatmul.mubr.f32.gmra.mxu0 %v1624
        %v2608 = vpop.f32.mrf.mxu0
        %v2609 = vadd.f32 0.0, %v2608
        %v2610 = vpop.f32.mrf.mxu0
        %v2611 = vadd.f32 0.0, %v2610
        %2612 = vmatprep.mubr.f32.mxu0 %v1629
        %2613 = vmatmul.mubr.f32.gmra.mxu0 %v1628
        %v2614 = vpop.f32.mrf.mxu0
        %v2615 = vadd.f32 0.0, %v2614
        %v2616 = vpop.f32.mrf.mxu0
        %v2617 = vadd.f32 0.0, %v2616
        %2618 = vmatprep.mubr.f32.mxu0 %v1633
        %2619 = vmatmul.mubr.f32.gmra.mxu0 %v1632
        %v2620 = vpop.f32.mrf.mxu0
        %v2621 = vadd.f32 0.0, %v2620
        %v2622 = vpop.f32.mrf.mxu0
        %v2623 = vadd.f32 0.0, %v2622
        %2624 = vmatprep.mubr.f32.mxu0 %v1637
        %2625 = vmatmul.mubr.f32.gmra.mxu0 %v1636
        %v2626 = vpop.f32.mrf.mxu0
        %v2627 = vadd.f32 0.0, %v2626
        %v2628 = vpop.f32.mrf.mxu0
        %v2629 = vadd.f32 0.0, %v2628
        %2630 = vmatprep.mubr.f32.mxu0 %v1641
        %2631 = vmatmul.mubr.f32.gmra.mxu0 %v1640
        %v2632 = vpop.f32.mrf.mxu0
        %v2633 = vadd.f32 0.0, %v2632
        %v2634 = vpop.f32.mrf.mxu0
        %v2635 = vadd.f32 0.0, %v2634
        %2636 = vmatprep.mubr.f32.mxu0 %v1645
        %2637 = vmatmul.mubr.f32.gmra.mxu0 %v1644
        %v2638 = vpop.f32.mrf.mxu0
        %v2639 = vadd.f32 0.0, %v2638
        %v2640 = vpop.f32.mrf.mxu0
        %v2641 = vadd.f32 0.0, %v2640
        %2642 = vmatprep.mubr.f32.mxu0 %v1649
        %2643 = vmatmul.mubr.f32.gmra.mxu0 %v1648
        %v2644 = vpop.f32.mrf.mxu0
        %v2645 = vadd.f32 0.0, %v2644
        %v2646 = vpop.f32.mrf.mxu0
        %v2647 = vadd.f32 0.0, %v2646
        %2648 = vmatprep.mubr.f32.mxu0 %v1653
        %2649 = vmatmul.mubr.f32.gmra.mxu0 %v1652
        %v2650 = vpop.f32.mrf.mxu0
        %v2651 = vadd.f32 0.0, %v2650
        %v2652 = vpop.f32.mrf.mxu0
        %v2653 = vadd.f32 0.0, %v2652
        %2654 = vmatprep.mubr.f32.mxu0 %v1657
        %2655 = vmatmul.mubr.f32.gmra.mxu0 %v1656
        %v2656 = vpop.f32.mrf.mxu0
        %v2657 = vadd.f32 0.0, %v2656
        %v2658 = vpop.f32.mrf.mxu0
        %v2659 = vadd.f32 0.0, %v2658
        %2660 = vmatprep.mubr.f32.mxu0 %v1661
        %2661 = vmatmul.mubr.f32.gmra.mxu0 %v1660
        %v2662 = vpop.f32.mrf.mxu0
        %v2663 = vadd.f32 0.0, %v2662
        %v2664 = vpop.f32.mrf.mxu0
        %v2665 = vadd.f32 0.0, %v2664
        %2666 = vmatprep.mubr.f32.mxu0 %v1665
        %2667 = vmatmul.mubr.f32.gmra.mxu0 %v1664
        %v2668 = vpop.f32.mrf.mxu0
        %v2669 = vadd.f32 0.0, %v2668
        %v2670 = vpop.f32.mrf.mxu0
        %v2671 = vadd.f32 0.0, %v2670
        %2672 = vmatprep.mubr.f32.mxu0 %v1669
        %2673 = vmatmul.mubr.f32.gmra.mxu0 %v1668
        %v2674 = vpop.f32.mrf.mxu0
        %v2675 = vadd.f32 0.0, %v2674
        %v2676 = vpop.f32.mrf.mxu0
        %v2677 = vadd.f32 0.0, %v2676
        %2678 = vmatprep.mubr.f32.mxu0 %v1673
        %2679 = vmatmul.mubr.f32.gmra.mxu0 %v1672
        %v2680 = vpop.f32.mrf.mxu0
        %v2681 = vadd.f32 0.0, %v2680
        %v2682 = vpop.f32.mrf.mxu0
        %v2683 = vadd.f32 0.0, %v2682
        %2684 = vmatprep.mubr.f32.mxu0 %v1677
        %2685 = vmatmul.mubr.f32.gmra.mxu0 %v1676
        %v2686 = vpop.f32.mrf.mxu0
        %v2687 = vadd.f32 0.0, %v2686
        %v2688 = vpop.f32.mrf.mxu0
        %v2689 = vadd.f32 0.0, %v2688
        %2690 = vmatprep.mubr.f32.mxu0 %v1681
        %2691 = vmatmul.mubr.f32.gmra.mxu0 %v1680
        %v2692 = vpop.f32.mrf.mxu0
        %v2693 = vadd.f32 0.0, %v2692
        %v2694 = vpop.f32.mrf.mxu0
        %v2695 = vadd.f32 0.0, %v2694
        %2696 = vmatprep.mubr.f32.mxu0 %v1685
        %2697 = vmatmul.mubr.f32.gmra.mxu0 %v1684
        %v2698 = vpop.f32.mrf.mxu0
        %v2699 = vadd.f32 0.0, %v2698
        %v2700 = vpop.f32.mrf.mxu0
        %v2701 = vadd.f32 0.0, %v2700
        %2702 = vmatprep.mubr.f32.mxu0 %v1689
        %2703 = vmatmul.mubr.f32.gmra.mxu0 %v1688
        %v2704 = vpop.f32.mrf.mxu0
        %v2705 = vadd.f32 0.0, %v2704
        %v2706 = vpop.f32.mrf.mxu0
        %v2707 = vadd.f32 0.0, %v2706
        %2708 = vmatprep.mubr.f32.mxu0 %v1693
        %2709 = vmatmul.mubr.f32.gmra.mxu0 %v1692
        %v2710 = vpop.f32.mrf.mxu0
        %v2711 = vadd.f32 0.0, %v2710
        %v2712 = vpop.f32.mrf.mxu0
        %v2713 = vadd.f32 0.0, %v2712
        %2714 = vmatprep.mubr.f32.mxu0 %v1697
        %2715 = vmatmul.mubr.f32.gmra.mxu0 %v1696
        %v2716 = vpop.f32.mrf.mxu0
        %v2717 = vadd.f32 0.0, %v2716
        %v2718 = vpop.f32.mrf.mxu0
        %v2719 = vadd.f32 0.0, %v2718
        %2720 = vmatprep.mubr.f32.mxu0 %v1701
        %2721 = vmatmul.mubr.f32.gmra.mxu0 %v1700
        %v2722 = vpop.f32.mrf.mxu0
        %v2723 = vadd.f32 0.0, %v2722
        %v2724 = vpop.f32.mrf.mxu0
        %v2725 = vadd.f32 0.0, %v2724
        %2726 = vmatprep.mubr.f32.mxu0 %v1705
        %2727 = vmatmul.mubr.f32.gmra.mxu0 %v1704
        %v2728 = vpop.f32.mrf.mxu0
        %v2729 = vadd.f32 0.0, %v2728
        %v2730 = vpop.f32.mrf.mxu0
        %v2731 = vadd.f32 0.0, %v2730
        %2732 = vdwg.mxu0
        %2733 = vmatprep.subr.mxu0 %v1771
        %2734 = vmatpush1.xpose.msra.mxu0 %v1770
        %2735 = vmatprep.subr.mxu0 %v1767
        %2736 = vmatpush1.xpose.msra.mxu0 %v1766
        %2737 = vmatprep.subr.mxu0 %v1763
        %2738 = vmatpush1.xpose.msra.mxu0 %v1762
        %2739 = vmatprep.subr.mxu0 %v1759
        %2740 = vmatpush1.xpose.msra.mxu0 %v1758
        %2741 = vmatprep.subr.mxu0 %v1755
        %2742 = vmatpush1.xpose.msra.mxu0 %v1754
        %2743 = vmatprep.subr.mxu0 %v1751
        %2744 = vmatpush1.xpose.msra.mxu0 %v1750
        %2745 = vmatprep.subr.mxu0 %v1747
        %2746 = vmatpush1.xpose.msra.mxu0 %v1746
        %2747 = vmatprep.subr.mxu0 %v1743
        %2748 = vmatpush1.xpose.msra.mxu0 %v1742
        %2749 = vmatprep.subr.mxu0 %v1739
        %2750 = vmatpush1.xpose.msra.mxu0 %v1738
        %2751 = vmatprep.subr.mxu0 %v1735
        %2752 = vmatpush1.xpose.msra.mxu0 %v1734
        %2753 = vmatprep.subr.mxu0 %v1731
        %2754 = vmatpush1.xpose.msra.mxu0 %v1730
        %2755 = vmatprep.subr.mxu0 %v1727
        %2756 = vmatpush1.xpose.msra.mxu0 %v1726
        %2757 = vmatprep.subr.mxu0 %v1723
        %2758 = vmatpush1.xpose.msra.mxu0 %v1722
        %2759 = vmatprep.subr.mxu0 %v1719
        %2760 = vmatpush1.xpose.msra.mxu0 %v1718
        %2761 = vmatprep.subr.mxu0 %v1715
        %2762 = vmatpush1.xpose.msra.mxu0 %v1714
        %2763 = vmatprep.subr.mxu0 %v1711
        %2764 = vmatpush1.xpose.msra.mxu0 %v1710
        %2765 = vmatprep.subr.mxu0 %v1835
        %2766 = vmatpush2.xpose.msra.mxu0 %v1834
        %2767 = vmatprep.subr.mxu0 %v1831
        %2768 = vmatpush2.xpose.msra.mxu0 %v1830
        %2769 = vmatprep.subr.mxu0 %v1827
        %2770 = vmatpush2.xpose.msra.mxu0 %v1826
        %2771 = vmatprep.subr.mxu0 %v1823
        %2772 = vmatpush2.xpose.msra.mxu0 %v1822
        %2773 = vmatprep.subr.mxu0 %v1819
        %2774 = vmatpush2.xpose.msra.mxu0 %v1818
        %2775 = vmatprep.subr.mxu0 %v1815
        %2776 = vmatpush2.xpose.msra.mxu0 %v1814
        %2777 = vmatprep.subr.mxu0 %v1811
        %2778 = vmatpush2.xpose.msra.mxu0 %v1810
        %2779 = vmatprep.subr.mxu0 %v1807
        %2780 = vmatpush2.xpose.msra.mxu0 %v1806
        %2781 = vmatprep.subr.mxu0 %v1803
        %2782 = vmatpush2.xpose.msra.mxu0 %v1802
        %2783 = vmatprep.subr.mxu0 %v1799
        %2784 = vmatpush2.xpose.msra.mxu0 %v1798
        %2785 = vmatprep.subr.mxu0 %v1795
        %2786 = vmatpush2.xpose.msra.mxu0 %v1794
        %2787 = vmatprep.subr.mxu0 %v1791
        %2788 = vmatpush2.xpose.msra.mxu0 %v1790
        %2789 = vmatprep.subr.mxu0 %v1787
        %2790 = vmatpush2.xpose.msra.mxu0 %v1786
        %2791 = vmatprep.subr.mxu0 %v1783
        %2792 = vmatpush2.xpose.msra.mxu0 %v1782
        %2793 = vmatprep.subr.mxu0 %v1779
        %2794 = vmatpush2.xpose.msra.mxu0 %v1778
        %2795 = vmatprep.subr.mxu0 %v1775
        %2796 = vmatpush2.xpose.msra.mxu0 %v1774
        %2797 = vmatprep.mubr.f32.mxu0 %v1519
        %2798 = vmatmul.mubr.f32.gmra.mxu0 %v1518
        %v2799 = vpop.f32.mrf.mxu0
        %v2800 = vadd.f32 %v2447, %v2799
        %v2801 = vpop.f32.mrf.mxu0
        %v2802 = vadd.f32 %v2449, %v2801
        %2803 = vmatprep.mubr.f32.mxu0 %v1523
        %2804 = vmatmul.mubr.f32.gmra.mxu0 %v1522
        %v2805 = vpop.f32.mrf.mxu0
        %v2806 = vadd.f32 %v2453, %v2805
        %v2807 = vpop.f32.mrf.mxu0
        %v2808 = vadd.f32 %v2455, %v2807
        %2809 = vmatprep.mubr.f32.mxu0 %v1527
        %2810 = vmatmul.mubr.f32.gmra.mxu0 %v1526
        %v2811 = vpop.f32.mrf.mxu0
        %v2812 = vadd.f32 %v2459, %v2811
        %v2813 = vpop.f32.mrf.mxu0
        %v2814 = vadd.f32 %v2461, %v2813
        %2815 = vmatprep.mubr.f32.mxu0 %v1531
        %2816 = vmatmul.mubr.f32.gmra.mxu0 %v1530
        %v2817 = vpop.f32.mrf.mxu0
        %v2818 = vadd.f32 %v2465, %v2817
        %v2819 = vpop.f32.mrf.mxu0
        %v2820 = vadd.f32 %v2467, %v2819
        %2821 = vmatprep.mubr.f32.mxu0 %v1535
        %2822 = vmatmul.mubr.f32.gmra.mxu0 %v1534
        %v2823 = vpop.f32.mrf.mxu0
        %v2824 = vadd.f32 %v2471, %v2823
        %v2825 = vpop.f32.mrf.mxu0
        %v2826 = vadd.f32 %v2473, %v2825
        %2827 = vmatprep.mubr.f32.mxu0 %v1539
        %2828 = vmatmul.mubr.f32.gmra.mxu0 %v1538
        %v2829 = vpop.f32.mrf.mxu0
        %v2830 = vadd.f32 %v2477, %v2829
        %v2831 = vpop.f32.mrf.mxu0
        %v2832 = vadd.f32 %v2479, %v2831
        %2833 = vmatprep.mubr.f32.mxu0 %v1543
        %2834 = vmatmul.mubr.f32.gmra.mxu0 %v1542
        %v2835 = vpop.f32.mrf.mxu0
        %v2836 = vadd.f32 %v2483, %v2835
        %v2837 = vpop.f32.mrf.mxu0
        %v2838 = vadd.f32 %v2485, %v2837
        %2839 = vmatprep.mubr.f32.mxu0 %v1547
        %2840 = vmatmul.mubr.f32.gmra.mxu0 %v1546
        %v2841 = vpop.f32.mrf.mxu0
        %v2842 = vadd.f32 %v2489, %v2841
        %v2843 = vpop.f32.mrf.mxu0
        %v2844 = vadd.f32 %v2491, %v2843
        %2845 = vmatprep.mubr.f32.mxu0 %v1551
        %2846 = vmatmul.mubr.f32.gmra.mxu0 %v1550
        %v2847 = vpop.f32.mrf.mxu0
        %v2848 = vadd.f32 %v2495, %v2847
        %v2849 = vpop.f32.mrf.mxu0
        %v2850 = vadd.f32 %v2497, %v2849
        %2851 = vmatprep.mubr.f32.mxu0 %v1555
        %2852 = vmatmul.mubr.f32.gmra.mxu0 %v1554
        %v2853 = vpop.f32.mrf.mxu0
        %v2854 = vadd.f32 %v2501, %v2853
        %v2855 = vpop.f32.mrf.mxu0
        %v2856 = vadd.f32 %v2503, %v2855
        %2857 = vmatprep.mubr.f32.mxu0 %v1559
        %2858 = vmatmul.mubr.f32.gmra.mxu0 %v1558
        %v2859 = vpop.f32.mrf.mxu0
        %v2860 = vadd.f32 %v2507, %v2859
        %v2861 = vpop.f32.mrf.mxu0
        %v2862 = vadd.f32 %v2509, %v2861
        %2863 = vmatprep.mubr.f32.mxu0 %v1563
        %2864 = vmatmul.mubr.f32.gmra.mxu0 %v1562
        %v2865 = vpop.f32.mrf.mxu0
        %v2866 = vadd.f32 %v2513, %v2865
        %v2867 = vpop.f32.mrf.mxu0
        %v2868 = vadd.f32 %v2515, %v2867
        %2869 = vmatprep.mubr.f32.mxu0 %v1567
        %2870 = vmatmul.mubr.f32.gmra.mxu0 %v1566
        %v2871 = vpop.f32.mrf.mxu0
        %v2872 = vadd.f32 %v2519, %v2871
        %v2873 = vpop.f32.mrf.mxu0
        %v2874 = vadd.f32 %v2521, %v2873
        %2875 = vmatprep.mubr.f32.mxu0 %v1571
        %2876 = vmatmul.mubr.f32.gmra.mxu0 %v1570
        %v2877 = vpop.f32.mrf.mxu0
        %v2878 = vadd.f32 %v2525, %v2877
        %v2879 = vpop.f32.mrf.mxu0
        %v2880 = vadd.f32 %v2527, %v2879
        %2881 = vmatprep.mubr.f32.mxu0 %v1575
        %2882 = vmatmul.mubr.f32.gmra.mxu0 %v1574
        %v2883 = vpop.f32.mrf.mxu0
        %v2884 = vadd.f32 %v2531, %v2883
        %v2885 = vpop.f32.mrf.mxu0
        %v2886 = vadd.f32 %v2533, %v2885
        %2887 = vmatprep.mubr.f32.mxu0 %v1579
        %2888 = vmatmul.mubr.f32.gmra.mxu0 %v1578
        %v2889 = vpop.f32.mrf.mxu0
        %v2890 = vadd.f32 %v2537, %v2889
        %v2891 = vpop.f32.mrf.mxu0
        %v2892 = vadd.f32 %v2539, %v2891
        %2893 = vmatprep.mubr.f32.mxu0 %v1583
        %2894 = vmatmul.mubr.f32.gmra.mxu0 %v1582
        %v2895 = vpop.f32.mrf.mxu0
        %v2896 = vadd.f32 %v2543, %v2895
        %v2897 = vpop.f32.mrf.mxu0
        %v2898 = vadd.f32 %v2545, %v2897
        %2899 = vmatprep.mubr.f32.mxu0 %v1587
        %2900 = vmatmul.mubr.f32.gmra.mxu0 %v1586
        %v2901 = vpop.f32.mrf.mxu0
        %v2902 = vadd.f32 %v2549, %v2901
        %v2903 = vpop.f32.mrf.mxu0
        %v2904 = vadd.f32 %v2551, %v2903
        %2905 = vmatprep.mubr.f32.mxu0 %v1591
        %2906 = vmatmul.mubr.f32.gmra.mxu0 %v1590
        %v2907 = vpop.f32.mrf.mxu0
        %v2908 = vadd.f32 %v2555, %v2907
        %v2909 = vpop.f32.mrf.mxu0
        %v2910 = vadd.f32 %v2557, %v2909
        %2911 = vmatprep.mubr.f32.mxu0 %v1595
        %2912 = vmatmul.mubr.f32.gmra.mxu0 %v1594
        %v2913 = vpop.f32.mrf.mxu0
        %v2914 = vadd.f32 %v2561, %v2913
        %v2915 = vpop.f32.mrf.mxu0
        %v2916 = vadd.f32 %v2563, %v2915
        %2917 = vmatprep.mubr.f32.mxu0 %v1599
        %2918 = vmatmul.mubr.f32.gmra.mxu0 %v1598
        %v2919 = vpop.f32.mrf.mxu0
        %v2920 = vadd.f32 %v2567, %v2919
        %v2921 = vpop.f32.mrf.mxu0
        %v2922 = vadd.f32 %v2569, %v2921
        %2923 = vmatprep.mubr.f32.mxu0 %v1603
        %2924 = vmatmul.mubr.f32.gmra.mxu0 %v1602
        %v2925 = vpop.f32.mrf.mxu0
        %v2926 = vadd.f32 %v2573, %v2925
        %v2927 = vpop.f32.mrf.mxu0
        %v2928 = vadd.f32 %v2575, %v2927
        %2929 = vmatprep.mubr.f32.mxu0 %v1607
        %2930 = vmatmul.mubr.f32.gmra.mxu0 %v1606
        %v2931 = vpop.f32.mrf.mxu0
        %v2932 = vadd.f32 %v2579, %v2931
        %v2933 = vpop.f32.mrf.mxu0
        %v2934 = vadd.f32 %v2581, %v2933
        %2935 = vmatprep.mubr.f32.mxu0 %v1611
        %2936 = vmatmul.mubr.f32.gmra.mxu0 %v1610
        %v2937 = vpop.f32.mrf.mxu0
        %v2938 = vadd.f32 %v2585, %v2937
        %v2939 = vpop.f32.mrf.mxu0
        %v2940 = vadd.f32 %v2587, %v2939
        %2941 = vmatprep.mubr.f32.mxu0 %v1615
        %2942 = vmatmul.mubr.f32.gmra.mxu0 %v1614
        %v2943 = vpop.f32.mrf.mxu0
        %v2944 = vadd.f32 %v2591, %v2943
        %v2945 = vpop.f32.mrf.mxu0
        %v2946 = vadd.f32 %v2593, %v2945
        %2947 = vmatprep.mubr.f32.mxu0 %v1619
        %2948 = vmatmul.mubr.f32.gmra.mxu0 %v1618
        %v2949 = vpop.f32.mrf.mxu0
        %v2950 = vadd.f32 %v2597, %v2949
        %v2951 = vpop.f32.mrf.mxu0
        %v2952 = vadd.f32 %v2599, %v2951
        %2953 = vmatprep.mubr.f32.mxu0 %v1623
        %2954 = vmatmul.mubr.f32.gmra.mxu0 %v1622
        %v2955 = vpop.f32.mrf.mxu0
        %v2956 = vadd.f32 %v2603, %v2955
        %v2957 = vpop.f32.mrf.mxu0
        %v2958 = vadd.f32 %v2605, %v2957
        %2959 = vmatprep.mubr.f32.mxu0 %v1627
        %2960 = vmatmul.mubr.f32.gmra.mxu0 %v1626
        %v2961 = vpop.f32.mrf.mxu0
        %v2962 = vadd.f32 %v2609, %v2961
        %v2963 = vpop.f32.mrf.mxu0
        %v2964 = vadd.f32 %v2611, %v2963
        %2965 = vmatprep.mubr.f32.mxu0 %v1631
        %2966 = vmatmul.mubr.f32.gmra.mxu0 %v1630
        %v2967 = vpop.f32.mrf.mxu0
        %v2968 = vadd.f32 %v2615, %v2967
        %v2969 = vpop.f32.mrf.mxu0
        %v2970 = vadd.f32 %v2617, %v2969
        %2971 = vmatprep.mubr.f32.mxu0 %v1635
        %2972 = vmatmul.mubr.f32.gmra.mxu0 %v1634
        %v2973 = vpop.f32.mrf.mxu0
        %v2974 = vadd.f32 %v2621, %v2973
        %v2975 = vpop.f32.mrf.mxu0
        %v2976 = vadd.f32 %v2623, %v2975
        %2977 = vmatprep.mubr.f32.mxu0 %v1639
        %2978 = vmatmul.mubr.f32.gmra.mxu0 %v1638
        %v2979 = vpop.f32.mrf.mxu0
        %v2980 = vadd.f32 %v2627, %v2979
        %v2981 = vpop.f32.mrf.mxu0
        %v2982 = vadd.f32 %v2629, %v2981
        %2983 = vmatprep.mubr.f32.mxu0 %v1643
        %2984 = vmatmul.mubr.f32.gmra.mxu0 %v1642
        %v2985 = vpop.f32.mrf.mxu0
        %v2986 = vadd.f32 %v2633, %v2985
        %v2987 = vpop.f32.mrf.mxu0
        %v2988 = vadd.f32 %v2635, %v2987
        %2989 = vmatprep.mubr.f32.mxu0 %v1647
        %2990 = vmatmul.mubr.f32.gmra.mxu0 %v1646
        %v2991 = vpop.f32.mrf.mxu0
        %v2992 = vadd.f32 %v2639, %v2991
        %v2993 = vpop.f32.mrf.mxu0
        %v2994 = vadd.f32 %v2641, %v2993
        %2995 = vmatprep.mubr.f32.mxu0 %v1651
        %2996 = vmatmul.mubr.f32.gmra.mxu0 %v1650
        %v2997 = vpop.f32.mrf.mxu0
        %v2998 = vadd.f32 %v2645, %v2997
        %v2999 = vpop.f32.mrf.mxu0
        %v3000 = vadd.f32 %v2647, %v2999
        %3001 = vmatprep.mubr.f32.mxu0 %v1655
        %3002 = vmatmul.mubr.f32.gmra.mxu0 %v1654
        %v3003 = vpop.f32.mrf.mxu0
        %v3004 = vadd.f32 %v2651, %v3003
        %v3005 = vpop.f32.mrf.mxu0
        %v3006 = vadd.f32 %v2653, %v3005
        %3007 = vmatprep.mubr.f32.mxu0 %v1659
        %3008 = vmatmul.mubr.f32.gmra.mxu0 %v1658
        %v3009 = vpop.f32.mrf.mxu0
        %v3010 = vadd.f32 %v2657, %v3009
        %v3011 = vpop.f32.mrf.mxu0
        %v3012 = vadd.f32 %v2659, %v3011
        %3013 = vmatprep.mubr.f32.mxu0 %v1663
        %3014 = vmatmul.mubr.f32.gmra.mxu0 %v1662
        %v3015 = vpop.f32.mrf.mxu0
        %v3016 = vadd.f32 %v2663, %v3015
        %v3017 = vpop.f32.mrf.mxu0
        %v3018 = vadd.f32 %v2665, %v3017
        %3019 = vmatprep.mubr.f32.mxu0 %v1667
        %3020 = vmatmul.mubr.f32.gmra.mxu0 %v1666
        %v3021 = vpop.f32.mrf.mxu0
        %v3022 = vadd.f32 %v2669, %v3021
        %v3023 = vpop.f32.mrf.mxu0
        %v3024 = vadd.f32 %v2671, %v3023
        %3025 = vmatprep.mubr.f32.mxu0 %v1671
        %3026 = vmatmul.mubr.f32.gmra.mxu0 %v1670
        %v3027 = vpop.f32.mrf.mxu0
        %v3028 = vadd.f32 %v2675, %v3027
        %v3029 = vpop.f32.mrf.mxu0
        %v3030 = vadd.f32 %v2677, %v3029
        %3031 = vmatprep.mubr.f32.mxu0 %v1675
        %3032 = vmatmul.mubr.f32.gmra.mxu0 %v1674
        %v3033 = vpop.f32.mrf.mxu0
        %v3034 = vadd.f32 %v2681, %v3033
        %v3035 = vpop.f32.mrf.mxu0
        %v3036 = vadd.f32 %v2683, %v3035
        %3037 = vmatprep.mubr.f32.mxu0 %v1679
        %3038 = vmatmul.mubr.f32.gmra.mxu0 %v1678
        %v3039 = vpop.f32.mrf.mxu0
        %v3040 = vadd.f32 %v2687, %v3039
        %v3041 = vpop.f32.mrf.mxu0
        %v3042 = vadd.f32 %v2689, %v3041
        %3043 = vmatprep.mubr.f32.mxu0 %v1683
        %3044 = vmatmul.mubr.f32.gmra.mxu0 %v1682
        %v3045 = vpop.f32.mrf.mxu0
        %v3046 = vadd.f32 %v2693, %v3045
        %v3047 = vpop.f32.mrf.mxu0
        %v3048 = vadd.f32 %v2695, %v3047
        %3049 = vmatprep.mubr.f32.mxu0 %v1687
        %3050 = vmatmul.mubr.f32.gmra.mxu0 %v1686
        %v3051 = vpop.f32.mrf.mxu0
        %v3052 = vadd.f32 %v2699, %v3051
        %v3053 = vpop.f32.mrf.mxu0
        %v3054 = vadd.f32 %v2701, %v3053
        %3055 = vmatprep.mubr.f32.mxu0 %v1691
        %3056 = vmatmul.mubr.f32.gmra.mxu0 %v1690
        %v3057 = vpop.f32.mrf.mxu0
        %v3058 = vadd.f32 %v2705, %v3057
        %v3059 = vpop.f32.mrf.mxu0
        %v3060 = vadd.f32 %v2707, %v3059
        %3061 = vmatprep.mubr.f32.mxu0 %v1695
        %3062 = vmatmul.mubr.f32.gmra.mxu0 %v1694
        %v3063 = vpop.f32.mrf.mxu0
        %v3064 = vadd.f32 %v2711, %v3063
        %v3065 = vpop.f32.mrf.mxu0
        %v3066 = vadd.f32 %v2713, %v3065
        %3067 = vmatprep.mubr.f32.mxu0 %v1699
        %3068 = vmatmul.mubr.f32.gmra.mxu0 %v1698
        %v3069 = vpop.f32.mrf.mxu0
        %v3070 = vadd.f32 %v2717, %v3069
        %v3071 = vpop.f32.mrf.mxu0
        %v3072 = vadd.f32 %v2719, %v3071
        %3073 = vmatprep.mubr.f32.mxu0 %v1703
        %3074 = vmatmul.mubr.f32.gmra.mxu0 %v1702
        %v3075 = vpop.f32.mrf.mxu0
        %v3076 = vadd.f32 %v2723, %v3075
        %v3077 = vpop.f32.mrf.mxu0
        %v3078 = vadd.f32 %v2725, %v3077
        %3079 = vmatprep.mubr.f32.mxu0 %v1707
        %3080 = vmatmul.mubr.f32.gmra.mxu0 %v1706
        %v3081 = vpop.f32.mrf.mxu0
        %v3082 = vadd.f32 %v2729, %v3081
        %v3083 = vpop.f32.mrf.mxu0
        %v3084 = vadd.f32 %v2731, %v3083
        %3085 = vdwg.mxu0
        %3086 = vmatprep.subr.mxu0 %v1897
        %3087 = vmatpush1.xpose.msra.mxu0 %v1896
        %3088 = vmatprep.subr.mxu0 %v1893
        %3089 = vmatpush1.xpose.msra.mxu0 %v1892
        %3090 = vmatprep.subr.mxu0 %v1889
        %3091 = vmatpush1.xpose.msra.mxu0 %v1888
        %3092 = vmatprep.subr.mxu0 %v1885
        %3093 = vmatpush1.xpose.msra.mxu0 %v1884
        %3094 = vmatprep.subr.mxu0 %v1881
        %3095 = vmatpush1.xpose.msra.mxu0 %v1880
        %3096 = vmatprep.subr.mxu0 %v1877
        %3097 = vmatpush1.xpose.msra.mxu0 %v1876
        %3098 = vmatprep.subr.mxu0 %v1873
        %3099 = vmatpush1.xpose.msra.mxu0 %v1872
        %3100 = vmatprep.subr.mxu0 %v1869
        %3101 = vmatpush1.xpose.msra.mxu0 %v1868
        %3102 = vmatprep.subr.mxu0 %v1865
        %3103 = vmatpush1.xpose.msra.mxu0 %v1864
        %3104 = vmatprep.subr.mxu0 %v1861
        %3105 = vmatpush1.xpose.msra.mxu0 %v1860
        %3106 = vmatprep.subr.mxu0 %v1857
        %3107 = vmatpush1.xpose.msra.mxu0 %v1856
        %3108 = vmatprep.subr.mxu0 %v1853
        %3109 = vmatpush1.xpose.msra.mxu0 %v1852
        %3110 = vmatprep.subr.mxu0 %v1849
        %3111 = vmatpush1.xpose.msra.mxu0 %v1848
        %3112 = vmatprep.subr.mxu0 %v1845
        %3113 = vmatpush1.xpose.msra.mxu0 %v1844
        %3114 = vmatprep.subr.mxu0 %v1841
        %3115 = vmatpush1.xpose.msra.mxu0 %v1840
        %3116 = vmatprep.subr.mxu0 %v1837
        %3117 = vmatpush1.xpose.msra.mxu0 %v1836
        %3118 = vmatprep.subr.mxu0 %v1961
        %3119 = vmatpush2.xpose.msra.mxu0 %v1960
        %3120 = vmatprep.subr.mxu0 %v1957
        %3121 = vmatpush2.xpose.msra.mxu0 %v1956
        %3122 = vmatprep.subr.mxu0 %v1953
        %3123 = vmatpush2.xpose.msra.mxu0 %v1952
        %3124 = vmatprep.subr.mxu0 %v1949
        %3125 = vmatpush2.xpose.msra.mxu0 %v1948
        %3126 = vmatprep.subr.mxu0 %v1945
        %3127 = vmatpush2.xpose.msra.mxu0 %v1944
        %3128 = vmatprep.subr.mxu0 %v1941
        %3129 = vmatpush2.xpose.msra.mxu0 %v1940
        %3130 = vmatprep.subr.mxu0 %v1937
        %3131 = vmatpush2.xpose.msra.mxu0 %v1936
        %3132 = vmatprep.subr.mxu0 %v1933
        %3133 = vmatpush2.xpose.msra.mxu0 %v1932
        %3134 = vmatprep.subr.mxu0 %v1929
        %3135 = vmatpush2.xpose.msra.mxu0 %v1928
        %3136 = vmatprep.subr.mxu0 %v1925
        %3137 = vmatpush2.xpose.msra.mxu0 %v1924
        %3138 = vmatprep.subr.mxu0 %v1921
        %3139 = vmatpush2.xpose.msra.mxu0 %v1920
        %3140 = vmatprep.subr.mxu0 %v1917
        %3141 = vmatpush2.xpose.msra.mxu0 %v1916
        %3142 = vmatprep.subr.mxu0 %v1913
        %3143 = vmatpush2.xpose.msra.mxu0 %v1912
        %3144 = vmatprep.subr.mxu0 %v1909
        %3145 = vmatpush2.xpose.msra.mxu0 %v1908
        %3146 = vmatprep.subr.mxu0 %v1905
        %3147 = vmatpush2.xpose.msra.mxu0 %v1904
        %3148 = vmatprep.subr.mxu0 %v1901
        %3149 = vmatpush2.xpose.msra.mxu0 %v1900
        %3150 = vmatprep.mubr.f32.mxu0 %v1517
        %3151 = vmatmul.mubr.f32.gmra.mxu0 %v1516
        %v3152 = vpop.f32.mrf.mxu0
        %v3153 = vadd.f32 0.0, %v3152
        %v3154 = vpop.f32.mrf.mxu0
        %v3155 = vadd.f32 0.0, %v3154
        %3156 = vmatprep.mubr.f32.mxu0 %v1521
        %3157 = vmatmul.mubr.f32.gmra.mxu0 %v1520
        %v3158 = vpop.f32.mrf.mxu0
        %v3159 = vadd.f32 0.0, %v3158
        %v3160 = vpop.f32.mrf.mxu0
        %v3161 = vadd.f32 0.0, %v3160
        %3162 = vmatprep.mubr.f32.mxu0 %v1525
        %3163 = vmatmul.mubr.f32.gmra.mxu0 %v1524
        %v3164 = vpop.f32.mrf.mxu0
        %v3165 = vadd.f32 0.0, %v3164
        %v3166 = vpop.f32.mrf.mxu0
        %v3167 = vadd.f32 0.0, %v3166
        %3168 = vmatprep.mubr.f32.mxu0 %v1529
        %3169 = vmatmul.mubr.f32.gmra.mxu0 %v1528
        %v3170 = vpop.f32.mrf.mxu0
        %v3171 = vadd.f32 0.0, %v3170
        %v3172 = vpop.f32.mrf.mxu0
        %v3173 = vadd.f32 0.0, %v3172
        %3174 = vmatprep.mubr.f32.mxu0 %v1533
        %3175 = vmatmul.mubr.f32.gmra.mxu0 %v1532
        %v3176 = vpop.f32.mrf.mxu0
        %v3177 = vadd.f32 0.0, %v3176
        %v3178 = vpop.f32.mrf.mxu0
        %v3179 = vadd.f32 0.0, %v3178
        %3180 = vmatprep.mubr.f32.mxu0 %v1537
        %3181 = vmatmul.mubr.f32.gmra.mxu0 %v1536
        %v3182 = vpop.f32.mrf.mxu0
        %v3183 = vadd.f32 0.0, %v3182
        %v3184 = vpop.f32.mrf.mxu0
        %v3185 = vadd.f32 0.0, %v3184
        %3186 = vmatprep.mubr.f32.mxu0 %v1541
        %3187 = vmatmul.mubr.f32.gmra.mxu0 %v1540
        %v3188 = vpop.f32.mrf.mxu0
        %v3189 = vadd.f32 0.0, %v3188
        %v3190 = vpop.f32.mrf.mxu0
        %v3191 = vadd.f32 0.0, %v3190
        %3192 = vmatprep.mubr.f32.mxu0 %v1545
        %3193 = vmatmul.mubr.f32.gmra.mxu0 %v1544
        %v3194 = vpop.f32.mrf.mxu0
        %v3195 = vadd.f32 0.0, %v3194
        %v3196 = vpop.f32.mrf.mxu0
        %v3197 = vadd.f32 0.0, %v3196
        %3198 = vmatprep.mubr.f32.mxu0 %v1549
        %3199 = vmatmul.mubr.f32.gmra.mxu0 %v1548
        %v3200 = vpop.f32.mrf.mxu0
        %v3201 = vadd.f32 0.0, %v3200
        %v3202 = vpop.f32.mrf.mxu0
        %v3203 = vadd.f32 0.0, %v3202
        %3204 = vmatprep.mubr.f32.mxu0 %v1553
        %3205 = vmatmul.mubr.f32.gmra.mxu0 %v1552
        %v3206 = vpop.f32.mrf.mxu0
        %v3207 = vadd.f32 0.0, %v3206
        %v3208 = vpop.f32.mrf.mxu0
        %v3209 = vadd.f32 0.0, %v3208
        %3210 = vmatprep.mubr.f32.mxu0 %v1557
        %3211 = vmatmul.mubr.f32.gmra.mxu0 %v1556
        %v3212 = vpop.f32.mrf.mxu0
        %v3213 = vadd.f32 0.0, %v3212
        %v3214 = vpop.f32.mrf.mxu0
        %v3215 = vadd.f32 0.0, %v3214
        %3216 = vmatprep.mubr.f32.mxu0 %v1561
        %3217 = vmatmul.mubr.f32.gmra.mxu0 %v1560
        %v3218 = vpop.f32.mrf.mxu0
        %v3219 = vadd.f32 0.0, %v3218
        %v3220 = vpop.f32.mrf.mxu0
        %v3221 = vadd.f32 0.0, %v3220
        %3222 = vmatprep.mubr.f32.mxu0 %v1565
        %3223 = vmatmul.mubr.f32.gmra.mxu0 %v1564
        %v3224 = vpop.f32.mrf.mxu0
        %v3225 = vadd.f32 0.0, %v3224
        %v3226 = vpop.f32.mrf.mxu0
        %v3227 = vadd.f32 0.0, %v3226
        %3228 = vmatprep.mubr.f32.mxu0 %v1569
        %3229 = vmatmul.mubr.f32.gmra.mxu0 %v1568
        %v3230 = vpop.f32.mrf.mxu0
        %v3231 = vadd.f32 0.0, %v3230
        %v3232 = vpop.f32.mrf.mxu0
        %v3233 = vadd.f32 0.0, %v3232
        %3234 = vmatprep.mubr.f32.mxu0 %v1573
        %3235 = vmatmul.mubr.f32.gmra.mxu0 %v1572
        %v3236 = vpop.f32.mrf.mxu0
        %v3237 = vadd.f32 0.0, %v3236
        %v3238 = vpop.f32.mrf.mxu0
        %v3239 = vadd.f32 0.0, %v3238
        %3240 = vmatprep.mubr.f32.mxu0 %v1577
        %3241 = vmatmul.mubr.f32.gmra.mxu0 %v1576
        %v3242 = vpop.f32.mrf.mxu0
        %v3243 = vadd.f32 0.0, %v3242
        %v3244 = vpop.f32.mrf.mxu0
        %v3245 = vadd.f32 0.0, %v3244
        %3246 = vmatprep.mubr.f32.mxu0 %v1581
        %3247 = vmatmul.mubr.f32.gmra.mxu0 %v1580
        %v3248 = vpop.f32.mrf.mxu0
        %v3249 = vadd.f32 0.0, %v3248
        %v3250 = vpop.f32.mrf.mxu0
        %v3251 = vadd.f32 0.0, %v3250
        %3252 = vmatprep.mubr.f32.mxu0 %v1585
        %3253 = vmatmul.mubr.f32.gmra.mxu0 %v1584
        %v3254 = vpop.f32.mrf.mxu0
        %v3255 = vadd.f32 0.0, %v3254
        %v3256 = vpop.f32.mrf.mxu0
        %v3257 = vadd.f32 0.0, %v3256
        %3258 = vmatprep.mubr.f32.mxu0 %v1589
        %3259 = vmatmul.mubr.f32.gmra.mxu0 %v1588
        %v3260 = vpop.f32.mrf.mxu0
        %v3261 = vadd.f32 0.0, %v3260
        %v3262 = vpop.f32.mrf.mxu0
        %v3263 = vadd.f32 0.0, %v3262
        %3264 = vmatprep.mubr.f32.mxu0 %v1593
        %3265 = vmatmul.mubr.f32.gmra.mxu0 %v1592
        %v3266 = vpop.f32.mrf.mxu0
        %v3267 = vadd.f32 0.0, %v3266
        %v3268 = vpop.f32.mrf.mxu0
        %v3269 = vadd.f32 0.0, %v3268
        %3270 = vmatprep.mubr.f32.mxu0 %v1597
        %3271 = vmatmul.mubr.f32.gmra.mxu0 %v1596
        %v3272 = vpop.f32.mrf.mxu0
        %v3273 = vadd.f32 0.0, %v3272
        %v3274 = vpop.f32.mrf.mxu0
        %v3275 = vadd.f32 0.0, %v3274
        %3276 = vmatprep.mubr.f32.mxu0 %v1601
        %3277 = vmatmul.mubr.f32.gmra.mxu0 %v1600
        %v3278 = vpop.f32.mrf.mxu0
        %v3279 = vadd.f32 0.0, %v3278
        %v3280 = vpop.f32.mrf.mxu0
        %v3281 = vadd.f32 0.0, %v3280
        %3282 = vmatprep.mubr.f32.mxu0 %v1605
        %3283 = vmatmul.mubr.f32.gmra.mxu0 %v1604
        %v3284 = vpop.f32.mrf.mxu0
        %v3285 = vadd.f32 0.0, %v3284
        %v3286 = vpop.f32.mrf.mxu0
        %v3287 = vadd.f32 0.0, %v3286
        %3288 = vmatprep.mubr.f32.mxu0 %v1609
        %3289 = vmatmul.mubr.f32.gmra.mxu0 %v1608
        %v3290 = vpop.f32.mrf.mxu0
        %v3291 = vadd.f32 0.0, %v3290
        %v3292 = vpop.f32.mrf.mxu0
        %v3293 = vadd.f32 0.0, %v3292
        %3294 = vmatprep.mubr.f32.mxu0 %v1613
        %3295 = vmatmul.mubr.f32.gmra.mxu0 %v1612
        %v3296 = vpop.f32.mrf.mxu0
        %v3297 = vadd.f32 0.0, %v3296
        %v3298 = vpop.f32.mrf.mxu0
        %v3299 = vadd.f32 0.0, %v3298
        %3300 = vmatprep.mubr.f32.mxu0 %v1617
        %3301 = vmatmul.mubr.f32.gmra.mxu0 %v1616
        %v3302 = vpop.f32.mrf.mxu0
        %v3303 = vadd.f32 0.0, %v3302
        %v3304 = vpop.f32.mrf.mxu0
        %v3305 = vadd.f32 0.0, %v3304
        %3306 = vmatprep.mubr.f32.mxu0 %v1621
        %3307 = vmatmul.mubr.f32.gmra.mxu0 %v1620
        %v3308 = vpop.f32.mrf.mxu0
        %v3309 = vadd.f32 0.0, %v3308
        %v3310 = vpop.f32.mrf.mxu0
        %v3311 = vadd.f32 0.0, %v3310
        %3312 = vmatprep.mubr.f32.mxu0 %v1625
        %3313 = vmatmul.mubr.f32.gmra.mxu0 %v1624
        %v3314 = vpop.f32.mrf.mxu0
        %v3315 = vadd.f32 0.0, %v3314
        %v3316 = vpop.f32.mrf.mxu0
        %v3317 = vadd.f32 0.0, %v3316
        %3318 = vmatprep.mubr.f32.mxu0 %v1629
        %3319 = vmatmul.mubr.f32.gmra.mxu0 %v1628
        %v3320 = vpop.f32.mrf.mxu0
        %v3321 = vadd.f32 0.0, %v3320
        %v3322 = vpop.f32.mrf.mxu0
        %v3323 = vadd.f32 0.0, %v3322
        %3324 = vmatprep.mubr.f32.mxu0 %v1633
        %3325 = vmatmul.mubr.f32.gmra.mxu0 %v1632
        %v3326 = vpop.f32.mrf.mxu0
        %v3327 = vadd.f32 0.0, %v3326
        %v3328 = vpop.f32.mrf.mxu0
        %v3329 = vadd.f32 0.0, %v3328
        %3330 = vmatprep.mubr.f32.mxu0 %v1637
        %3331 = vmatmul.mubr.f32.gmra.mxu0 %v1636
        %v3332 = vpop.f32.mrf.mxu0
        %v3333 = vadd.f32 0.0, %v3332
        %v3334 = vpop.f32.mrf.mxu0
        %v3335 = vadd.f32 0.0, %v3334
        %3336 = vmatprep.mubr.f32.mxu0 %v1641
        %3337 = vmatmul.mubr.f32.gmra.mxu0 %v1640
        %v3338 = vpop.f32.mrf.mxu0
        %v3339 = vadd.f32 0.0, %v3338
        %v3340 = vpop.f32.mrf.mxu0
        %v3341 = vadd.f32 0.0, %v3340
        %3342 = vmatprep.mubr.f32.mxu0 %v1645
        %3343 = vmatmul.mubr.f32.gmra.mxu0 %v1644
        %v3344 = vpop.f32.mrf.mxu0
        %v3345 = vadd.f32 0.0, %v3344
        %v3346 = vpop.f32.mrf.mxu0
        %v3347 = vadd.f32 0.0, %v3346
        %3348 = vmatprep.mubr.f32.mxu0 %v1649
        %3349 = vmatmul.mubr.f32.gmra.mxu0 %v1648
        %v3350 = vpop.f32.mrf.mxu0
        %v3351 = vadd.f32 0.0, %v3350
        %v3352 = vpop.f32.mrf.mxu0
        %v3353 = vadd.f32 0.0, %v3352
        %3354 = vmatprep.mubr.f32.mxu0 %v1653
        %3355 = vmatmul.mubr.f32.gmra.mxu0 %v1652
        %v3356 = vpop.f32.mrf.mxu0
        %v3357 = vadd.f32 0.0, %v3356
        %v3358 = vpop.f32.mrf.mxu0
        %v3359 = vadd.f32 0.0, %v3358
        %3360 = vmatprep.mubr.f32.mxu0 %v1657
        %3361 = vmatmul.mubr.f32.gmra.mxu0 %v1656
        %v3362 = vpop.f32.mrf.mxu0
        %v3363 = vadd.f32 0.0, %v3362
        %v3364 = vpop.f32.mrf.mxu0
        %v3365 = vadd.f32 0.0, %v3364
        %3366 = vmatprep.mubr.f32.mxu0 %v1661
        %3367 = vmatmul.mubr.f32.gmra.mxu0 %v1660
        %v3368 = vpop.f32.mrf.mxu0
        %v3369 = vadd.f32 0.0, %v3368
        %v3370 = vpop.f32.mrf.mxu0
        %v3371 = vadd.f32 0.0, %v3370
        %3372 = vmatprep.mubr.f32.mxu0 %v1665
        %3373 = vmatmul.mubr.f32.gmra.mxu0 %v1664
        %v3374 = vpop.f32.mrf.mxu0
        %v3375 = vadd.f32 0.0, %v3374
        %v3376 = vpop.f32.mrf.mxu0
        %v3377 = vadd.f32 0.0, %v3376
        %3378 = vmatprep.mubr.f32.mxu0 %v1669
        %3379 = vmatmul.mubr.f32.gmra.mxu0 %v1668
        %v3380 = vpop.f32.mrf.mxu0
        %v3381 = vadd.f32 0.0, %v3380
        %v3382 = vpop.f32.mrf.mxu0
        %v3383 = vadd.f32 0.0, %v3382
        %3384 = vmatprep.mubr.f32.mxu0 %v1673
        %3385 = vmatmul.mubr.f32.gmra.mxu0 %v1672
        %v3386 = vpop.f32.mrf.mxu0
        %v3387 = vadd.f32 0.0, %v3386
        %v3388 = vpop.f32.mrf.mxu0
        %v3389 = vadd.f32 0.0, %v3388
        %3390 = vmatprep.mubr.f32.mxu0 %v1677
        %3391 = vmatmul.mubr.f32.gmra.mxu0 %v1676
        %v3392 = vpop.f32.mrf.mxu0
        %v3393 = vadd.f32 0.0, %v3392
        %v3394 = vpop.f32.mrf.mxu0
        %v3395 = vadd.f32 0.0, %v3394
        %3396 = vmatprep.mubr.f32.mxu0 %v1681
        %3397 = vmatmul.mubr.f32.gmra.mxu0 %v1680
        %v3398 = vpop.f32.mrf.mxu0
        %v3399 = vadd.f32 0.0, %v3398
        %v3400 = vpop.f32.mrf.mxu0
        %v3401 = vadd.f32 0.0, %v3400
        %3402 = vmatprep.mubr.f32.mxu0 %v1685
        %3403 = vmatmul.mubr.f32.gmra.mxu0 %v1684
        %v3404 = vpop.f32.mrf.mxu0
        %v3405 = vadd.f32 0.0, %v3404
        %v3406 = vpop.f32.mrf.mxu0
        %v3407 = vadd.f32 0.0, %v3406
        %3408 = vmatprep.mubr.f32.mxu0 %v1689
        %3409 = vmatmul.mubr.f32.gmra.mxu0 %v1688
        %v3410 = vpop.f32.mrf.mxu0
        %v3411 = vadd.f32 0.0, %v3410
        %v3412 = vpop.f32.mrf.mxu0
        %v3413 = vadd.f32 0.0, %v3412
        %3414 = vmatprep.mubr.f32.mxu0 %v1693
        %3415 = vmatmul.mubr.f32.gmra.mxu0 %v1692
        %v3416 = vpop.f32.mrf.mxu0
        %v3417 = vadd.f32 0.0, %v3416
        %v3418 = vpop.f32.mrf.mxu0
        %v3419 = vadd.f32 0.0, %v3418
        %3420 = vmatprep.mubr.f32.mxu0 %v1697
        %3421 = vmatmul.mubr.f32.gmra.mxu0 %v1696
        %v3422 = vpop.f32.mrf.mxu0
        %v3423 = vadd.f32 0.0, %v3422
        %v3424 = vpop.f32.mrf.mxu0
        %v3425 = vadd.f32 0.0, %v3424
        %3426 = vmatprep.mubr.f32.mxu0 %v1701
        %3427 = vmatmul.mubr.f32.gmra.mxu0 %v1700
        %v3428 = vpop.f32.mrf.mxu0
        %v3429 = vadd.f32 0.0, %v3428
        %v3430 = vpop.f32.mrf.mxu0
        %v3431 = vadd.f32 0.0, %v3430
        %3432 = vmatprep.mubr.f32.mxu0 %v1705
        %3433 = vmatmul.mubr.f32.gmra.mxu0 %v1704
        %v3434 = vpop.f32.mrf.mxu0
        %v3435 = vadd.f32 0.0, %v3434
        %v3436 = vpop.f32.mrf.mxu0
        %v3437 = vadd.f32 0.0, %v3436
        %3438 = vdwg.mxu0
        %3439 = vmatprep.subr.mxu0 %v1899
        %3440 = vmatpush1.xpose.msra.mxu0 %v1898
        %3441 = vmatprep.subr.mxu0 %v1895
        %3442 = vmatpush1.xpose.msra.mxu0 %v1894
        %3443 = vmatprep.subr.mxu0 %v1891
        %3444 = vmatpush1.xpose.msra.mxu0 %v1890
        %3445 = vmatprep.subr.mxu0 %v1887
        %3446 = vmatpush1.xpose.msra.mxu0 %v1886
        %3447 = vmatprep.subr.mxu0 %v1883
        %3448 = vmatpush1.xpose.msra.mxu0 %v1882
        %3449 = vmatprep.subr.mxu0 %v1879
        %3450 = vmatpush1.xpose.msra.mxu0 %v1878
        %3451 = vmatprep.subr.mxu0 %v1875
        %3452 = vmatpush1.xpose.msra.mxu0 %v1874
        %3453 = vmatprep.subr.mxu0 %v1871
        %3454 = vmatpush1.xpose.msra.mxu0 %v1870
        %3455 = vmatprep.subr.mxu0 %v1867
        %3456 = vmatpush1.xpose.msra.mxu0 %v1866
        %3457 = vmatprep.subr.mxu0 %v1863
        %3458 = vmatpush1.xpose.msra.mxu0 %v1862
        %3459 = vmatprep.subr.mxu0 %v1859
        %3460 = vmatpush1.xpose.msra.mxu0 %v1858
        %3461 = vmatprep.subr.mxu0 %v1855
        %3462 = vmatpush1.xpose.msra.mxu0 %v1854
        %3463 = vmatprep.subr.mxu0 %v1851
        %3464 = vmatpush1.xpose.msra.mxu0 %v1850
        %3465 = vmatprep.subr.mxu0 %v1847
        %3466 = vmatpush1.xpose.msra.mxu0 %v1846
        %3467 = vmatprep.subr.mxu0 %v1843
        %3468 = vmatpush1.xpose.msra.mxu0 %v1842
        %3469 = vmatprep.subr.mxu0 %v1839
        %3470 = vmatpush1.xpose.msra.mxu0 %v1838
        %3471 = vmatprep.subr.mxu0 %v1963
        %3472 = vmatpush2.xpose.msra.mxu0 %v1962
        %3473 = vmatprep.subr.mxu0 %v1959
        %3474 = vmatpush2.xpose.msra.mxu0 %v1958
        %3475 = vmatprep.subr.mxu0 %v1955
        %3476 = vmatpush2.xpose.msra.mxu0 %v1954
        %3477 = vmatprep.subr.mxu0 %v1951
        %3478 = vmatpush2.xpose.msra.mxu0 %v1950
        %3479 = vmatprep.subr.mxu0 %v1947
        %3480 = vmatpush2.xpose.msra.mxu0 %v1946
        %3481 = vmatprep.subr.mxu0 %v1943
        %3482 = vmatpush2.xpose.msra.mxu0 %v1942
        %3483 = vmatprep.subr.mxu0 %v1939
        %3484 = vmatpush2.xpose.msra.mxu0 %v1938
        %3485 = vmatprep.subr.mxu0 %v1935
        %3486 = vmatpush2.xpose.msra.mxu0 %v1934
        %3487 = vmatprep.subr.mxu0 %v1931
        %3488 = vmatpush2.xpose.msra.mxu0 %v1930
        %3489 = vmatprep.subr.mxu0 %v1927
        %3490 = vmatpush2.xpose.msra.mxu0 %v1926
        %3491 = vmatprep.subr.mxu0 %v1923
        %3492 = vmatpush2.xpose.msra.mxu0 %v1922
        %3493 = vmatprep.subr.mxu0 %v1919
        %3494 = vmatpush2.xpose.msra.mxu0 %v1918
        %3495 = vmatprep.subr.mxu0 %v1915
        %3496 = vmatpush2.xpose.msra.mxu0 %v1914
        %3497 = vmatprep.subr.mxu0 %v1911
        %3498 = vmatpush2.xpose.msra.mxu0 %v1910
        %3499 = vmatprep.subr.mxu0 %v1907
        %3500 = vmatpush2.xpose.msra.mxu0 %v1906
        %3501 = vmatprep.subr.mxu0 %v1903
        %3502 = vmatpush2.xpose.msra.mxu0 %v1902
        %3503 = vmatprep.mubr.f32.mxu0 %v1519
        %3504 = vmatmul.mubr.f32.gmra.mxu0 %v1518
        %v3505 = vpop.f32.mrf.mxu0
        %v3506 = vadd.f32 %v3153, %v3505
        %v3507 = vpop.f32.mrf.mxu0
        %v3508 = vadd.f32 %v3155, %v3507
        %3509 = vmatprep.mubr.f32.mxu0 %v1523
        %3510 = vmatmul.mubr.f32.gmra.mxu0 %v1522
        %v3511 = vpop.f32.mrf.mxu0
        %v3512 = vadd.f32 %v3159, %v3511
        %v3513 = vpop.f32.mrf.mxu0
        %v3514 = vadd.f32 %v3161, %v3513
        %3515 = vmatprep.mubr.f32.mxu0 %v1527
        %3516 = vmatmul.mubr.f32.gmra.mxu0 %v1526
        %v3517 = vpop.f32.mrf.mxu0
        %v3518 = vadd.f32 %v3165, %v3517
        %v3519 = vpop.f32.mrf.mxu0
        %v3520 = vadd.f32 %v3167, %v3519
        %3521 = vmatprep.mubr.f32.mxu0 %v1531
        %3522 = vmatmul.mubr.f32.gmra.mxu0 %v1530
        %v3523 = vpop.f32.mrf.mxu0
        %v3524 = vadd.f32 %v3171, %v3523
        %v3525 = vpop.f32.mrf.mxu0
        %v3526 = vadd.f32 %v3173, %v3525
        %3527 = vmatprep.mubr.f32.mxu0 %v1535
        %3528 = vmatmul.mubr.f32.gmra.mxu0 %v1534
        %v3529 = vpop.f32.mrf.mxu0
        %v3530 = vadd.f32 %v3177, %v3529
        %v3531 = vpop.f32.mrf.mxu0
        %v3532 = vadd.f32 %v3179, %v3531
        %3533 = vmatprep.mubr.f32.mxu0 %v1539
        %3534 = vmatmul.mubr.f32.gmra.mxu0 %v1538
        %v3535 = vpop.f32.mrf.mxu0
        %v3536 = vadd.f32 %v3183, %v3535
        %v3537 = vpop.f32.mrf.mxu0
        %v3538 = vadd.f32 %v3185, %v3537
        %3539 = vmatprep.mubr.f32.mxu0 %v1543
        %3540 = vmatmul.mubr.f32.gmra.mxu0 %v1542
        %v3541 = vpop.f32.mrf.mxu0
        %v3542 = vadd.f32 %v3189, %v3541
        %v3543 = vpop.f32.mrf.mxu0
        %v3544 = vadd.f32 %v3191, %v3543
        %3545 = vmatprep.mubr.f32.mxu0 %v1547
        %3546 = vmatmul.mubr.f32.gmra.mxu0 %v1546
        %v3547 = vpop.f32.mrf.mxu0
        %v3548 = vadd.f32 %v3195, %v3547
        %v3549 = vpop.f32.mrf.mxu0
        %v3550 = vadd.f32 %v3197, %v3549
        %3551 = vmatprep.mubr.f32.mxu0 %v1551
        %3552 = vmatmul.mubr.f32.gmra.mxu0 %v1550
        %v3553 = vpop.f32.mrf.mxu0
        %v3554 = vadd.f32 %v3201, %v3553
        %v3555 = vpop.f32.mrf.mxu0
        %v3556 = vadd.f32 %v3203, %v3555
        %3557 = vmatprep.mubr.f32.mxu0 %v1555
        %3558 = vmatmul.mubr.f32.gmra.mxu0 %v1554
        %v3559 = vpop.f32.mrf.mxu0
        %v3560 = vadd.f32 %v3207, %v3559
        %v3561 = vpop.f32.mrf.mxu0
        %v3562 = vadd.f32 %v3209, %v3561
        %3563 = vmatprep.mubr.f32.mxu0 %v1559
        %3564 = vmatmul.mubr.f32.gmra.mxu0 %v1558
        %v3565 = vpop.f32.mrf.mxu0
        %v3566 = vadd.f32 %v3213, %v3565
        %v3567 = vpop.f32.mrf.mxu0
        %v3568 = vadd.f32 %v3215, %v3567
        %3569 = vmatprep.mubr.f32.mxu0 %v1563
        %3570 = vmatmul.mubr.f32.gmra.mxu0 %v1562
        %v3571 = vpop.f32.mrf.mxu0
        %v3572 = vadd.f32 %v3219, %v3571
        %v3573 = vpop.f32.mrf.mxu0
        %v3574 = vadd.f32 %v3221, %v3573
        %3575 = vmatprep.mubr.f32.mxu0 %v1567
        %3576 = vmatmul.mubr.f32.gmra.mxu0 %v1566
        %v3577 = vpop.f32.mrf.mxu0
        %v3578 = vadd.f32 %v3225, %v3577
        %v3579 = vpop.f32.mrf.mxu0
        %v3580 = vadd.f32 %v3227, %v3579
        %3581 = vmatprep.mubr.f32.mxu0 %v1571
        %3582 = vmatmul.mubr.f32.gmra.mxu0 %v1570
        %v3583 = vpop.f32.mrf.mxu0
        %v3584 = vadd.f32 %v3231, %v3583
        %v3585 = vpop.f32.mrf.mxu0
        %v3586 = vadd.f32 %v3233, %v3585
        %3587 = vmatprep.mubr.f32.mxu0 %v1575
        %3588 = vmatmul.mubr.f32.gmra.mxu0 %v1574
        %v3589 = vpop.f32.mrf.mxu0
        %v3590 = vadd.f32 %v3237, %v3589
        %v3591 = vpop.f32.mrf.mxu0
        %v3592 = vadd.f32 %v3239, %v3591
        %3593 = vmatprep.mubr.f32.mxu0 %v1579
        %3594 = vmatmul.mubr.f32.gmra.mxu0 %v1578
        %v3595 = vpop.f32.mrf.mxu0
        %v3596 = vadd.f32 %v3243, %v3595
        %v3597 = vpop.f32.mrf.mxu0
        %v3598 = vadd.f32 %v3245, %v3597
        %3599 = vmatprep.mubr.f32.mxu0 %v1583
        %3600 = vmatmul.mubr.f32.gmra.mxu0 %v1582
        %v3601 = vpop.f32.mrf.mxu0
        %v3602 = vadd.f32 %v3249, %v3601
        %v3603 = vpop.f32.mrf.mxu0
        %v3604 = vadd.f32 %v3251, %v3603
        %3605 = vmatprep.mubr.f32.mxu0 %v1587
        %3606 = vmatmul.mubr.f32.gmra.mxu0 %v1586
        %v3607 = vpop.f32.mrf.mxu0
        %v3608 = vadd.f32 %v3255, %v3607
        %v3609 = vpop.f32.mrf.mxu0
        %v3610 = vadd.f32 %v3257, %v3609
        %3611 = vmatprep.mubr.f32.mxu0 %v1591
        %3612 = vmatmul.mubr.f32.gmra.mxu0 %v1590
        %v3613 = vpop.f32.mrf.mxu0
        %v3614 = vadd.f32 %v3261, %v3613
        %v3615 = vpop.f32.mrf.mxu0
        %v3616 = vadd.f32 %v3263, %v3615
        %3617 = vmatprep.mubr.f32.mxu0 %v1595
        %3618 = vmatmul.mubr.f32.gmra.mxu0 %v1594
        %v3619 = vpop.f32.mrf.mxu0
        %v3620 = vadd.f32 %v3267, %v3619
        %v3621 = vpop.f32.mrf.mxu0
        %v3622 = vadd.f32 %v3269, %v3621
        %3623 = vmatprep.mubr.f32.mxu0 %v1599
        %3624 = vmatmul.mubr.f32.gmra.mxu0 %v1598
        %v3625 = vpop.f32.mrf.mxu0
        %v3626 = vadd.f32 %v3273, %v3625
        %v3627 = vpop.f32.mrf.mxu0
        %v3628 = vadd.f32 %v3275, %v3627
        %3629 = vmatprep.mubr.f32.mxu0 %v1603
        %3630 = vmatmul.mubr.f32.gmra.mxu0 %v1602
        %v3631 = vpop.f32.mrf.mxu0
        %v3632 = vadd.f32 %v3279, %v3631
        %v3633 = vpop.f32.mrf.mxu0
        %v3634 = vadd.f32 %v3281, %v3633
        %3635 = vmatprep.mubr.f32.mxu0 %v1607
        %3636 = vmatmul.mubr.f32.gmra.mxu0 %v1606
        %v3637 = vpop.f32.mrf.mxu0
        %v3638 = vadd.f32 %v3285, %v3637
        %v3639 = vpop.f32.mrf.mxu0
        %v3640 = vadd.f32 %v3287, %v3639
        %3641 = vmatprep.mubr.f32.mxu0 %v1611
        %3642 = vmatmul.mubr.f32.gmra.mxu0 %v1610
        %v3643 = vpop.f32.mrf.mxu0
        %v3644 = vadd.f32 %v3291, %v3643
        %v3645 = vpop.f32.mrf.mxu0
        %v3646 = vadd.f32 %v3293, %v3645
        %3647 = vmatprep.mubr.f32.mxu0 %v1615
        %3648 = vmatmul.mubr.f32.gmra.mxu0 %v1614
        %v3649 = vpop.f32.mrf.mxu0
        %v3650 = vadd.f32 %v3297, %v3649
        %v3651 = vpop.f32.mrf.mxu0
        %v3652 = vadd.f32 %v3299, %v3651
        %3653 = vmatprep.mubr.f32.mxu0 %v1619
        %3654 = vmatmul.mubr.f32.gmra.mxu0 %v1618
        %v3655 = vpop.f32.mrf.mxu0
        %v3656 = vadd.f32 %v3303, %v3655
        %v3657 = vpop.f32.mrf.mxu0
        %v3658 = vadd.f32 %v3305, %v3657
        %3659 = vmatprep.mubr.f32.mxu0 %v1623
        %3660 = vmatmul.mubr.f32.gmra.mxu0 %v1622
        %v3661 = vpop.f32.mrf.mxu0
        %v3662 = vadd.f32 %v3309, %v3661
        %v3663 = vpop.f32.mrf.mxu0
        %v3664 = vadd.f32 %v3311, %v3663
        %3665 = vmatprep.mubr.f32.mxu0 %v1627
        %3666 = vmatmul.mubr.f32.gmra.mxu0 %v1626
        %v3667 = vpop.f32.mrf.mxu0
        %v3668 = vadd.f32 %v3315, %v3667
        %v3669 = vpop.f32.mrf.mxu0
        %v3670 = vadd.f32 %v3317, %v3669
        %3671 = vmatprep.mubr.f32.mxu0 %v1631
        %3672 = vmatmul.mubr.f32.gmra.mxu0 %v1630
        %v3673 = vpop.f32.mrf.mxu0
        %v3674 = vadd.f32 %v3321, %v3673
        %v3675 = vpop.f32.mrf.mxu0
        %v3676 = vadd.f32 %v3323, %v3675
        %3677 = vmatprep.mubr.f32.mxu0 %v1635
        %3678 = vmatmul.mubr.f32.gmra.mxu0 %v1634
        %v3679 = vpop.f32.mrf.mxu0
        %v3680 = vadd.f32 %v3327, %v3679
        %v3681 = vpop.f32.mrf.mxu0
        %v3682 = vadd.f32 %v3329, %v3681
        %3683 = vmatprep.mubr.f32.mxu0 %v1639
        %3684 = vmatmul.mubr.f32.gmra.mxu0 %v1638
        %v3685 = vpop.f32.mrf.mxu0
        %v3686 = vadd.f32 %v3333, %v3685
        %v3687 = vpop.f32.mrf.mxu0
        %v3688 = vadd.f32 %v3335, %v3687
        %3689 = vmatprep.mubr.f32.mxu0 %v1643
        %3690 = vmatmul.mubr.f32.gmra.mxu0 %v1642
        %v3691 = vpop.f32.mrf.mxu0
        %v3692 = vadd.f32 %v3339, %v3691
        %v3693 = vpop.f32.mrf.mxu0
        %v3694 = vadd.f32 %v3341, %v3693
        %3695 = vmatprep.mubr.f32.mxu0 %v1647
        %3696 = vmatmul.mubr.f32.gmra.mxu0 %v1646
        %v3697 = vpop.f32.mrf.mxu0
        %v3698 = vadd.f32 %v3345, %v3697
        %v3699 = vpop.f32.mrf.mxu0
        %v3700 = vadd.f32 %v3347, %v3699
        %3701 = vmatprep.mubr.f32.mxu0 %v1651
        %3702 = vmatmul.mubr.f32.gmra.mxu0 %v1650
        %v3703 = vpop.f32.mrf.mxu0
        %v3704 = vadd.f32 %v3351, %v3703
        %v3705 = vpop.f32.mrf.mxu0
        %v3706 = vadd.f32 %v3353, %v3705
        %3707 = vmatprep.mubr.f32.mxu0 %v1655
        %3708 = vmatmul.mubr.f32.gmra.mxu0 %v1654
        %v3709 = vpop.f32.mrf.mxu0
        %v3710 = vadd.f32 %v3357, %v3709
        %v3711 = vpop.f32.mrf.mxu0
        %v3712 = vadd.f32 %v3359, %v3711
        %3713 = vmatprep.mubr.f32.mxu0 %v1659
        %3714 = vmatmul.mubr.f32.gmra.mxu0 %v1658
        %v3715 = vpop.f32.mrf.mxu0
        %v3716 = vadd.f32 %v3363, %v3715
        %v3717 = vpop.f32.mrf.mxu0
        %v3718 = vadd.f32 %v3365, %v3717
        %3719 = vmatprep.mubr.f32.mxu0 %v1663
        %3720 = vmatmul.mubr.f32.gmra.mxu0 %v1662
        %v3721 = vpop.f32.mrf.mxu0
        %v3722 = vadd.f32 %v3369, %v3721
        %v3723 = vpop.f32.mrf.mxu0
        %v3724 = vadd.f32 %v3371, %v3723
        %3725 = vmatprep.mubr.f32.mxu0 %v1667
        %3726 = vmatmul.mubr.f32.gmra.mxu0 %v1666
        %v3727 = vpop.f32.mrf.mxu0
        %v3728 = vadd.f32 %v3375, %v3727
        %v3729 = vpop.f32.mrf.mxu0
        %v3730 = vadd.f32 %v3377, %v3729
        %3731 = vmatprep.mubr.f32.mxu0 %v1671
        %3732 = vmatmul.mubr.f32.gmra.mxu0 %v1670
        %v3733 = vpop.f32.mrf.mxu0
        %v3734 = vadd.f32 %v3381, %v3733
        %v3735 = vpop.f32.mrf.mxu0
        %v3736 = vadd.f32 %v3383, %v3735
        %3737 = vmatprep.mubr.f32.mxu0 %v1675
        %3738 = vmatmul.mubr.f32.gmra.mxu0 %v1674
        %v3739 = vpop.f32.mrf.mxu0
        %v3740 = vadd.f32 %v3387, %v3739
        %v3741 = vpop.f32.mrf.mxu0
        %v3742 = vadd.f32 %v3389, %v3741
        %3743 = vmatprep.mubr.f32.mxu0 %v1679
        %3744 = vmatmul.mubr.f32.gmra.mxu0 %v1678
        %v3745 = vpop.f32.mrf.mxu0
        %v3746 = vadd.f32 %v3393, %v3745
        %v3747 = vpop.f32.mrf.mxu0
        %v3748 = vadd.f32 %v3395, %v3747
        %3749 = vmatprep.mubr.f32.mxu0 %v1683
        %3750 = vmatmul.mubr.f32.gmra.mxu0 %v1682
        %v3751 = vpop.f32.mrf.mxu0
        %v3752 = vadd.f32 %v3399, %v3751
        %v3753 = vpop.f32.mrf.mxu0
        %v3754 = vadd.f32 %v3401, %v3753
        %3755 = vmatprep.mubr.f32.mxu0 %v1687
        %3756 = vmatmul.mubr.f32.gmra.mxu0 %v1686
        %v3757 = vpop.f32.mrf.mxu0
        %v3758 = vadd.f32 %v3405, %v3757
        %v3759 = vpop.f32.mrf.mxu0
        %v3760 = vadd.f32 %v3407, %v3759
        %3761 = vmatprep.mubr.f32.mxu0 %v1691
        %3762 = vmatmul.mubr.f32.gmra.mxu0 %v1690
        %v3763 = vpop.f32.mrf.mxu0
        %v3764 = vadd.f32 %v3411, %v3763
        %v3765 = vpop.f32.mrf.mxu0
        %v3766 = vadd.f32 %v3413, %v3765
        %3767 = vmatprep.mubr.f32.mxu0 %v1695
        %3768 = vmatmul.mubr.f32.gmra.mxu0 %v1694
        %v3769 = vpop.f32.mrf.mxu0
        %v3770 = vadd.f32 %v3417, %v3769
        %v3771 = vpop.f32.mrf.mxu0
        %v3772 = vadd.f32 %v3419, %v3771
        %3773 = vmatprep.mubr.f32.mxu0 %v1699
        %3774 = vmatmul.mubr.f32.gmra.mxu0 %v1698
        %v3775 = vpop.f32.mrf.mxu0
        %v3776 = vadd.f32 %v3423, %v3775
        %v3777 = vpop.f32.mrf.mxu0
        %v3778 = vadd.f32 %v3425, %v3777
        %3779 = vmatprep.mubr.f32.mxu0 %v1703
        %3780 = vmatmul.mubr.f32.gmra.mxu0 %v1702
        %v3781 = vpop.f32.mrf.mxu0
        %v3782 = vadd.f32 %v3429, %v3781
        %v3783 = vpop.f32.mrf.mxu0
        %v3784 = vadd.f32 %v3431, %v3783
        %3785 = vmatprep.mubr.f32.mxu0 %v1707
        %3786 = vmatmul.mubr.f32.gmra.mxu0 %v1706
        %v3787 = vpop.f32.mrf.mxu0
        %v3788 = vadd.f32 %v3435, %v3787
        %v3789 = vpop.f32.mrf.mxu0
        %v3790 = vadd.f32 %v3437, %v3789
        %3791 = vdwg.mxu0
        %3792 = vmatprep.subr.mxu0 %v2025
        %3793 = vmatpush1.xpose.msra.mxu0 %v2024
        %3794 = vmatprep.subr.mxu0 %v2021
        %3795 = vmatpush1.xpose.msra.mxu0 %v2020
        %3796 = vmatprep.subr.mxu0 %v2017
        %3797 = vmatpush1.xpose.msra.mxu0 %v2016
        %3798 = vmatprep.subr.mxu0 %v2013
        %3799 = vmatpush1.xpose.msra.mxu0 %v2012
        %3800 = vmatprep.subr.mxu0 %v2009
        %3801 = vmatpush1.xpose.msra.mxu0 %v2008
        %3802 = vmatprep.subr.mxu0 %v2005
        %3803 = vmatpush1.xpose.msra.mxu0 %v2004
        %3804 = vmatprep.subr.mxu0 %v2001
        %3805 = vmatpush1.xpose.msra.mxu0 %v2000
        %3806 = vmatprep.subr.mxu0 %v1997
        %3807 = vmatpush1.xpose.msra.mxu0 %v1996
        %3808 = vmatprep.subr.mxu0 %v1993
        %3809 = vmatpush1.xpose.msra.mxu0 %v1992
        %3810 = vmatprep.subr.mxu0 %v1989
        %3811 = vmatpush1.xpose.msra.mxu0 %v1988
        %3812 = vmatprep.subr.mxu0 %v1985
        %3813 = vmatpush1.xpose.msra.mxu0 %v1984
        %3814 = vmatprep.subr.mxu0 %v1981
        %3815 = vmatpush1.xpose.msra.mxu0 %v1980
        %3816 = vmatprep.subr.mxu0 %v1977
        %3817 = vmatpush1.xpose.msra.mxu0 %v1976
        %3818 = vmatprep.subr.mxu0 %v1973
        %3819 = vmatpush1.xpose.msra.mxu0 %v1972
        %3820 = vmatprep.subr.mxu0 %v1969
        %3821 = vmatpush1.xpose.msra.mxu0 %v1968
        %3822 = vmatprep.subr.mxu0 %v1965
        %3823 = vmatpush1.xpose.msra.mxu0 %v1964
        %3824 = vmatprep.subr.mxu0 %v2089
        %3825 = vmatpush2.xpose.msra.mxu0 %v2088
        %3826 = vmatprep.subr.mxu0 %v2085
        %3827 = vmatpush2.xpose.msra.mxu0 %v2084
        %3828 = vmatprep.subr.mxu0 %v2081
        %3829 = vmatpush2.xpose.msra.mxu0 %v2080
        %3830 = vmatprep.subr.mxu0 %v2077
        %3831 = vmatpush2.xpose.msra.mxu0 %v2076
        %3832 = vmatprep.subr.mxu0 %v2073
        %3833 = vmatpush2.xpose.msra.mxu0 %v2072
        %3834 = vmatprep.subr.mxu0 %v2069
        %3835 = vmatpush2.xpose.msra.mxu0 %v2068
        %3836 = vmatprep.subr.mxu0 %v2065
        %3837 = vmatpush2.xpose.msra.mxu0 %v2064
        %3838 = vmatprep.subr.mxu0 %v2061
        %3839 = vmatpush2.xpose.msra.mxu0 %v2060
        %3840 = vmatprep.subr.mxu0 %v2057
        %3841 = vmatpush2.xpose.msra.mxu0 %v2056
        %3842 = vmatprep.subr.mxu0 %v2053
        %3843 = vmatpush2.xpose.msra.mxu0 %v2052
        %3844 = vmatprep.subr.mxu0 %v2049
        %3845 = vmatpush2.xpose.msra.mxu0 %v2048
        %3846 = vmatprep.subr.mxu0 %v2045
        %3847 = vmatpush2.xpose.msra.mxu0 %v2044
        %3848 = vmatprep.subr.mxu0 %v2041
        %3849 = vmatpush2.xpose.msra.mxu0 %v2040
        %3850 = vmatprep.subr.mxu0 %v2037
        %3851 = vmatpush2.xpose.msra.mxu0 %v2036
        %3852 = vmatprep.subr.mxu0 %v2033
        %3853 = vmatpush2.xpose.msra.mxu0 %v2032
        %3854 = vmatprep.subr.mxu0 %v2029
        %3855 = vmatpush2.xpose.msra.mxu0 %v2028
        %3856 = vmatprep.mubr.f32.mxu0 %v1517
        %3857 = vmatmul.mubr.f32.gmra.mxu0 %v1516
        %v3858 = vpop.f32.mrf.mxu0
        %v3859 = vadd.f32 0.0, %v3858
        %v3860 = vpop.f32.mrf.mxu0
        %v3861 = vadd.f32 0.0, %v3860
        %3862 = vmatprep.mubr.f32.mxu0 %v1521
        %3863 = vmatmul.mubr.f32.gmra.mxu0 %v1520
        %v3864 = vpop.f32.mrf.mxu0
        %v3865 = vadd.f32 0.0, %v3864
        %v3866 = vpop.f32.mrf.mxu0
        %v3867 = vadd.f32 0.0, %v3866
        %3868 = vmatprep.mubr.f32.mxu0 %v1525
        %3869 = vmatmul.mubr.f32.gmra.mxu0 %v1524
        %v3870 = vpop.f32.mrf.mxu0
        %v3871 = vadd.f32 0.0, %v3870
        %v3872 = vpop.f32.mrf.mxu0
        %v3873 = vadd.f32 0.0, %v3872
        %3874 = vmatprep.mubr.f32.mxu0 %v1529
        %3875 = vmatmul.mubr.f32.gmra.mxu0 %v1528
        %v3876 = vpop.f32.mrf.mxu0
        %v3877 = vadd.f32 0.0, %v3876
        %v3878 = vpop.f32.mrf.mxu0
        %v3879 = vadd.f32 0.0, %v3878
        %3880 = vmatprep.mubr.f32.mxu0 %v1533
        %3881 = vmatmul.mubr.f32.gmra.mxu0 %v1532
        %v3882 = vpop.f32.mrf.mxu0
        %v3883 = vadd.f32 0.0, %v3882
        %v3884 = vpop.f32.mrf.mxu0
        %v3885 = vadd.f32 0.0, %v3884
        %3886 = vmatprep.mubr.f32.mxu0 %v1537
        %3887 = vmatmul.mubr.f32.gmra.mxu0 %v1536
        %v3888 = vpop.f32.mrf.mxu0
        %v3889 = vadd.f32 0.0, %v3888
        %v3890 = vpop.f32.mrf.mxu0
        %v3891 = vadd.f32 0.0, %v3890
        %3892 = vmatprep.mubr.f32.mxu0 %v1541
        %3893 = vmatmul.mubr.f32.gmra.mxu0 %v1540
        %v3894 = vpop.f32.mrf.mxu0
        %v3895 = vadd.f32 0.0, %v3894
        %v3896 = vpop.f32.mrf.mxu0
        %v3897 = vadd.f32 0.0, %v3896
        %3898 = vmatprep.mubr.f32.mxu0 %v1545
        %3899 = vmatmul.mubr.f32.gmra.mxu0 %v1544
        %v3900 = vpop.f32.mrf.mxu0
        %v3901 = vadd.f32 0.0, %v3900
        %v3902 = vpop.f32.mrf.mxu0
        %v3903 = vadd.f32 0.0, %v3902
        %3904 = vmatprep.mubr.f32.mxu0 %v1549
        %3905 = vmatmul.mubr.f32.gmra.mxu0 %v1548
        %v3906 = vpop.f32.mrf.mxu0
        %v3907 = vadd.f32 0.0, %v3906
        %v3908 = vpop.f32.mrf.mxu0
        %v3909 = vadd.f32 0.0, %v3908
        %3910 = vmatprep.mubr.f32.mxu0 %v1553
        %3911 = vmatmul.mubr.f32.gmra.mxu0 %v1552
        %v3912 = vpop.f32.mrf.mxu0
        %v3913 = vadd.f32 0.0, %v3912
        %v3914 = vpop.f32.mrf.mxu0
        %v3915 = vadd.f32 0.0, %v3914
        %3916 = vmatprep.mubr.f32.mxu0 %v1557
        %3917 = vmatmul.mubr.f32.gmra.mxu0 %v1556
        %v3918 = vpop.f32.mrf.mxu0
        %v3919 = vadd.f32 0.0, %v3918
        %v3920 = vpop.f32.mrf.mxu0
        %v3921 = vadd.f32 0.0, %v3920
        %3922 = vmatprep.mubr.f32.mxu0 %v1561
        %3923 = vmatmul.mubr.f32.gmra.mxu0 %v1560
        %v3924 = vpop.f32.mrf.mxu0
        %v3925 = vadd.f32 0.0, %v3924
        %v3926 = vpop.f32.mrf.mxu0
        %v3927 = vadd.f32 0.0, %v3926
        %3928 = vmatprep.mubr.f32.mxu0 %v1565
        %3929 = vmatmul.mubr.f32.gmra.mxu0 %v1564
        %v3930 = vpop.f32.mrf.mxu0
        %v3931 = vadd.f32 0.0, %v3930
        %v3932 = vpop.f32.mrf.mxu0
        %v3933 = vadd.f32 0.0, %v3932
        %3934 = vmatprep.mubr.f32.mxu0 %v1569
        %3935 = vmatmul.mubr.f32.gmra.mxu0 %v1568
        %v3936 = vpop.f32.mrf.mxu0
        %v3937 = vadd.f32 0.0, %v3936
        %v3938 = vpop.f32.mrf.mxu0
        %v3939 = vadd.f32 0.0, %v3938
        %3940 = vmatprep.mubr.f32.mxu0 %v1573
        %3941 = vmatmul.mubr.f32.gmra.mxu0 %v1572
        %v3942 = vpop.f32.mrf.mxu0
        %v3943 = vadd.f32 0.0, %v3942
        %v3944 = vpop.f32.mrf.mxu0
        %v3945 = vadd.f32 0.0, %v3944
        %3946 = vmatprep.mubr.f32.mxu0 %v1577
        %3947 = vmatmul.mubr.f32.gmra.mxu0 %v1576
        %v3948 = vpop.f32.mrf.mxu0
        %v3949 = vadd.f32 0.0, %v3948
        %v3950 = vpop.f32.mrf.mxu0
        %v3951 = vadd.f32 0.0, %v3950
        %3952 = vmatprep.mubr.f32.mxu0 %v1581
        %3953 = vmatmul.mubr.f32.gmra.mxu0 %v1580
        %v3954 = vpop.f32.mrf.mxu0
        %v3955 = vadd.f32 0.0, %v3954
        %v3956 = vpop.f32.mrf.mxu0
        %v3957 = vadd.f32 0.0, %v3956
        %3958 = vmatprep.mubr.f32.mxu0 %v1585
        %3959 = vmatmul.mubr.f32.gmra.mxu0 %v1584
        %v3960 = vpop.f32.mrf.mxu0
        %v3961 = vadd.f32 0.0, %v3960
        %v3962 = vpop.f32.mrf.mxu0
        %v3963 = vadd.f32 0.0, %v3962
        %3964 = vmatprep.mubr.f32.mxu0 %v1589
        %3965 = vmatmul.mubr.f32.gmra.mxu0 %v1588
        %v3966 = vpop.f32.mrf.mxu0
        %v3967 = vadd.f32 0.0, %v3966
        %v3968 = vpop.f32.mrf.mxu0
        %v3969 = vadd.f32 0.0, %v3968
        %3970 = vmatprep.mubr.f32.mxu0 %v1593
        %3971 = vmatmul.mubr.f32.gmra.mxu0 %v1592
        %v3972 = vpop.f32.mrf.mxu0
        %v3973 = vadd.f32 0.0, %v3972
        %v3974 = vpop.f32.mrf.mxu0
        %v3975 = vadd.f32 0.0, %v3974
        %3976 = vmatprep.mubr.f32.mxu0 %v1597
        %3977 = vmatmul.mubr.f32.gmra.mxu0 %v1596
        %v3978 = vpop.f32.mrf.mxu0
        %v3979 = vadd.f32 0.0, %v3978
        %v3980 = vpop.f32.mrf.mxu0
        %v3981 = vadd.f32 0.0, %v3980
        %3982 = vmatprep.mubr.f32.mxu0 %v1601
        %3983 = vmatmul.mubr.f32.gmra.mxu0 %v1600
        %v3984 = vpop.f32.mrf.mxu0
        %v3985 = vadd.f32 0.0, %v3984
        %v3986 = vpop.f32.mrf.mxu0
        %v3987 = vadd.f32 0.0, %v3986
        %3988 = vmatprep.mubr.f32.mxu0 %v1605
        %3989 = vmatmul.mubr.f32.gmra.mxu0 %v1604
        %v3990 = vpop.f32.mrf.mxu0
        %v3991 = vadd.f32 0.0, %v3990
        %v3992 = vpop.f32.mrf.mxu0
        %v3993 = vadd.f32 0.0, %v3992
        %3994 = vmatprep.mubr.f32.mxu0 %v1609
        %3995 = vmatmul.mubr.f32.gmra.mxu0 %v1608
        %v3996 = vpop.f32.mrf.mxu0
        %v3997 = vadd.f32 0.0, %v3996
        %v3998 = vpop.f32.mrf.mxu0
        %v3999 = vadd.f32 0.0, %v3998
        %4000 = vmatprep.mubr.f32.mxu0 %v1613
        %4001 = vmatmul.mubr.f32.gmra.mxu0 %v1612
        %v4002 = vpop.f32.mrf.mxu0
        %v4003 = vadd.f32 0.0, %v4002
        %v4004 = vpop.f32.mrf.mxu0
        %v4005 = vadd.f32 0.0, %v4004
        %4006 = vmatprep.mubr.f32.mxu0 %v1617
        %4007 = vmatmul.mubr.f32.gmra.mxu0 %v1616
        %v4008 = vpop.f32.mrf.mxu0
        %v4009 = vadd.f32 0.0, %v4008
        %v4010 = vpop.f32.mrf.mxu0
        %v4011 = vadd.f32 0.0, %v4010
        %4012 = vmatprep.mubr.f32.mxu0 %v1621
        %4013 = vmatmul.mubr.f32.gmra.mxu0 %v1620
        %v4014 = vpop.f32.mrf.mxu0
        %v4015 = vadd.f32 0.0, %v4014
        %v4016 = vpop.f32.mrf.mxu0
        %v4017 = vadd.f32 0.0, %v4016
        %4018 = vmatprep.mubr.f32.mxu0 %v1625
        %4019 = vmatmul.mubr.f32.gmra.mxu0 %v1624
        %v4020 = vpop.f32.mrf.mxu0
        %v4021 = vadd.f32 0.0, %v4020
        %v4022 = vpop.f32.mrf.mxu0
        %v4023 = vadd.f32 0.0, %v4022
        %4024 = vmatprep.mubr.f32.mxu0 %v1629
        %4025 = vmatmul.mubr.f32.gmra.mxu0 %v1628
        %v4026 = vpop.f32.mrf.mxu0
        %v4027 = vadd.f32 0.0, %v4026
        %v4028 = vpop.f32.mrf.mxu0
        %v4029 = vadd.f32 0.0, %v4028
        %4030 = vmatprep.mubr.f32.mxu0 %v1633
        %4031 = vmatmul.mubr.f32.gmra.mxu0 %v1632
        %v4032 = vpop.f32.mrf.mxu0
        %v4033 = vadd.f32 0.0, %v4032
        %v4034 = vpop.f32.mrf.mxu0
        %v4035 = vadd.f32 0.0, %v4034
        %4036 = vmatprep.mubr.f32.mxu0 %v1637
        %4037 = vmatmul.mubr.f32.gmra.mxu0 %v1636
        %v4038 = vpop.f32.mrf.mxu0
        %v4039 = vadd.f32 0.0, %v4038
        %v4040 = vpop.f32.mrf.mxu0
        %v4041 = vadd.f32 0.0, %v4040
        %4042 = vmatprep.mubr.f32.mxu0 %v1641
        %4043 = vmatmul.mubr.f32.gmra.mxu0 %v1640
        %v4044 = vpop.f32.mrf.mxu0
        %v4045 = vadd.f32 0.0, %v4044
        %v4046 = vpop.f32.mrf.mxu0
        %v4047 = vadd.f32 0.0, %v4046
        %4048 = vmatprep.mubr.f32.mxu0 %v1645
        %4049 = vmatmul.mubr.f32.gmra.mxu0 %v1644
        %v4050 = vpop.f32.mrf.mxu0
        %v4051 = vadd.f32 0.0, %v4050
        %v4052 = vpop.f32.mrf.mxu0
        %v4053 = vadd.f32 0.0, %v4052
        %4054 = vmatprep.mubr.f32.mxu0 %v1649
        %4055 = vmatmul.mubr.f32.gmra.mxu0 %v1648
        %v4056 = vpop.f32.mrf.mxu0
        %v4057 = vadd.f32 0.0, %v4056
        %v4058 = vpop.f32.mrf.mxu0
        %v4059 = vadd.f32 0.0, %v4058
        %4060 = vmatprep.mubr.f32.mxu0 %v1653
        %4061 = vmatmul.mubr.f32.gmra.mxu0 %v1652
        %v4062 = vpop.f32.mrf.mxu0
        %v4063 = vadd.f32 0.0, %v4062
        %v4064 = vpop.f32.mrf.mxu0
        %v4065 = vadd.f32 0.0, %v4064
        %4066 = vmatprep.mubr.f32.mxu0 %v1657
        %4067 = vmatmul.mubr.f32.gmra.mxu0 %v1656
        %v4068 = vpop.f32.mrf.mxu0
        %v4069 = vadd.f32 0.0, %v4068
        %v4070 = vpop.f32.mrf.mxu0
        %v4071 = vadd.f32 0.0, %v4070
        %4072 = vmatprep.mubr.f32.mxu0 %v1661
        %4073 = vmatmul.mubr.f32.gmra.mxu0 %v1660
        %v4074 = vpop.f32.mrf.mxu0
        %v4075 = vadd.f32 0.0, %v4074
        %v4076 = vpop.f32.mrf.mxu0
        %v4077 = vadd.f32 0.0, %v4076
        %4078 = vmatprep.mubr.f32.mxu0 %v1665
        %4079 = vmatmul.mubr.f32.gmra.mxu0 %v1664
        %v4080 = vpop.f32.mrf.mxu0
        %v4081 = vadd.f32 0.0, %v4080
        %v4082 = vpop.f32.mrf.mxu0
        %v4083 = vadd.f32 0.0, %v4082
        %4084 = vmatprep.mubr.f32.mxu0 %v1669
        %4085 = vmatmul.mubr.f32.gmra.mxu0 %v1668
        %v4086 = vpop.f32.mrf.mxu0
        %v4087 = vadd.f32 0.0, %v4086
        %v4088 = vpop.f32.mrf.mxu0
        %v4089 = vadd.f32 0.0, %v4088
        %4090 = vmatprep.mubr.f32.mxu0 %v1673
        %4091 = vmatmul.mubr.f32.gmra.mxu0 %v1672
        %v4092 = vpop.f32.mrf.mxu0
        %v4093 = vadd.f32 0.0, %v4092
        %v4094 = vpop.f32.mrf.mxu0
        %v4095 = vadd.f32 0.0, %v4094
        %4096 = vmatprep.mubr.f32.mxu0 %v1677
        %4097 = vmatmul.mubr.f32.gmra.mxu0 %v1676
        %v4098 = vpop.f32.mrf.mxu0
        %v4099 = vadd.f32 0.0, %v4098
        %v4100 = vpop.f32.mrf.mxu0
        %v4101 = vadd.f32 0.0, %v4100
        %4102 = vmatprep.mubr.f32.mxu0 %v1681
        %4103 = vmatmul.mubr.f32.gmra.mxu0 %v1680
        %v4104 = vpop.f32.mrf.mxu0
        %v4105 = vadd.f32 0.0, %v4104
        %v4106 = vpop.f32.mrf.mxu0
        %v4107 = vadd.f32 0.0, %v4106
        %4108 = vmatprep.mubr.f32.mxu0 %v1685
        %4109 = vmatmul.mubr.f32.gmra.mxu0 %v1684
        %v4110 = vpop.f32.mrf.mxu0
        %v4111 = vadd.f32 0.0, %v4110
        %v4112 = vpop.f32.mrf.mxu0
        %v4113 = vadd.f32 0.0, %v4112
        %4114 = vmatprep.mubr.f32.mxu0 %v1689
        %4115 = vmatmul.mubr.f32.gmra.mxu0 %v1688
        %v4116 = vpop.f32.mrf.mxu0
        %v4117 = vadd.f32 0.0, %v4116
        %v4118 = vpop.f32.mrf.mxu0
        %v4119 = vadd.f32 0.0, %v4118
        %4120 = vmatprep.mubr.f32.mxu0 %v1693
        %4121 = vmatmul.mubr.f32.gmra.mxu0 %v1692
        %v4122 = vpop.f32.mrf.mxu0
        %v4123 = vadd.f32 0.0, %v4122
        %v4124 = vpop.f32.mrf.mxu0
        %v4125 = vadd.f32 0.0, %v4124
        %4126 = vmatprep.mubr.f32.mxu0 %v1697
        %4127 = vmatmul.mubr.f32.gmra.mxu0 %v1696
        %v4128 = vpop.f32.mrf.mxu0
        %v4129 = vadd.f32 0.0, %v4128
        %v4130 = vpop.f32.mrf.mxu0
        %v4131 = vadd.f32 0.0, %v4130
        %4132 = vmatprep.mubr.f32.mxu0 %v1701
        %4133 = vmatmul.mubr.f32.gmra.mxu0 %v1700
        %v4134 = vpop.f32.mrf.mxu0
        %v4135 = vadd.f32 0.0, %v4134
        %v4136 = vpop.f32.mrf.mxu0
        %v4137 = vadd.f32 0.0, %v4136
        %4138 = vmatprep.mubr.f32.mxu0 %v1705
        %4139 = vmatmul.mubr.f32.gmra.mxu0 %v1704
        %v4140 = vpop.f32.mrf.mxu0
        %v4141 = vadd.f32 0.0, %v4140
        %v4142 = vpop.f32.mrf.mxu0
        %v4143 = vadd.f32 0.0, %v4142
        %4144 = vdwg.mxu0
        %4145 = vmatprep.subr.mxu0 %v2027
        %4146 = vmatpush1.xpose.msra.mxu0 %v2026
        %4147 = vmatprep.subr.mxu0 %v2023
        %4148 = vmatpush1.xpose.msra.mxu0 %v2022
        %4149 = vmatprep.subr.mxu0 %v2019
        %4150 = vmatpush1.xpose.msra.mxu0 %v2018
        %4151 = vmatprep.subr.mxu0 %v2015
        %4152 = vmatpush1.xpose.msra.mxu0 %v2014
        %4153 = vmatprep.subr.mxu0 %v2011
        %4154 = vmatpush1.xpose.msra.mxu0 %v2010
        %4155 = vmatprep.subr.mxu0 %v2007
        %4156 = vmatpush1.xpose.msra.mxu0 %v2006
        %4157 = vmatprep.subr.mxu0 %v2003
        %4158 = vmatpush1.xpose.msra.mxu0 %v2002
        %4159 = vmatprep.subr.mxu0 %v1999
        %4160 = vmatpush1.xpose.msra.mxu0 %v1998
        %4161 = vmatprep.subr.mxu0 %v1995
        %4162 = vmatpush1.xpose.msra.mxu0 %v1994
        %4163 = vmatprep.subr.mxu0 %v1991
        %4164 = vmatpush1.xpose.msra.mxu0 %v1990
        %4165 = vmatprep.subr.mxu0 %v1987
        %4166 = vmatpush1.xpose.msra.mxu0 %v1986
        %4167 = vmatprep.subr.mxu0 %v1983
        %4168 = vmatpush1.xpose.msra.mxu0 %v1982
        %4169 = vmatprep.subr.mxu0 %v1979
        %4170 = vmatpush1.xpose.msra.mxu0 %v1978
        %4171 = vmatprep.subr.mxu0 %v1975
        %4172 = vmatpush1.xpose.msra.mxu0 %v1974
        %4173 = vmatprep.subr.mxu0 %v1971
        %4174 = vmatpush1.xpose.msra.mxu0 %v1970
        %4175 = vmatprep.subr.mxu0 %v1967
        %4176 = vmatpush1.xpose.msra.mxu0 %v1966
        %4177 = vmatprep.subr.mxu0 %v2091
        %4178 = vmatpush2.xpose.msra.mxu0 %v2090
        %4179 = vmatprep.subr.mxu0 %v2087
        %4180 = vmatpush2.xpose.msra.mxu0 %v2086
        %4181 = vmatprep.subr.mxu0 %v2083
        %4182 = vmatpush2.xpose.msra.mxu0 %v2082
        %4183 = vmatprep.subr.mxu0 %v2079
        %4184 = vmatpush2.xpose.msra.mxu0 %v2078
        %4185 = vmatprep.subr.mxu0 %v2075
        %4186 = vmatpush2.xpose.msra.mxu0 %v2074
        %4187 = vmatprep.subr.mxu0 %v2071
        %4188 = vmatpush2.xpose.msra.mxu0 %v2070
        %4189 = vmatprep.subr.mxu0 %v2067
        %4190 = vmatpush2.xpose.msra.mxu0 %v2066
        %4191 = vmatprep.subr.mxu0 %v2063
        %4192 = vmatpush2.xpose.msra.mxu0 %v2062
        %4193 = vmatprep.subr.mxu0 %v2059
        %4194 = vmatpush2.xpose.msra.mxu0 %v2058
        %4195 = vmatprep.subr.mxu0 %v2055
        %4196 = vmatpush2.xpose.msra.mxu0 %v2054
        %4197 = vmatprep.subr.mxu0 %v2051
        %4198 = vmatpush2.xpose.msra.mxu0 %v2050
        %4199 = vmatprep.subr.mxu0 %v2047
        %4200 = vmatpush2.xpose.msra.mxu0 %v2046
        %4201 = vmatprep.subr.mxu0 %v2043
        %4202 = vmatpush2.xpose.msra.mxu0 %v2042
        %4203 = vmatprep.subr.mxu0 %v2039
        %4204 = vmatpush2.xpose.msra.mxu0 %v2038
        %4205 = vmatprep.subr.mxu0 %v2035
        %4206 = vmatpush2.xpose.msra.mxu0 %v2034
        %4207 = vmatprep.subr.mxu0 %v2031
        %4208 = vmatpush2.xpose.msra.mxu0 %v2030
        %4209 = vmatprep.mubr.f32.mxu0 %v1519
        %4210 = vmatmul.mubr.f32.gmra.mxu0 %v1518
        %v4211 = vpop.f32.mrf.mxu0
        %v4212 = vadd.f32 %v3859, %v4211
        %v4213 = vpop.f32.mrf.mxu0
        %v4214 = vadd.f32 %v3861, %v4213
        %4215 = vmatprep.mubr.f32.mxu0 %v1523
        %4216 = vmatmul.mubr.f32.gmra.mxu0 %v1522
        %v4217 = vpop.f32.mrf.mxu0
        %v4218 = vadd.f32 %v3865, %v4217
        %v4219 = vpop.f32.mrf.mxu0
        %v4220 = vadd.f32 %v3867, %v4219
        %4221 = vmatprep.mubr.f32.mxu0 %v1527
        %4222 = vmatmul.mubr.f32.gmra.mxu0 %v1526
        %v4223 = vpop.f32.mrf.mxu0
        %v4224 = vadd.f32 %v3871, %v4223
        %v4225 = vpop.f32.mrf.mxu0
        %v4226 = vadd.f32 %v3873, %v4225
        %4227 = vmatprep.mubr.f32.mxu0 %v1531
        %4228 = vmatmul.mubr.f32.gmra.mxu0 %v1530
        %v4229 = vpop.f32.mrf.mxu0
        %v4230 = vadd.f32 %v3877, %v4229
        %v4231 = vpop.f32.mrf.mxu0
        %v4232 = vadd.f32 %v3879, %v4231
        %4233 = vmatprep.mubr.f32.mxu0 %v1535
        %4234 = vmatmul.mubr.f32.gmra.mxu0 %v1534
        %v4235 = vpop.f32.mrf.mxu0
        %v4236 = vadd.f32 %v3883, %v4235
        %v4237 = vpop.f32.mrf.mxu0
        %v4238 = vadd.f32 %v3885, %v4237
        %4239 = vmatprep.mubr.f32.mxu0 %v1539
        %4240 = vmatmul.mubr.f32.gmra.mxu0 %v1538
        %v4241 = vpop.f32.mrf.mxu0
        %v4242 = vadd.f32 %v3889, %v4241
        %v4243 = vpop.f32.mrf.mxu0
        %v4244 = vadd.f32 %v3891, %v4243
        %4245 = vmatprep.mubr.f32.mxu0 %v1543
        %4246 = vmatmul.mubr.f32.gmra.mxu0 %v1542
        %v4247 = vpop.f32.mrf.mxu0
        %v4248 = vadd.f32 %v3895, %v4247
        %v4249 = vpop.f32.mrf.mxu0
        %v4250 = vadd.f32 %v3897, %v4249
        %4251 = vmatprep.mubr.f32.mxu0 %v1547
        %4252 = vmatmul.mubr.f32.gmra.mxu0 %v1546
        %v4253 = vpop.f32.mrf.mxu0
        %v4254 = vadd.f32 %v3901, %v4253
        %v4255 = vpop.f32.mrf.mxu0
        %v4256 = vadd.f32 %v3903, %v4255
        %4257 = vmatprep.mubr.f32.mxu0 %v1551
        %4258 = vmatmul.mubr.f32.gmra.mxu0 %v1550
        %v4259 = vpop.f32.mrf.mxu0
        %v4260 = vadd.f32 %v3907, %v4259
        %v4261 = vpop.f32.mrf.mxu0
        %v4262 = vadd.f32 %v3909, %v4261
        %4263 = vmatprep.mubr.f32.mxu0 %v1555
        %4264 = vmatmul.mubr.f32.gmra.mxu0 %v1554
        %v4265 = vpop.f32.mrf.mxu0
        %v4266 = vadd.f32 %v3913, %v4265
        %v4267 = vpop.f32.mrf.mxu0
        %v4268 = vadd.f32 %v3915, %v4267
        %4269 = vmatprep.mubr.f32.mxu0 %v1559
        %4270 = vmatmul.mubr.f32.gmra.mxu0 %v1558
        %v4271 = vpop.f32.mrf.mxu0
        %v4272 = vadd.f32 %v3919, %v4271
        %v4273 = vpop.f32.mrf.mxu0
        %v4274 = vadd.f32 %v3921, %v4273
        %4275 = vmatprep.mubr.f32.mxu0 %v1563
        %4276 = vmatmul.mubr.f32.gmra.mxu0 %v1562
        %v4277 = vpop.f32.mrf.mxu0
        %v4278 = vadd.f32 %v3925, %v4277
        %v4279 = vpop.f32.mrf.mxu0
        %v4280 = vadd.f32 %v3927, %v4279
        %4281 = vmatprep.mubr.f32.mxu0 %v1567
        %4282 = vmatmul.mubr.f32.gmra.mxu0 %v1566
        %v4283 = vpop.f32.mrf.mxu0
        %v4284 = vadd.f32 %v3931, %v4283
        %v4285 = vpop.f32.mrf.mxu0
        %v4286 = vadd.f32 %v3933, %v4285
        %4287 = vmatprep.mubr.f32.mxu0 %v1571
        %4288 = vmatmul.mubr.f32.gmra.mxu0 %v1570
        %v4289 = vpop.f32.mrf.mxu0
        %v4290 = vadd.f32 %v3937, %v4289
        %v4291 = vpop.f32.mrf.mxu0
        %v4292 = vadd.f32 %v3939, %v4291
        %4293 = vmatprep.mubr.f32.mxu0 %v1575
        %4294 = vmatmul.mubr.f32.gmra.mxu0 %v1574
        %v4295 = vpop.f32.mrf.mxu0
        %v4296 = vadd.f32 %v3943, %v4295
        %v4297 = vpop.f32.mrf.mxu0
        %v4298 = vadd.f32 %v3945, %v4297
        %4299 = vmatprep.mubr.f32.mxu0 %v1579
        %4300 = vmatmul.mubr.f32.gmra.mxu0 %v1578
        %v4301 = vpop.f32.mrf.mxu0
        %v4302 = vadd.f32 %v3949, %v4301
        %v4303 = vpop.f32.mrf.mxu0
        %v4304 = vadd.f32 %v3951, %v4303
        %4305 = vmatprep.mubr.f32.mxu0 %v1583
        %4306 = vmatmul.mubr.f32.gmra.mxu0 %v1582
        %v4307 = vpop.f32.mrf.mxu0
        %v4308 = vadd.f32 %v3955, %v4307
        %v4309 = vpop.f32.mrf.mxu0
        %v4310 = vadd.f32 %v3957, %v4309
        %4311 = vmatprep.mubr.f32.mxu0 %v1587
        %4312 = vmatmul.mubr.f32.gmra.mxu0 %v1586
        %v4313 = vpop.f32.mrf.mxu0
        %v4314 = vadd.f32 %v3961, %v4313
        %v4315 = vpop.f32.mrf.mxu0
        %v4316 = vadd.f32 %v3963, %v4315
        %4317 = vmatprep.mubr.f32.mxu0 %v1591
        %4318 = vmatmul.mubr.f32.gmra.mxu0 %v1590
        %v4319 = vpop.f32.mrf.mxu0
        %v4320 = vadd.f32 %v3967, %v4319
        %v4321 = vpop.f32.mrf.mxu0
        %v4322 = vadd.f32 %v3969, %v4321
        %4323 = vmatprep.mubr.f32.mxu0 %v1595
        %4324 = vmatmul.mubr.f32.gmra.mxu0 %v1594
        %v4325 = vpop.f32.mrf.mxu0
        %v4326 = vadd.f32 %v3973, %v4325
        %v4327 = vpop.f32.mrf.mxu0
        %v4328 = vadd.f32 %v3975, %v4327
        %4329 = vmatprep.mubr.f32.mxu0 %v1599
        %4330 = vmatmul.mubr.f32.gmra.mxu0 %v1598
        %v4331 = vpop.f32.mrf.mxu0
        %v4332 = vadd.f32 %v3979, %v4331
        %v4333 = vpop.f32.mrf.mxu0
        %v4334 = vadd.f32 %v3981, %v4333
        %4335 = vmatprep.mubr.f32.mxu0 %v1603
        %4336 = vmatmul.mubr.f32.gmra.mxu0 %v1602
        %v4337 = vpop.f32.mrf.mxu0
        %v4338 = vadd.f32 %v3985, %v4337
        %v4339 = vpop.f32.mrf.mxu0
        %v4340 = vadd.f32 %v3987, %v4339
        %4341 = vmatprep.mubr.f32.mxu0 %v1607
        %4342 = vmatmul.mubr.f32.gmra.mxu0 %v1606
        %v4343 = vpop.f32.mrf.mxu0
        %v4344 = vadd.f32 %v3991, %v4343
        %v4345 = vpop.f32.mrf.mxu0
        %v4346 = vadd.f32 %v3993, %v4345
        %4347 = vmatprep.mubr.f32.mxu0 %v1611
        %4348 = vmatmul.mubr.f32.gmra.mxu0 %v1610
        %v4349 = vpop.f32.mrf.mxu0
        %v4350 = vadd.f32 %v3997, %v4349
        %v4351 = vpop.f32.mrf.mxu0
        %v4352 = vadd.f32 %v3999, %v4351
        %4353 = vmatprep.mubr.f32.mxu0 %v1615
        %4354 = vmatmul.mubr.f32.gmra.mxu0 %v1614
        %v4355 = vpop.f32.mrf.mxu0
        %v4356 = vadd.f32 %v4003, %v4355
        %v4357 = vpop.f32.mrf.mxu0
        %v4358 = vadd.f32 %v4005, %v4357
        %4359 = vmatprep.mubr.f32.mxu0 %v1619
        %4360 = vmatmul.mubr.f32.gmra.mxu0 %v1618
        %v4361 = vpop.f32.mrf.mxu0
        %v4362 = vadd.f32 %v4009, %v4361
        %v4363 = vpop.f32.mrf.mxu0
        %v4364 = vadd.f32 %v4011, %v4363
        %4365 = vmatprep.mubr.f32.mxu0 %v1623
        %4366 = vmatmul.mubr.f32.gmra.mxu0 %v1622
        %v4367 = vpop.f32.mrf.mxu0
        %v4368 = vadd.f32 %v4015, %v4367
        %v4369 = vpop.f32.mrf.mxu0
        %v4370 = vadd.f32 %v4017, %v4369
        %4371 = vmatprep.mubr.f32.mxu0 %v1627
        %4372 = vmatmul.mubr.f32.gmra.mxu0 %v1626
        %v4373 = vpop.f32.mrf.mxu0
        %v4374 = vadd.f32 %v4021, %v4373
        %v4375 = vpop.f32.mrf.mxu0
        %v4376 = vadd.f32 %v4023, %v4375
        %4377 = vmatprep.mubr.f32.mxu0 %v1631
        %4378 = vmatmul.mubr.f32.gmra.mxu0 %v1630
        %v4379 = vpop.f32.mrf.mxu0
        %v4380 = vadd.f32 %v4027, %v4379
        %v4381 = vpop.f32.mrf.mxu0
        %v4382 = vadd.f32 %v4029, %v4381
        %4383 = vmatprep.mubr.f32.mxu0 %v1635
        %4384 = vmatmul.mubr.f32.gmra.mxu0 %v1634
        %v4385 = vpop.f32.mrf.mxu0
        %v4386 = vadd.f32 %v4033, %v4385
        %v4387 = vpop.f32.mrf.mxu0
        %v4388 = vadd.f32 %v4035, %v4387
        %4389 = vmatprep.mubr.f32.mxu0 %v1639
        %4390 = vmatmul.mubr.f32.gmra.mxu0 %v1638
        %v4391 = vpop.f32.mrf.mxu0
        %v4392 = vadd.f32 %v4039, %v4391
        %v4393 = vpop.f32.mrf.mxu0
        %v4394 = vadd.f32 %v4041, %v4393
        %4395 = vmatprep.mubr.f32.mxu0 %v1643
        %4396 = vmatmul.mubr.f32.gmra.mxu0 %v1642
        %v4397 = vpop.f32.mrf.mxu0
        %v4398 = vadd.f32 %v4045, %v4397
        %v4399 = vpop.f32.mrf.mxu0
        %v4400 = vadd.f32 %v4047, %v4399
        %4401 = vmatprep.mubr.f32.mxu0 %v1647
        %4402 = vmatmul.mubr.f32.gmra.mxu0 %v1646
        %v4403 = vpop.f32.mrf.mxu0
        %v4404 = vadd.f32 %v4051, %v4403
        %v4405 = vpop.f32.mrf.mxu0
        %v4406 = vadd.f32 %v4053, %v4405
        %4407 = vmatprep.mubr.f32.mxu0 %v1651
        %4408 = vmatmul.mubr.f32.gmra.mxu0 %v1650
        %v4409 = vpop.f32.mrf.mxu0
        %v4410 = vadd.f32 %v4057, %v4409
        %v4411 = vpop.f32.mrf.mxu0
        %v4412 = vadd.f32 %v4059, %v4411
        %4413 = vmatprep.mubr.f32.mxu0 %v1655
        %4414 = vmatmul.mubr.f32.gmra.mxu0 %v1654
        %v4415 = vpop.f32.mrf.mxu0
        %v4416 = vadd.f32 %v4063, %v4415
        %v4417 = vpop.f32.mrf.mxu0
        %v4418 = vadd.f32 %v4065, %v4417
        %4419 = vmatprep.mubr.f32.mxu0 %v1659
        %4420 = vmatmul.mubr.f32.gmra.mxu0 %v1658
        %v4421 = vpop.f32.mrf.mxu0
        %v4422 = vadd.f32 %v4069, %v4421
        %v4423 = vpop.f32.mrf.mxu0
        %v4424 = vadd.f32 %v4071, %v4423
        %4425 = vmatprep.mubr.f32.mxu0 %v1663
        %4426 = vmatmul.mubr.f32.gmra.mxu0 %v1662
        %v4427 = vpop.f32.mrf.mxu0
        %v4428 = vadd.f32 %v4075, %v4427
        %v4429 = vpop.f32.mrf.mxu0
        %v4430 = vadd.f32 %v4077, %v4429
        %4431 = vmatprep.mubr.f32.mxu0 %v1667
        %4432 = vmatmul.mubr.f32.gmra.mxu0 %v1666
        %v4433 = vpop.f32.mrf.mxu0
        %v4434 = vadd.f32 %v4081, %v4433
        %v4435 = vpop.f32.mrf.mxu0
        %v4436 = vadd.f32 %v4083, %v4435
        %4437 = vmatprep.mubr.f32.mxu0 %v1671
        %4438 = vmatmul.mubr.f32.gmra.mxu0 %v1670
        %v4439 = vpop.f32.mrf.mxu0
        %v4440 = vadd.f32 %v4087, %v4439
        %v4441 = vpop.f32.mrf.mxu0
        %v4442 = vadd.f32 %v4089, %v4441
        %4443 = vmatprep.mubr.f32.mxu0 %v1675
        %4444 = vmatmul.mubr.f32.gmra.mxu0 %v1674
        %v4445 = vpop.f32.mrf.mxu0
        %v4446 = vadd.f32 %v4093, %v4445
        %v4447 = vpop.f32.mrf.mxu0
        %v4448 = vadd.f32 %v4095, %v4447
        %4449 = vmatprep.mubr.f32.mxu0 %v1679
        %4450 = vmatmul.mubr.f32.gmra.mxu0 %v1678
        %v4451 = vpop.f32.mrf.mxu0
        %v4452 = vadd.f32 %v4099, %v4451
        %v4453 = vpop.f32.mrf.mxu0
        %v4454 = vadd.f32 %v4101, %v4453
        %4455 = vmatprep.mubr.f32.mxu0 %v1683
        %4456 = vmatmul.mubr.f32.gmra.mxu0 %v1682
        %v4457 = vpop.f32.mrf.mxu0
        %v4458 = vadd.f32 %v4105, %v4457
        %v4459 = vpop.f32.mrf.mxu0
        %v4460 = vadd.f32 %v4107, %v4459
        %4461 = vmatprep.mubr.f32.mxu0 %v1687
        %4462 = vmatmul.mubr.f32.gmra.mxu0 %v1686
        %v4463 = vpop.f32.mrf.mxu0
        %v4464 = vadd.f32 %v4111, %v4463
        %v4465 = vpop.f32.mrf.mxu0
        %v4466 = vadd.f32 %v4113, %v4465
        %4467 = vmatprep.mubr.f32.mxu0 %v1691
        %4468 = vmatmul.mubr.f32.gmra.mxu0 %v1690
        %v4469 = vpop.f32.mrf.mxu0
        %v4470 = vadd.f32 %v4117, %v4469
        %v4471 = vpop.f32.mrf.mxu0
        %v4472 = vadd.f32 %v4119, %v4471
        %4473 = vmatprep.mubr.f32.mxu0 %v1695
        %4474 = vmatmul.mubr.f32.gmra.mxu0 %v1694
        %v4475 = vpop.f32.mrf.mxu0
        %v4476 = vadd.f32 %v4123, %v4475
        %v4477 = vpop.f32.mrf.mxu0
        %v4478 = vadd.f32 %v4125, %v4477
        %4479 = vmatprep.mubr.f32.mxu0 %v1699
        %4480 = vmatmul.mubr.f32.gmra.mxu0 %v1698
        %v4481 = vpop.f32.mrf.mxu0
        %v4482 = vadd.f32 %v4129, %v4481
        %v4483 = vpop.f32.mrf.mxu0
        %v4484 = vadd.f32 %v4131, %v4483
        %4485 = vmatprep.mubr.f32.mxu0 %v1703
        %4486 = vmatmul.mubr.f32.gmra.mxu0 %v1702
        %v4487 = vpop.f32.mrf.mxu0
        %v4488 = vadd.f32 %v4135, %v4487
        %v4489 = vpop.f32.mrf.mxu0
        %v4490 = vadd.f32 %v4137, %v4489
        %4491 = vmatprep.mubr.f32.mxu0 %v1707
        %4492 = vmatmul.mubr.f32.gmra.mxu0 %v1706
        %v4493 = vpop.f32.mrf.mxu0
        %v4494 = vadd.f32 %v4141, %v4493
        %v4495 = vpop.f32.mrf.mxu0
        %v4496 = vadd.f32 %v4143, %v4495
        %4497 = vdwg.mxu0
        %v4498 = vadd.f32 %v2092, %v2800
        %v4499 = vadd.f32 %v2093, %v2802
        %v4500 = vadd.f32 %v2094, %v3506
        %v4501 = vadd.f32 %v2095, %v3508
        %v4502 = vadd.f32 %v2096, %v4212
        %v4503 = vadd.f32 %v2097, %v4214
        %v4504 = vadd.f32 %v2098, %v2806
        %v4505 = vadd.f32 %v2099, %v2808
        %v4506 = vadd.f32 %v2100, %v3512
        %v4507 = vadd.f32 %v2101, %v3514
        %v4508 = vadd.f32 %v2102, %v4218
        %v4509 = vadd.f32 %v2103, %v4220
        %v4510 = vadd.f32 %v2104, %v2812
        %v4511 = vadd.f32 %v2105, %v2814
        %v4512 = vadd.f32 %v2106, %v3518
        %v4513 = vadd.f32 %v2107, %v3520
        %v4514 = vadd.f32 %v2108, %v4224
        %v4515 = vadd.f32 %v2109, %v4226
        %v4516 = vadd.f32 %v2110, %v2818
        %v4517 = vadd.f32 %v2111, %v2820
        %v4518 = vadd.f32 %v2112, %v3524
        %v4519 = vadd.f32 %v2113, %v3526
        %v4520 = vadd.f32 %v2114, %v4230
        %v4521 = vadd.f32 %v2115, %v4232
        %v4522 = vadd.f32 %v2116, %v2824
        %v4523 = vadd.f32 %v2117, %v2826
        %v4524 = vadd.f32 %v2118, %v3530
        %v4525 = vadd.f32 %v2119, %v3532
        %v4526 = vadd.f32 %v2120, %v4236
        %v4527 = vadd.f32 %v2121, %v4238
        %v4528 = vadd.f32 %v2122, %v2830
        %v4529 = vadd.f32 %v2123, %v2832
        %v4530 = vadd.f32 %v2124, %v3536
        %v4531 = vadd.f32 %v2125, %v3538
        %v4532 = vadd.f32 %v2126, %v4242
        %v4533 = vadd.f32 %v2127, %v4244
        %v4534 = vadd.f32 %v2128, %v2836
        %v4535 = vadd.f32 %v2129, %v2838
        %v4536 = vadd.f32 %v2130, %v3542
        %v4537 = vadd.f32 %v2131, %v3544
        %v4538 = vadd.f32 %v2132, %v4248
        %v4539 = vadd.f32 %v2133, %v4250
        %v4540 = vadd.f32 %v2134, %v2842
        %v4541 = vadd.f32 %v2135, %v2844
        %v4542 = vadd.f32 %v2136, %v3548
        %v4543 = vadd.f32 %v2137, %v3550
        %v4544 = vadd.f32 %v2138, %v4254
        %v4545 = vadd.f32 %v2139, %v4256
        %v4546 = vadd.f32 %v2140, %v2848
        %v4547 = vadd.f32 %v2141, %v2850
        %v4548 = vadd.f32 %v2142, %v3554
        %v4549 = vadd.f32 %v2143, %v3556
        %v4550 = vadd.f32 %v2144, %v4260
        %v4551 = vadd.f32 %v2145, %v4262
        %v4552 = vadd.f32 %v2146, %v2854
        %v4553 = vadd.f32 %v2147, %v2856
        %v4554 = vadd.f32 %v2148, %v3560
        %v4555 = vadd.f32 %v2149, %v3562
        %v4556 = vadd.f32 %v2150, %v4266
        %v4557 = vadd.f32 %v2151, %v4268
        %v4558 = vadd.f32 %v2152, %v2860
        %v4559 = vadd.f32 %v2153, %v2862
        %v4560 = vadd.f32 %v2154, %v3566
        %v4561 = vadd.f32 %v2155, %v3568
        %v4562 = vadd.f32 %v2156, %v4272
        %v4563 = vadd.f32 %v2157, %v4274
        %v4564 = vadd.f32 %v2158, %v2866
        %v4565 = vadd.f32 %v2159, %v2868
        %v4566 = vadd.f32 %v2160, %v3572
        %v4567 = vadd.f32 %v2161, %v3574
        %v4568 = vadd.f32 %v2162, %v4278
        %v4569 = vadd.f32 %v2163, %v4280
        %v4570 = vadd.f32 %v2164, %v2872
        %v4571 = vadd.f32 %v2165, %v2874
        %v4572 = vadd.f32 %v2166, %v3578
        %v4573 = vadd.f32 %v2167, %v3580
        %v4574 = vadd.f32 %v2168, %v4284
        %v4575 = vadd.f32 %v2169, %v4286
        %v4576 = vadd.f32 %v2170, %v2878
        %v4577 = vadd.f32 %v2171, %v2880
        %v4578 = vadd.f32 %v2172, %v3584
        %v4579 = vadd.f32 %v2173, %v3586
        %v4580 = vadd.f32 %v2174, %v4290
        %v4581 = vadd.f32 %v2175, %v4292
        %v4582 = vadd.f32 %v2176, %v2884
        %v4583 = vadd.f32 %v2177, %v2886
        %v4584 = vadd.f32 %v2178, %v3590
        %v4585 = vadd.f32 %v2179, %v3592
        %v4586 = vadd.f32 %v2180, %v4296
        %v4587 = vadd.f32 %v2181, %v4298
        %v4588 = vadd.f32 %v2182, %v2890
        %v4589 = vadd.f32 %v2183, %v2892
        %v4590 = vadd.f32 %v2184, %v3596
        %v4591 = vadd.f32 %v2185, %v3598
        %v4592 = vadd.f32 %v2186, %v4302
        %v4593 = vadd.f32 %v2187, %v4304
        %v4594 = vadd.f32 %v2188, %v2896
        %v4595 = vadd.f32 %v2189, %v2898
        %v4596 = vadd.f32 %v2190, %v3602
        %v4597 = vadd.f32 %v2191, %v3604
        %v4598 = vadd.f32 %v2192, %v4308
        %v4599 = vadd.f32 %v2193, %v4310
        %v4600 = vadd.f32 %v2194, %v2902
        %v4601 = vadd.f32 %v2195, %v2904
        %v4602 = vadd.f32 %v2196, %v3608
        %v4603 = vadd.f32 %v2197, %v3610
        %v4604 = vadd.f32 %v2198, %v4314
        %v4605 = vadd.f32 %v2199, %v4316
        %v4606 = vadd.f32 %v2200, %v2908
        %v4607 = vadd.f32 %v2201, %v2910
        %v4608 = vadd.f32 %v2202, %v3614
        %v4609 = vadd.f32 %v2203, %v3616
        %v4610 = vadd.f32 %v2204, %v4320
        %v4611 = vadd.f32 %v2205, %v4322
        %v4612 = vadd.f32 %v2206, %v2914
        %v4613 = vadd.f32 %v2207, %v2916
        %v4614 = vadd.f32 %v2208, %v3620
        %v4615 = vadd.f32 %v2209, %v3622
        %v4616 = vadd.f32 %v2210, %v4326
        %v4617 = vadd.f32 %v2211, %v4328
        %v4618 = vadd.f32 %v2212, %v2920
        %v4619 = vadd.f32 %v2213, %v2922
        %v4620 = vadd.f32 %v2214, %v3626
        %v4621 = vadd.f32 %v2215, %v3628
        %v4622 = vadd.f32 %v2216, %v4332
        %v4623 = vadd.f32 %v2217, %v4334
        %v4624 = vadd.f32 %v2218, %v2926
        %v4625 = vadd.f32 %v2219, %v2928
        %v4626 = vadd.f32 %v2220, %v3632
        %v4627 = vadd.f32 %v2221, %v3634
        %v4628 = vadd.f32 %v2222, %v4338
        %v4629 = vadd.f32 %v2223, %v4340
        %v4630 = vadd.f32 %v2224, %v2932
        %v4631 = vadd.f32 %v2225, %v2934
        %v4632 = vadd.f32 %v2226, %v3638
        %v4633 = vadd.f32 %v2227, %v3640
        %v4634 = vadd.f32 %v2228, %v4344
        %v4635 = vadd.f32 %v2229, %v4346
        %v4636 = vadd.f32 %v2230, %v2938
        %v4637 = vadd.f32 %v2231, %v2940
        %v4638 = vadd.f32 %v2232, %v3644
        %v4639 = vadd.f32 %v2233, %v3646
        %v4640 = vadd.f32 %v2234, %v4350
        %v4641 = vadd.f32 %v2235, %v4352
        %v4642 = vadd.f32 %v2236, %v2944
        %v4643 = vadd.f32 %v2237, %v2946
        %v4644 = vadd.f32 %v2238, %v3650
        %v4645 = vadd.f32 %v2239, %v3652
        %v4646 = vadd.f32 %v2240, %v4356
        %v4647 = vadd.f32 %v2241, %v4358
        %v4648 = vadd.f32 %v2242, %v2950
        %v4649 = vadd.f32 %v2243, %v2952
        %v4650 = vadd.f32 %v2244, %v3656
        %v4651 = vadd.f32 %v2245, %v3658
        %v4652 = vadd.f32 %v2246, %v4362
        %v4653 = vadd.f32 %v2247, %v4364
        %v4654 = vadd.f32 %v2248, %v2956
        %v4655 = vadd.f32 %v2249, %v2958
        %v4656 = vadd.f32 %v2250, %v3662
        %v4657 = vadd.f32 %v2251, %v3664
        %v4658 = vadd.f32 %v2252, %v4368
        %v4659 = vadd.f32 %v2253, %v4370
        %v4660 = vadd.f32 %v2254, %v2962
        %v4661 = vadd.f32 %v2255, %v2964
        %v4662 = vadd.f32 %v2256, %v3668
        %v4663 = vadd.f32 %v2257, %v3670
        %v4664 = vadd.f32 %v2258, %v4374
        %v4665 = vadd.f32 %v2259, %v4376
        %v4666 = vadd.f32 %v2260, %v2968
        %v4667 = vadd.f32 %v2261, %v2970
        %v4668 = vadd.f32 %v2262, %v3674
        %v4669 = vadd.f32 %v2263, %v3676
        %v4670 = vadd.f32 %v2264, %v4380
        %v4671 = vadd.f32 %v2265, %v4382
        %v4672 = vadd.f32 %v2266, %v2974
        %v4673 = vadd.f32 %v2267, %v2976
        %v4674 = vadd.f32 %v2268, %v3680
        %v4675 = vadd.f32 %v2269, %v3682
        %v4676 = vadd.f32 %v2270, %v4386
        %v4677 = vadd.f32 %v2271, %v4388
        %v4678 = vadd.f32 %v2272, %v2980
        %v4679 = vadd.f32 %v2273, %v2982
        %v4680 = vadd.f32 %v2274, %v3686
        %v4681 = vadd.f32 %v2275, %v3688
        %v4682 = vadd.f32 %v2276, %v4392
        %v4683 = vadd.f32 %v2277, %v4394
        %v4684 = vadd.f32 %v2278, %v2986
        %v4685 = vadd.f32 %v2279, %v2988
        %v4686 = vadd.f32 %v2280, %v3692
        %v4687 = vadd.f32 %v2281, %v3694
        %v4688 = vadd.f32 %v2282, %v4398
        %v4689 = vadd.f32 %v2283, %v4400
        %v4690 = vadd.f32 %v2284, %v2992
        %v4691 = vadd.f32 %v2285, %v2994
        %v4692 = vadd.f32 %v2286, %v3698
        %v4693 = vadd.f32 %v2287, %v3700
        %v4694 = vadd.f32 %v2288, %v4404
        %v4695 = vadd.f32 %v2289, %v4406
        %v4696 = vadd.f32 %v2290, %v2998
        %v4697 = vadd.f32 %v2291, %v3000
        %v4698 = vadd.f32 %v2292, %v3704
        %v4699 = vadd.f32 %v2293, %v3706
        %v4700 = vadd.f32 %v2294, %v4410
        %v4701 = vadd.f32 %v2295, %v4412
        %v4702 = vadd.f32 %v2296, %v3004
        %v4703 = vadd.f32 %v2297, %v3006
        %v4704 = vadd.f32 %v2298, %v3710
        %v4705 = vadd.f32 %v2299, %v3712
        %v4706 = vadd.f32 %v2300, %v4416
        %v4707 = vadd.f32 %v2301, %v4418
        %v4708 = vadd.f32 %v2302, %v3010
        %v4709 = vadd.f32 %v2303, %v3012
        %v4710 = vadd.f32 %v2304, %v3716
        %v4711 = vadd.f32 %v2305, %v3718
        %v4712 = vadd.f32 %v2306, %v4422
        %v4713 = vadd.f32 %v2307, %v4424
        %v4714 = vadd.f32 %v2308, %v3016
        %v4715 = vadd.f32 %v2309, %v3018
        %v4716 = vadd.f32 %v2310, %v3722
        %v4717 = vadd.f32 %v2311, %v3724
        %v4718 = vadd.f32 %v2312, %v4428
        %v4719 = vadd.f32 %v2313, %v4430
        %v4720 = vadd.f32 %v2314, %v3022
        %v4721 = vadd.f32 %v2315, %v3024
        %v4722 = vadd.f32 %v2316, %v3728
        %v4723 = vadd.f32 %v2317, %v3730
        %v4724 = vadd.f32 %v2318, %v4434
        %v4725 = vadd.f32 %v2319, %v4436
        %v4726 = vadd.f32 %v2320, %v3028
        %v4727 = vadd.f32 %v2321, %v3030
        %v4728 = vadd.f32 %v2322, %v3734
        %v4729 = vadd.f32 %v2323, %v3736
        %v4730 = vadd.f32 %v2324, %v4440
        %v4731 = vadd.f32 %v2325, %v4442
        %v4732 = vadd.f32 %v2326, %v3034
        %v4733 = vadd.f32 %v2327, %v3036
        %v4734 = vadd.f32 %v2328, %v3740
        %v4735 = vadd.f32 %v2329, %v3742
        %v4736 = vadd.f32 %v2330, %v4446
        %v4737 = vadd.f32 %v2331, %v4448
        %v4738 = vadd.f32 %v2332, %v3040
        %v4739 = vadd.f32 %v2333, %v3042
        %v4740 = vadd.f32 %v2334, %v3746
        %v4741 = vadd.f32 %v2335, %v3748
        %v4742 = vadd.f32 %v2336, %v4452
        %v4743 = vadd.f32 %v2337, %v4454
        %v4744 = vadd.f32 %v2338, %v3046
        %v4745 = vadd.f32 %v2339, %v3048
        %v4746 = vadd.f32 %v2340, %v3752
        %v4747 = vadd.f32 %v2341, %v3754
        %v4748 = vadd.f32 %v2342, %v4458
        %v4749 = vadd.f32 %v2343, %v4460
        %v4750 = vadd.f32 %v2344, %v3052
        %v4751 = vadd.f32 %v2345, %v3054
        %v4752 = vadd.f32 %v2346, %v3758
        %v4753 = vadd.f32 %v2347, %v3760
        %v4754 = vadd.f32 %v2348, %v4464
        %v4755 = vadd.f32 %v2349, %v4466
        %v4756 = vadd.f32 %v2350, %v3058
        %v4757 = vadd.f32 %v2351, %v3060
        %v4758 = vadd.f32 %v2352, %v3764
        %v4759 = vadd.f32 %v2353, %v3766
        %v4760 = vadd.f32 %v2354, %v4470
        %v4761 = vadd.f32 %v2355, %v4472
        %v4762 = vadd.f32 %v2356, %v3064
        %v4763 = vadd.f32 %v2357, %v3066
        %v4764 = vadd.f32 %v2358, %v3770
        %v4765 = vadd.f32 %v2359, %v3772
        %v4766 = vadd.f32 %v2360, %v4476
        %v4767 = vadd.f32 %v2361, %v4478
        %v4768 = vadd.f32 %v2362, %v3070
        %v4769 = vadd.f32 %v2363, %v3072
        %v4770 = vadd.f32 %v2364, %v3776
        %v4771 = vadd.f32 %v2365, %v3778
        %v4772 = vadd.f32 %v2366, %v4482
        %v4773 = vadd.f32 %v2367, %v4484
        %v4774 = vadd.f32 %v2368, %v3076
        %v4775 = vadd.f32 %v2369, %v3078
        %v4776 = vadd.f32 %v2370, %v3782
        %v4777 = vadd.f32 %v2371, %v3784
        %v4778 = vadd.f32 %v2372, %v4488
        %v4779 = vadd.f32 %v2373, %v4490
        %v4780 = vadd.f32 %v2374, %v3082
        %v4781 = vadd.f32 %v2375, %v3084
        %v4782 = vadd.f32 %v2376, %v3788
        %v4783 = vadd.f32 %v2377, %v3790
        %v4784 = vadd.f32 %v2378, %v4494
        %v4785 = vadd.f32 %v2379, %v4496
        %4786 = vst [vmem:[#allocation2] sm:$0xff] %v4498
        %4787 = vst [vmem:[#allocation2 + $0x8] sm:$0xff] %v4499
        %4788 = vst [vmem:[#allocation2 + $0x10] sm:$0xff] %v4500
        %4789 = vst [vmem:[#allocation2 + $0x18] sm:$0xff] %v4501
        %4790 = vst [vmem:[#allocation2 + $0x20] sm:$0xff] %v4502
        %4791 = vst [vmem:[#allocation2 + $0x28] sm:$0xff] %v4503
        %4792 = vst [vmem:[#allocation2 + $0x30] sm:$0xff] %v4504
        %4793 = vst [vmem:[#allocation2 + $0x38] sm:$0xff] %v4505
        %4794 = vst [vmem:[#allocation2 + $0x40] sm:$0xff] %v4506
        %4795 = vst [vmem:[#allocation2 + $0x48] sm:$0xff] %v4507
        %4796 = vst [vmem:[#allocation2 + $0x50] sm:$0xff] %v4508
        %4797 = vst [vmem:[#allocation2 + $0x58] sm:$0xff] %v4509
        %4798 = vst [vmem:[#allocation2 + $0x60] sm:$0xff] %v4510
        %4799 = vst [vmem:[#allocation2 + $0x68] sm:$0xff] %v4511
        %4800 = vst [vmem:[#allocation2 + $0x70] sm:$0xff] %v4512
        %4801 = vst [vmem:[#allocation2 + $0x78] sm:$0xff] %v4513
        %4802 = vst [vmem:[#allocation2 + $0x80] sm:$0xff] %v4514
        %4803 = vst [vmem:[#allocation2 + $0x88] sm:$0xff] %v4515
        %4804 = vst [vmem:[#allocation2 + $0x90] sm:$0xff] %v4516
        %4805 = vst [vmem:[#allocation2 + $0x98] sm:$0xff] %v4517
        %4806 = vst [vmem:[#allocation2 + $0xa0] sm:$0xff] %v4518
        %4807 = vst [vmem:[#allocation2 + $0xa8] sm:$0xff] %v4519
        %4808 = vst [vmem:[#allocation2 + $0xb0] sm:$0xff] %v4520
        %4809 = vst [vmem:[#allocation2 + $0xb8] sm:$0xff] %v4521
        %4810 = vst [vmem:[#allocation2 + $0xc0] sm:$0xff] %v4522
        %4811 = vst [vmem:[#allocation2 + $0xc8] sm:$0xff] %v4523
        %4812 = vst [vmem:[#allocation2 + $0xd0] sm:$0xff] %v4524
        %4813 = vst [vmem:[#allocation2 + $0xd8] sm:$0xff] %v4525
        %4814 = vst [vmem:[#allocation2 + $0xe0] sm:$0xff] %v4526
        %4815 = vst [vmem:[#allocation2 + $0xe8] sm:$0xff] %v4527
        %4816 = vst [vmem:[#allocation2 + $0xf0] sm:$0xff] %v4528
        %4817 = vst [vmem:[#allocation2 + $0xf8] sm:$0xff] %v4529
        %4818 = vst [vmem:[#allocation2 + $0x100] sm:$0xff] %v4530
        %4819 = vst [vmem:[#allocation2 + $0x108] sm:$0xff] %v4531
        %4820 = vst [vmem:[#allocation2 + $0x110] sm:$0xff] %v4532
        %4821 = vst [vmem:[#allocation2 + $0x118] sm:$0xff] %v4533
        %4822 = vst [vmem:[#allocation2 + $0x120] sm:$0xff] %v4534
        %4823 = vst [vmem:[#allocation2 + $0x128] sm:$0xff] %v4535
        %4824 = vst [vmem:[#allocation2 + $0x130] sm:$0xff] %v4536
        %4825 = vst [vmem:[#allocation2 + $0x138] sm:$0xff] %v4537
        %4826 = vst [vmem:[#allocation2 + $0x140] sm:$0xff] %v4538
        %4827 = vst [vmem:[#allocation2 + $0x148] sm:$0xff] %v4539
        %4828 = vst [vmem:[#allocation2 + $0x150] sm:$0xff] %v4540
        %4829 = vst [vmem:[#allocation2 + $0x158] sm:$0xff] %v4541
        %4830 = vst [vmem:[#allocation2 + $0x160] sm:$0xff] %v4542
        %4831 = vst [vmem:[#allocation2 + $0x168] sm:$0xff] %v4543
        %4832 = vst [vmem:[#allocation2 + $0x170] sm:$0xff] %v4544
        %4833 = vst [vmem:[#allocation2 + $0x178] sm:$0xff] %v4545
        %4834 = vst [vmem:[#allocation2 + $0x180] sm:$0xff] %v4546
        %4835 = vst [vmem:[#allocation2 + $0x188] sm:$0xff] %v4547
        %4836 = vst [vmem:[#allocation2 + $0x190] sm:$0xff] %v4548
        %4837 = vst [vmem:[#allocation2 + $0x198] sm:$0xff] %v4549
        %4838 = vst [vmem:[#allocation2 + $0x1a0] sm:$0xff] %v4550
        %4839 = vst [vmem:[#allocation2 + $0x1a8] sm:$0xff] %v4551
        %4840 = vst [vmem:[#allocation2 + $0x1b0] sm:$0xff] %v4552
        %4841 = vst [vmem:[#allocation2 + $0x1b8] sm:$0xff] %v4553
        %4842 = vst [vmem:[#allocation2 + $0x1c0] sm:$0xff] %v4554
        %4843 = vst [vmem:[#allocation2 + $0x1c8] sm:$0xff] %v4555
        %4844 = vst [vmem:[#allocation2 + $0x1d0] sm:$0xff] %v4556
        %4845 = vst [vmem:[#allocation2 + $0x1d8] sm:$0xff] %v4557
        %4846 = vst [vmem:[#allocation2 + $0x1e0] sm:$0xff] %v4558
        %4847 = vst [vmem:[#allocation2 + $0x1e8] sm:$0xff] %v4559
        %4848 = vst [vmem:[#allocation2 + $0x1f0] sm:$0xff] %v4560
        %4849 = vst [vmem:[#allocation2 + $0x1f8] sm:$0xff] %v4561
        %4850 = vst [vmem:[#allocation2 + $0x200] sm:$0xff] %v4562
        %4851 = vst [vmem:[#allocation2 + $0x208] sm:$0xff] %v4563
        %4852 = vst [vmem:[#allocation2 + $0x210] sm:$0xff] %v4564
        %4853 = vst [vmem:[#allocation2 + $0x218] sm:$0xff] %v4565
        %4854 = vst [vmem:[#allocation2 + $0x220] sm:$0xff] %v4566
        %4855 = vst [vmem:[#allocation2 + $0x228] sm:$0xff] %v4567
        %4856 = vst [vmem:[#allocation2 + $0x230] sm:$0xff] %v4568
        %4857 = vst [vmem:[#allocation2 + $0x238] sm:$0xff] %v4569
        %4858 = vst [vmem:[#allocation2 + $0x240] sm:$0xff] %v4570
        %4859 = vst [vmem:[#allocation2 + $0x248] sm:$0xff] %v4571
        %4860 = vst [vmem:[#allocation2 + $0x250] sm:$0xff] %v4572
        %4861 = vst [vmem:[#allocation2 + $0x258] sm:$0xff] %v4573
        %4862 = vst [vmem:[#allocation2 + $0x260] sm:$0xff] %v4574
        %4863 = vst [vmem:[#allocation2 + $0x268] sm:$0xff] %v4575
        %4864 = vst [vmem:[#allocation2 + $0x270] sm:$0xff] %v4576
        %4865 = vst [vmem:[#allocation2 + $0x278] sm:$0xff] %v4577
        %4866 = vst [vmem:[#allocation2 + $0x280] sm:$0xff] %v4578
        %4867 = vst [vmem:[#allocation2 + $0x288] sm:$0xff] %v4579
        %4868 = vst [vmem:[#allocation2 + $0x290] sm:$0xff] %v4580
        %4869 = vst [vmem:[#allocation2 + $0x298] sm:$0xff] %v4581
        %4870 = vst [vmem:[#allocation2 + $0x2a0] sm:$0xff] %v4582
        %4871 = vst [vmem:[#allocation2 + $0x2a8] sm:$0xff] %v4583
        %4872 = vst [vmem:[#allocation2 + $0x2b0] sm:$0xff] %v4584
        %4873 = vst [vmem:[#allocation2 + $0x2b8] sm:$0xff] %v4585
        %4874 = vst [vmem:[#allocation2 + $0x2c0] sm:$0xff] %v4586
        %4875 = vst [vmem:[#allocation2 + $0x2c8] sm:$0xff] %v4587
        %4876 = vst [vmem:[#allocation2 + $0x2d0] sm:$0xff] %v4588
        %4877 = vst [vmem:[#allocation2 + $0x2d8] sm:$0xff] %v4589
        %4878 = vst [vmem:[#allocation2 + $0x2e0] sm:$0xff] %v4590
        %4879 = vst [vmem:[#allocation2 + $0x2e8] sm:$0xff] %v4591
        %4880 = vst [vmem:[#allocation2 + $0x2f0] sm:$0xff] %v4592
        %4881 = vst [vmem:[#allocation2 + $0x2f8] sm:$0xff] %v4593
        %4882 = vst [vmem:[#allocation2 + $0x300] sm:$0xff] %v4594
        %4883 = vst [vmem:[#allocation2 + $0x308] sm:$0xff] %v4595
        %4884 = vst [vmem:[#allocation2 + $0x310] sm:$0xff] %v4596
        %4885 = vst [vmem:[#allocation2 + $0x318] sm:$0xff] %v4597
        %4886 = vst [vmem:[#allocation2 + $0x320] sm:$0xff] %v4598
        %4887 = vst [vmem:[#allocation2 + $0x328] sm:$0xff] %v4599
        %4888 = vst [vmem:[#allocation2 + $0x330] sm:$0xff] %v4600
        %4889 = vst [vmem:[#allocation2 + $0x338] sm:$0xff] %v4601
        %4890 = vst [vmem:[#allocation2 + $0x340] sm:$0xff] %v4602
        %4891 = vst [vmem:[#allocation2 + $0x348] sm:$0xff] %v4603
        %4892 = vst [vmem:[#allocation2 + $0x350] sm:$0xff] %v4604
        %4893 = vst [vmem:[#allocation2 + $0x358] sm:$0xff] %v4605
        %4894 = vst [vmem:[#allocation2 + $0x360] sm:$0xff] %v4606
        %4895 = vst [vmem:[#allocation2 + $0x368] sm:$0xff] %v4607
        %4896 = vst [vmem:[#allocation2 + $0x370] sm:$0xff] %v4608
        %4897 = vst [vmem:[#allocation2 + $0x378] sm:$0xff] %v4609
        %4898 = vst [vmem:[#allocation2 + $0x380] sm:$0xff] %v4610
        %4899 = vst [vmem:[#allocation2 + $0x388] sm:$0xff] %v4611
        %4900 = vst [vmem:[#allocation2 + $0x390] sm:$0xff] %v4612
        %4901 = vst [vmem:[#allocation2 + $0x398] sm:$0xff] %v4613
        %4902 = vst [vmem:[#allocation2 + $0x3a0] sm:$0xff] %v4614
        %4903 = vst [vmem:[#allocation2 + $0x3a8] sm:$0xff] %v4615
        %4904 = vst [vmem:[#allocation2 + $0x3b0] sm:$0xff] %v4616
        %4905 = vst [vmem:[#allocation2 + $0x3b8] sm:$0xff] %v4617
        %4906 = vst [vmem:[#allocation2 + $0x3c0] sm:$0xff] %v4618
        %4907 = vst [vmem:[#allocation2 + $0x3c8] sm:$0xff] %v4619
        %4908 = vst [vmem:[#allocation2 + $0x3d0] sm:$0xff] %v4620
        %4909 = vst [vmem:[#allocation2 + $0x3d8] sm:$0xff] %v4621
        %4910 = vst [vmem:[#allocation2 + $0x3e0] sm:$0xff] %v4622
        %4911 = vst [vmem:[#allocation2 + $0x3e8] sm:$0xff] %v4623
        %4912 = vst [vmem:[#allocation2 + $0x3f0] sm:$0xff] %v4624
        %4913 = vst [vmem:[#allocation2 + $0x3f8] sm:$0xff] %v4625
        %4914 = vst [vmem:[#allocation2 + $0x400] sm:$0xff] %v4626
        %4915 = vst [vmem:[#allocation2 + $0x408] sm:$0xff] %v4627
        %4916 = vst [vmem:[#allocation2 + $0x410] sm:$0xff] %v4628
        %4917 = vst [vmem:[#allocation2 + $0x418] sm:$0xff] %v4629
        %4918 = vst [vmem:[#allocation2 + $0x420] sm:$0xff] %v4630
        %4919 = vst [vmem:[#allocation2 + $0x428] sm:$0xff] %v4631
        %4920 = vst [vmem:[#allocation2 + $0x430] sm:$0xff] %v4632
        %4921 = vst [vmem:[#allocation2 + $0x438] sm:$0xff] %v4633
        %4922 = vst [vmem:[#allocation2 + $0x440] sm:$0xff] %v4634
        %4923 = vst [vmem:[#allocation2 + $0x448] sm:$0xff] %v4635
        %4924 = vst [vmem:[#allocation2 + $0x450] sm:$0xff] %v4636
        %4925 = vst [vmem:[#allocation2 + $0x458] sm:$0xff] %v4637
        %4926 = vst [vmem:[#allocation2 + $0x460] sm:$0xff] %v4638
        %4927 = vst [vmem:[#allocation2 + $0x468] sm:$0xff] %v4639
        %4928 = vst [vmem:[#allocation2 + $0x470] sm:$0xff] %v4640
        %4929 = vst [vmem:[#allocation2 + $0x478] sm:$0xff] %v4641
        %4930 = vst [vmem:[#allocation2 + $0x480] sm:$0xff] %v4642
        %4931 = vst [vmem:[#allocation2 + $0x488] sm:$0xff] %v4643
        %4932 = vst [vmem:[#allocation2 + $0x490] sm:$0xff] %v4644
        %4933 = vst [vmem:[#allocation2 + $0x498] sm:$0xff] %v4645
        %4934 = vst [vmem:[#allocation2 + $0x4a0] sm:$0xff] %v4646
        %4935 = vst [vmem:[#allocation2 + $0x4a8] sm:$0xff] %v4647
        %4936 = vst [vmem:[#allocation2 + $0x4b0] sm:$0xff] %v4648
        %4937 = vst [vmem:[#allocation2 + $0x4b8] sm:$0xff] %v4649
        %4938 = vst [vmem:[#allocation2 + $0x4c0] sm:$0xff] %v4650
        %4939 = vst [vmem:[#allocation2 + $0x4c8] sm:$0xff] %v4651
        %4940 = vst [vmem:[#allocation2 + $0x4d0] sm:$0xff] %v4652
        %4941 = vst [vmem:[#allocation2 + $0x4d8] sm:$0xff] %v4653
        %4942 = vst [vmem:[#allocation2 + $0x4e0] sm:$0xff] %v4654
        %4943 = vst [vmem:[#allocation2 + $0x4e8] sm:$0xff] %v4655
        %4944 = vst [vmem:[#allocation2 + $0x4f0] sm:$0xff] %v4656
        %4945 = vst [vmem:[#allocation2 + $0x4f8] sm:$0xff] %v4657
        %4946 = vst [vmem:[#allocation2 + $0x500] sm:$0xff] %v4658
        %4947 = vst [vmem:[#allocation2 + $0x508] sm:$0xff] %v4659
        %4948 = vst [vmem:[#allocation2 + $0x510] sm:$0xff] %v4660
        %4949 = vst [vmem:[#allocation2 + $0x518] sm:$0xff] %v4661
        %4950 = vst [vmem:[#allocation2 + $0x520] sm:$0xff] %v4662
        %4951 = vst [vmem:[#allocation2 + $0x528] sm:$0xff] %v4663
        %4952 = vst [vmem:[#allocation2 + $0x530] sm:$0xff] %v4664
        %4953 = vst [vmem:[#allocation2 + $0x538] sm:$0xff] %v4665
        %4954 = vst [vmem:[#allocation2 + $0x540] sm:$0xff] %v4666
        %4955 = vst [vmem:[#allocation2 + $0x548] sm:$0xff] %v4667
        %4956 = vst [vmem:[#allocation2 + $0x550] sm:$0xff] %v4668
        %4957 = vst [vmem:[#allocation2 + $0x558] sm:$0xff] %v4669
        %4958 = vst [vmem:[#allocation2 + $0x560] sm:$0xff] %v4670
        %4959 = vst [vmem:[#allocation2 + $0x568] sm:$0xff] %v4671
        %4960 = vst [vmem:[#allocation2 + $0x570] sm:$0xff] %v4672
        %4961 = vst [vmem:[#allocation2 + $0x578] sm:$0xff] %v4673
        %4962 = vst [vmem:[#allocation2 + $0x580] sm:$0xff] %v4674
        %4963 = vst [vmem:[#allocation2 + $0x588] sm:$0xff] %v4675
        %4964 = vst [vmem:[#allocation2 + $0x590] sm:$0xff] %v4676
        %4965 = vst [vmem:[#allocation2 + $0x598] sm:$0xff] %v4677
        %4966 = vst [vmem:[#allocation2 + $0x5a0] sm:$0xff] %v4678
        %4967 = vst [vmem:[#allocation2 + $0x5a8] sm:$0xff] %v4679
        %4968 = vst [vmem:[#allocation2 + $0x5b0] sm:$0xff] %v4680
        %4969 = vst [vmem:[#allocation2 + $0x5b8] sm:$0xff] %v4681
        %4970 = vst [vmem:[#allocation2 + $0x5c0] sm:$0xff] %v4682
        %4971 = vst [vmem:[#allocation2 + $0x5c8] sm:$0xff] %v4683
        %4972 = vst [vmem:[#allocation2 + $0x5d0] sm:$0xff] %v4684
        %4973 = vst [vmem:[#allocation2 + $0x5d8] sm:$0xff] %v4685
        %4974 = vst [vmem:[#allocation2 + $0x5e0] sm:$0xff] %v4686
        %4975 = vst [vmem:[#allocation2 + $0x5e8] sm:$0xff] %v4687
        %4976 = vst [vmem:[#allocation2 + $0x5f0] sm:$0xff] %v4688
        %4977 = vst [vmem:[#allocation2 + $0x5f8] sm:$0xff] %v4689
        %4978 = vst [vmem:[#allocation2 + $0x600] sm:$0xff] %v4690
        %4979 = vst [vmem:[#allocation2 + $0x608] sm:$0xff] %v4691
        %4980 = vst [vmem:[#allocation2 + $0x610] sm:$0xff] %v4692
        %4981 = vst [vmem:[#allocation2 + $0x618] sm:$0xff] %v4693
        %4982 = vst [vmem:[#allocation2 + $0x620] sm:$0xff] %v4694
        %4983 = vst [vmem:[#allocation2 + $0x628] sm:$0xff] %v4695
        %4984 = vst [vmem:[#allocation2 + $0x630] sm:$0xff] %v4696
        %4985 = vst [vmem:[#allocation2 + $0x638] sm:$0xff] %v4697
        %4986 = vst [vmem:[#allocation2 + $0x640] sm:$0xff] %v4698
        %4987 = vst [vmem:[#allocation2 + $0x648] sm:$0xff] %v4699
        %4988 = vst [vmem:[#allocation2 + $0x650] sm:$0xff] %v4700
        %4989 = vst [vmem:[#allocation2 + $0x658] sm:$0xff] %v4701
        %4990 = vst [vmem:[#allocation2 + $0x660] sm:$0xff] %v4702
        %4991 = vst [vmem:[#allocation2 + $0x668] sm:$0xff] %v4703
        %4992 = vst [vmem:[#allocation2 + $0x670] sm:$0xff] %v4704
        %4993 = vst [vmem:[#allocation2 + $0x678] sm:$0xff] %v4705
        %4994 = vst [vmem:[#allocation2 + $0x680] sm:$0xff] %v4706
        %4995 = vst [vmem:[#allocation2 + $0x688] sm:$0xff] %v4707
        %4996 = vst [vmem:[#allocation2 + $0x690] sm:$0xff] %v4708
        %4997 = vst [vmem:[#allocation2 + $0x698] sm:$0xff] %v4709
        %4998 = vst [vmem:[#allocation2 + $0x6a0] sm:$0xff] %v4710
        %4999 = vst [vmem:[#allocation2 + $0x6a8] sm:$0xff] %v4711
        %5000 = vst [vmem:[#allocation2 + $0x6b0] sm:$0xff] %v4712
        %5001 = vst [vmem:[#allocation2 + $0x6b8] sm:$0xff] %v4713
        %5002 = vst [vmem:[#allocation2 + $0x6c0] sm:$0xff] %v4714
        %5003 = vst [vmem:[#allocation2 + $0x6c8] sm:$0xff] %v4715
        %5004 = vst [vmem:[#allocation2 + $0x6d0] sm:$0xff] %v4716
        %5005 = vst [vmem:[#allocation2 + $0x6d8] sm:$0xff] %v4717
        %5006 = vst [vmem:[#allocation2 + $0x6e0] sm:$0xff] %v4718
        %5007 = vst [vmem:[#allocation2 + $0x6e8] sm:$0xff] %v4719
        %5008 = vst [vmem:[#allocation2 + $0x6f0] sm:$0xff] %v4720
        %5009 = vst [vmem:[#allocation2 + $0x6f8] sm:$0xff] %v4721
        %5010 = vst [vmem:[#allocation2 + $0x700] sm:$0xff] %v4722
        %5011 = vst [vmem:[#allocation2 + $0x708] sm:$0xff] %v4723
        %5012 = vst [vmem:[#allocation2 + $0x710] sm:$0xff] %v4724
        %5013 = vst [vmem:[#allocation2 + $0x718] sm:$0xff] %v4725
        %5014 = vst [vmem:[#allocation2 + $0x720] sm:$0xff] %v4726
        %5015 = vst [vmem:[#allocation2 + $0x728] sm:$0xff] %v4727
        %5016 = vst [vmem:[#allocation2 + $0x730] sm:$0xff] %v4728
        %5017 = vst [vmem:[#allocation2 + $0x738] sm:$0xff] %v4729
        %5018 = vst [vmem:[#allocation2 + $0x740] sm:$0xff] %v4730
        %5019 = vst [vmem:[#allocation2 + $0x748] sm:$0xff] %v4731
        %5020 = vst [vmem:[#allocation2 + $0x750] sm:$0xff] %v4732
        %5021 = vst [vmem:[#allocation2 + $0x758] sm:$0xff] %v4733
        %5022 = vst [vmem:[#allocation2 + $0x760] sm:$0xff] %v4734
        %5023 = vst [vmem:[#allocation2 + $0x768] sm:$0xff] %v4735
        %5024 = vst [vmem:[#allocation2 + $0x770] sm:$0xff] %v4736
        %5025 = vst [vmem:[#allocation2 + $0x778] sm:$0xff] %v4737
        %5026 = vst [vmem:[#allocation2 + $0x780] sm:$0xff] %v4738
        %5027 = vst [vmem:[#allocation2 + $0x788] sm:$0xff] %v4739
        %5028 = vst [vmem:[#allocation2 + $0x790] sm:$0xff] %v4740
        %5029 = vst [vmem:[#allocation2 + $0x798] sm:$0xff] %v4741
        %5030 = vst [vmem:[#allocation2 + $0x7a0] sm:$0xff] %v4742
        %5031 = vst [vmem:[#allocation2 + $0x7a8] sm:$0xff] %v4743
        %5032 = vst [vmem:[#allocation2 + $0x7b0] sm:$0xff] %v4744
        %5033 = vst [vmem:[#allocation2 + $0x7b8] sm:$0xff] %v4745
        %5034 = vst [vmem:[#allocation2 + $0x7c0] sm:$0xff] %v4746
        %5035 = vst [vmem:[#allocation2 + $0x7c8] sm:$0xff] %v4747
        %5036 = vst [vmem:[#allocation2 + $0x7d0] sm:$0xff] %v4748
        %5037 = vst [vmem:[#allocation2 + $0x7d8] sm:$0xff] %v4749
        %5038 = vst [vmem:[#allocation2 + $0x7e0] sm:$0xff] %v4750
        %5039 = vst [vmem:[#allocation2 + $0x7e8] sm:$0xff] %v4751
        %5040 = vst [vmem:[#allocation2 + $0x7f0] sm:$0xff] %v4752
        %5041 = vst [vmem:[#allocation2 + $0x7f8] sm:$0xff] %v4753
        %5042 = vst [vmem:[#allocation2 + $0x800] sm:$0xff] %v4754
        %5043 = vst [vmem:[#allocation2 + $0x808] sm:$0xff] %v4755
        %5044 = vst [vmem:[#allocation2 + $0x810] sm:$0xff] %v4756
        %5045 = vst [vmem:[#allocation2 + $0x818] sm:$0xff] %v4757
        %5046 = vst [vmem:[#allocation2 + $0x820] sm:$0xff] %v4758
        %5047 = vst [vmem:[#allocation2 + $0x828] sm:$0xff] %v4759
        %5048 = vst [vmem:[#allocation2 + $0x830] sm:$0xff] %v4760
        %5049 = vst [vmem:[#allocation2 + $0x838] sm:$0xff] %v4761
        %5050 = vst [vmem:[#allocation2 + $0x840] sm:$0xff] %v4762
        %5051 = vst [vmem:[#allocation2 + $0x848] sm:$0xff] %v4763
        %5052 = vst [vmem:[#allocation2 + $0x850] sm:$0xff] %v4764
        %5053 = vst [vmem:[#allocation2 + $0x858] sm:$0xff] %v4765
        %5054 = vst [vmem:[#allocation2 + $0x860] sm:$0xff] %v4766
        %5055 = vst [vmem:[#allocation2 + $0x868] sm:$0xff] %v4767
        %5056 = vst [vmem:[#allocation2 + $0x870] sm:$0xff] %v4768
        %5057 = vst [vmem:[#allocation2 + $0x878] sm:$0xff] %v4769
        %5058 = vst [vmem:[#allocation2 + $0x880] sm:$0xff] %v4770
        %5059 = vst [vmem:[#allocation2 + $0x888] sm:$0xff] %v4771
        %5060 = vst [vmem:[#allocation2 + $0x890] sm:$0xff] %v4772
        %5061 = vst [vmem:[#allocation2 + $0x898] sm:$0xff] %v4773
        %5062 = vst [vmem:[#allocation2 + $0x8a0] sm:$0xff] %v4774
        %5063 = vst [vmem:[#allocation2 + $0x8a8] sm:$0xff] %v4775
        %5064 = vst [vmem:[#allocation2 + $0x8b0] sm:$0xff] %v4776
        %5065 = vst [vmem:[#allocation2 + $0x8b8] sm:$0xff] %v4777
        %5066 = vst [vmem:[#allocation2 + $0x8c0] sm:$0xff] %v4778
        %5067 = vst [vmem:[#allocation2 + $0x8c8] sm:$0xff] %v4779
        %5068 = vst [vmem:[#allocation2 + $0x8d0] sm:$0xff] %v4780
        %5069 = vst [vmem:[#allocation2 + $0x8d8] sm:$0xff] %v4781
        %5070 = vst [vmem:[#allocation2 + $0x8e0] sm:$0xff] %v4782
        %5071 = vst [vmem:[#allocation2 + $0x8e8] sm:$0xff] %v4783
        %5072 = vst [vmem:[#allocation2 + $0x8f0] sm:$0xff] %v4784
        %5073 = vst [vmem:[#allocation2 + $0x8f8] sm:$0xff] %v4785
        %p5074 = scmp.eq.s32.totalorder %s26, 5
        // Predicated region
        $region49: #{tpu_custom_call.1} parent=31 // pred_check
          %p5075 = pneg %p5074
        $region50: #{tpu_custom_call.1} parent=31 // pred_check_branch
          %5077 = sbr.rel (%p5075) target = $region52
        $region51: #{tpu_custom_call.1} parent=31 // pred_region
          %v5078 = vld [vmem:[#allocation2] sm:$0xff]
          %v5079 = vld [vmem:[#allocation2 + $0x8] sm:$0xff]
          %v5080 = vld [vmem:[#allocation2 + $0x10] sm:$0xff]
          %v5081 = vld [vmem:[#allocation2 + $0x18] sm:$0xff]
          %v5082 = vld [vmem:[#allocation2 + $0x20] sm:$0xff]
          %v5083 = vld [vmem:[#allocation2 + $0x28] sm:$0xff]
          %v5084 = vld [vmem:[#allocation2 + $0x30] sm:$0xff]
          %v5085 = vld [vmem:[#allocation2 + $0x38] sm:$0xff]
          %v5086 = vld [vmem:[#allocation2 + $0x40] sm:$0xff]
          %v5087 = vld [vmem:[#allocation2 + $0x48] sm:$0xff]
          %v5088 = vld [vmem:[#allocation2 + $0x50] sm:$0xff]
          %v5089 = vld [vmem:[#allocation2 + $0x58] sm:$0xff]
          %v5090 = vld [vmem:[#allocation2 + $0x60] sm:$0xff]
          %v5091 = vld [vmem:[#allocation2 + $0x68] sm:$0xff]
          %v5092 = vld [vmem:[#allocation2 + $0x70] sm:$0xff]
          %v5093 = vld [vmem:[#allocation2 + $0x78] sm:$0xff]
          %v5094 = vld [vmem:[#allocation2 + $0x80] sm:$0xff]
          %v5095 = vld [vmem:[#allocation2 + $0x88] sm:$0xff]
          %v5096 = vld [vmem:[#allocation2 + $0x90] sm:$0xff]
          %v5097 = vld [vmem:[#allocation2 + $0x98] sm:$0xff]
          %v5098 = vld [vmem:[#allocation2 + $0xa0] sm:$0xff]
          %v5099 = vld [vmem:[#allocation2 + $0xa8] sm:$0xff]
          %v5100 = vld [vmem:[#allocation2 + $0xb0] sm:$0xff]
          %v5101 = vld [vmem:[#allocation2 + $0xb8] sm:$0xff]
          %v5102 = vld [vmem:[#allocation2 + $0xc0] sm:$0xff]
          %v5103 = vld [vmem:[#allocation2 + $0xc8] sm:$0xff]
          %v5104 = vld [vmem:[#allocation2 + $0xd0] sm:$0xff]
          %v5105 = vld [vmem:[#allocation2 + $0xd8] sm:$0xff]
          %v5106 = vld [vmem:[#allocation2 + $0xe0] sm:$0xff]
          %v5107 = vld [vmem:[#allocation2 + $0xe8] sm:$0xff]
          %v5108 = vld [vmem:[#allocation2 + $0xf0] sm:$0xff]
          %v5109 = vld [vmem:[#allocation2 + $0xf8] sm:$0xff]
          %v5110 = vld [vmem:[#allocation2 + $0x100] sm:$0xff]
          %v5111 = vld [vmem:[#allocation2 + $0x108] sm:$0xff]
          %v5112 = vld [vmem:[#allocation2 + $0x110] sm:$0xff]
          %v5113 = vld [vmem:[#allocation2 + $0x118] sm:$0xff]
          %v5114 = vld [vmem:[#allocation2 + $0x120] sm:$0xff]
          %v5115 = vld [vmem:[#allocation2 + $0x128] sm:$0xff]
          %v5116 = vld [vmem:[#allocation2 + $0x130] sm:$0xff]
          %v5117 = vld [vmem:[#allocation2 + $0x138] sm:$0xff]
          %v5118 = vld [vmem:[#allocation2 + $0x140] sm:$0xff]
          %v5119 = vld [vmem:[#allocation2 + $0x148] sm:$0xff]
          %v5120 = vld [vmem:[#allocation2 + $0x150] sm:$0xff]
          %v5121 = vld [vmem:[#allocation2 + $0x158] sm:$0xff]
          %v5122 = vld [vmem:[#allocation2 + $0x160] sm:$0xff]
          %v5123 = vld [vmem:[#allocation2 + $0x168] sm:$0xff]
          %v5124 = vld [vmem:[#allocation2 + $0x170] sm:$0xff]
          %v5125 = vld [vmem:[#allocation2 + $0x178] sm:$0xff]
          %v5126 = vld [vmem:[#allocation2 + $0x180] sm:$0xff]
          %v5127 = vld [vmem:[#allocation2 + $0x188] sm:$0xff]
          %v5128 = vld [vmem:[#allocation2 + $0x190] sm:$0xff]
          %v5129 = vld [vmem:[#allocation2 + $0x198] sm:$0xff]
          %v5130 = vld [vmem:[#allocation2 + $0x1a0] sm:$0xff]
          %v5131 = vld [vmem:[#allocation2 + $0x1a8] sm:$0xff]
          %v5132 = vld [vmem:[#allocation2 + $0x1b0] sm:$0xff]
          %v5133 = vld [vmem:[#allocation2 + $0x1b8] sm:$0xff]
          %v5134 = vld [vmem:[#allocation2 + $0x1c0] sm:$0xff]
          %v5135 = vld [vmem:[#allocation2 + $0x1c8] sm:$0xff]
          %v5136 = vld [vmem:[#allocation2 + $0x1d0] sm:$0xff]
          %v5137 = vld [vmem:[#allocation2 + $0x1d8] sm:$0xff]
          %v5138 = vld [vmem:[#allocation2 + $0x1e0] sm:$0xff]
          %v5139 = vld [vmem:[#allocation2 + $0x1e8] sm:$0xff]
          %v5140 = vld [vmem:[#allocation2 + $0x1f0] sm:$0xff]
          %v5141 = vld [vmem:[#allocation2 + $0x1f8] sm:$0xff]
          %v5142 = vld [vmem:[#allocation2 + $0x200] sm:$0xff]
          %v5143 = vld [vmem:[#allocation2 + $0x208] sm:$0xff]
          %v5144 = vld [vmem:[#allocation2 + $0x210] sm:$0xff]
          %v5145 = vld [vmem:[#allocation2 + $0x218] sm:$0xff]
          %v5146 = vld [vmem:[#allocation2 + $0x220] sm:$0xff]
          %v5147 = vld [vmem:[#allocation2 + $0x228] sm:$0xff]
          %v5148 = vld [vmem:[#allocation2 + $0x230] sm:$0xff]
          %v5149 = vld [vmem:[#allocation2 + $0x238] sm:$0xff]
          %v5150 = vld [vmem:[#allocation2 + $0x240] sm:$0xff]
          %v5151 = vld [vmem:[#allocation2 + $0x248] sm:$0xff]
          %v5152 = vld [vmem:[#allocation2 + $0x250] sm:$0xff]
          %v5153 = vld [vmem:[#allocation2 + $0x258] sm:$0xff]
          %v5154 = vld [vmem:[#allocation2 + $0x260] sm:$0xff]
          %v5155 = vld [vmem:[#allocation2 + $0x268] sm:$0xff]
          %v5156 = vld [vmem:[#allocation2 + $0x270] sm:$0xff]
          %v5157 = vld [vmem:[#allocation2 + $0x278] sm:$0xff]
          %v5158 = vld [vmem:[#allocation2 + $0x280] sm:$0xff]
          %v5159 = vld [vmem:[#allocation2 + $0x288] sm:$0xff]
          %v5160 = vld [vmem:[#allocation2 + $0x290] sm:$0xff]
          %v5161 = vld [vmem:[#allocation2 + $0x298] sm:$0xff]
          %v5162 = vld [vmem:[#allocation2 + $0x2a0] sm:$0xff]
          %v5163 = vld [vmem:[#allocation2 + $0x2a8] sm:$0xff]
          %v5164 = vld [vmem:[#allocation2 + $0x2b0] sm:$0xff]
          %v5165 = vld [vmem:[#allocation2 + $0x2b8] sm:$0xff]
          %v5166 = vld [vmem:[#allocation2 + $0x2c0] sm:$0xff]
          %v5167 = vld [vmem:[#allocation2 + $0x2c8] sm:$0xff]
          %v5168 = vld [vmem:[#allocation2 + $0x2d0] sm:$0xff]
          %v5169 = vld [vmem:[#allocation2 + $0x2d8] sm:$0xff]
          %v5170 = vld [vmem:[#allocation2 + $0x2e0] sm:$0xff]
          %v5171 = vld [vmem:[#allocation2 + $0x2e8] sm:$0xff]
          %v5172 = vld [vmem:[#allocation2 + $0x2f0] sm:$0xff]
          %v5173 = vld [vmem:[#allocation2 + $0x2f8] sm:$0xff]
          %v5174 = vld [vmem:[#allocation2 + $0x300] sm:$0xff]
          %v5175 = vld [vmem:[#allocation2 + $0x308] sm:$0xff]
          %v5176 = vld [vmem:[#allocation2 + $0x310] sm:$0xff]
          %v5177 = vld [vmem:[#allocation2 + $0x318] sm:$0xff]
          %v5178 = vld [vmem:[#allocation2 + $0x320] sm:$0xff]
          %v5179 = vld [vmem:[#allocation2 + $0x328] sm:$0xff]
          %v5180 = vld [vmem:[#allocation2 + $0x330] sm:$0xff]
          %v5181 = vld [vmem:[#allocation2 + $0x338] sm:$0xff]
          %v5182 = vld [vmem:[#allocation2 + $0x340] sm:$0xff]
          %v5183 = vld [vmem:[#allocation2 + $0x348] sm:$0xff]
          %v5184 = vld [vmem:[#allocation2 + $0x350] sm:$0xff]
          %v5185 = vld [vmem:[#allocation2 + $0x358] sm:$0xff]
          %v5186 = vld [vmem:[#allocation2 + $0x360] sm:$0xff]
          %v5187 = vld [vmem:[#allocation2 + $0x368] sm:$0xff]
          %v5188 = vld [vmem:[#allocation2 + $0x370] sm:$0xff]
          %v5189 = vld [vmem:[#allocation2 + $0x378] sm:$0xff]
          %v5190 = vld [vmem:[#allocation2 + $0x380] sm:$0xff]
          %v5191 = vld [vmem:[#allocation2 + $0x388] sm:$0xff]
          %v5192 = vld [vmem:[#allocation2 + $0x390] sm:$0xff]
          %v5193 = vld [vmem:[#allocation2 + $0x398] sm:$0xff]
          %v5194 = vld [vmem:[#allocation2 + $0x3a0] sm:$0xff]
          %v5195 = vld [vmem:[#allocation2 + $0x3a8] sm:$0xff]
          %v5196 = vld [vmem:[#allocation2 + $0x3b0] sm:$0xff]
          %v5197 = vld [vmem:[#allocation2 + $0x3b8] sm:$0xff]
          %v5198 = vld [vmem:[#allocation2 + $0x3c0] sm:$0xff]
          %v5199 = vld [vmem:[#allocation2 + $0x3c8] sm:$0xff]
          %v5200 = vld [vmem:[#allocation2 + $0x3d0] sm:$0xff]
          %v5201 = vld [vmem:[#allocation2 + $0x3d8] sm:$0xff]
          %v5202 = vld [vmem:[#allocation2 + $0x3e0] sm:$0xff]
          %v5203 = vld [vmem:[#allocation2 + $0x3e8] sm:$0xff]
          %v5204 = vld [vmem:[#allocation2 + $0x3f0] sm:$0xff]
          %v5205 = vld [vmem:[#allocation2 + $0x3f8] sm:$0xff]
          %v5206 = vld [vmem:[#allocation2 + $0x400] sm:$0xff]
          %v5207 = vld [vmem:[#allocation2 + $0x408] sm:$0xff]
          %v5208 = vld [vmem:[#allocation2 + $0x410] sm:$0xff]
          %v5209 = vld [vmem:[#allocation2 + $0x418] sm:$0xff]
          %v5210 = vld [vmem:[#allocation2 + $0x420] sm:$0xff]
          %v5211 = vld [vmem:[#allocation2 + $0x428] sm:$0xff]
          %v5212 = vld [vmem:[#allocation2 + $0x430] sm:$0xff]
          %v5213 = vld [vmem:[#allocation2 + $0x438] sm:$0xff]
          %v5214 = vld [vmem:[#allocation2 + $0x440] sm:$0xff]
          %v5215 = vld [vmem:[#allocation2 + $0x448] sm:$0xff]
          %v5216 = vld [vmem:[#allocation2 + $0x450] sm:$0xff]
          %v5217 = vld [vmem:[#allocation2 + $0x458] sm:$0xff]
          %v5218 = vld [vmem:[#allocation2 + $0x460] sm:$0xff]
          %v5219 = vld [vmem:[#allocation2 + $0x468] sm:$0xff]
          %v5220 = vld [vmem:[#allocation2 + $0x470] sm:$0xff]
          %v5221 = vld [vmem:[#allocation2 + $0x478] sm:$0xff]
          %v5222 = vld [vmem:[#allocation2 + $0x480] sm:$0xff]
          %v5223 = vld [vmem:[#allocation2 + $0x488] sm:$0xff]
          %v5224 = vld [vmem:[#allocation2 + $0x490] sm:$0xff]
          %v5225 = vld [vmem:[#allocation2 + $0x498] sm:$0xff]
          %v5226 = vld [vmem:[#allocation2 + $0x4a0] sm:$0xff]
          %v5227 = vld [vmem:[#allocation2 + $0x4a8] sm:$0xff]
          %v5228 = vld [vmem:[#allocation2 + $0x4b0] sm:$0xff]
          %v5229 = vld [vmem:[#allocation2 + $0x4b8] sm:$0xff]
          %v5230 = vld [vmem:[#allocation2 + $0x4c0] sm:$0xff]
          %v5231 = vld [vmem:[#allocation2 + $0x4c8] sm:$0xff]
          %v5232 = vld [vmem:[#allocation2 + $0x4d0] sm:$0xff]
          %v5233 = vld [vmem:[#allocation2 + $0x4d8] sm:$0xff]
          %v5234 = vld [vmem:[#allocation2 + $0x4e0] sm:$0xff]
          %v5235 = vld [vmem:[#allocation2 + $0x4e8] sm:$0xff]
          %v5236 = vld [vmem:[#allocation2 + $0x4f0] sm:$0xff]
          %v5237 = vld [vmem:[#allocation2 + $0x4f8] sm:$0xff]
          %v5238 = vld [vmem:[#allocation2 + $0x500] sm:$0xff]
          %v5239 = vld [vmem:[#allocation2 + $0x508] sm:$0xff]
          %v5240 = vld [vmem:[#allocation2 + $0x510] sm:$0xff]
          %v5241 = vld [vmem:[#allocation2 + $0x518] sm:$0xff]
          %v5242 = vld [vmem:[#allocation2 + $0x520] sm:$0xff]
          %v5243 = vld [vmem:[#allocation2 + $0x528] sm:$0xff]
          %v5244 = vld [vmem:[#allocation2 + $0x530] sm:$0xff]
          %v5245 = vld [vmem:[#allocation2 + $0x538] sm:$0xff]
          %v5246 = vld [vmem:[#allocation2 + $0x540] sm:$0xff]
          %v5247 = vld [vmem:[#allocation2 + $0x548] sm:$0xff]
          %v5248 = vld [vmem:[#allocation2 + $0x550] sm:$0xff]
          %v5249 = vld [vmem:[#allocation2 + $0x558] sm:$0xff]
          %v5250 = vld [vmem:[#allocation2 + $0x560] sm:$0xff]
          %v5251 = vld [vmem:[#allocation2 + $0x568] sm:$0xff]
          %v5252 = vld [vmem:[#allocation2 + $0x570] sm:$0xff]
          %v5253 = vld [vmem:[#allocation2 + $0x578] sm:$0xff]
          %v5254 = vld [vmem:[#allocation2 + $0x580] sm:$0xff]
          %v5255 = vld [vmem:[#allocation2 + $0x588] sm:$0xff]
          %v5256 = vld [vmem:[#allocation2 + $0x590] sm:$0xff]
          %v5257 = vld [vmem:[#allocation2 + $0x598] sm:$0xff]
          %v5258 = vld [vmem:[#allocation2 + $0x5a0] sm:$0xff]
          %v5259 = vld [vmem:[#allocation2 + $0x5a8] sm:$0xff]
          %v5260 = vld [vmem:[#allocation2 + $0x5b0] sm:$0xff]
          %v5261 = vld [vmem:[#allocation2 + $0x5b8] sm:$0xff]
          %v5262 = vld [vmem:[#allocation2 + $0x5c0] sm:$0xff]
          %v5263 = vld [vmem:[#allocation2 + $0x5c8] sm:$0xff]
          %v5264 = vld [vmem:[#allocation2 + $0x5d0] sm:$0xff]
          %v5265 = vld [vmem:[#allocation2 + $0x5d8] sm:$0xff]
          %v5266 = vld [vmem:[#allocation2 + $0x5e0] sm:$0xff]
          %v5267 = vld [vmem:[#allocation2 + $0x5e8] sm:$0xff]
          %v5268 = vld [vmem:[#allocation2 + $0x5f0] sm:$0xff]
          %v5269 = vld [vmem:[#allocation2 + $0x5f8] sm:$0xff]
          %v5270 = vld [vmem:[#allocation2 + $0x600] sm:$0xff]
          %v5271 = vld [vmem:[#allocation2 + $0x608] sm:$0xff]
          %v5272 = vld [vmem:[#allocation2 + $0x610] sm:$0xff]
          %v5273 = vld [vmem:[#allocation2 + $0x618] sm:$0xff]
          %v5274 = vld [vmem:[#allocation2 + $0x620] sm:$0xff]
          %v5275 = vld [vmem:[#allocation2 + $0x628] sm:$0xff]
          %v5276 = vld [vmem:[#allocation2 + $0x630] sm:$0xff]
          %v5277 = vld [vmem:[#allocation2 + $0x638] sm:$0xff]
          %v5278 = vld [vmem:[#allocation2 + $0x640] sm:$0xff]
          %v5279 = vld [vmem:[#allocation2 + $0x648] sm:$0xff]
          %v5280 = vld [vmem:[#allocation2 + $0x650] sm:$0xff]
          %v5281 = vld [vmem:[#allocation2 + $0x658] sm:$0xff]
          %v5282 = vld [vmem:[#allocation2 + $0x660] sm:$0xff]
          %v5283 = vld [vmem:[#allocation2 + $0x668] sm:$0xff]
          %v5284 = vld [vmem:[#allocation2 + $0x670] sm:$0xff]
          %v5285 = vld [vmem:[#allocation2 + $0x678] sm:$0xff]
          %v5286 = vld [vmem:[#allocation2 + $0x680] sm:$0xff]
          %v5287 = vld [vmem:[#allocation2 + $0x688] sm:$0xff]
          %v5288 = vld [vmem:[#allocation2 + $0x690] sm:$0xff]
          %v5289 = vld [vmem:[#allocation2 + $0x698] sm:$0xff]
          %v5290 = vld [vmem:[#allocation2 + $0x6a0] sm:$0xff]
          %v5291 = vld [vmem:[#allocation2 + $0x6a8] sm:$0xff]
          %v5292 = vld [vmem:[#allocation2 + $0x6b0] sm:$0xff]
          %v5293 = vld [vmem:[#allocation2 + $0x6b8] sm:$0xff]
          %v5294 = vld [vmem:[#allocation2 + $0x6c0] sm:$0xff]
          %v5295 = vld [vmem:[#allocation2 + $0x6c8] sm:$0xff]
          %v5296 = vld [vmem:[#allocation2 + $0x6d0] sm:$0xff]
          %v5297 = vld [vmem:[#allocation2 + $0x6d8] sm:$0xff]
          %v5298 = vld [vmem:[#allocation2 + $0x6e0] sm:$0xff]
          %v5299 = vld [vmem:[#allocation2 + $0x6e8] sm:$0xff]
          %v5300 = vld [vmem:[#allocation2 + $0x6f0] sm:$0xff]
          %v5301 = vld [vmem:[#allocation2 + $0x6f8] sm:$0xff]
          %v5302 = vld [vmem:[#allocation2 + $0x700] sm:$0xff]
          %v5303 = vld [vmem:[#allocation2 + $0x708] sm:$0xff]
          %v5304 = vld [vmem:[#allocation2 + $0x710] sm:$0xff]
          %v5305 = vld [vmem:[#allocation2 + $0x718] sm:$0xff]
          %v5306 = vld [vmem:[#allocation2 + $0x720] sm:$0xff]
          %v5307 = vld [vmem:[#allocation2 + $0x728] sm:$0xff]
          %v5308 = vld [vmem:[#allocation2 + $0x730] sm:$0xff]
          %v5309 = vld [vmem:[#allocation2 + $0x738] sm:$0xff]
          %v5310 = vld [vmem:[#allocation2 + $0x740] sm:$0xff]
          %v5311 = vld [vmem:[#allocation2 + $0x748] sm:$0xff]
          %v5312 = vld [vmem:[#allocation2 + $0x750] sm:$0xff]
          %v5313 = vld [vmem:[#allocation2 + $0x758] sm:$0xff]
          %v5314 = vld [vmem:[#allocation2 + $0x760] sm:$0xff]
          %v5315 = vld [vmem:[#allocation2 + $0x768] sm:$0xff]
          %v5316 = vld [vmem:[#allocation2 + $0x770] sm:$0xff]
          %v5317 = vld [vmem:[#allocation2 + $0x778] sm:$0xff]
          %v5318 = vld [vmem:[#allocation2 + $0x780] sm:$0xff]
          %v5319 = vld [vmem:[#allocation2 + $0x788] sm:$0xff]
          %v5320 = vld [vmem:[#allocation2 + $0x790] sm:$0xff]
          %v5321 = vld [vmem:[#allocation2 + $0x798] sm:$0xff]
          %v5322 = vld [vmem:[#allocation2 + $0x7a0] sm:$0xff]
          %v5323 = vld [vmem:[#allocation2 + $0x7a8] sm:$0xff]
          %v5324 = vld [vmem:[#allocation2 + $0x7b0] sm:$0xff]
          %v5325 = vld [vmem:[#allocation2 + $0x7b8] sm:$0xff]
          %v5326 = vld [vmem:[#allocation2 + $0x7c0] sm:$0xff]
          %v5327 = vld [vmem:[#allocation2 + $0x7c8] sm:$0xff]
          %v5328 = vld [vmem:[#allocation2 + $0x7d0] sm:$0xff]
          %v5329 = vld [vmem:[#allocation2 + $0x7d8] sm:$0xff]
          %v5330 = vld [vmem:[#allocation2 + $0x7e0] sm:$0xff]
          %v5331 = vld [vmem:[#allocation2 + $0x7e8] sm:$0xff]
          %v5332 = vld [vmem:[#allocation2 + $0x7f0] sm:$0xff]
          %v5333 = vld [vmem:[#allocation2 + $0x7f8] sm:$0xff]
          %v5334 = vld [vmem:[#allocation2 + $0x800] sm:$0xff]
          %v5335 = vld [vmem:[#allocation2 + $0x808] sm:$0xff]
          %v5336 = vld [vmem:[#allocation2 + $0x810] sm:$0xff]
          %v5337 = vld [vmem:[#allocation2 + $0x818] sm:$0xff]
          %v5338 = vld [vmem:[#allocation2 + $0x820] sm:$0xff]
          %v5339 = vld [vmem:[#allocation2 + $0x828] sm:$0xff]
          %v5340 = vld [vmem:[#allocation2 + $0x830] sm:$0xff]
          %v5341 = vld [vmem:[#allocation2 + $0x838] sm:$0xff]
          %v5342 = vld [vmem:[#allocation2 + $0x840] sm:$0xff]
          %v5343 = vld [vmem:[#allocation2 + $0x848] sm:$0xff]
          %v5344 = vld [vmem:[#allocation2 + $0x850] sm:$0xff]
          %v5345 = vld [vmem:[#allocation2 + $0x858] sm:$0xff]
          %v5346 = vld [vmem:[#allocation2 + $0x860] sm:$0xff]
          %v5347 = vld [vmem:[#allocation2 + $0x868] sm:$0xff]
          %v5348 = vld [vmem:[#allocation2 + $0x870] sm:$0xff]
          %v5349 = vld [vmem:[#allocation2 + $0x878] sm:$0xff]
          %v5350 = vld [vmem:[#allocation2 + $0x880] sm:$0xff]
          %v5351 = vld [vmem:[#allocation2 + $0x888] sm:$0xff]
          %v5352 = vld [vmem:[#allocation2 + $0x890] sm:$0xff]
          %v5353 = vld [vmem:[#allocation2 + $0x898] sm:$0xff]
          %v5354 = vld [vmem:[#allocation2 + $0x8a0] sm:$0xff]
          %v5355 = vld [vmem:[#allocation2 + $0x8a8] sm:$0xff]
          %v5356 = vld [vmem:[#allocation2 + $0x8b0] sm:$0xff]
          %v5357 = vld [vmem:[#allocation2 + $0x8b8] sm:$0xff]
          %v5358 = vld [vmem:[#allocation2 + $0x8c0] sm:$0xff]
          %v5359 = vld [vmem:[#allocation2 + $0x8c8] sm:$0xff]
          %v5360 = vld [vmem:[#allocation2 + $0x8d0] sm:$0xff]
          %v5361 = vld [vmem:[#allocation2 + $0x8d8] sm:$0xff]
          %v5362 = vld [vmem:[#allocation2 + $0x8e0] sm:$0xff]
          %v5363 = vld [vmem:[#allocation2 + $0x8e8] sm:$0xff]
          %v5364 = vld [vmem:[#allocation2 + $0x8f0] sm:$0xff]
          %v5365 = vld [vmem:[#allocation2 + $0x8f8] sm:$0xff]
          %v5366 = vld [vmem:[#allocation8] sm:$0x3f]
          %v5368 = vlaneseq
          %v5369 = vshrl.u32 %v5368, 7
          %v5370 = vsub.s32 0, %v5369
          %v5371 = vrot.slane %v5366, %v5370
          %v5372 = vlaneseq
          %v5373 = vshrl.u32 %v5372, 7
          %v5374 = vsub.s32 1, %v5373
          %v5375 = vrot.slane %v5366, %v5374
          %v5376 = vlaneseq
          %v5377 = vshrl.u32 %v5376, 7
          %v5378 = vsub.s32 2, %v5377
          %v5379 = vrot.slane %v5366, %v5378
          %v5380 = vlaneseq
          %v5381 = vshrl.u32 %v5380, 7
          %v5382 = vsub.s32 3, %v5381
          %v5383 = vrot.slane %v5366, %v5382
          %v5384 = vlaneseq
          %v5385 = vshrl.u32 %v5384, 7
          %v5386 = vsub.s32 4, %v5385
          %v5387 = vrot.slane %v5366, %v5386
          %v5388 = vlaneseq
          %v5389 = vshrl.u32 %v5388, 7
          %v5390 = vsub.s32 5, %v5389
          %v5391 = vrot.slane %v5366, %v5390
          %v5398 = vadd.f32 %v5078, %v5371
          %v5399 = vadd.f32 %v5079, %v5375
          %v5400 = vadd.f32 %v5080, %v5379
          %v5401 = vadd.f32 %v5081, %v5383
          %v5402 = vadd.f32 %v5082, %v5387
          %v5403 = vadd.f32 %v5083, %v5391
          %v5404 = vadd.f32 %v5084, %v5371
          %v5405 = vadd.f32 %v5085, %v5375
          %v5406 = vadd.f32 %v5086, %v5379
          %v5407 = vadd.f32 %v5087, %v5383
          %v5408 = vadd.f32 %v5088, %v5387
          %v5409 = vadd.f32 %v5089, %v5391
          %v5410 = vadd.f32 %v5090, %v5371
          %v5411 = vadd.f32 %v5091, %v5375
          %v5412 = vadd.f32 %v5092, %v5379
          %v5413 = vadd.f32 %v5093, %v5383
          %v5414 = vadd.f32 %v5094, %v5387
          %v5415 = vadd.f32 %v5095, %v5391
          %v5416 = vadd.f32 %v5096, %v5371
          %v5417 = vadd.f32 %v5097, %v5375
          %v5418 = vadd.f32 %v5098, %v5379
          %v5419 = vadd.f32 %v5099, %v5383
          %v5420 = vadd.f32 %v5100, %v5387
          %v5421 = vadd.f32 %v5101, %v5391
          %v5422 = vadd.f32 %v5102, %v5371
          %v5423 = vadd.f32 %v5103, %v5375
          %v5424 = vadd.f32 %v5104, %v5379
          %v5425 = vadd.f32 %v5105, %v5383
          %v5426 = vadd.f32 %v5106, %v5387
          %v5427 = vadd.f32 %v5107, %v5391
          %v5428 = vadd.f32 %v5108, %v5371
          %v5429 = vadd.f32 %v5109, %v5375
          %v5430 = vadd.f32 %v5110, %v5379
          %v5431 = vadd.f32 %v5111, %v5383
          %v5432 = vadd.f32 %v5112, %v5387
          %v5433 = vadd.f32 %v5113, %v5391
          %v5434 = vadd.f32 %v5114, %v5371
          %v5435 = vadd.f32 %v5115, %v5375
          %v5436 = vadd.f32 %v5116, %v5379
          %v5437 = vadd.f32 %v5117, %v5383
          %v5438 = vadd.f32 %v5118, %v5387
          %v5439 = vadd.f32 %v5119, %v5391
          %v5440 = vadd.f32 %v5120, %v5371
          %v5441 = vadd.f32 %v5121, %v5375
          %v5442 = vadd.f32 %v5122, %v5379
          %v5443 = vadd.f32 %v5123, %v5383
          %v5444 = vadd.f32 %v5124, %v5387
          %v5445 = vadd.f32 %v5125, %v5391
          %v5446 = vadd.f32 %v5126, %v5371
          %v5447 = vadd.f32 %v5127, %v5375
          %v5448 = vadd.f32 %v5128, %v5379
          %v5449 = vadd.f32 %v5129, %v5383
          %v5450 = vadd.f32 %v5130, %v5387
          %v5451 = vadd.f32 %v5131, %v5391
          %v5452 = vadd.f32 %v5132, %v5371
          %v5453 = vadd.f32 %v5133, %v5375
          %v5454 = vadd.f32 %v5134, %v5379
          %v5455 = vadd.f32 %v5135, %v5383
          %v5456 = vadd.f32 %v5136, %v5387
          %v5457 = vadd.f32 %v5137, %v5391
          %v5458 = vadd.f32 %v5138, %v5371
          %v5459 = vadd.f32 %v5139, %v5375
          %v5460 = vadd.f32 %v5140, %v5379
          %v5461 = vadd.f32 %v5141, %v5383
          %v5462 = vadd.f32 %v5142, %v5387
          %v5463 = vadd.f32 %v5143, %v5391
          %v5464 = vadd.f32 %v5144, %v5371
          %v5465 = vadd.f32 %v5145, %v5375
          %v5466 = vadd.f32 %v5146, %v5379
          %v5467 = vadd.f32 %v5147, %v5383
          %v5468 = vadd.f32 %v5148, %v5387
          %v5469 = vadd.f32 %v5149, %v5391
          %v5470 = vadd.f32 %v5150, %v5371
          %v5471 = vadd.f32 %v5151, %v5375
          %v5472 = vadd.f32 %v5152, %v5379
          %v5473 = vadd.f32 %v5153, %v5383
          %v5474 = vadd.f32 %v5154, %v5387
          %v5475 = vadd.f32 %v5155, %v5391
          %v5476 = vadd.f32 %v5156, %v5371
          %v5477 = vadd.f32 %v5157, %v5375
          %v5478 = vadd.f32 %v5158, %v5379
          %v5479 = vadd.f32 %v5159, %v5383
          %v5480 = vadd.f32 %v5160, %v5387
          %v5481 = vadd.f32 %v5161, %v5391
          %v5482 = vadd.f32 %v5162, %v5371
          %v5483 = vadd.f32 %v5163, %v5375
          %v5484 = vadd.f32 %v5164, %v5379
          %v5485 = vadd.f32 %v5165, %v5383
          %v5486 = vadd.f32 %v5166, %v5387
          %v5487 = vadd.f32 %v5167, %v5391
          %v5488 = vadd.f32 %v5168, %v5371
          %v5489 = vadd.f32 %v5169, %v5375
          %v5490 = vadd.f32 %v5170, %v5379
          %v5491 = vadd.f32 %v5171, %v5383
          %v5492 = vadd.f32 %v5172, %v5387
          %v5493 = vadd.f32 %v5173, %v5391
          %v5494 = vadd.f32 %v5174, %v5371
          %v5495 = vadd.f32 %v5175, %v5375
          %v5496 = vadd.f32 %v5176, %v5379
          %v5497 = vadd.f32 %v5177, %v5383
          %v5498 = vadd.f32 %v5178, %v5387
          %v5499 = vadd.f32 %v5179, %v5391
          %v5500 = vadd.f32 %v5180, %v5371
          %v5501 = vadd.f32 %v5181, %v5375
          %v5502 = vadd.f32 %v5182, %v5379
          %v5503 = vadd.f32 %v5183, %v5383
          %v5504 = vadd.f32 %v5184, %v5387
          %v5505 = vadd.f32 %v5185, %v5391
          %v5506 = vadd.f32 %v5186, %v5371
          %v5507 = vadd.f32 %v5187, %v5375
          %v5508 = vadd.f32 %v5188, %v5379
          %v5509 = vadd.f32 %v5189, %v5383
          %v5510 = vadd.f32 %v5190, %v5387
          %v5511 = vadd.f32 %v5191, %v5391
          %v5512 = vadd.f32 %v5192, %v5371
          %v5513 = vadd.f32 %v5193, %v5375
          %v5514 = vadd.f32 %v5194, %v5379
          %v5515 = vadd.f32 %v5195, %v5383
          %v5516 = vadd.f32 %v5196, %v5387
          %v5517 = vadd.f32 %v5197, %v5391
          %v5518 = vadd.f32 %v5198, %v5371
          %v5519 = vadd.f32 %v5199, %v5375
          %v5520 = vadd.f32 %v5200, %v5379
          %v5521 = vadd.f32 %v5201, %v5383
          %v5522 = vadd.f32 %v5202, %v5387
          %v5523 = vadd.f32 %v5203, %v5391
          %v5524 = vadd.f32 %v5204, %v5371
          %v5525 = vadd.f32 %v5205, %v5375
          %v5526 = vadd.f32 %v5206, %v5379
          %v5527 = vadd.f32 %v5207, %v5383
          %v5528 = vadd.f32 %v5208, %v5387
          %v5529 = vadd.f32 %v5209, %v5391
          %v5530 = vadd.f32 %v5210, %v5371
          %v5531 = vadd.f32 %v5211, %v5375
          %v5532 = vadd.f32 %v5212, %v5379
          %v5533 = vadd.f32 %v5213, %v5383
          %v5534 = vadd.f32 %v5214, %v5387
          %v5535 = vadd.f32 %v5215, %v5391
          %v5536 = vadd.f32 %v5216, %v5371
          %v5537 = vadd.f32 %v5217, %v5375
          %v5538 = vadd.f32 %v5218, %v5379
          %v5539 = vadd.f32 %v5219, %v5383
          %v5540 = vadd.f32 %v5220, %v5387
          %v5541 = vadd.f32 %v5221, %v5391
          %v5542 = vadd.f32 %v5222, %v5371
          %v5543 = vadd.f32 %v5223, %v5375
          %v5544 = vadd.f32 %v5224, %v5379
          %v5545 = vadd.f32 %v5225, %v5383
          %v5546 = vadd.f32 %v5226, %v5387
          %v5547 = vadd.f32 %v5227, %v5391
          %v5548 = vadd.f32 %v5228, %v5371
          %v5549 = vadd.f32 %v5229, %v5375
          %v5550 = vadd.f32 %v5230, %v5379
          %v5551 = vadd.f32 %v5231, %v5383
          %v5552 = vadd.f32 %v5232, %v5387
          %v5553 = vadd.f32 %v5233, %v5391
          %v5554 = vadd.f32 %v5234, %v5371
          %v5555 = vadd.f32 %v5235, %v5375
          %v5556 = vadd.f32 %v5236, %v5379
          %v5557 = vadd.f32 %v5237, %v5383
          %v5558 = vadd.f32 %v5238, %v5387
          %v5559 = vadd.f32 %v5239, %v5391
          %v5560 = vadd.f32 %v5240, %v5371
          %v5561 = vadd.f32 %v5241, %v5375
          %v5562 = vadd.f32 %v5242, %v5379
          %v5563 = vadd.f32 %v5243, %v5383
          %v5564 = vadd.f32 %v5244, %v5387
          %v5565 = vadd.f32 %v5245, %v5391
          %v5566 = vadd.f32 %v5246, %v5371
          %v5567 = vadd.f32 %v5247, %v5375
          %v5568 = vadd.f32 %v5248, %v5379
          %v5569 = vadd.f32 %v5249, %v5383
          %v5570 = vadd.f32 %v5250, %v5387
          %v5571 = vadd.f32 %v5251, %v5391
          %v5572 = vadd.f32 %v5252, %v5371
          %v5573 = vadd.f32 %v5253, %v5375
          %v5574 = vadd.f32 %v5254, %v5379
          %v5575 = vadd.f32 %v5255, %v5383
          %v5576 = vadd.f32 %v5256, %v5387
          %v5577 = vadd.f32 %v5257, %v5391
          %v5578 = vadd.f32 %v5258, %v5371
          %v5579 = vadd.f32 %v5259, %v5375
          %v5580 = vadd.f32 %v5260, %v5379
          %v5581 = vadd.f32 %v5261, %v5383
          %v5582 = vadd.f32 %v5262, %v5387
          %v5583 = vadd.f32 %v5263, %v5391
          %v5584 = vadd.f32 %v5264, %v5371
          %v5585 = vadd.f32 %v5265, %v5375
          %v5586 = vadd.f32 %v5266, %v5379
          %v5587 = vadd.f32 %v5267, %v5383
          %v5588 = vadd.f32 %v5268, %v5387
          %v5589 = vadd.f32 %v5269, %v5391
          %v5590 = vadd.f32 %v5270, %v5371
          %v5591 = vadd.f32 %v5271, %v5375
          %v5592 = vadd.f32 %v5272, %v5379
          %v5593 = vadd.f32 %v5273, %v5383
          %v5594 = vadd.f32 %v5274, %v5387
          %v5595 = vadd.f32 %v5275, %v5391
          %v5596 = vadd.f32 %v5276, %v5371
          %v5597 = vadd.f32 %v5277, %v5375
          %v5598 = vadd.f32 %v5278, %v5379
          %v5599 = vadd.f32 %v5279, %v5383
          %v5600 = vadd.f32 %v5280, %v5387
          %v5601 = vadd.f32 %v5281, %v5391
          %v5602 = vadd.f32 %v5282, %v5371
          %v5603 = vadd.f32 %v5283, %v5375
          %v5604 = vadd.f32 %v5284, %v5379
          %v5605 = vadd.f32 %v5285, %v5383
          %v5606 = vadd.f32 %v5286, %v5387
          %v5607 = vadd.f32 %v5287, %v5391
          %v5608 = vadd.f32 %v5288, %v5371
          %v5609 = vadd.f32 %v5289, %v5375
          %v5610 = vadd.f32 %v5290, %v5379
          %v5611 = vadd.f32 %v5291, %v5383
          %v5612 = vadd.f32 %v5292, %v5387
          %v5613 = vadd.f32 %v5293, %v5391
          %v5614 = vadd.f32 %v5294, %v5371
          %v5615 = vadd.f32 %v5295, %v5375
          %v5616 = vadd.f32 %v5296, %v5379
          %v5617 = vadd.f32 %v5297, %v5383
          %v5618 = vadd.f32 %v5298, %v5387
          %v5619 = vadd.f32 %v5299, %v5391
          %v5620 = vadd.f32 %v5300, %v5371
          %v5621 = vadd.f32 %v5301, %v5375
          %v5622 = vadd.f32 %v5302, %v5379
          %v5623 = vadd.f32 %v5303, %v5383
          %v5624 = vadd.f32 %v5304, %v5387
          %v5625 = vadd.f32 %v5305, %v5391
          %v5626 = vadd.f32 %v5306, %v5371
          %v5627 = vadd.f32 %v5307, %v5375
          %v5628 = vadd.f32 %v5308, %v5379
          %v5629 = vadd.f32 %v5309, %v5383
          %v5630 = vadd.f32 %v5310, %v5387
          %v5631 = vadd.f32 %v5311, %v5391
          %v5632 = vadd.f32 %v5312, %v5371
          %v5633 = vadd.f32 %v5313, %v5375
          %v5634 = vadd.f32 %v5314, %v5379
          %v5635 = vadd.f32 %v5315, %v5383
          %v5636 = vadd.f32 %v5316, %v5387
          %v5637 = vadd.f32 %v5317, %v5391
          %v5638 = vadd.f32 %v5318, %v5371
          %v5639 = vadd.f32 %v5319, %v5375
          %v5640 = vadd.f32 %v5320, %v5379
          %v5641 = vadd.f32 %v5321, %v5383
          %v5642 = vadd.f32 %v5322, %v5387
          %v5643 = vadd.f32 %v5323, %v5391
          %v5644 = vadd.f32 %v5324, %v5371
          %v5645 = vadd.f32 %v5325, %v5375
          %v5646 = vadd.f32 %v5326, %v5379
          %v5647 = vadd.f32 %v5327, %v5383
          %v5648 = vadd.f32 %v5328, %v5387
          %v5649 = vadd.f32 %v5329, %v5391
          %v5650 = vadd.f32 %v5330, %v5371
          %v5651 = vadd.f32 %v5331, %v5375
          %v5652 = vadd.f32 %v5332, %v5379
          %v5653 = vadd.f32 %v5333, %v5383
          %v5654 = vadd.f32 %v5334, %v5387
          %v5655 = vadd.f32 %v5335, %v5391
          %v5656 = vadd.f32 %v5336, %v5371
          %v5657 = vadd.f32 %v5337, %v5375
          %v5658 = vadd.f32 %v5338, %v5379
          %v5659 = vadd.f32 %v5339, %v5383
          %v5660 = vadd.f32 %v5340, %v5387
          %v5661 = vadd.f32 %v5341, %v5391
          %v5662 = vadd.f32 %v5342, %v5371
          %v5663 = vadd.f32 %v5343, %v5375
          %v5664 = vadd.f32 %v5344, %v5379
          %v5665 = vadd.f32 %v5345, %v5383
          %v5666 = vadd.f32 %v5346, %v5387
          %v5667 = vadd.f32 %v5347, %v5391
          %v5668 = vadd.f32 %v5348, %v5371
          %v5669 = vadd.f32 %v5349, %v5375
          %v5670 = vadd.f32 %v5350, %v5379
          %v5671 = vadd.f32 %v5351, %v5383
          %v5672 = vadd.f32 %v5352, %v5387
          %v5673 = vadd.f32 %v5353, %v5391
          %v5674 = vadd.f32 %v5354, %v5371
          %v5675 = vadd.f32 %v5355, %v5375
          %v5676 = vadd.f32 %v5356, %v5379
          %v5677 = vadd.f32 %v5357, %v5383
          %v5678 = vadd.f32 %v5358, %v5387
          %v5679 = vadd.f32 %v5359, %v5391
          %v5680 = vadd.f32 %v5360, %v5371
          %v5681 = vadd.f32 %v5361, %v5375
          %v5682 = vadd.f32 %v5362, %v5379
          %v5683 = vadd.f32 %v5363, %v5383
          %v5684 = vadd.f32 %v5364, %v5387
          %v5685 = vadd.f32 %v5365, %v5391
          %5686 = vst [vmem:[#allocation9] sm:$0xff] %v5398
          %5687 = vst [vmem:[#allocation9 + $0x8] sm:$0xff] %v5399
          %5688 = vst [vmem:[#allocation9 + $0x10] sm:$0xff] %v5400
          %5689 = vst [vmem:[#allocation9 + $0x18] sm:$0xff] %v5401
          %5690 = vst [vmem:[#allocation9 + $0x20] sm:$0xff] %v5402
          %5691 = vst [vmem:[#allocation9 + $0x28] sm:$0xff] %v5403
          %5692 = vst [vmem:[#allocation9 + $0x30] sm:$0xff] %v5404
          %5693 = vst [vmem:[#allocation9 + $0x38] sm:$0xff] %v5405
          %5694 = vst [vmem:[#allocation9 + $0x40] sm:$0xff] %v5406
          %5695 = vst [vmem:[#allocation9 + $0x48] sm:$0xff] %v5407
          %5696 = vst [vmem:[#allocation9 + $0x50] sm:$0xff] %v5408
          %5697 = vst [vmem:[#allocation9 + $0x58] sm:$0xff] %v5409
          %5698 = vst [vmem:[#allocation9 + $0x60] sm:$0xff] %v5410
          %5699 = vst [vmem:[#allocation9 + $0x68] sm:$0xff] %v5411
          %5700 = vst [vmem:[#allocation9 + $0x70] sm:$0xff] %v5412
          %5701 = vst [vmem:[#allocation9 + $0x78] sm:$0xff] %v5413
          %5702 = vst [vmem:[#allocation9 + $0x80] sm:$0xff] %v5414
          %5703 = vst [vmem:[#allocation9 + $0x88] sm:$0xff] %v5415
          %5704 = vst [vmem:[#allocation9 + $0x90] sm:$0xff] %v5416
          %5705 = vst [vmem:[#allocation9 + $0x98] sm:$0xff] %v5417
          %5706 = vst [vmem:[#allocation9 + $0xa0] sm:$0xff] %v5418
          %5707 = vst [vmem:[#allocation9 + $0xa8] sm:$0xff] %v5419
          %5708 = vst [vmem:[#allocation9 + $0xb0] sm:$0xff] %v5420
          %5709 = vst [vmem:[#allocation9 + $0xb8] sm:$0xff] %v5421
          %5710 = vst [vmem:[#allocation9 + $0xc0] sm:$0xff] %v5422
          %5711 = vst [vmem:[#allocation9 + $0xc8] sm:$0xff] %v5423
          %5712 = vst [vmem:[#allocation9 + $0xd0] sm:$0xff] %v5424
          %5713 = vst [vmem:[#allocation9 + $0xd8] sm:$0xff] %v5425
          %5714 = vst [vmem:[#allocation9 + $0xe0] sm:$0xff] %v5426
          %5715 = vst [vmem:[#allocation9 + $0xe8] sm:$0xff] %v5427
          %5716 = vst [vmem:[#allocation9 + $0xf0] sm:$0xff] %v5428
          %5717 = vst [vmem:[#allocation9 + $0xf8] sm:$0xff] %v5429
          %5718 = vst [vmem:[#allocation9 + $0x100] sm:$0xff] %v5430
          %5719 = vst [vmem:[#allocation9 + $0x108] sm:$0xff] %v5431
          %5720 = vst [vmem:[#allocation9 + $0x110] sm:$0xff] %v5432
          %5721 = vst [vmem:[#allocation9 + $0x118] sm:$0xff] %v5433
          %5722 = vst [vmem:[#allocation9 + $0x120] sm:$0xff] %v5434
          %5723 = vst [vmem:[#allocation9 + $0x128] sm:$0xff] %v5435
          %5724 = vst [vmem:[#allocation9 + $0x130] sm:$0xff] %v5436
          %5725 = vst [vmem:[#allocation9 + $0x138] sm:$0xff] %v5437
          %5726 = vst [vmem:[#allocation9 + $0x140] sm:$0xff] %v5438
          %5727 = vst [vmem:[#allocation9 + $0x148] sm:$0xff] %v5439
          %5728 = vst [vmem:[#allocation9 + $0x150] sm:$0xff] %v5440
          %5729 = vst [vmem:[#allocation9 + $0x158] sm:$0xff] %v5441
          %5730 = vst [vmem:[#allocation9 + $0x160] sm:$0xff] %v5442
          %5731 = vst [vmem:[#allocation9 + $0x168] sm:$0xff] %v5443
          %5732 = vst [vmem:[#allocation9 + $0x170] sm:$0xff] %v5444
          %5733 = vst [vmem:[#allocation9 + $0x178] sm:$0xff] %v5445
          %5734 = vst [vmem:[#allocation9 + $0x180] sm:$0xff] %v5446
          %5735 = vst [vmem:[#allocation9 + $0x188] sm:$0xff] %v5447
          %5736 = vst [vmem:[#allocation9 + $0x190] sm:$0xff] %v5448
          %5737 = vst [vmem:[#allocation9 + $0x198] sm:$0xff] %v5449
          %5738 = vst [vmem:[#allocation9 + $0x1a0] sm:$0xff] %v5450
          %5739 = vst [vmem:[#allocation9 + $0x1a8] sm:$0xff] %v5451
          %5740 = vst [vmem:[#allocation9 + $0x1b0] sm:$0xff] %v5452
          %5741 = vst [vmem:[#allocation9 + $0x1b8] sm:$0xff] %v5453
          %5742 = vst [vmem:[#allocation9 + $0x1c0] sm:$0xff] %v5454
          %5743 = vst [vmem:[#allocation9 + $0x1c8] sm:$0xff] %v5455
          %5744 = vst [vmem:[#allocation9 + $0x1d0] sm:$0xff] %v5456
          %5745 = vst [vmem:[#allocation9 + $0x1d8] sm:$0xff] %v5457
          %5746 = vst [vmem:[#allocation9 + $0x1e0] sm:$0xff] %v5458
          %5747 = vst [vmem:[#allocation9 + $0x1e8] sm:$0xff] %v5459
          %5748 = vst [vmem:[#allocation9 + $0x1f0] sm:$0xff] %v5460
          %5749 = vst [vmem:[#allocation9 + $0x1f8] sm:$0xff] %v5461
          %5750 = vst [vmem:[#allocation9 + $0x200] sm:$0xff] %v5462
          %5751 = vst [vmem:[#allocation9 + $0x208] sm:$0xff] %v5463
          %5752 = vst [vmem:[#allocation9 + $0x210] sm:$0xff] %v5464
          %5753 = vst [vmem:[#allocation9 + $0x218] sm:$0xff] %v5465
          %5754 = vst [vmem:[#allocation9 + $0x220] sm:$0xff] %v5466
          %5755 = vst [vmem:[#allocation9 + $0x228] sm:$0xff] %v5467
          %5756 = vst [vmem:[#allocation9 + $0x230] sm:$0xff] %v5468
          %5757 = vst [vmem:[#allocation9 + $0x238] sm:$0xff] %v5469
          %5758 = vst [vmem:[#allocation9 + $0x240] sm:$0xff] %v5470
          %5759 = vst [vmem:[#allocation9 + $0x248] sm:$0xff] %v5471
          %5760 = vst [vmem:[#allocation9 + $0x250] sm:$0xff] %v5472
          %5761 = vst [vmem:[#allocation9 + $0x258] sm:$0xff] %v5473
          %5762 = vst [vmem:[#allocation9 + $0x260] sm:$0xff] %v5474
          %5763 = vst [vmem:[#allocation9 + $0x268] sm:$0xff] %v5475
          %5764 = vst [vmem:[#allocation9 + $0x270] sm:$0xff] %v5476
          %5765 = vst [vmem:[#allocation9 + $0x278] sm:$0xff] %v5477
          %5766 = vst [vmem:[#allocation9 + $0x280] sm:$0xff] %v5478
          %5767 = vst [vmem:[#allocation9 + $0x288] sm:$0xff] %v5479
          %5768 = vst [vmem:[#allocation9 + $0x290] sm:$0xff] %v5480
          %5769 = vst [vmem:[#allocation9 + $0x298] sm:$0xff] %v5481
          %5770 = vst [vmem:[#allocation9 + $0x2a0] sm:$0xff] %v5482
          %5771 = vst [vmem:[#allocation9 + $0x2a8] sm:$0xff] %v5483
          %5772 = vst [vmem:[#allocation9 + $0x2b0] sm:$0xff] %v5484
          %5773 = vst [vmem:[#allocation9 + $0x2b8] sm:$0xff] %v5485
          %5774 = vst [vmem:[#allocation9 + $0x2c0] sm:$0xff] %v5486
          %5775 = vst [vmem:[#allocation9 + $0x2c8] sm:$0xff] %v5487
          %5776 = vst [vmem:[#allocation9 + $0x2d0] sm:$0xff] %v5488
          %5777 = vst [vmem:[#allocation9 + $0x2d8] sm:$0xff] %v5489
          %5778 = vst [vmem:[#allocation9 + $0x2e0] sm:$0xff] %v5490
          %5779 = vst [vmem:[#allocation9 + $0x2e8] sm:$0xff] %v5491
          %5780 = vst [vmem:[#allocation9 + $0x2f0] sm:$0xff] %v5492
          %5781 = vst [vmem:[#allocation9 + $0x2f8] sm:$0xff] %v5493
          %5782 = vst [vmem:[#allocation9 + $0x300] sm:$0xff] %v5494
          %5783 = vst [vmem:[#allocation9 + $0x308] sm:$0xff] %v5495
          %5784 = vst [vmem:[#allocation9 + $0x310] sm:$0xff] %v5496
          %5785 = vst [vmem:[#allocation9 + $0x318] sm:$0xff] %v5497
          %5786 = vst [vmem:[#allocation9 + $0x320] sm:$0xff] %v5498
          %5787 = vst [vmem:[#allocation9 + $0x328] sm:$0xff] %v5499
          %5788 = vst [vmem:[#allocation9 + $0x330] sm:$0xff] %v5500
          %5789 = vst [vmem:[#allocation9 + $0x338] sm:$0xff] %v5501
          %5790 = vst [vmem:[#allocation9 + $0x340] sm:$0xff] %v5502
          %5791 = vst [vmem:[#allocation9 + $0x348] sm:$0xff] %v5503
          %5792 = vst [vmem:[#allocation9 + $0x350] sm:$0xff] %v5504
          %5793 = vst [vmem:[#allocation9 + $0x358] sm:$0xff] %v5505
          %5794 = vst [vmem:[#allocation9 + $0x360] sm:$0xff] %v5506
          %5795 = vst [vmem:[#allocation9 + $0x368] sm:$0xff] %v5507
          %5796 = vst [vmem:[#allocation9 + $0x370] sm:$0xff] %v5508
          %5797 = vst [vmem:[#allocation9 + $0x378] sm:$0xff] %v5509
          %5798 = vst [vmem:[#allocation9 + $0x380] sm:$0xff] %v5510
          %5799 = vst [vmem:[#allocation9 + $0x388] sm:$0xff] %v5511
          %5800 = vst [vmem:[#allocation9 + $0x390] sm:$0xff] %v5512
          %5801 = vst [vmem:[#allocation9 + $0x398] sm:$0xff] %v5513
          %5802 = vst [vmem:[#allocation9 + $0x3a0] sm:$0xff] %v5514
          %5803 = vst [vmem:[#allocation9 + $0x3a8] sm:$0xff] %v5515
          %5804 = vst [vmem:[#allocation9 + $0x3b0] sm:$0xff] %v5516
          %5805 = vst [vmem:[#allocation9 + $0x3b8] sm:$0xff] %v5517
          %5806 = vst [vmem:[#allocation9 + $0x3c0] sm:$0xff] %v5518
          %5807 = vst [vmem:[#allocation9 + $0x3c8] sm:$0xff] %v5519
          %5808 = vst [vmem:[#allocation9 + $0x3d0] sm:$0xff] %v5520
          %5809 = vst [vmem:[#allocation9 + $0x3d8] sm:$0xff] %v5521
          %5810 = vst [vmem:[#allocation9 + $0x3e0] sm:$0xff] %v5522
          %5811 = vst [vmem:[#allocation9 + $0x3e8] sm:$0xff] %v5523
          %5812 = vst [vmem:[#allocation9 + $0x3f0] sm:$0xff] %v5524
          %5813 = vst [vmem:[#allocation9 + $0x3f8] sm:$0xff] %v5525
          %5814 = vst [vmem:[#allocation9 + $0x400] sm:$0xff] %v5526
          %5815 = vst [vmem:[#allocation9 + $0x408] sm:$0xff] %v5527
          %5816 = vst [vmem:[#allocation9 + $0x410] sm:$0xff] %v5528
          %5817 = vst [vmem:[#allocation9 + $0x418] sm:$0xff] %v5529
          %5818 = vst [vmem:[#allocation9 + $0x420] sm:$0xff] %v5530
          %5819 = vst [vmem:[#allocation9 + $0x428] sm:$0xff] %v5531
          %5820 = vst [vmem:[#allocation9 + $0x430] sm:$0xff] %v5532
          %5821 = vst [vmem:[#allocation9 + $0x438] sm:$0xff] %v5533
          %5822 = vst [vmem:[#allocation9 + $0x440] sm:$0xff] %v5534
          %5823 = vst [vmem:[#allocation9 + $0x448] sm:$0xff] %v5535
          %5824 = vst [vmem:[#allocation9 + $0x450] sm:$0xff] %v5536
          %5825 = vst [vmem:[#allocation9 + $0x458] sm:$0xff] %v5537
          %5826 = vst [vmem:[#allocation9 + $0x460] sm:$0xff] %v5538
          %5827 = vst [vmem:[#allocation9 + $0x468] sm:$0xff] %v5539
          %5828 = vst [vmem:[#allocation9 + $0x470] sm:$0xff] %v5540
          %5829 = vst [vmem:[#allocation9 + $0x478] sm:$0xff] %v5541
          %5830 = vst [vmem:[#allocation9 + $0x480] sm:$0xff] %v5542
          %5831 = vst [vmem:[#allocation9 + $0x488] sm:$0xff] %v5543
          %5832 = vst [vmem:[#allocation9 + $0x490] sm:$0xff] %v5544
          %5833 = vst [vmem:[#allocation9 + $0x498] sm:$0xff] %v5545
          %5834 = vst [vmem:[#allocation9 + $0x4a0] sm:$0xff] %v5546
          %5835 = vst [vmem:[#allocation9 + $0x4a8] sm:$0xff] %v5547
          %5836 = vst [vmem:[#allocation9 + $0x4b0] sm:$0xff] %v5548
          %5837 = vst [vmem:[#allocation9 + $0x4b8] sm:$0xff] %v5549
          %5838 = vst [vmem:[#allocation9 + $0x4c0] sm:$0xff] %v5550
          %5839 = vst [vmem:[#allocation9 + $0x4c8] sm:$0xff] %v5551
          %5840 = vst [vmem:[#allocation9 + $0x4d0] sm:$0xff] %v5552
          %5841 = vst [vmem:[#allocation9 + $0x4d8] sm:$0xff] %v5553
          %5842 = vst [vmem:[#allocation9 + $0x4e0] sm:$0xff] %v5554
          %5843 = vst [vmem:[#allocation9 + $0x4e8] sm:$0xff] %v5555
          %5844 = vst [vmem:[#allocation9 + $0x4f0] sm:$0xff] %v5556
          %5845 = vst [vmem:[#allocation9 + $0x4f8] sm:$0xff] %v5557
          %5846 = vst [vmem:[#allocation9 + $0x500] sm:$0xff] %v5558
          %5847 = vst [vmem:[#allocation9 + $0x508] sm:$0xff] %v5559
          %5848 = vst [vmem:[#allocation9 + $0x510] sm:$0xff] %v5560
          %5849 = vst [vmem:[#allocation9 + $0x518] sm:$0xff] %v5561
          %5850 = vst [vmem:[#allocation9 + $0x520] sm:$0xff] %v5562
          %5851 = vst [vmem:[#allocation9 + $0x528] sm:$0xff] %v5563
          %5852 = vst [vmem:[#allocation9 + $0x530] sm:$0xff] %v5564
          %5853 = vst [vmem:[#allocation9 + $0x538] sm:$0xff] %v5565
          %5854 = vst [vmem:[#allocation9 + $0x540] sm:$0xff] %v5566
          %5855 = vst [vmem:[#allocation9 + $0x548] sm:$0xff] %v5567
          %5856 = vst [vmem:[#allocation9 + $0x550] sm:$0xff] %v5568
          %5857 = vst [vmem:[#allocation9 + $0x558] sm:$0xff] %v5569
          %5858 = vst [vmem:[#allocation9 + $0x560] sm:$0xff] %v5570
          %5859 = vst [vmem:[#allocation9 + $0x568] sm:$0xff] %v5571
          %5860 = vst [vmem:[#allocation9 + $0x570] sm:$0xff] %v5572
          %5861 = vst [vmem:[#allocation9 + $0x578] sm:$0xff] %v5573
          %5862 = vst [vmem:[#allocation9 + $0x580] sm:$0xff] %v5574
          %5863 = vst [vmem:[#allocation9 + $0x588] sm:$0xff] %v5575
          %5864 = vst [vmem:[#allocation9 + $0x590] sm:$0xff] %v5576
          %5865 = vst [vmem:[#allocation9 + $0x598] sm:$0xff] %v5577
          %5866 = vst [vmem:[#allocation9 + $0x5a0] sm:$0xff] %v5578
          %5867 = vst [vmem:[#allocation9 + $0x5a8] sm:$0xff] %v5579
          %5868 = vst [vmem:[#allocation9 + $0x5b0] sm:$0xff] %v5580
          %5869 = vst [vmem:[#allocation9 + $0x5b8] sm:$0xff] %v5581
          %5870 = vst [vmem:[#allocation9 + $0x5c0] sm:$0xff] %v5582
          %5871 = vst [vmem:[#allocation9 + $0x5c8] sm:$0xff] %v5583
          %5872 = vst [vmem:[#allocation9 + $0x5d0] sm:$0xff] %v5584
          %5873 = vst [vmem:[#allocation9 + $0x5d8] sm:$0xff] %v5585
          %5874 = vst [vmem:[#allocation9 + $0x5e0] sm:$0xff] %v5586
          %5875 = vst [vmem:[#allocation9 + $0x5e8] sm:$0xff] %v5587
          %5876 = vst [vmem:[#allocation9 + $0x5f0] sm:$0xff] %v5588
          %5877 = vst [vmem:[#allocation9 + $0x5f8] sm:$0xff] %v5589
          %5878 = vst [vmem:[#allocation9 + $0x600] sm:$0xff] %v5590
          %5879 = vst [vmem:[#allocation9 + $0x608] sm:$0xff] %v5591
          %5880 = vst [vmem:[#allocation9 + $0x610] sm:$0xff] %v5592
          %5881 = vst [vmem:[#allocation9 + $0x618] sm:$0xff] %v5593
          %5882 = vst [vmem:[#allocation9 + $0x620] sm:$0xff] %v5594
          %5883 = vst [vmem:[#allocation9 + $0x628] sm:$0xff] %v5595
          %5884 = vst [vmem:[#allocation9 + $0x630] sm:$0xff] %v5596
          %5885 = vst [vmem:[#allocation9 + $0x638] sm:$0xff] %v5597
          %5886 = vst [vmem:[#allocation9 + $0x640] sm:$0xff] %v5598
          %5887 = vst [vmem:[#allocation9 + $0x648] sm:$0xff] %v5599
          %5888 = vst [vmem:[#allocation9 + $0x650] sm:$0xff] %v5600
          %5889 = vst [vmem:[#allocation9 + $0x658] sm:$0xff] %v5601
          %5890 = vst [vmem:[#allocation9 + $0x660] sm:$0xff] %v5602
          %5891 = vst [vmem:[#allocation9 + $0x668] sm:$0xff] %v5603
          %5892 = vst [vmem:[#allocation9 + $0x670] sm:$0xff] %v5604
          %5893 = vst [vmem:[#allocation9 + $0x678] sm:$0xff] %v5605
          %5894 = vst [vmem:[#allocation9 + $0x680] sm:$0xff] %v5606
          %5895 = vst [vmem:[#allocation9 + $0x688] sm:$0xff] %v5607
          %5896 = vst [vmem:[#allocation9 + $0x690] sm:$0xff] %v5608
          %5897 = vst [vmem:[#allocation9 + $0x698] sm:$0xff] %v5609
          %5898 = vst [vmem:[#allocation9 + $0x6a0] sm:$0xff] %v5610
          %5899 = vst [vmem:[#allocation9 + $0x6a8] sm:$0xff] %v5611
          %5900 = vst [vmem:[#allocation9 + $0x6b0] sm:$0xff] %v5612
          %5901 = vst [vmem:[#allocation9 + $0x6b8] sm:$0xff] %v5613
          %5902 = vst [vmem:[#allocation9 + $0x6c0] sm:$0xff] %v5614
          %5903 = vst [vmem:[#allocation9 + $0x6c8] sm:$0xff] %v5615
          %5904 = vst [vmem:[#allocation9 + $0x6d0] sm:$0xff] %v5616
          %5905 = vst [vmem:[#allocation9 + $0x6d8] sm:$0xff] %v5617
          %5906 = vst [vmem:[#allocation9 + $0x6e0] sm:$0xff] %v5618
          %5907 = vst [vmem:[#allocation9 + $0x6e8] sm:$0xff] %v5619
          %5908 = vst [vmem:[#allocation9 + $0x6f0] sm:$0xff] %v5620
          %5909 = vst [vmem:[#allocation9 + $0x6f8] sm:$0xff] %v5621
          %5910 = vst [vmem:[#allocation9 + $0x700] sm:$0xff] %v5622
          %5911 = vst [vmem:[#allocation9 + $0x708] sm:$0xff] %v5623
          %5912 = vst [vmem:[#allocation9 + $0x710] sm:$0xff] %v5624
          %5913 = vst [vmem:[#allocation9 + $0x718] sm:$0xff] %v5625
          %5914 = vst [vmem:[#allocation9 + $0x720] sm:$0xff] %v5626
          %5915 = vst [vmem:[#allocation9 + $0x728] sm:$0xff] %v5627
          %5916 = vst [vmem:[#allocation9 + $0x730] sm:$0xff] %v5628
          %5917 = vst [vmem:[#allocation9 + $0x738] sm:$0xff] %v5629
          %5918 = vst [vmem:[#allocation9 + $0x740] sm:$0xff] %v5630
          %5919 = vst [vmem:[#allocation9 + $0x748] sm:$0xff] %v5631
          %5920 = vst [vmem:[#allocation9 + $0x750] sm:$0xff] %v5632
          %5921 = vst [vmem:[#allocation9 + $0x758] sm:$0xff] %v5633
          %5922 = vst [vmem:[#allocation9 + $0x760] sm:$0xff] %v5634
          %5923 = vst [vmem:[#allocation9 + $0x768] sm:$0xff] %v5635
          %5924 = vst [vmem:[#allocation9 + $0x770] sm:$0xff] %v5636
          %5925 = vst [vmem:[#allocation9 + $0x778] sm:$0xff] %v5637
          %5926 = vst [vmem:[#allocation9 + $0x780] sm:$0xff] %v5638
          %5927 = vst [vmem:[#allocation9 + $0x788] sm:$0xff] %v5639
          %5928 = vst [vmem:[#allocation9 + $0x790] sm:$0xff] %v5640
          %5929 = vst [vmem:[#allocation9 + $0x798] sm:$0xff] %v5641
          %5930 = vst [vmem:[#allocation9 + $0x7a0] sm:$0xff] %v5642
          %5931 = vst [vmem:[#allocation9 + $0x7a8] sm:$0xff] %v5643
          %5932 = vst [vmem:[#allocation9 + $0x7b0] sm:$0xff] %v5644
          %5933 = vst [vmem:[#allocation9 + $0x7b8] sm:$0xff] %v5645
          %5934 = vst [vmem:[#allocation9 + $0x7c0] sm:$0xff] %v5646
          %5935 = vst [vmem:[#allocation9 + $0x7c8] sm:$0xff] %v5647
          %5936 = vst [vmem:[#allocation9 + $0x7d0] sm:$0xff] %v5648
          %5937 = vst [vmem:[#allocation9 + $0x7d8] sm:$0xff] %v5649
          %5938 = vst [vmem:[#allocation9 + $0x7e0] sm:$0xff] %v5650
          %5939 = vst [vmem:[#allocation9 + $0x7e8] sm:$0xff] %v5651
          %5940 = vst [vmem:[#allocation9 + $0x7f0] sm:$0xff] %v5652
          %5941 = vst [vmem:[#allocation9 + $0x7f8] sm:$0xff] %v5653
          %5942 = vst [vmem:[#allocation9 + $0x800] sm:$0xff] %v5654
          %5943 = vst [vmem:[#allocation9 + $0x808] sm:$0xff] %v5655
          %5944 = vst [vmem:[#allocation9 + $0x810] sm:$0xff] %v5656
          %5945 = vst [vmem:[#allocation9 + $0x818] sm:$0xff] %v5657
          %5946 = vst [vmem:[#allocation9 + $0x820] sm:$0xff] %v5658
          %5947 = vst [vmem:[#allocation9 + $0x828] sm:$0xff] %v5659
          %5948 = vst [vmem:[#allocation9 + $0x830] sm:$0xff] %v5660
          %5949 = vst [vmem:[#allocation9 + $0x838] sm:$0xff] %v5661
          %5950 = vst [vmem:[#allocation9 + $0x840] sm:$0xff] %v5662
          %5951 = vst [vmem:[#allocation9 + $0x848] sm:$0xff] %v5663
          %5952 = vst [vmem:[#allocation9 + $0x850] sm:$0xff] %v5664
          %5953 = vst [vmem:[#allocation9 + $0x858] sm:$0xff] %v5665
          %5954 = vst [vmem:[#allocation9 + $0x860] sm:$0xff] %v5666
          %5955 = vst [vmem:[#allocation9 + $0x868] sm:$0xff] %v5667
          %5956 = vst [vmem:[#allocation9 + $0x870] sm:$0xff] %v5668
          %5957 = vst [vmem:[#allocation9 + $0x878] sm:$0xff] %v5669
          %5958 = vst [vmem:[#allocation9 + $0x880] sm:$0xff] %v5670
          %5959 = vst [vmem:[#allocation9 + $0x888] sm:$0xff] %v5671
          %5960 = vst [vmem:[#allocation9 + $0x890] sm:$0xff] %v5672
          %5961 = vst [vmem:[#allocation9 + $0x898] sm:$0xff] %v5673
          %5962 = vst [vmem:[#allocation9 + $0x8a0] sm:$0xff] %v5674
          %5963 = vst [vmem:[#allocation9 + $0x8a8] sm:$0xff] %v5675
          %5964 = vst [vmem:[#allocation9 + $0x8b0] sm:$0xff] %v5676
          %5965 = vst [vmem:[#allocation9 + $0x8b8] sm:$0xff] %v5677
          %5966 = vst [vmem:[#allocation9 + $0x8c0] sm:$0xff] %v5678
          %5967 = vst [vmem:[#allocation9 + $0x8c8] sm:$0xff] %v5679
          %5968 = vst [vmem:[#allocation9 + $0x8d0] sm:$0xff] %v5680
          %5969 = vst [vmem:[#allocation9 + $0x8d8] sm:$0xff] %v5681
          %5970 = vst [vmem:[#allocation9 + $0x8e0] sm:$0xff] %v5682
          %5971 = vst [vmem:[#allocation9 + $0x8e8] sm:$0xff] %v5683
          %5972 = vst [vmem:[#allocation9 + $0x8f0] sm:$0xff] %v5684
          %5973 = vst [vmem:[#allocation9 + $0x8f8] sm:$0xff] %v5685
        $region52: #{tpu_custom_call.1} parent=31 // pred_fallthru
          _
        // Predicated region
        $region53: #{tpu_custom_call.1} parent=31 // pred_check
          %p5974 = pneg %p131
        $region54: #{tpu_custom_call.1} parent=31 // pred_check_branch
          %5976 = sbr.rel (%p5974) target = $region56
        $region55: #{tpu_custom_call.1} parent=31 // pred_region
          %s5977 = smul.u32 6, %s25
          %s5979 = ssub.s32 36864, 36864
          %5980 = vsyncadd [#allocation5], %s5979
          %s5981 = smul.addr %s5977, 128
          %s5982 = scalar_lea.hbm %s3, %s5981
          %s5983 = sshll.u32 [#allocation9], 4
          %s5984 = int_to_ptr.vmem [resolvable:$true] %s5983
          %5989 = dma.vmem_to_hbm [thread:$0]  %s5984, 36864, %s5982, [#allocation5], 768, 768, 48
        $region56: #{tpu_custom_call.1} parent=31 // pred_fallthru
          _
        // Predicated region
        $region57: #{tpu_custom_call.1} parent=31 // pred_check
          %p5990 = pneg %p131
        $region58: #{tpu_custom_call.1} parent=31 // pred_check_branch
          %5992 = sbr.rel (%p5990) target = $region60
        $region59: #{tpu_custom_call.1} parent=31 // pred_region
          %5993 = dma.done [#allocation5], 36864
        $region60: #{tpu_custom_call.1} parent=31 // pred_fallthru
          _
      $region32: #{tpu_custom_call.1} parent=5 // pred_fallthru
        _
      %p5994 = scmp.le.s32.totalorder 2, %s16
      // Predicated region
      $region61: #{tpu_custom_call.1} parent=5 // pred_check
        %p5995 = pneg %p5994
      $region62: #{tpu_custom_call.1} parent=5 // pred_check_branch
        %5997 = sbr.rel (%p5995) target = $region64
      $region63: #{tpu_custom_call.1} parent=5 // pred_region
        %s5998 = ssub.s32 %s16, 2
      $region64: #{tpu_custom_call.1} parent=5 // pred_fallthru
        _
    $region6: #{tpu_custom_call.1} parent=1 // loop_footer
      %s20 = sadd.s32 1, %s16
    $region7: #{tpu_custom_call.1} parent=1 // loop_footer_branch
      %15 = sbr.rel target = $region3
    $region8: #{tpu_custom_call.1} parent=1 // loop_exit
      _
    %5999 = vsyncpa [#allocation4], 1
    %s6000 = scalar_lea.sflag [#allocation4], 1
    %6001 = vsyncpa %s6000, 1
    %6002 = vsyncpa [#allocation7], 1
    %s6003 = scalar_lea.sflag [#allocation7], 1
    %6004 = vsyncpa %s6003, 1
    %6005 = vsyncpa [#allocation5], 1
    %s6006 = scalar_lea.sflag [#allocation5], 1
    %6007 = vsyncpa %s6006, 1

</llo_original>
